<compile_context>
chip_gen: v7x
topology: tpu7x:2x2x1
jax: 0.10.0
libtpu: 0.0.40
codegen_flags: <defaults>
</compile_context>

<pallas_src>
import functools

import jax
import jax.numpy as jnp
from jax import lax
from jax.experimental import pallas as pl
from jax.experimental.pallas import tpu as pltpu


# --------------------------------------------------------------------------
# Kernel: one (batch, d_v) pair -> all 2*md+1 d_u displacements at once.
# Feature layout: (C*H, W)  (matmul LHS),  BM / coords layout: (*, H*W) lanes.
# --------------------------------------------------------------------------
def _bcv_kernel(f1_ref, f2_ref, bm_ref, out_ref, *, C, H, W, K, md, time,
                align_corners):
    HW = H * W
    dv = (pl.program_id(1) - md).astype(jnp.float32)      # slow (y) displacement

    # ---- fused L2 normalization over channels (layout (C*H, W)) ----
    def l2norm(f):
        acc = f[0:H, :] * f[0:H, :]
        for c in range(1, C):
            blk = f[c * H:(c + 1) * H, :]
            acc = acc + blk * blk
        inv = lax.rsqrt(acc + 1e-6)                        # (H, W)
        return jnp.concatenate(
            [f[c * H:(c + 1) * H, :] * inv for c in range(C)], axis=0)

    f1n = l2norm(f1_ref[0])                                # (C*H, W)
    f2n = l2norm(f2_ref[0])                                # (C*H, W)

    bm = bm_ref[0]                                         # (2, HW)
    bm_u = bm[0:1, :]                                      # x displacement
    bm_v = bm[1:2, :]                                      # y displacement

    # target-pixel coordinates, lane-dense along flattened HW
    idx = lax.broadcasted_iota(jnp.int32, (1, HW), 1).astype(jnp.float32)
    yy = jnp.floor((idx + 0.5) * (1.0 / float(W)))
    xx = idx - yy * float(W)

    # source row / column ids for the separable one-hot gather weights
    w_iota = lax.broadcasted_iota(jnp.int32, (W, HW), 0)   # (W, HW)
    h_iota = lax.broadcasted_iota(jnp.int32, (H, HW), 0)   # (H, HW)

    inv_wm1 = 2.0 / max(W - 1, 1)
    inv_hm1 = 2.0 / max(H - 1, 1)

    def warp_factors(scale, du):
        """Separable bilinear gather weights + zeros-padding validity mask."""
        px = xx + scale * (bm_u + du)                      # (1, HW)
        py = yy + scale * (bm_v + dv)
        # normalize to [-1, 1] exactly like the module ...
        gx = inv_wm1 * px - 1.0
        gy = inv_hm1 * py - 1.0
        # ... then un-normalize the way grid_sample does
        if align_corners:
            ix = (gx + 1.0) * 0.5 * (W - 1)
            iy = (gy + 1.0) * 0.5 * (H - 1)
        else:
            ix = ((gx + 1.0) * W - 1.0) * 0.5
            iy = ((gy + 1.0) * H - 1.0) * 0.5

        # validity mask: bilinear sample of ones with zeros padding, @0.999
        x0 = jnp.floor(ix)
        y0 = jnp.floor(iy)
        tx = ix - x0
        ty = iy - y0

        def inb(xc, yc):
            return ((xc >= 0.0) & (xc <= W - 1.0) &
                    (yc >= 0.0) & (yc <= H - 1.0)).astype(jnp.float32)

        msum = ((1.0 - tx) * (1.0 - ty) * inb(x0, y0)
                + tx * (1.0 - ty) * inb(x0 + 1.0, y0)
                + (1.0 - tx) * ty * inb(x0, y0 + 1.0)
                + tx * ty * inb(x0 + 1.0, y0 + 1.0))
        mask = (msum >= 0.999).astype(jnp.float32)         # (1, HW)

        # border-clamped bilinear -> separable one-hot weights (int compares)
        ixc = jnp.clip(ix, 0.0, W - 1.0)
        iyc = jnp.clip(iy, 0.0, H - 1.0)
        x0f = jnp.floor(ixc)
        y0f = jnp.floor(iyc)
        fx = ixc - x0f
        fy = iyc - y0f
        x0i = x0f.astype(jnp.int32)
        y0i = y0f.astype(jnp.int32)
        x1i = jnp.minimum(x0i + 1, W - 1)
        y1i = jnp.minimum(y0i + 1, H - 1)

        bx = (jnp.where(w_iota == x0i, 1.0 - fx, 0.0)
              + jnp.where(w_iota == x1i, fx, 0.0))         # (W, HW)
        ay = (jnp.where(h_iota == y0i, 1.0 - fy, 0.0)
              + jnp.where(h_iota == y1i, fy, 0.0))         # (H, HW)
        return bx, ay, mask

    scale_bw = -2.0 * time                                 # backward warp of f1
    scale_fw = 2.0 * (1.0 - time)                          # forward  warp of f2

    corr_rows = []
    for j in range(K):                                     # d_u is the fast axis
        du = float(j - md)

        bx1, ay1, m1 = warp_factors(scale_bw, du)
        g1 = jnp.dot(f1n, bx1, preferred_element_type=jnp.float32)  # (C*H, HW)
        bw = [jnp.sum(g1[c * H:(c + 1) * H, :] * ay1, axis=0, keepdims=True)
              for c in range(C)]                           # C x (1, HW)

        bx2, ay2, m2 = warp_factors(scale_fw, du)
        g2 = jnp.dot(f2n, bx2, preferred_element_type=jnp.float32)  # (C*H, HW)

        corr = jnp.zeros((1, HW), jnp.float32)
        for c in range(C):
            fw_c = jnp.sum(g2[c * H:(c + 1) * H, :] * ay2, axis=0, keepdims=True)
            corr = corr + bw[c] * fw_c
        corr_rows.append(corr * (m1 * m2))

    # single lane-dense store of the whole (K, HW) displacement block
    out_ref[0, 0, :, :] = jnp.concatenate(corr_rows, axis=0)


# --------------------------------------------------------------------------
# Wrapper
# --------------------------------------------------------------------------
def bilateral_cost_volume(feature1, feature2, BM, md=4, time=0.5,
                          align_corners=False):
    """feature1/feature2: (N,C,H,W), BM: (N,2,H,W) -> (N,(2md+1)^2,H,W)."""
    # TODO(synk): only the 0 < time < 1 branch of forward() is implemented
    # (time == 0 / time == 1 use one un-warped feature directly).
    assert 0.0 < time < 1.0
    N, C, H, W = feature1.shape
    K = 2 * md + 1
    R = K * K
    HW = H * W

    f1 = feature1.astype(jnp.float32).reshape(N, C * H, W)
    f2 = feature2.astype(jnp.float32).reshape(N, C * H, W)
    bm = BM.astype(jnp.float32).reshape(N, 2, HW)

    kernel = functools.partial(_bcv_kernel, C=C, H=H, W=W, K=K, md=md,
                               time=float(time), align_corners=align_corners)

    out = pl.pallas_call(
        kernel,
        out_shape=jax.ShapeDtypeStruct((N, K, K, HW), jnp.float32),
        grid=(N, K),
        in_specs=[
            pl.BlockSpec((1, C * H, W), lambda n, r: (n, 0, 0)),
            pl.BlockSpec((1, C * H, W), lambda n, r: (n, 0, 0)),
            pl.BlockSpec((1, 2, HW), lambda n, r: (n, 0, 0)),
        ],
        out_specs=pl.BlockSpec((1, 1, K, HW), lambda n, r: (n, r, 0, 0)),
        compiler_params=pltpu.CompilerParams(
            dimension_semantics=("parallel", "parallel")),
    )(f1, f2, bm)

    # (N, K_v, K_u, HW) -> (N, R, H, W); r = v_idx*K + u_idx matches the module.
    return out.reshape(N, R, H, W)


# --------------------------------------------------------------------------
# Pure-JAX reference (direct gather grid_sample) for a sanity check.
# --------------------------------------------------------------------------
def _reference(feature1, feature2, BM, md=4, time=0.5, align_corners=False):
    N, C, H, W = feature1.shape
    K = 2 * md + 1
    R = K * K

    def l2n(x):
        return x / jnp.sqrt(jnp.sum(x * x, axis=1, keepdims=True) + 1e-6)

    f1 = l2n(feature1.astype(jnp.float32))
    f2 = l2n(feature2.astype(jnp.float32))
    lin = jnp.arange(-md, md + 1, dtype=jnp.float32)
    d_u = jnp.tile(lin[None, :], (K, 1)).reshape(R)
    d_v = jnp.tile(lin[:, None], (1, K)).reshape(R)
    xg = jnp.broadcast_to(jnp.arange(W, dtype=jnp.float32)[None, :], (H, W))
    yg = jnp.broadcast_to(jnp.arange(H, dtype=jnp.float32)[:, None], (H, W))

    def pix(px, py):
        gx = 2.0 * px / max(W - 1, 1) - 1.0
        gy = 2.0 * py / max(H - 1, 1) - 1.0
        if align_corners:
            return (gx + 1.0) * 0.5 * (W - 1), (gy + 1.0) * 0.5 * (H - 1)
        return ((gx + 1.0) * W - 1.0) * 0.5, ((gy + 1.0) * H - 1.0) * 0.5

    def sample_border(img, ix, iy):
        ixc = jnp.clip(ix, 0.0, W - 1.0)
        iyc = jnp.clip(iy, 0.0, H - 1.0)
        x0 = jnp.floor(ixc)
        y0 = jnp.floor(iyc)
        fx = ixc - x0
        fy = iyc - y0
        x0i = x0.astype(jnp.int32)
        y0i = y0.astype(jnp.int32)
        x1i = jnp.minimum(x0i + 1, W - 1)
        y1i = jnp.minimum(y0i + 1, H - 1)
        g = lambda yi, xi: img[:, yi, xi]
        return (g(y0i, x0i) * (1 - fx) * (1 - fy) + g(y0i, x1i) * fx * (1 - fy)
                + g(y1i, x0i) * (1 - fx) * fy + g(y1i, x1i) * fx * fy)

    def zeros_mask(ix, iy):
        x0 = jnp.floor(ix)
        y0 = jnp.floor(iy)
        tx = ix - x0
        ty = iy - y0
        inb = lambda xc, yc: ((xc >= 0) & (xc <= W - 1) &
                              (yc >= 0) & (yc <= H - 1)).astype(jnp.float32)
        m = ((1 - tx) * (1 - ty) * inb(x0, y0) + tx * (1 - ty) * inb(x0 + 1, y0)
             + (1 - tx) * ty * inb(x0, y0 + 1) + tx * ty * inb(x0 + 1, y0 + 1))
        return (m >= 0.999).astype(jnp.float32)

    outs = []
    for n in range(N):
        rows = []
        bmu = BM[n, 0].astype(jnp.float32)
        bmv = BM[n, 1].astype(jnp.float32)
        for r in range(R):
            du, dv = d_u[r], d_v[r]
            ix1, iy1 = pix(xg + (-2.0 * time) * (bmu + du),
                           yg + (-2.0 * time) * (bmv + dv))
            bw = sample_border(f1[n], ix1, iy1) * zeros_mask(ix1, iy1)[None]
            ix2, iy2 = pix(xg + (2.0 * (1.0 - time)) * (bmu + du),
                           yg + (2.0 * (1.0 - time)) * (bmv + dv))
            fw = sample_border(f2[n], ix2, iy2) * zeros_mask(ix2, iy2)[None]
            rows.append(jnp.sum(fw * bw, axis=0))
        outs.append(jnp.stack(rows))
    return jnp.stack(outs)


if __name__ == "__main__":
    key = jax.random.PRNGKey(0)
    k1, k2, k3 = jax.random.split(key, 3)
    N, C, H, W = 2, 8, 16, 16
    md = 2                                   # range = (2*md+1)^2 = 25

    feature1 = jax.random.normal(k1, (N, C, H, W), dtype=jnp.float32)
    feature2 = jax.random.normal(k2, (N, C, H, W), dtype=jnp.float32)
    BM = 2.0 * jax.random.normal(k3, (N, 2, H, W), dtype=jnp.float32)

    out = bilateral_cost_volume(feature1, feature2, BM, md=md, time=0.5)
    out = jax.block_until_ready(out)

    assert out.shape == (N, (2 * md + 1) ** 2, H, W)
    assert bool(jnp.all(jnp.isfinite(out)))

    ref = _reference(feature1, feature2, BM, md=md, time=0.5)
    # loose tolerance: in-kernel MXU matmuls may use bf16 passes by default
    max_err = float(jnp.max(jnp.abs(out - ref)))
    assert max_err < 5e-2, f"max abs err vs reference: {max_err}"
    print("KERNEL_OK")
</pallas_src>

<mosaic_0001>
module attributes {stable_mosaic.version = 11 : i64} {
  func.func @_bcv_kernel(%arg0: i32, %arg1: i32, %arg2: memref<1x128x16xf32, #tpu.memory_space<vmem>>, %arg3: memref<1x128x16xf32, #tpu.memory_space<vmem>>, %arg4: memref<1x2x256xf32, #tpu.memory_space<vmem>>, %arg5: memref<1x1x5x256xf32, #tpu.memory_space<vmem>>) attributes {dimension_semantics = [#tpu.dimension_semantics<parallel>, #tpu.dimension_semantics<parallel>], iteration_bounds = array<i64: 2, 5>, scalar_prefetch = 0 : i64, scratch_operands = 0 : i64, tpu.core_type = #tpu.core_type<tc>, window_params = [{transform_indices = @transform_0, window_bounds = array<i64: 1, 128, 16>}, {transform_indices = @transform_1, window_bounds = array<i64: 1, 128, 16>}, {transform_indices = @transform_2, window_bounds = array<i64: 1, 2, 256>}, {transform_indices = @transform_3, window_bounds = array<i64: 1, 1, 5, 256>}]} {
    %c2_i32 = arith.constant 2 : i32
    %0 = arith.subi %arg1, %c2_i32 : i32
    %1 = arith.sitofp %0 : i32 to f32
    %c0 = arith.constant 0 : index
    %c0_0 = arith.constant 0 : index
    %c0_1 = arith.constant 0 : index
    %2 = vector.load %arg2[%c0, %c0_0, %c0_1] : memref<1x128x16xf32, #tpu.memory_space<vmem>>, vector<1x128x16xf32>
    %3 = vector.shape_cast %2 : vector<1x128x16xf32> to vector<128x16xf32>
    %4 = vector.extract_strided_slice %3 {offsets = [0, 0], sizes = [16, 16], strides = [1, 1]} : vector<128x16xf32> to vector<16x16xf32>
    %5 = vector.extract_strided_slice %3 {offsets = [0, 0], sizes = [16, 16], strides = [1, 1]} : vector<128x16xf32> to vector<16x16xf32>
    %6 = arith.mulf %4, %5 : vector<16x16xf32>
    %7 = vector.extract_strided_slice %3 {offsets = [16, 0], sizes = [16, 16], strides = [1, 1]} : vector<128x16xf32> to vector<16x16xf32>
    %8 = arith.mulf %7, %7 : vector<16x16xf32>
    %9 = arith.addf %6, %8 : vector<16x16xf32>
    %10 = vector.extract_strided_slice %3 {offsets = [32, 0], sizes = [16, 16], strides = [1, 1]} : vector<128x16xf32> to vector<16x16xf32>
    %11 = arith.mulf %10, %10 : vector<16x16xf32>
    %12 = arith.addf %9, %11 : vector<16x16xf32>
    %13 = vector.extract_strided_slice %3 {offsets = [48, 0], sizes = [16, 16], strides = [1, 1]} : vector<128x16xf32> to vector<16x16xf32>
    %14 = arith.mulf %13, %13 : vector<16x16xf32>
    %15 = arith.addf %12, %14 : vector<16x16xf32>
    %16 = vector.extract_strided_slice %3 {offsets = [64, 0], sizes = [16, 16], strides = [1, 1]} : vector<128x16xf32> to vector<16x16xf32>
    %17 = arith.mulf %16, %16 : vector<16x16xf32>
    %18 = arith.addf %15, %17 : vector<16x16xf32>
    %19 = vector.extract_strided_slice %3 {offsets = [80, 0], sizes = [16, 16], strides = [1, 1]} : vector<128x16xf32> to vector<16x16xf32>
    %20 = arith.mulf %19, %19 : vector<16x16xf32>
    %21 = arith.addf %18, %20 : vector<16x16xf32>
    %22 = vector.extract_strided_slice %3 {offsets = [96, 0], sizes = [16, 16], strides = [1, 1]} : vector<128x16xf32> to vector<16x16xf32>
    %23 = arith.mulf %22, %22 : vector<16x16xf32>
    %24 = arith.addf %21, %23 : vector<16x16xf32>
    %25 = vector.extract_strided_slice %3 {offsets = [112, 0], sizes = [16, 16], strides = [1, 1]} : vector<128x16xf32> to vector<16x16xf32>
    %26 = arith.mulf %25, %25 : vector<16x16xf32>
    %27 = arith.addf %24, %26 : vector<16x16xf32>
    %cst = arith.constant 9.99999997E-7 : f32
    %28 = vector.broadcast %cst : f32 to vector<16x16xf32>
    %29 = arith.addf %27, %28 : vector<16x16xf32>
    %30 = math.rsqrt %29 : vector<16x16xf32>
    %31 = vector.extract_strided_slice %3 {offsets = [0, 0], sizes = [16, 16], strides = [1, 1]} : vector<128x16xf32> to vector<16x16xf32>
    %32 = arith.mulf %31, %30 : vector<16x16xf32>
    %33 = vector.extract_strided_slice %3 {offsets = [16, 0], sizes = [16, 16], strides = [1, 1]} : vector<128x16xf32> to vector<16x16xf32>
    %34 = arith.mulf %33, %30 : vector<16x16xf32>
    %35 = vector.extract_strided_slice %3 {offsets = [32, 0], sizes = [16, 16], strides = [1, 1]} : vector<128x16xf32> to vector<16x16xf32>
    %36 = arith.mulf %35, %30 : vector<16x16xf32>
    %37 = vector.extract_strided_slice %3 {offsets = [48, 0], sizes = [16, 16], strides = [1, 1]} : vector<128x16xf32> to vector<16x16xf32>
    %38 = arith.mulf %37, %30 : vector<16x16xf32>
    %39 = vector.extract_strided_slice %3 {offsets = [64, 0], sizes = [16, 16], strides = [1, 1]} : vector<128x16xf32> to vector<16x16xf32>
    %40 = arith.mulf %39, %30 : vector<16x16xf32>
    %41 = vector.extract_strided_slice %3 {offsets = [80, 0], sizes = [16, 16], strides = [1, 1]} : vector<128x16xf32> to vector<16x16xf32>
    %42 = arith.mulf %41, %30 : vector<16x16xf32>
    %43 = vector.extract_strided_slice %3 {offsets = [96, 0], sizes = [16, 16], strides = [1, 1]} : vector<128x16xf32> to vector<16x16xf32>
    %44 = arith.mulf %43, %30 : vector<16x16xf32>
    %45 = vector.extract_strided_slice %3 {offsets = [112, 0], sizes = [16, 16], strides = [1, 1]} : vector<128x16xf32> to vector<16x16xf32>
    %46 = arith.mulf %45, %30 : vector<16x16xf32>
    %47 = tpu.concatenate %32, %34, %36, %38, %40, %42, %44, %46 in 0 : vector<16x16xf32>, vector<16x16xf32>, vector<16x16xf32>, vector<16x16xf32>, vector<16x16xf32>, vector<16x16xf32>, vector<16x16xf32>, vector<16x16xf32> -> vector<128x16xf32>
    %c0_2 = arith.constant 0 : index
    %c0_3 = arith.constant 0 : index
    %c0_4 = arith.constant 0 : index
    %48 = vector.load %arg3[%c0_2, %c0_3, %c0_4] : memref<1x128x16xf32, #tpu.memory_space<vmem>>, vector<1x128x16xf32>
    %49 = vector.shape_cast %48 : vector<1x128x16xf32> to vector<128x16xf32>
    %50 = vector.extract_strided_slice %49 {offsets = [0, 0], sizes = [16, 16], strides = [1, 1]} : vector<128x16xf32> to vector<16x16xf32>
    %51 = vector.extract_strided_slice %49 {offsets = [0, 0], sizes = [16, 16], strides = [1, 1]} : vector<128x16xf32> to vector<16x16xf32>
    %52 = arith.mulf %50, %51 : vector<16x16xf32>
    %53 = vector.extract_strided_slice %49 {offsets = [16, 0], sizes = [16, 16], strides = [1, 1]} : vector<128x16xf32> to vector<16x16xf32>
    %54 = arith.mulf %53, %53 : vector<16x16xf32>
    %55 = arith.addf %52, %54 : vector<16x16xf32>
    %56 = vector.extract_strided_slice %49 {offsets = [32, 0], sizes = [16, 16], strides = [1, 1]} : vector<128x16xf32> to vector<16x16xf32>
    %57 = arith.mulf %56, %56 : vector<16x16xf32>
    %58 = arith.addf %55, %57 : vector<16x16xf32>
    %59 = vector.extract_strided_slice %49 {offsets = [48, 0], sizes = [16, 16], strides = [1, 1]} : vector<128x16xf32> to vector<16x16xf32>
    %60 = arith.mulf %59, %59 : vector<16x16xf32>
    %61 = arith.addf %58, %60 : vector<16x16xf32>
    %62 = vector.extract_strided_slice %49 {offsets = [64, 0], sizes = [16, 16], strides = [1, 1]} : vector<128x16xf32> to vector<16x16xf32>
    %63 = arith.mulf %62, %62 : vector<16x16xf32>
    %64 = arith.addf %61, %63 : vector<16x16xf32>
    %65 = vector.extract_strided_slice %49 {offsets = [80, 0], sizes = [16, 16], strides = [1, 1]} : vector<128x16xf32> to vector<16x16xf32>
    %66 = arith.mulf %65, %65 : vector<16x16xf32>
    %67 = arith.addf %64, %66 : vector<16x16xf32>
    %68 = vector.extract_strided_slice %49 {offsets = [96, 0], sizes = [16, 16], strides = [1, 1]} : vector<128x16xf32> to vector<16x16xf32>
    %69 = arith.mulf %68, %68 : vector<16x16xf32>
    %70 = arith.addf %67, %69 : vector<16x16xf32>
    %71 = vector.extract_strided_slice %49 {offsets = [112, 0], sizes = [16, 16], strides = [1, 1]} : vector<128x16xf32> to vector<16x16xf32>
    %72 = arith.mulf %71, %71 : vector<16x16xf32>
    %73 = arith.addf %70, %72 : vector<16x16xf32>
    %cst_5 = arith.constant 9.99999997E-7 : f32
    %74 = vector.broadcast %cst_5 : f32 to vector<16x16xf32>
    %75 = arith.addf %73, %74 : vector<16x16xf32>
    %76 = math.rsqrt %75 : vector<16x16xf32>
    %77 = vector.extract_strided_slice %49 {offsets = [0, 0], sizes = [16, 16], strides = [1, 1]} : vector<128x16xf32> to vector<16x16xf32>
    %78 = arith.mulf %77, %76 : vector<16x16xf32>
    %79 = vector.extract_strided_slice %49 {offsets = [16, 0], sizes = [16, 16], strides = [1, 1]} : vector<128x16xf32> to vector<16x16xf32>
    %80 = arith.mulf %79, %76 : vector<16x16xf32>
    %81 = vector.extract_strided_slice %49 {offsets = [32, 0], sizes = [16, 16], strides = [1, 1]} : vector<128x16xf32> to vector<16x16xf32>
    %82 = arith.mulf %81, %76 : vector<16x16xf32>
    %83 = vector.extract_strided_slice %49 {offsets = [48, 0], sizes = [16, 16], strides = [1, 1]} : vector<128x16xf32> to vector<16x16xf32>
    %84 = arith.mulf %83, %76 : vector<16x16xf32>
    %85 = vector.extract_strided_slice %49 {offsets = [64, 0], sizes = [16, 16], strides = [1, 1]} : vector<128x16xf32> to vector<16x16xf32>
    %86 = arith.mulf %85, %76 : vector<16x16xf32>
    %87 = vector.extract_strided_slice %49 {offsets = [80, 0], sizes = [16, 16], strides = [1, 1]} : vector<128x16xf32> to vector<16x16xf32>
    %88 = arith.mulf %87, %76 : vector<16x16xf32>
    %89 = vector.extract_strided_slice %49 {offsets = [96, 0], sizes = [16, 16], strides = [1, 1]} : vector<128x16xf32> to vector<16x16xf32>
    %90 = arith.mulf %89, %76 : vector<16x16xf32>
    %91 = vector.extract_strided_slice %49 {offsets = [112, 0], sizes = [16, 16], strides = [1, 1]} : vector<128x16xf32> to vector<16x16xf32>
    %92 = arith.mulf %91, %76 : vector<16x16xf32>
    %93 = tpu.concatenate %78, %80, %82, %84, %86, %88, %90, %92 in 0 : vector<16x16xf32>, vector<16x16xf32>, vector<16x16xf32>, vector<16x16xf32>, vector<16x16xf32>, vector<16x16xf32>, vector<16x16xf32>, vector<16x16xf32> -> vector<128x16xf32>
    %c0_6 = arith.constant 0 : index
    %c0_7 = arith.constant 0 : index
    %c0_8 = arith.constant 0 : index
    %94 = vector.load %arg4[%c0_6, %c0_7, %c0_8] : memref<1x2x256xf32, #tpu.memory_space<vmem>>, vector<1x2x256xf32>
    %95 = vector.shape_cast %94 : vector<1x2x256xf32> to vector<2x256xf32>
    %96 = vector.extract_strided_slice %95 {offsets = [0, 0], sizes = [1, 256], strides = [1, 1]} : vector<2x256xf32> to vector<1x256xf32>
    %97 = vector.extract_strided_slice %95 {offsets = [1, 0], sizes = [1, 256], strides = [1, 1]} : vector<2x256xf32> to vector<1x256xf32>
    %98 = tpu.iota {dimensions = array<i32: 1>} : vector<1x256xi32>
    %99 = arith.sitofp %98 : vector<1x256xi32> to vector<1x256xf32>
    %cst_9 = arith.constant 5.000000e-01 : f32
    %100 = vector.broadcast %cst_9 : f32 to vector<1x256xf32>
    %101 = arith.addf %99, %100 : vector<1x256xf32>
    %cst_10 = arith.constant 6.250000e-02 : f32
    %102 = vector.broadcast %cst_10 : f32 to vector<1x256xf32>
    %103 = arith.mulf %101, %102 : vector<1x256xf32>
    %104 = math.floor %103 : vector<1x256xf32>
    %cst_11 = arith.constant 1.600000e+01 : f32
    %105 = vector.broadcast %cst_11 : f32 to vector<1x256xf32>
    %106 = arith.mulf %104, %105 : vector<1x256xf32>
    %107 = arith.subf %99, %106 : vector<1x256xf32>
    %108 = tpu.iota {dimensions = array<i32: 0>} : vector<16x256xi32>
    %109 = tpu.iota {dimensions = array<i32: 0>} : vector<16x256xi32>
    %cst_12 = arith.constant -2.000000e+00 : f32
    %110 = vector.broadcast %cst_12 : f32 to vector<1x256xf32>
    %111 = arith.addf %96, %110 : vector<1x256xf32>
    %cst_13 = arith.constant -1.000000e+00 : f32
    %112 = vector.broadcast %cst_13 : f32 to vector<1x256xf32>
    %113 = arith.mulf %112, %111 : vector<1x256xf32>
    %114 = arith.addf %107, %113 : vector<1x256xf32>
    %115 = vector.broadcast %1 : f32 to vector<1x256xf32>
    %116 = arith.addf %97, %115 : vector<1x256xf32>
    %cst_14 = arith.constant -1.000000e+00 : f32
    %117 = vector.broadcast %cst_14 : f32 to vector<1x256xf32>
    %118 = arith.mulf %117, %116 : vector<1x256xf32>
    %119 = arith.addf %104, %118 : vector<1x256xf32>
    %cst_15 = arith.constant 0.13333334 : f32
    %120 = vector.broadcast %cst_15 : f32 to vector<1x256xf32>
    %121 = arith.mulf %120, %114 : vector<1x256xf32>
    %cst_16 = arith.constant 1.000000e+00 : f32
    %122 = vector.broadcast %cst_16 : f32 to vector<1x256xf32>
    %123 = arith.subf %121, %122 : vector<1x256xf32>
    %cst_17 = arith.constant 0.13333334 : f32
    %124 = vector.broadcast %cst_17 : f32 to vector<1x256xf32>
    %125 = arith.mulf %124, %119 : vector<1x256xf32>
    %cst_18 = arith.constant 1.000000e+00 : f32
    %126 = vector.broadcast %cst_18 : f32 to vector<1x256xf32>
    %127 = arith.subf %125, %126 : vector<1x256xf32>
    %cst_19 = arith.constant 1.000000e+00 : f32
    %128 = vector.broadcast %cst_19 : f32 to vector<1x256xf32>
    %129 = arith.addf %123, %128 : vector<1x256xf32>
    %cst_20 = arith.constant 1.600000e+01 : f32
    %130 = vector.broadcast %cst_20 : f32 to vector<1x256xf32>
    %131 = arith.mulf %129, %130 : vector<1x256xf32>
    %cst_21 = arith.constant 1.000000e+00 : f32
    %132 = vector.broadcast %cst_21 : f32 to vector<1x256xf32>
    %133 = arith.subf %131, %132 : vector<1x256xf32>
    %cst_22 = arith.constant 5.000000e-01 : f32
    %134 = vector.broadcast %cst_22 : f32 to vector<1x256xf32>
    %135 = arith.mulf %133, %134 : vector<1x256xf32>
    %cst_23 = arith.constant 1.000000e+00 : f32
    %136 = vector.broadcast %cst_23 : f32 to vector<1x256xf32>
    %137 = arith.addf %127, %136 : vector<1x256xf32>
    %cst_24 = arith.constant 1.600000e+01 : f32
    %138 = vector.broadcast %cst_24 : f32 to vector<1x256xf32>
    %139 = arith.mulf %137, %138 : vector<1x256xf32>
    %cst_25 = arith.constant 1.000000e+00 : f32
    %140 = vector.broadcast %cst_25 : f32 to vector<1x256xf32>
    %141 = arith.subf %139, %140 : vector<1x256xf32>
    %cst_26 = arith.constant 5.000000e-01 : f32
    %142 = vector.broadcast %cst_26 : f32 to vector<1x256xf32>
    %143 = arith.mulf %141, %142 : vector<1x256xf32>
    %144 = math.floor %135 : vector<1x256xf32>
    %145 = math.floor %143 : vector<1x256xf32>
    %146 = arith.subf %135, %144 : vector<1x256xf32>
    %147 = arith.subf %143, %145 : vector<1x256xf32>
    %cst_27 = arith.constant 1.000000e+00 : f32
    %148 = vector.broadcast %cst_27 : f32 to vector<1x256xf32>
    %149 = arith.subf %148, %146 : vector<1x256xf32>
    %cst_28 = arith.constant 1.000000e+00 : f32
    %150 = vector.broadcast %cst_28 : f32 to vector<1x256xf32>
    %151 = arith.subf %150, %147 : vector<1x256xf32>
    %152 = arith.mulf %149, %151 : vector<1x256xf32>
    %cst_29 = arith.constant 0.000000e+00 : f32
    %153 = vector.broadcast %cst_29 : f32 to vector<1x256xf32>
    %154 = arith.cmpf oge, %144, %153 : vector<1x256xf32>
    %cst_30 = arith.constant 1.500000e+01 : f32
    %155 = vector.broadcast %cst_30 : f32 to vector<1x256xf32>
    %156 = arith.cmpf ole, %144, %155 : vector<1x256xf32>
    %157 = arith.andi %154, %156 : vector<1x256xi1>
    %cst_31 = arith.constant 0.000000e+00 : f32
    %158 = vector.broadcast %cst_31 : f32 to vector<1x256xf32>
    %159 = arith.cmpf oge, %145, %158 : vector<1x256xf32>
    %160 = arith.andi %157, %159 : vector<1x256xi1>
    %cst_32 = arith.constant 1.500000e+01 : f32
    %161 = vector.broadcast %cst_32 : f32 to vector<1x256xf32>
    %162 = arith.cmpf ole, %145, %161 : vector<1x256xf32>
    %163 = arith.andi %160, %162 : vector<1x256xi1>
    %164 = arith.extui %163 : vector<1x256xi1> to vector<1x256xi32>
    %165 = arith.sitofp %164 : vector<1x256xi32> to vector<1x256xf32>
    %166 = arith.mulf %152, %165 : vector<1x256xf32>
    %cst_33 = arith.constant 1.000000e+00 : f32
    %167 = vector.broadcast %cst_33 : f32 to vector<1x256xf32>
    %168 = arith.subf %167, %147 : vector<1x256xf32>
    %169 = arith.mulf %146, %168 : vector<1x256xf32>
    %cst_34 = arith.constant 1.000000e+00 : f32
    %170 = vector.broadcast %cst_34 : f32 to vector<1x256xf32>
    %171 = arith.addf %144, %170 : vector<1x256xf32>
    %cst_35 = arith.constant 0.000000e+00 : f32
    %172 = vector.broadcast %cst_35 : f32 to vector<1x256xf32>
    %173 = arith.cmpf oge, %171, %172 : vector<1x256xf32>
    %cst_36 = arith.constant 1.500000e+01 : f32
    %174 = vector.broadcast %cst_36 : f32 to vector<1x256xf32>
    %175 = arith.cmpf ole, %171, %174 : vector<1x256xf32>
    %176 = arith.andi %173, %175 : vector<1x256xi1>
    %cst_37 = arith.constant 0.000000e+00 : f32
    %177 = vector.broadcast %cst_37 : f32 to vector<1x256xf32>
    %178 = arith.cmpf oge, %145, %177 : vector<1x256xf32>
    %179 = arith.andi %176, %178 : vector<1x256xi1>
    %cst_38 = arith.constant 1.500000e+01 : f32
    %180 = vector.broadcast %cst_38 : f32 to vector<1x256xf32>
    %181 = arith.cmpf ole, %145, %180 : vector<1x256xf32>
    %182 = arith.andi %179, %181 : vector<1x256xi1>
    %183 = arith.extui %182 : vector<1x256xi1> to vector<1x256xi32>
    %184 = arith.sitofp %183 : vector<1x256xi32> to vector<1x256xf32>
    %185 = arith.mulf %169, %184 : vector<1x256xf32>
    %186 = arith.addf %166, %185 : vector<1x256xf32>
    %cst_39 = arith.constant 1.000000e+00 : f32
    %187 = vector.broadcast %cst_39 : f32 to vector<1x256xf32>
    %188 = arith.subf %187, %146 : vector<1x256xf32>
    %189 = arith.mulf %188, %147 : vector<1x256xf32>
    %cst_40 = arith.constant 1.000000e+00 : f32
    %190 = vector.broadcast %cst_40 : f32 to vector<1x256xf32>
    %191 = arith.addf %145, %190 : vector<1x256xf32>
    %cst_41 = arith.constant 0.000000e+00 : f32
    %192 = vector.broadcast %cst_41 : f32 to vector<1x256xf32>
    %193 = arith.cmpf oge, %144, %192 : vector<1x256xf32>
    %cst_42 = arith.constant 1.500000e+01 : f32
    %194 = vector.broadcast %cst_42 : f32 to vector<1x256xf32>
    %195 = arith.cmpf ole, %144, %194 : vector<1x256xf32>
    %196 = arith.andi %193, %195 : vector<1x256xi1>
    %cst_43 = arith.constant 0.000000e+00 : f32
    %197 = vector.broadcast %cst_43 : f32 to vector<1x256xf32>
    %198 = arith.cmpf oge, %191, %197 : vector<1x256xf32>
    %199 = arith.andi %196, %198 : vector<1x256xi1>
    %cst_44 = arith.constant 1.500000e+01 : f32
    %200 = vector.broadcast %cst_44 : f32 to vector<1x256xf32>
    %201 = arith.cmpf ole, %191, %200 : vector<1x256xf32>
    %202 = arith.andi %199, %201 : vector<1x256xi1>
    %203 = arith.extui %202 : vector<1x256xi1> to vector<1x256xi32>
    %204 = arith.sitofp %203 : vector<1x256xi32> to vector<1x256xf32>
    %205 = arith.mulf %189, %204 : vector<1x256xf32>
    %206 = arith.addf %186, %205 : vector<1x256xf32>
    %207 = arith.mulf %146, %147 : vector<1x256xf32>
    %cst_45 = arith.constant 1.000000e+00 : f32
    %208 = vector.broadcast %cst_45 : f32 to vector<1x256xf32>
    %209 = arith.addf %144, %208 : vector<1x256xf32>
    %cst_46 = arith.constant 1.000000e+00 : f32
    %210 = vector.broadcast %cst_46 : f32 to vector<1x256xf32>
    %211 = arith.addf %145, %210 : vector<1x256xf32>
    %cst_47 = arith.constant 0.000000e+00 : f32
    %212 = vector.broadcast %cst_47 : f32 to vector<1x256xf32>
    %213 = arith.cmpf oge, %209, %212 : vector<1x256xf32>
    %cst_48 = arith.constant 1.500000e+01 : f32
    %214 = vector.broadcast %cst_48 : f32 to vector<1x256xf32>
    %215 = arith.cmpf ole, %209, %214 : vector<1x256xf32>
    %216 = arith.andi %213, %215 : vector<1x256xi1>
    %cst_49 = arith.constant 0.000000e+00 : f32
    %217 = vector.broadcast %cst_49 : f32 to vector<1x256xf32>
    %218 = arith.cmpf oge, %211, %217 : vector<1x256xf32>
    %219 = arith.andi %216, %218 : vector<1x256xi1>
    %cst_50 = arith.constant 1.500000e+01 : f32
    %220 = vector.broadcast %cst_50 : f32 to vector<1x256xf32>
    %221 = arith.cmpf ole, %211, %220 : vector<1x256xf32>
    %222 = arith.andi %219, %221 : vector<1x256xi1>
    %223 = arith.extui %222 : vector<1x256xi1> to vector<1x256xi32>
    %224 = arith.sitofp %223 : vector<1x256xi32> to vector<1x256xf32>
    %225 = arith.mulf %207, %224 : vector<1x256xf32>
    %226 = arith.addf %206, %225 : vector<1x256xf32>
    %cst_51 = arith.constant 9.990000e-01 : f32
    %227 = vector.broadcast %cst_51 : f32 to vector<1x256xf32>
    %228 = arith.cmpf oge, %226, %227 : vector<1x256xf32>
    %229 = arith.extui %228 : vector<1x256xi1> to vector<1x256xi32>
    %230 = arith.sitofp %229 : vector<1x256xi32> to vector<1x256xf32>
    %cst_52 = arith.constant 0.000000e+00 : f32
    %cst_53 = arith.constant 1.500000e+01 : f32
    %231 = vector.broadcast %cst_52 : f32 to vector<1x256xf32>
    %232 = arith.maximumf %231, %135 : vector<1x256xf32>
    %233 = vector.broadcast %cst_53 : f32 to vector<1x256xf32>
    %234 = arith.minimumf %233, %232 : vector<1x256xf32>
    %cst_54 = arith.constant 0.000000e+00 : f32
    %cst_55 = arith.constant 1.500000e+01 : f32
    %235 = vector.broadcast %cst_54 : f32 to vector<1x256xf32>
    %236 = arith.maximumf %235, %143 : vector<1x256xf32>
    %237 = vector.broadcast %cst_55 : f32 to vector<1x256xf32>
    %238 = arith.minimumf %237, %236 : vector<1x256xf32>
    %239 = math.floor %234 : vector<1x256xf32>
    %240 = math.floor %238 : vector<1x256xf32>
    %241 = arith.subf %234, %239 : vector<1x256xf32>
    %242 = arith.subf %238, %240 : vector<1x256xf32>
    %243 = arith.fptosi %239 : vector<1x256xf32> to vector<1x256xi32>
    %244 = arith.fptosi %240 : vector<1x256xf32> to vector<1x256xi32>
    %c1_i32 = arith.constant 1 : i32
    %245 = vector.broadcast %c1_i32 : i32 to vector<1x256xi32>
    %246 = arith.addi %243, %245 : vector<1x256xi32>
    %c15_i32 = arith.constant 15 : i32
    %247 = vector.broadcast %c15_i32 : i32 to vector<1x256xi32>
    %248 = arith.minsi %246, %247 : vector<1x256xi32>
    %c1_i32_56 = arith.constant 1 : i32
    %249 = vector.broadcast %c1_i32_56 : i32 to vector<1x256xi32>
    %250 = arith.addi %244, %249 : vector<1x256xi32>
    %c15_i32_57 = arith.constant 15 : i32
    %251 = vector.broadcast %c15_i32_57 : i32 to vector<1x256xi32>
    %252 = arith.minsi %250, %251 : vector<1x256xi32>
    %253 = vector.broadcast %243 : vector<1x256xi32> to vector<16x256xi32>
    %254 = arith.cmpi eq, %108, %253 : vector<16x256xi32>
    %cst_58 = arith.constant 1.000000e+00 : f32
    %255 = vector.broadcast %cst_58 : f32 to vector<1x256xf32>
    %256 = arith.subf %255, %241 : vector<1x256xf32>
    %cst_59 = arith.constant 0.000000e+00 : f32
    %257 = vector.shape_cast %256 : vector<1x256xf32> to vector<1x256xf32>
    %258 = vector.broadcast %257 : vector<1x256xf32> to vector<16x256xf32>
    %259 = vector.broadcast %cst_59 : f32 to vector<16x256xf32>
    %260 = arith.select %254, %258, %259 : vector<16x256xi1>, vector<16x256xf32>
    %261 = vector.broadcast %248 : vector<1x256xi32> to vector<16x256xi32>
    %262 = arith.cmpi eq, %108, %261 : vector<16x256xi32>
    %cst_60 = arith.constant 0.000000e+00 : f32
    %263 = vector.shape_cast %241 : vector<1x256xf32> to vector<1x256xf32>
    %264 = vector.broadcast %263 : vector<1x256xf32> to vector<16x256xf32>
    %265 = vector.broadcast %cst_60 : f32 to vector<16x256xf32>
    %266 = arith.select %262, %264, %265 : vector<16x256xi1>, vector<16x256xf32>
    %267 = arith.addf %260, %266 : vector<16x256xf32>
    %268 = vector.broadcast %244 : vector<1x256xi32> to vector<16x256xi32>
    %269 = arith.cmpi eq, %109, %268 : vector<16x256xi32>
    %cst_61 = arith.constant 1.000000e+00 : f32
    %270 = vector.broadcast %cst_61 : f32 to vector<1x256xf32>
    %271 = arith.subf %270, %242 : vector<1x256xf32>
    %cst_62 = arith.constant 0.000000e+00 : f32
    %272 = vector.shape_cast %271 : vector<1x256xf32> to vector<1x256xf32>
    %273 = vector.broadcast %272 : vector<1x256xf32> to vector<16x256xf32>
    %274 = vector.broadcast %cst_62 : f32 to vector<16x256xf32>
    %275 = arith.select %269, %273, %274 : vector<16x256xi1>, vector<16x256xf32>
    %276 = vector.broadcast %252 : vector<1x256xi32> to vector<16x256xi32>
    %277 = arith.cmpi eq, %109, %276 : vector<16x256xi32>
    %cst_63 = arith.constant 0.000000e+00 : f32
    %278 = vector.shape_cast %242 : vector<1x256xf32> to vector<1x256xf32>
    %279 = vector.broadcast %278 : vector<1x256xf32> to vector<16x256xf32>
    %280 = vector.broadcast %cst_63 : f32 to vector<16x256xf32>
    %281 = arith.select %277, %279, %280 : vector<16x256xi1>, vector<16x256xf32>
    %282 = arith.addf %275, %281 : vector<16x256xf32>
    %cst_64 = arith.constant dense<0.000000e+00> : vector<128x256xf32>
    %283 = tpu.matmul %47, %267, %cst_64 {dimension_numbers = #tpu.dot_dimension_numbers<[1], [0], [0], [1], [0, 0, 1, 1], [], []>} : vector<128x16xf32>, vector<16x256xf32>, vector<128x256xf32> -> vector<128x256xf32>
    %284 = vector.extract_strided_slice %283 {offsets = [0, 0], sizes = [16, 256], strides = [1, 1]} : vector<128x256xf32> to vector<16x256xf32>
    %285 = arith.mulf %284, %282 : vector<16x256xf32>
    %cst_65 = arith.constant dense<0.000000e+00> : vector<256xf32>
    %286 = vector.multi_reduction <add>, %285, %cst_65 [0] : vector<16x256xf32> to vector<256xf32>
    %287 = vector.shape_cast %286 : vector<256xf32> to vector<1x256xf32>
    %288 = vector.extract_strided_slice %283 {offsets = [16, 0], sizes = [16, 256], strides = [1, 1]} : vector<128x256xf32> to vector<16x256xf32>
    %289 = arith.mulf %288, %282 : vector<16x256xf32>
    %cst_66 = arith.constant dense<0.000000e+00> : vector<256xf32>
    %290 = vector.multi_reduction <add>, %289, %cst_66 [0] : vector<16x256xf32> to vector<256xf32>
    %291 = vector.shape_cast %290 : vector<256xf32> to vector<1x256xf32>
    %292 = vector.extract_strided_slice %283 {offsets = [32, 0], sizes = [16, 256], strides = [1, 1]} : vector<128x256xf32> to vector<16x256xf32>
    %293 = arith.mulf %292, %282 : vector<16x256xf32>
    %cst_67 = arith.constant dense<0.000000e+00> : vector<256xf32>
    %294 = vector.multi_reduction <add>, %293, %cst_67 [0] : vector<16x256xf32> to vector<256xf32>
    %295 = vector.shape_cast %294 : vector<256xf32> to vector<1x256xf32>
    %296 = vector.extract_strided_slice %283 {offsets = [48, 0], sizes = [16, 256], strides = [1, 1]} : vector<128x256xf32> to vector<16x256xf32>
    %297 = arith.mulf %296, %282 : vector<16x256xf32>
    %cst_68 = arith.constant dense<0.000000e+00> : vector<256xf32>
    %298 = vector.multi_reduction <add>, %297, %cst_68 [0] : vector<16x256xf32> to vector<256xf32>
    %299 = vector.shape_cast %298 : vector<256xf32> to vector<1x256xf32>
    %300 = vector.extract_strided_slice %283 {offsets = [64, 0], sizes = [16, 256], strides = [1, 1]} : vector<128x256xf32> to vector<16x256xf32>
    %301 = arith.mulf %300, %282 : vector<16x256xf32>
    %cst_69 = arith.constant dense<0.000000e+00> : vector<256xf32>
    %302 = vector.multi_reduction <add>, %301, %cst_69 [0] : vector<16x256xf32> to vector<256xf32>
    %303 = vector.shape_cast %302 : vector<256xf32> to vector<1x256xf32>
    %304 = vector.extract_strided_slice %283 {offsets = [80, 0], sizes = [16, 256], strides = [1, 1]} : vector<128x256xf32> to vector<16x256xf32>
    %305 = arith.mulf %304, %282 : vector<16x256xf32>
    %cst_70 = arith.constant dense<0.000000e+00> : vector<256xf32>
    %306 = vector.multi_reduction <add>, %305, %cst_70 [0] : vector<16x256xf32> to vector<256xf32>
    %307 = vector.shape_cast %306 : vector<256xf32> to vector<1x256xf32>
    %308 = vector.extract_strided_slice %283 {offsets = [96, 0], sizes = [16, 256], strides = [1, 1]} : vector<128x256xf32> to vector<16x256xf32>
    %309 = arith.mulf %308, %282 : vector<16x256xf32>
    %cst_71 = arith.constant dense<0.000000e+00> : vector<256xf32>
    %310 = vector.multi_reduction <add>, %309, %cst_71 [0] : vector<16x256xf32> to vector<256xf32>
    %311 = vector.shape_cast %310 : vector<256xf32> to vector<1x256xf32>
    %312 = vector.extract_strided_slice %283 {offsets = [112, 0], sizes = [16, 256], strides = [1, 1]} : vector<128x256xf32> to vector<16x256xf32>
    %313 = arith.mulf %312, %282 : vector<16x256xf32>
    %cst_72 = arith.constant dense<0.000000e+00> : vector<256xf32>
    %314 = vector.multi_reduction <add>, %313, %cst_72 [0] : vector<16x256xf32> to vector<256xf32>
    %315 = vector.shape_cast %314 : vector<256xf32> to vector<1x256xf32>
    %cst_73 = arith.constant -2.000000e+00 : f32
    %316 = vector.broadcast %cst_73 : f32 to vector<1x256xf32>
    %317 = arith.addf %96, %316 : vector<1x256xf32>
    %cst_74 = arith.constant 1.000000e+00 : f32
    %318 = vector.broadcast %cst_74 : f32 to vector<1x256xf32>
    %319 = arith.mulf %318, %317 : vector<1x256xf32>
    %320 = arith.addf %107, %319 : vector<1x256xf32>
    %321 = vector.broadcast %1 : f32 to vector<1x256xf32>
    %322 = arith.addf %97, %321 : vector<1x256xf32>
    %cst_75 = arith.constant 1.000000e+00 : f32
    %323 = vector.broadcast %cst_75 : f32 to vector<1x256xf32>
    %324 = arith.mulf %323, %322 : vector<1x256xf32>
    %325 = arith.addf %104, %324 : vector<1x256xf32>
    %cst_76 = arith.constant 0.13333334 : f32
    %326 = vector.broadcast %cst_76 : f32 to vector<1x256xf32>
    %327 = arith.mulf %326, %320 : vector<1x256xf32>
    %cst_77 = arith.constant 1.000000e+00 : f32
    %328 = vector.broadcast %cst_77 : f32 to vector<1x256xf32>
    %329 = arith.subf %327, %328 : vector<1x256xf32>
    %cst_78 = arith.constant 0.13333334 : f32
    %330 = vector.broadcast %cst_78 : f32 to vector<1x256xf32>
    %331 = arith.mulf %330, %325 : vector<1x256xf32>
    %cst_79 = arith.constant 1.000000e+00 : f32
    %332 = vector.broadcast %cst_79 : f32 to vector<1x256xf32>
    %333 = arith.subf %331, %332 : vector<1x256xf32>
    %cst_80 = arith.constant 1.000000e+00 : f32
    %334 = vector.broadcast %cst_80 : f32 to vector<1x256xf32>
    %335 = arith.addf %329, %334 : vector<1x256xf32>
    %cst_81 = arith.constant 1.600000e+01 : f32
    %336 = vector.broadcast %cst_81 : f32 to vector<1x256xf32>
    %337 = arith.mulf %335, %336 : vector<1x256xf32>
    %cst_82 = arith.constant 1.000000e+00 : f32
    %338 = vector.broadcast %cst_82 : f32 to vector<1x256xf32>
    %339 = arith.subf %337, %338 : vector<1x256xf32>
    %cst_83 = arith.constant 5.000000e-01 : f32
    %340 = vector.broadcast %cst_83 : f32 to vector<1x256xf32>
    %341 = arith.mulf %339, %340 : vector<1x256xf32>
    %cst_84 = arith.constant 1.000000e+00 : f32
    %342 = vector.broadcast %cst_84 : f32 to vector<1x256xf32>
    %343 = arith.addf %333, %342 : vector<1x256xf32>
    %cst_85 = arith.constant 1.600000e+01 : f32
    %344 = vector.broadcast %cst_85 : f32 to vector<1x256xf32>
    %345 = arith.mulf %343, %344 : vector<1x256xf32>
    %cst_86 = arith.constant 1.000000e+00 : f32
    %346 = vector.broadcast %cst_86 : f32 to vector<1x256xf32>
    %347 = arith.subf %345, %346 : vector<1x256xf32>
    %cst_87 = arith.constant 5.000000e-01 : f32
    %348 = vector.broadcast %cst_87 : f32 to vector<1x256xf32>
    %349 = arith.mulf %347, %348 : vector<1x256xf32>
    %350 = math.floor %341 : vector<1x256xf32>
    %351 = math.floor %349 : vector<1x256xf32>
    %352 = arith.subf %341, %350 : vector<1x256xf32>
    %353 = arith.subf %349, %351 : vector<1x256xf32>
    %cst_88 = arith.constant 1.000000e+00 : f32
    %354 = vector.broadcast %cst_88 : f32 to vector<1x256xf32>
    %355 = arith.subf %354, %352 : vector<1x256xf32>
    %cst_89 = arith.constant 1.000000e+00 : f32
    %356 = vector.broadcast %cst_89 : f32 to vector<1x256xf32>
    %357 = arith.subf %356, %353 : vector<1x256xf32>
    %358 = arith.mulf %355, %357 : vector<1x256xf32>
    %cst_90 = arith.constant 0.000000e+00 : f32
    %359 = vector.broadcast %cst_90 : f32 to vector<1x256xf32>
    %360 = arith.cmpf oge, %350, %359 : vector<1x256xf32>
    %cst_91 = arith.constant 1.500000e+01 : f32
    %361 = vector.broadcast %cst_91 : f32 to vector<1x256xf32>
    %362 = arith.cmpf ole, %350, %361 : vector<1x256xf32>
    %363 = arith.andi %360, %362 : vector<1x256xi1>
    %cst_92 = arith.constant 0.000000e+00 : f32
    %364 = vector.broadcast %cst_92 : f32 to vector<1x256xf32>
    %365 = arith.cmpf oge, %351, %364 : vector<1x256xf32>
    %366 = arith.andi %363, %365 : vector<1x256xi1>
    %cst_93 = arith.constant 1.500000e+01 : f32
    %367 = vector.broadcast %cst_93 : f32 to vector<1x256xf32>
    %368 = arith.cmpf ole, %351, %367 : vector<1x256xf32>
    %369 = arith.andi %366, %368 : vector<1x256xi1>
    %370 = arith.extui %369 : vector<1x256xi1> to vector<1x256xi32>
    %371 = arith.sitofp %370 : vector<1x256xi32> to vector<1x256xf32>
    %372 = arith.mulf %358, %371 : vector<1x256xf32>
    %cst_94 = arith.constant 1.000000e+00 : f32
    %373 = vector.broadcast %cst_94 : f32 to vector<1x256xf32>
    %374 = arith.subf %373, %353 : vector<1x256xf32>
    %375 = arith.mulf %352, %374 : vector<1x256xf32>
    %cst_95 = arith.constant 1.000000e+00 : f32
    %376 = vector.broadcast %cst_95 : f32 to vector<1x256xf32>
    %377 = arith.addf %350, %376 : vector<1x256xf32>
    %cst_96 = arith.constant 0.000000e+00 : f32
    %378 = vector.broadcast %cst_96 : f32 to vector<1x256xf32>
    %379 = arith.cmpf oge, %377, %378 : vector<1x256xf32>
    %cst_97 = arith.constant 1.500000e+01 : f32
    %380 = vector.broadcast %cst_97 : f32 to vector<1x256xf32>
    %381 = arith.cmpf ole, %377, %380 : vector<1x256xf32>
    %382 = arith.andi %379, %381 : vector<1x256xi1>
    %cst_98 = arith.constant 0.000000e+00 : f32
    %383 = vector.broadcast %cst_98 : f32 to vector<1x256xf32>
    %384 = arith.cmpf oge, %351, %383 : vector<1x256xf32>
    %385 = arith.andi %382, %384 : vector<1x256xi1>
    %cst_99 = arith.constant 1.500000e+01 : f32
    %386 = vector.broadcast %cst_99 : f32 to vector<1x256xf32>
    %387 = arith.cmpf ole, %351, %386 : vector<1x256xf32>
    %388 = arith.andi %385, %387 : vector<1x256xi1>
    %389 = arith.extui %388 : vector<1x256xi1> to vector<1x256xi32>
    %390 = arith.sitofp %389 : vector<1x256xi32> to vector<1x256xf32>
    %391 = arith.mulf %375, %390 : vector<1x256xf32>
    %392 = arith.addf %372, %391 : vector<1x256xf32>
    %cst_100 = arith.constant 1.000000e+00 : f32
    %393 = vector.broadcast %cst_100 : f32 to vector<1x256xf32>
    %394 = arith.subf %393, %352 : vector<1x256xf32>
    %395 = arith.mulf %394, %353 : vector<1x256xf32>
    %cst_101 = arith.constant 1.000000e+00 : f32
    %396 = vector.broadcast %cst_101 : f32 to vector<1x256xf32>
    %397 = arith.addf %351, %396 : vector<1x256xf32>
    %cst_102 = arith.constant 0.000000e+00 : f32
    %398 = vector.broadcast %cst_102 : f32 to vector<1x256xf32>
    %399 = arith.cmpf oge, %350, %398 : vector<1x256xf32>
    %cst_103 = arith.constant 1.500000e+01 : f32
    %400 = vector.broadcast %cst_103 : f32 to vector<1x256xf32>
    %401 = arith.cmpf ole, %350, %400 : vector<1x256xf32>
    %402 = arith.andi %399, %401 : vector<1x256xi1>
    %cst_104 = arith.constant 0.000000e+00 : f32
    %403 = vector.broadcast %cst_104 : f32 to vector<1x256xf32>
    %404 = arith.cmpf oge, %397, %403 : vector<1x256xf32>
    %405 = arith.andi %402, %404 : vector<1x256xi1>
    %cst_105 = arith.constant 1.500000e+01 : f32
    %406 = vector.broadcast %cst_105 : f32 to vector<1x256xf32>
    %407 = arith.cmpf ole, %397, %406 : vector<1x256xf32>
    %408 = arith.andi %405, %407 : vector<1x256xi1>
    %409 = arith.extui %408 : vector<1x256xi1> to vector<1x256xi32>
    %410 = arith.sitofp %409 : vector<1x256xi32> to vector<1x256xf32>
    %411 = arith.mulf %395, %410 : vector<1x256xf32>
    %412 = arith.addf %392, %411 : vector<1x256xf32>
    %413 = arith.mulf %352, %353 : vector<1x256xf32>
    %cst_106 = arith.constant 1.000000e+00 : f32
    %414 = vector.broadcast %cst_106 : f32 to vector<1x256xf32>
    %415 = arith.addf %350, %414 : vector<1x256xf32>
    %cst_107 = arith.constant 1.000000e+00 : f32
    %416 = vector.broadcast %cst_107 : f32 to vector<1x256xf32>
    %417 = arith.addf %351, %416 : vector<1x256xf32>
    %cst_108 = arith.constant 0.000000e+00 : f32
    %418 = vector.broadcast %cst_108 : f32 to vector<1x256xf32>
    %419 = arith.cmpf oge, %415, %418 : vector<1x256xf32>
    %cst_109 = arith.constant 1.500000e+01 : f32
    %420 = vector.broadcast %cst_109 : f32 to vector<1x256xf32>
    %421 = arith.cmpf ole, %415, %420 : vector<1x256xf32>
    %422 = arith.andi %419, %421 : vector<1x256xi1>
    %cst_110 = arith.constant 0.000000e+00 : f32
    %423 = vector.broadcast %cst_110 : f32 to vector<1x256xf32>
    %424 = arith.cmpf oge, %417, %423 : vector<1x256xf32>
    %425 = arith.andi %422, %424 : vector<1x256xi1>
    %cst_111 = arith.constant 1.500000e+01 : f32
    %426 = vector.broadcast %cst_111 : f32 to vector<1x256xf32>
    %427 = arith.cmpf ole, %417, %426 : vector<1x256xf32>
    %428 = arith.andi %425, %427 : vector<1x256xi1>
    %429 = arith.extui %428 : vector<1x256xi1> to vector<1x256xi32>
    %430 = arith.sitofp %429 : vector<1x256xi32> to vector<1x256xf32>
    %431 = arith.mulf %413, %430 : vector<1x256xf32>
    %432 = arith.addf %412, %431 : vector<1x256xf32>
    %cst_112 = arith.constant 9.990000e-01 : f32
    %433 = vector.broadcast %cst_112 : f32 to vector<1x256xf32>
    %434 = arith.cmpf oge, %432, %433 : vector<1x256xf32>
    %435 = arith.extui %434 : vector<1x256xi1> to vector<1x256xi32>
    %436 = arith.sitofp %435 : vector<1x256xi32> to vector<1x256xf32>
    %cst_113 = arith.constant 0.000000e+00 : f32
    %cst_114 = arith.constant 1.500000e+01 : f32
    %437 = vector.broadcast %cst_113 : f32 to vector<1x256xf32>
    %438 = arith.maximumf %437, %341 : vector<1x256xf32>
    %439 = vector.broadcast %cst_114 : f32 to vector<1x256xf32>
    %440 = arith.minimumf %439, %438 : vector<1x256xf32>
    %cst_115 = arith.constant 0.000000e+00 : f32
    %cst_116 = arith.constant 1.500000e+01 : f32
    %441 = vector.broadcast %cst_115 : f32 to vector<1x256xf32>
    %442 = arith.maximumf %441, %349 : vector<1x256xf32>
    %443 = vector.broadcast %cst_116 : f32 to vector<1x256xf32>
    %444 = arith.minimumf %443, %442 : vector<1x256xf32>
    %445 = math.floor %440 : vector<1x256xf32>
    %446 = math.floor %444 : vector<1x256xf32>
    %447 = arith.subf %440, %445 : vector<1x256xf32>
    %448 = arith.subf %444, %446 : vector<1x256xf32>
    %449 = arith.fptosi %445 : vector<1x256xf32> to vector<1x256xi32>
    %450 = arith.fptosi %446 : vector<1x256xf32> to vector<1x256xi32>
    %c1_i32_117 = arith.constant 1 : i32
    %451 = vector.broadcast %c1_i32_117 : i32 to vector<1x256xi32>
    %452 = arith.addi %449, %451 : vector<1x256xi32>
    %c15_i32_118 = arith.constant 15 : i32
    %453 = vector.broadcast %c15_i32_118 : i32 to vector<1x256xi32>
    %454 = arith.minsi %452, %453 : vector<1x256xi32>
    %c1_i32_119 = arith.constant 1 : i32
    %455 = vector.broadcast %c1_i32_119 : i32 to vector<1x256xi32>
    %456 = arith.addi %450, %455 : vector<1x256xi32>
    %c15_i32_120 = arith.constant 15 : i32
    %457 = vector.broadcast %c15_i32_120 : i32 to vector<1x256xi32>
    %458 = arith.minsi %456, %457 : vector<1x256xi32>
    %459 = vector.broadcast %449 : vector<1x256xi32> to vector<16x256xi32>
    %460 = arith.cmpi eq, %108, %459 : vector<16x256xi32>
    %cst_121 = arith.constant 1.000000e+00 : f32
    %461 = vector.broadcast %cst_121 : f32 to vector<1x256xf32>
    %462 = arith.subf %461, %447 : vector<1x256xf32>
    %cst_122 = arith.constant 0.000000e+00 : f32
    %463 = vector.shape_cast %462 : vector<1x256xf32> to vector<1x256xf32>
    %464 = vector.broadcast %463 : vector<1x256xf32> to vector<16x256xf32>
    %465 = vector.broadcast %cst_122 : f32 to vector<16x256xf32>
    %466 = arith.select %460, %464, %465 : vector<16x256xi1>, vector<16x256xf32>
    %467 = vector.broadcast %454 : vector<1x256xi32> to vector<16x256xi32>
    %468 = arith.cmpi eq, %108, %467 : vector<16x256xi32>
    %cst_123 = arith.constant 0.000000e+00 : f32
    %469 = vector.shape_cast %447 : vector<1x256xf32> to vector<1x256xf32>
    %470 = vector.broadcast %469 : vector<1x256xf32> to vector<16x256xf32>
    %471 = vector.broadcast %cst_123 : f32 to vector<16x256xf32>
    %472 = arith.select %468, %470, %471 : vector<16x256xi1>, vector<16x256xf32>
    %473 = arith.addf %466, %472 : vector<16x256xf32>
    %474 = vector.broadcast %450 : vector<1x256xi32> to vector<16x256xi32>
    %475 = arith.cmpi eq, %109, %474 : vector<16x256xi32>
    %cst_124 = arith.constant 1.000000e+00 : f32
    %476 = vector.broadcast %cst_124 : f32 to vector<1x256xf32>
    %477 = arith.subf %476, %448 : vector<1x256xf32>
    %cst_125 = arith.constant 0.000000e+00 : f32
    %478 = vector.shape_cast %477 : vector<1x256xf32> to vector<1x256xf32>
    %479 = vector.broadcast %478 : vector<1x256xf32> to vector<16x256xf32>
    %480 = vector.broadcast %cst_125 : f32 to vector<16x256xf32>
    %481 = arith.select %475, %479, %480 : vector<16x256xi1>, vector<16x256xf32>
    %482 = vector.broadcast %458 : vector<1x256xi32> to vector<16x256xi32>
    %483 = arith.cmpi eq, %109, %482 : vector<16x256xi32>
    %cst_126 = arith.constant 0.000000e+00 : f32
    %484 = vector.shape_cast %448 : vector<1x256xf32> to vector<1x256xf32>
    %485 = vector.broadcast %484 : vector<1x256xf32> to vector<16x256xf32>
    %486 = vector.broadcast %cst_126 : f32 to vector<16x256xf32>
    %487 = arith.select %483, %485, %486 : vector<16x256xi1>, vector<16x256xf32>
    %488 = arith.addf %481, %487 : vector<16x256xf32>
    %cst_127 = arith.constant dense<0.000000e+00> : vector<128x256xf32>
    %489 = tpu.matmul %93, %473, %cst_127 {dimension_numbers = #tpu.dot_dimension_numbers<[1], [0], [0], [1], [0, 0, 1, 1], [], []>} : vector<128x16xf32>, vector<16x256xf32>, vector<128x256xf32> -> vector<128x256xf32>
    %cst_128 = arith.constant 0.000000e+00 : f32
    %490 = vector.broadcast %cst_128 : f32 to vector<1x256xf32>
    %491 = vector.extract_strided_slice %489 {offsets = [0, 0], sizes = [16, 256], strides = [1, 1]} : vector<128x256xf32> to vector<16x256xf32>
    %492 = arith.mulf %491, %488 : vector<16x256xf32>
    %cst_129 = arith.constant dense<0.000000e+00> : vector<256xf32>
    %493 = vector.multi_reduction <add>, %492, %cst_129 [0] : vector<16x256xf32> to vector<256xf32>
    %494 = vector.shape_cast %493 : vector<256xf32> to vector<1x256xf32>
    %495 = arith.mulf %287, %494 : vector<1x256xf32>
    %496 = arith.addf %490, %495 : vector<1x256xf32>
    %497 = vector.extract_strided_slice %489 {offsets = [16, 0], sizes = [16, 256], strides = [1, 1]} : vector<128x256xf32> to vector<16x256xf32>
    %498 = arith.mulf %497, %488 : vector<16x256xf32>
    %cst_130 = arith.constant dense<0.000000e+00> : vector<256xf32>
    %499 = vector.multi_reduction <add>, %498, %cst_130 [0] : vector<16x256xf32> to vector<256xf32>
    %500 = vector.shape_cast %499 : vector<256xf32> to vector<1x256xf32>
    %501 = arith.mulf %291, %500 : vector<1x256xf32>
    %502 = arith.addf %496, %501 : vector<1x256xf32>
    %503 = vector.extract_strided_slice %489 {offsets = [32, 0], sizes = [16, 256], strides = [1, 1]} : vector<128x256xf32> to vector<16x256xf32>
    %504 = arith.mulf %503, %488 : vector<16x256xf32>
    %cst_131 = arith.constant dense<0.000000e+00> : vector<256xf32>
    %505 = vector.multi_reduction <add>, %504, %cst_131 [0] : vector<16x256xf32> to vector<256xf32>
    %506 = vector.shape_cast %505 : vector<256xf32> to vector<1x256xf32>
    %507 = arith.mulf %295, %506 : vector<1x256xf32>
    %508 = arith.addf %502, %507 : vector<1x256xf32>
    %509 = vector.extract_strided_slice %489 {offsets = [48, 0], sizes = [16, 256], strides = [1, 1]} : vector<128x256xf32> to vector<16x256xf32>
    %510 = arith.mulf %509, %488 : vector<16x256xf32>
    %cst_132 = arith.constant dense<0.000000e+00> : vector<256xf32>
    %511 = vector.multi_reduction <add>, %510, %cst_132 [0] : vector<16x256xf32> to vector<256xf32>
    %512 = vector.shape_cast %511 : vector<256xf32> to vector<1x256xf32>
    %513 = arith.mulf %299, %512 : vector<1x256xf32>
    %514 = arith.addf %508, %513 : vector<1x256xf32>
    %515 = vector.extract_strided_slice %489 {offsets = [64, 0], sizes = [16, 256], strides = [1, 1]} : vector<128x256xf32> to vector<16x256xf32>
    %516 = arith.mulf %515, %488 : vector<16x256xf32>
    %cst_133 = arith.constant dense<0.000000e+00> : vector<256xf32>
    %517 = vector.multi_reduction <add>, %516, %cst_133 [0] : vector<16x256xf32> to vector<256xf32>
    %518 = vector.shape_cast %517 : vector<256xf32> to vector<1x256xf32>
    %519 = arith.mulf %303, %518 : vector<1x256xf32>
    %520 = arith.addf %514, %519 : vector<1x256xf32>
    %521 = vector.extract_strided_slice %489 {offsets = [80, 0], sizes = [16, 256], strides = [1, 1]} : vector<128x256xf32> to vector<16x256xf32>
    %522 = arith.mulf %521, %488 : vector<16x256xf32>
    %cst_134 = arith.constant dense<0.000000e+00> : vector<256xf32>
    %523 = vector.multi_reduction <add>, %522, %cst_134 [0] : vector<16x256xf32> to vector<256xf32>
    %524 = vector.shape_cast %523 : vector<256xf32> to vector<1x256xf32>
    %525 = arith.mulf %307, %524 : vector<1x256xf32>
    %526 = arith.addf %520, %525 : vector<1x256xf32>
    %527 = vector.extract_strided_slice %489 {offsets = [96, 0], sizes = [16, 256], strides = [1, 1]} : vector<128x256xf32> to vector<16x256xf32>
    %528 = arith.mulf %527, %488 : vector<16x256xf32>
    %cst_135 = arith.constant dense<0.000000e+00> : vector<256xf32>
    %529 = vector.multi_reduction <add>, %528, %cst_135 [0] : vector<16x256xf32> to vector<256xf32>
    %530 = vector.shape_cast %529 : vector<256xf32> to vector<1x256xf32>
    %531 = arith.mulf %311, %530 : vector<1x256xf32>
    %532 = arith.addf %526, %531 : vector<1x256xf32>
    %533 = vector.extract_strided_slice %489 {offsets = [112, 0], sizes = [16, 256], strides = [1, 1]} : vector<128x256xf32> to vector<16x256xf32>
    %534 = arith.mulf %533, %488 : vector<16x256xf32>
    %cst_136 = arith.constant dense<0.000000e+00> : vector<256xf32>
    %535 = vector.multi_reduction <add>, %534, %cst_136 [0] : vector<16x256xf32> to vector<256xf32>
    %536 = vector.shape_cast %535 : vector<256xf32> to vector<1x256xf32>
    %537 = arith.mulf %315, %536 : vector<1x256xf32>
    %538 = arith.addf %532, %537 : vector<1x256xf32>
    %539 = arith.mulf %230, %436 : vector<1x256xf32>
    %540 = arith.mulf %538, %539 : vector<1x256xf32>
    %cst_137 = arith.constant -1.000000e+00 : f32
    %541 = vector.broadcast %cst_137 : f32 to vector<1x256xf32>
    %542 = arith.addf %96, %541 : vector<1x256xf32>
    %cst_138 = arith.constant -1.000000e+00 : f32
    %543 = vector.broadcast %cst_138 : f32 to vector<1x256xf32>
    %544 = arith.mulf %543, %542 : vector<1x256xf32>
    %545 = arith.addf %107, %544 : vector<1x256xf32>
    %546 = vector.broadcast %1 : f32 to vector<1x256xf32>
    %547 = arith.addf %97, %546 : vector<1x256xf32>
    %cst_139 = arith.constant -1.000000e+00 : f32
    %548 = vector.broadcast %cst_139 : f32 to vector<1x256xf32>
    %549 = arith.mulf %548, %547 : vector<1x256xf32>
    %550 = arith.addf %104, %549 : vector<1x256xf32>
    %cst_140 = arith.constant 0.13333334 : f32
    %551 = vector.broadcast %cst_140 : f32 to vector<1x256xf32>
    %552 = arith.mulf %551, %545 : vector<1x256xf32>
    %cst_141 = arith.constant 1.000000e+00 : f32
    %553 = vector.broadcast %cst_141 : f32 to vector<1x256xf32>
    %554 = arith.subf %552, %553 : vector<1x256xf32>
    %cst_142 = arith.constant 0.13333334 : f32
    %555 = vector.broadcast %cst_142 : f32 to vector<1x256xf32>
    %556 = arith.mulf %555, %550 : vector<1x256xf32>
    %cst_143 = arith.constant 1.000000e+00 : f32
    %557 = vector.broadcast %cst_143 : f32 to vector<1x256xf32>
    %558 = arith.subf %556, %557 : vector<1x256xf32>
    %cst_144 = arith.constant 1.000000e+00 : f32
    %559 = vector.broadcast %cst_144 : f32 to vector<1x256xf32>
    %560 = arith.addf %554, %559 : vector<1x256xf32>
    %cst_145 = arith.constant 1.600000e+01 : f32
    %561 = vector.broadcast %cst_145 : f32 to vector<1x256xf32>
    %562 = arith.mulf %560, %561 : vector<1x256xf32>
    %cst_146 = arith.constant 1.000000e+00 : f32
    %563 = vector.broadcast %cst_146 : f32 to vector<1x256xf32>
    %564 = arith.subf %562, %563 : vector<1x256xf32>
    %cst_147 = arith.constant 5.000000e-01 : f32
    %565 = vector.broadcast %cst_147 : f32 to vector<1x256xf32>
    %566 = arith.mulf %564, %565 : vector<1x256xf32>
    %cst_148 = arith.constant 1.000000e+00 : f32
    %567 = vector.broadcast %cst_148 : f32 to vector<1x256xf32>
    %568 = arith.addf %558, %567 : vector<1x256xf32>
    %cst_149 = arith.constant 1.600000e+01 : f32
    %569 = vector.broadcast %cst_149 : f32 to vector<1x256xf32>
    %570 = arith.mulf %568, %569 : vector<1x256xf32>
    %cst_150 = arith.constant 1.000000e+00 : f32
    %571 = vector.broadcast %cst_150 : f32 to vector<1x256xf32>
    %572 = arith.subf %570, %571 : vector<1x256xf32>
    %cst_151 = arith.constant 5.000000e-01 : f32
    %573 = vector.broadcast %cst_151 : f32 to vector<1x256xf32>
    %574 = arith.mulf %572, %573 : vector<1x256xf32>
    %575 = math.floor %566 : vector<1x256xf32>
    %576 = math.floor %574 : vector<1x256xf32>
    %577 = arith.subf %566, %575 : vector<1x256xf32>
    %578 = arith.subf %574, %576 : vector<1x256xf32>
    %cst_152 = arith.constant 1.000000e+00 : f32
    %579 = vector.broadcast %cst_152 : f32 to vector<1x256xf32>
    %580 = arith.subf %579, %577 : vector<1x256xf32>
    %cst_153 = arith.constant 1.000000e+00 : f32
    %581 = vector.broadcast %cst_153 : f32 to vector<1x256xf32>
    %582 = arith.subf %581, %578 : vector<1x256xf32>
    %583 = arith.mulf %580, %582 : vector<1x256xf32>
    %cst_154 = arith.constant 0.000000e+00 : f32
    %584 = vector.broadcast %cst_154 : f32 to vector<1x256xf32>
    %585 = arith.cmpf oge, %575, %584 : vector<1x256xf32>
    %cst_155 = arith.constant 1.500000e+01 : f32
    %586 = vector.broadcast %cst_155 : f32 to vector<1x256xf32>
    %587 = arith.cmpf ole, %575, %586 : vector<1x256xf32>
    %588 = arith.andi %585, %587 : vector<1x256xi1>
    %cst_156 = arith.constant 0.000000e+00 : f32
    %589 = vector.broadcast %cst_156 : f32 to vector<1x256xf32>
    %590 = arith.cmpf oge, %576, %589 : vector<1x256xf32>
    %591 = arith.andi %588, %590 : vector<1x256xi1>
    %cst_157 = arith.constant 1.500000e+01 : f32
    %592 = vector.broadcast %cst_157 : f32 to vector<1x256xf32>
    %593 = arith.cmpf ole, %576, %592 : vector<1x256xf32>
    %594 = arith.andi %591, %593 : vector<1x256xi1>
    %595 = arith.extui %594 : vector<1x256xi1> to vector<1x256xi32>
    %596 = arith.sitofp %595 : vector<1x256xi32> to vector<1x256xf32>
    %597 = arith.mulf %583, %596 : vector<1x256xf32>
    %cst_158 = arith.constant 1.000000e+00 : f32
    %598 = vector.broadcast %cst_158 : f32 to vector<1x256xf32>
    %599 = arith.subf %598, %578 : vector<1x256xf32>
    %600 = arith.mulf %577, %599 : vector<1x256xf32>
    %cst_159 = arith.constant 1.000000e+00 : f32
    %601 = vector.broadcast %cst_159 : f32 to vector<1x256xf32>
    %602 = arith.addf %575, %601 : vector<1x256xf32>
    %cst_160 = arith.constant 0.000000e+00 : f32
    %603 = vector.broadcast %cst_160 : f32 to vector<1x256xf32>
    %604 = arith.cmpf oge, %602, %603 : vector<1x256xf32>
    %cst_161 = arith.constant 1.500000e+01 : f32
    %605 = vector.broadcast %cst_161 : f32 to vector<1x256xf32>
    %606 = arith.cmpf ole, %602, %605 : vector<1x256xf32>
    %607 = arith.andi %604, %606 : vector<1x256xi1>
    %cst_162 = arith.constant 0.000000e+00 : f32
    %608 = vector.broadcast %cst_162 : f32 to vector<1x256xf32>
    %609 = arith.cmpf oge, %576, %608 : vector<1x256xf32>
    %610 = arith.andi %607, %609 : vector<1x256xi1>
    %cst_163 = arith.constant 1.500000e+01 : f32
    %611 = vector.broadcast %cst_163 : f32 to vector<1x256xf32>
    %612 = arith.cmpf ole, %576, %611 : vector<1x256xf32>
    %613 = arith.andi %610, %612 : vector<1x256xi1>
    %614 = arith.extui %613 : vector<1x256xi1> to vector<1x256xi32>
    %615 = arith.sitofp %614 : vector<1x256xi32> to vector<1x256xf32>
    %616 = arith.mulf %600, %615 : vector<1x256xf32>
    %617 = arith.addf %597, %616 : vector<1x256xf32>
    %cst_164 = arith.constant 1.000000e+00 : f32
    %618 = vector.broadcast %cst_164 : f32 to vector<1x256xf32>
    %619 = arith.subf %618, %577 : vector<1x256xf32>
    %620 = arith.mulf %619, %578 : vector<1x256xf32>
    %cst_165 = arith.constant 1.000000e+00 : f32
    %621 = vector.broadcast %cst_165 : f32 to vector<1x256xf32>
    %622 = arith.addf %576, %621 : vector<1x256xf32>
    %cst_166 = arith.constant 0.000000e+00 : f32
    %623 = vector.broadcast %cst_166 : f32 to vector<1x256xf32>
    %624 = arith.cmpf oge, %575, %623 : vector<1x256xf32>
    %cst_167 = arith.constant 1.500000e+01 : f32
    %625 = vector.broadcast %cst_167 : f32 to vector<1x256xf32>
    %626 = arith.cmpf ole, %575, %625 : vector<1x256xf32>
    %627 = arith.andi %624, %626 : vector<1x256xi1>
    %cst_168 = arith.constant 0.000000e+00 : f32
    %628 = vector.broadcast %cst_168 : f32 to vector<1x256xf32>
    %629 = arith.cmpf oge, %622, %628 : vector<1x256xf32>
    %630 = arith.andi %627, %629 : vector<1x256xi1>
    %cst_169 = arith.constant 1.500000e+01 : f32
    %631 = vector.broadcast %cst_169 : f32 to vector<1x256xf32>
    %632 = arith.cmpf ole, %622, %631 : vector<1x256xf32>
    %633 = arith.andi %630, %632 : vector<1x256xi1>
    %634 = arith.extui %633 : vector<1x256xi1> to vector<1x256xi32>
    %635 = arith.sitofp %634 : vector<1x256xi32> to vector<1x256xf32>
    %636 = arith.mulf %620, %635 : vector<1x256xf32>
    %637 = arith.addf %617, %636 : vector<1x256xf32>
    %638 = arith.mulf %577, %578 : vector<1x256xf32>
    %cst_170 = arith.constant 1.000000e+00 : f32
    %639 = vector.broadcast %cst_170 : f32 to vector<1x256xf32>
    %640 = arith.addf %575, %639 : vector<1x256xf32>
    %cst_171 = arith.constant 1.000000e+00 : f32
    %641 = vector.broadcast %cst_171 : f32 to vector<1x256xf32>
    %642 = arith.addf %576, %641 : vector<1x256xf32>
    %cst_172 = arith.constant 0.000000e+00 : f32
    %643 = vector.broadcast %cst_172 : f32 to vector<1x256xf32>
    %644 = arith.cmpf oge, %640, %643 : vector<1x256xf32>
    %cst_173 = arith.constant 1.500000e+01 : f32
    %645 = vector.broadcast %cst_173 : f32 to vector<1x256xf32>
    %646 = arith.cmpf ole, %640, %645 : vector<1x256xf32>
    %647 = arith.andi %644, %646 : vector<1x256xi1>
    %cst_174 = arith.constant 0.000000e+00 : f32
    %648 = vector.broadcast %cst_174 : f32 to vector<1x256xf32>
    %649 = arith.cmpf oge, %642, %648 : vector<1x256xf32>
    %650 = arith.andi %647, %649 : vector<1x256xi1>
    %cst_175 = arith.constant 1.500000e+01 : f32
    %651 = vector.broadcast %cst_175 : f32 to vector<1x256xf32>
    %652 = arith.cmpf ole, %642, %651 : vector<1x256xf32>
    %653 = arith.andi %650, %652 : vector<1x256xi1>
    %654 = arith.extui %653 : vector<1x256xi1> to vector<1x256xi32>
    %655 = arith.sitofp %654 : vector<1x256xi32> to vector<1x256xf32>
    %656 = arith.mulf %638, %655 : vector<1x256xf32>
    %657 = arith.addf %637, %656 : vector<1x256xf32>
    %cst_176 = arith.constant 9.990000e-01 : f32
    %658 = vector.broadcast %cst_176 : f32 to vector<1x256xf32>
    %659 = arith.cmpf oge, %657, %658 : vector<1x256xf32>
    %660 = arith.extui %659 : vector<1x256xi1> to vector<1x256xi32>
    %661 = arith.sitofp %660 : vector<1x256xi32> to vector<1x256xf32>
    %cst_177 = arith.constant 0.000000e+00 : f32
    %cst_178 = arith.constant 1.500000e+01 : f32
    %662 = vector.broadcast %cst_177 : f32 to vector<1x256xf32>
    %663 = arith.maximumf %662, %566 : vector<1x256xf32>
    %664 = vector.broadcast %cst_178 : f32 to vector<1x256xf32>
    %665 = arith.minimumf %664, %663 : vector<1x256xf32>
    %cst_179 = arith.constant 0.000000e+00 : f32
    %cst_180 = arith.constant 1.500000e+01 : f32
    %666 = vector.broadcast %cst_179 : f32 to vector<1x256xf32>
    %667 = arith.maximumf %666, %574 : vector<1x256xf32>
    %668 = vector.broadcast %cst_180 : f32 to vector<1x256xf32>
    %669 = arith.minimumf %668, %667 : vector<1x256xf32>
    %670 = math.floor %665 : vector<1x256xf32>
    %671 = math.floor %669 : vector<1x256xf32>
    %672 = arith.subf %665, %670 : vector<1x256xf32>
    %673 = arith.subf %669, %671 : vector<1x256xf32>
    %674 = arith.fptosi %670 : vector<1x256xf32> to vector<1x256xi32>
    %675 = arith.fptosi %671 : vector<1x256xf32> to vector<1x256xi32>
    %c1_i32_181 = arith.constant 1 : i32
    %676 = vector.broadcast %c1_i32_181 : i32 to vector<1x256xi32>
    %677 = arith.addi %674, %676 : vector<1x256xi32>
    %c15_i32_182 = arith.constant 15 : i32
    %678 = vector.broadcast %c15_i32_182 : i32 to vector<1x256xi32>
    %679 = arith.minsi %677, %678 : vector<1x256xi32>
    %c1_i32_183 = arith.constant 1 : i32
    %680 = vector.broadcast %c1_i32_183 : i32 to vector<1x256xi32>
    %681 = arith.addi %675, %680 : vector<1x256xi32>
    %c15_i32_184 = arith.constant 15 : i32
    %682 = vector.broadcast %c15_i32_184 : i32 to vector<1x256xi32>
    %683 = arith.minsi %681, %682 : vector<1x256xi32>
    %684 = vector.broadcast %674 : vector<1x256xi32> to vector<16x256xi32>
    %685 = arith.cmpi eq, %108, %684 : vector<16x256xi32>
    %cst_185 = arith.constant 1.000000e+00 : f32
    %686 = vector.broadcast %cst_185 : f32 to vector<1x256xf32>
    %687 = arith.subf %686, %672 : vector<1x256xf32>
    %cst_186 = arith.constant 0.000000e+00 : f32
    %688 = vector.shape_cast %687 : vector<1x256xf32> to vector<1x256xf32>
    %689 = vector.broadcast %688 : vector<1x256xf32> to vector<16x256xf32>
    %690 = vector.broadcast %cst_186 : f32 to vector<16x256xf32>
    %691 = arith.select %685, %689, %690 : vector<16x256xi1>, vector<16x256xf32>
    %692 = vector.broadcast %679 : vector<1x256xi32> to vector<16x256xi32>
    %693 = arith.cmpi eq, %108, %692 : vector<16x256xi32>
    %cst_187 = arith.constant 0.000000e+00 : f32
    %694 = vector.shape_cast %672 : vector<1x256xf32> to vector<1x256xf32>
    %695 = vector.broadcast %694 : vector<1x256xf32> to vector<16x256xf32>
    %696 = vector.broadcast %cst_187 : f32 to vector<16x256xf32>
    %697 = arith.select %693, %695, %696 : vector<16x256xi1>, vector<16x256xf32>
    %698 = arith.addf %691, %697 : vector<16x256xf32>
    %699 = vector.broadcast %675 : vector<1x256xi32> to vector<16x256xi32>
    %700 = arith.cmpi eq, %109, %699 : vector<16x256xi32>
    %cst_188 = arith.constant 1.000000e+00 : f32
    %701 = vector.broadcast %cst_188 : f32 to vector<1x256xf32>
    %702 = arith.subf %701, %673 : vector<1x256xf32>
    %cst_189 = arith.constant 0.000000e+00 : f32
    %703 = vector.shape_cast %702 : vector<1x256xf32> to vector<1x256xf32>
    %704 = vector.broadcast %703 : vector<1x256xf32> to vector<16x256xf32>
    %705 = vector.broadcast %cst_189 : f32 to vector<16x256xf32>
    %706 = arith.select %700, %704, %705 : vector<16x256xi1>, vector<16x256xf32>
    %707 = vector.broadcast %683 : vector<1x256xi32> to vector<16x256xi32>
    %708 = arith.cmpi eq, %109, %707 : vector<16x256xi32>
    %cst_190 = arith.constant 0.000000e+00 : f32
    %709 = vector.shape_cast %673 : vector<1x256xf32> to vector<1x256xf32>
    %710 = vector.broadcast %709 : vector<1x256xf32> to vector<16x256xf32>
    %711 = vector.broadcast %cst_190 : f32 to vector<16x256xf32>
    %712 = arith.select %708, %710, %711 : vector<16x256xi1>, vector<16x256xf32>
    %713 = arith.addf %706, %712 : vector<16x256xf32>
    %cst_191 = arith.constant dense<0.000000e+00> : vector<128x256xf32>
    %714 = tpu.matmul %47, %698, %cst_191 {dimension_numbers = #tpu.dot_dimension_numbers<[1], [0], [0], [1], [0, 0, 1, 1], [], []>} : vector<128x16xf32>, vector<16x256xf32>, vector<128x256xf32> -> vector<128x256xf32>
    %715 = vector.extract_strided_slice %714 {offsets = [0, 0], sizes = [16, 256], strides = [1, 1]} : vector<128x256xf32> to vector<16x256xf32>
    %716 = arith.mulf %715, %713 : vector<16x256xf32>
    %cst_192 = arith.constant dense<0.000000e+00> : vector<256xf32>
    %717 = vector.multi_reduction <add>, %716, %cst_192 [0] : vector<16x256xf32> to vector<256xf32>
    %718 = vector.shape_cast %717 : vector<256xf32> to vector<1x256xf32>
    %719 = vector.extract_strided_slice %714 {offsets = [16, 0], sizes = [16, 256], strides = [1, 1]} : vector<128x256xf32> to vector<16x256xf32>
    %720 = arith.mulf %719, %713 : vector<16x256xf32>
    %cst_193 = arith.constant dense<0.000000e+00> : vector<256xf32>
    %721 = vector.multi_reduction <add>, %720, %cst_193 [0] : vector<16x256xf32> to vector<256xf32>
    %722 = vector.shape_cast %721 : vector<256xf32> to vector<1x256xf32>
    %723 = vector.extract_strided_slice %714 {offsets = [32, 0], sizes = [16, 256], strides = [1, 1]} : vector<128x256xf32> to vector<16x256xf32>
    %724 = arith.mulf %723, %713 : vector<16x256xf32>
    %cst_194 = arith.constant dense<0.000000e+00> : vector<256xf32>
    %725 = vector.multi_reduction <add>, %724, %cst_194 [0] : vector<16x256xf32> to vector<256xf32>
    %726 = vector.shape_cast %725 : vector<256xf32> to vector<1x256xf32>
    %727 = vector.extract_strided_slice %714 {offsets = [48, 0], sizes = [16, 256], strides = [1, 1]} : vector<128x256xf32> to vector<16x256xf32>
    %728 = arith.mulf %727, %713 : vector<16x256xf32>
    %cst_195 = arith.constant dense<0.000000e+00> : vector<256xf32>
    %729 = vector.multi_reduction <add>, %728, %cst_195 [0] : vector<16x256xf32> to vector<256xf32>
    %730 = vector.shape_cast %729 : vector<256xf32> to vector<1x256xf32>
    %731 = vector.extract_strided_slice %714 {offsets = [64, 0], sizes = [16, 256], strides = [1, 1]} : vector<128x256xf32> to vector<16x256xf32>
    %732 = arith.mulf %731, %713 : vector<16x256xf32>
    %cst_196 = arith.constant dense<0.000000e+00> : vector<256xf32>
    %733 = vector.multi_reduction <add>, %732, %cst_196 [0] : vector<16x256xf32> to vector<256xf32>
    %734 = vector.shape_cast %733 : vector<256xf32> to vector<1x256xf32>
    %735 = vector.extract_strided_slice %714 {offsets = [80, 0], sizes = [16, 256], strides = [1, 1]} : vector<128x256xf32> to vector<16x256xf32>
    %736 = arith.mulf %735, %713 : vector<16x256xf32>
    %cst_197 = arith.constant dense<0.000000e+00> : vector<256xf32>
    %737 = vector.multi_reduction <add>, %736, %cst_197 [0] : vector<16x256xf32> to vector<256xf32>
    %738 = vector.shape_cast %737 : vector<256xf32> to vector<1x256xf32>
    %739 = vector.extract_strided_slice %714 {offsets = [96, 0], sizes = [16, 256], strides = [1, 1]} : vector<128x256xf32> to vector<16x256xf32>
    %740 = arith.mulf %739, %713 : vector<16x256xf32>
    %cst_198 = arith.constant dense<0.000000e+00> : vector<256xf32>
    %741 = vector.multi_reduction <add>, %740, %cst_198 [0] : vector<16x256xf32> to vector<256xf32>
    %742 = vector.shape_cast %741 : vector<256xf32> to vector<1x256xf32>
    %743 = vector.extract_strided_slice %714 {offsets = [112, 0], sizes = [16, 256], strides = [1, 1]} : vector<128x256xf32> to vector<16x256xf32>
    %744 = arith.mulf %743, %713 : vector<16x256xf32>
    %cst_199 = arith.constant dense<0.000000e+00> : vector<256xf32>
    %745 = vector.multi_reduction <add>, %744, %cst_199 [0] : vector<16x256xf32> to vector<256xf32>
    %746 = vector.shape_cast %745 : vector<256xf32> to vector<1x256xf32>
    %cst_200 = arith.constant -1.000000e+00 : f32
    %747 = vector.broadcast %cst_200 : f32 to vector<1x256xf32>
    %748 = arith.addf %96, %747 : vector<1x256xf32>
    %cst_201 = arith.constant 1.000000e+00 : f32
    %749 = vector.broadcast %cst_201 : f32 to vector<1x256xf32>
    %750 = arith.mulf %749, %748 : vector<1x256xf32>
    %751 = arith.addf %107, %750 : vector<1x256xf32>
    %752 = vector.broadcast %1 : f32 to vector<1x256xf32>
    %753 = arith.addf %97, %752 : vector<1x256xf32>
    %cst_202 = arith.constant 1.000000e+00 : f32
    %754 = vector.broadcast %cst_202 : f32 to vector<1x256xf32>
    %755 = arith.mulf %754, %753 : vector<1x256xf32>
    %756 = arith.addf %104, %755 : vector<1x256xf32>
    %cst_203 = arith.constant 0.13333334 : f32
    %757 = vector.broadcast %cst_203 : f32 to vector<1x256xf32>
    %758 = arith.mulf %757, %751 : vector<1x256xf32>
    %cst_204 = arith.constant 1.000000e+00 : f32
    %759 = vector.broadcast %cst_204 : f32 to vector<1x256xf32>
    %760 = arith.subf %758, %759 : vector<1x256xf32>
    %cst_205 = arith.constant 0.13333334 : f32
    %761 = vector.broadcast %cst_205 : f32 to vector<1x256xf32>
    %762 = arith.mulf %761, %756 : vector<1x256xf32>
    %cst_206 = arith.constant 1.000000e+00 : f32
    %763 = vector.broadcast %cst_206 : f32 to vector<1x256xf32>
    %764 = arith.subf %762, %763 : vector<1x256xf32>
    %cst_207 = arith.constant 1.000000e+00 : f32
    %765 = vector.broadcast %cst_207 : f32 to vector<1x256xf32>
    %766 = arith.addf %760, %765 : vector<1x256xf32>
    %cst_208 = arith.constant 1.600000e+01 : f32
    %767 = vector.broadcast %cst_208 : f32 to vector<1x256xf32>
    %768 = arith.mulf %766, %767 : vector<1x256xf32>
    %cst_209 = arith.constant 1.000000e+00 : f32
    %769 = vector.broadcast %cst_209 : f32 to vector<1x256xf32>
    %770 = arith.subf %768, %769 : vector<1x256xf32>
    %cst_210 = arith.constant 5.000000e-01 : f32
    %771 = vector.broadcast %cst_210 : f32 to vector<1x256xf32>
    %772 = arith.mulf %770, %771 : vector<1x256xf32>
    %cst_211 = arith.constant 1.000000e+00 : f32
    %773 = vector.broadcast %cst_211 : f32 to vector<1x256xf32>
    %774 = arith.addf %764, %773 : vector<1x256xf32>
    %cst_212 = arith.constant 1.600000e+01 : f32
    %775 = vector.broadcast %cst_212 : f32 to vector<1x256xf32>
    %776 = arith.mulf %774, %775 : vector<1x256xf32>
    %cst_213 = arith.constant 1.000000e+00 : f32
    %777 = vector.broadcast %cst_213 : f32 to vector<1x256xf32>
    %778 = arith.subf %776, %777 : vector<1x256xf32>
    %cst_214 = arith.constant 5.000000e-01 : f32
    %779 = vector.broadcast %cst_214 : f32 to vector<1x256xf32>
    %780 = arith.mulf %778, %779 : vector<1x256xf32>
    %781 = math.floor %772 : vector<1x256xf32>
    %782 = math.floor %780 : vector<1x256xf32>
    %783 = arith.subf %772, %781 : vector<1x256xf32>
    %784 = arith.subf %780, %782 : vector<1x256xf32>
    %cst_215 = arith.constant 1.000000e+00 : f32
    %785 = vector.broadcast %cst_215 : f32 to vector<1x256xf32>
    %786 = arith.subf %785, %783 : vector<1x256xf32>
    %cst_216 = arith.constant 1.000000e+00 : f32
    %787 = vector.broadcast %cst_216 : f32 to vector<1x256xf32>
    %788 = arith.subf %787, %784 : vector<1x256xf32>
    %789 = arith.mulf %786, %788 : vector<1x256xf32>
    %cst_217 = arith.constant 0.000000e+00 : f32
    %790 = vector.broadcast %cst_217 : f32 to vector<1x256xf32>
    %791 = arith.cmpf oge, %781, %790 : vector<1x256xf32>
    %cst_218 = arith.constant 1.500000e+01 : f32
    %792 = vector.broadcast %cst_218 : f32 to vector<1x256xf32>
    %793 = arith.cmpf ole, %781, %792 : vector<1x256xf32>
    %794 = arith.andi %791, %793 : vector<1x256xi1>
    %cst_219 = arith.constant 0.000000e+00 : f32
    %795 = vector.broadcast %cst_219 : f32 to vector<1x256xf32>
    %796 = arith.cmpf oge, %782, %795 : vector<1x256xf32>
    %797 = arith.andi %794, %796 : vector<1x256xi1>
    %cst_220 = arith.constant 1.500000e+01 : f32
    %798 = vector.broadcast %cst_220 : f32 to vector<1x256xf32>
    %799 = arith.cmpf ole, %782, %798 : vector<1x256xf32>
    %800 = arith.andi %797, %799 : vector<1x256xi1>
    %801 = arith.extui %800 : vector<1x256xi1> to vector<1x256xi32>
    %802 = arith.sitofp %801 : vector<1x256xi32> to vector<1x256xf32>
    %803 = arith.mulf %789, %802 : vector<1x256xf32>
    %cst_221 = arith.constant 1.000000e+00 : f32
    %804 = vector.broadcast %cst_221 : f32 to vector<1x256xf32>
    %805 = arith.subf %804, %784 : vector<1x256xf32>
    %806 = arith.mulf %783, %805 : vector<1x256xf32>
    %cst_222 = arith.constant 1.000000e+00 : f32
    %807 = vector.broadcast %cst_222 : f32 to vector<1x256xf32>
    %808 = arith.addf %781, %807 : vector<1x256xf32>
    %cst_223 = arith.constant 0.000000e+00 : f32
    %809 = vector.broadcast %cst_223 : f32 to vector<1x256xf32>
    %810 = arith.cmpf oge, %808, %809 : vector<1x256xf32>
    %cst_224 = arith.constant 1.500000e+01 : f32
    %811 = vector.broadcast %cst_224 : f32 to vector<1x256xf32>
    %812 = arith.cmpf ole, %808, %811 : vector<1x256xf32>
    %813 = arith.andi %810, %812 : vector<1x256xi1>
    %cst_225 = arith.constant 0.000000e+00 : f32
    %814 = vector.broadcast %cst_225 : f32 to vector<1x256xf32>
    %815 = arith.cmpf oge, %782, %814 : vector<1x256xf32>
    %816 = arith.andi %813, %815 : vector<1x256xi1>
    %cst_226 = arith.constant 1.500000e+01 : f32
    %817 = vector.broadcast %cst_226 : f32 to vector<1x256xf32>
    %818 = arith.cmpf ole, %782, %817 : vector<1x256xf32>
    %819 = arith.andi %816, %818 : vector<1x256xi1>
    %820 = arith.extui %819 : vector<1x256xi1> to vector<1x256xi32>
    %821 = arith.sitofp %820 : vector<1x256xi32> to vector<1x256xf32>
    %822 = arith.mulf %806, %821 : vector<1x256xf32>
    %823 = arith.addf %803, %822 : vector<1x256xf32>
    %cst_227 = arith.constant 1.000000e+00 : f32
    %824 = vector.broadcast %cst_227 : f32 to vector<1x256xf32>
    %825 = arith.subf %824, %783 : vector<1x256xf32>
    %826 = arith.mulf %825, %784 : vector<1x256xf32>
    %cst_228 = arith.constant 1.000000e+00 : f32
    %827 = vector.broadcast %cst_228 : f32 to vector<1x256xf32>
    %828 = arith.addf %782, %827 : vector<1x256xf32>
    %cst_229 = arith.constant 0.000000e+00 : f32
    %829 = vector.broadcast %cst_229 : f32 to vector<1x256xf32>
    %830 = arith.cmpf oge, %781, %829 : vector<1x256xf32>
    %cst_230 = arith.constant 1.500000e+01 : f32
    %831 = vector.broadcast %cst_230 : f32 to vector<1x256xf32>
    %832 = arith.cmpf ole, %781, %831 : vector<1x256xf32>
    %833 = arith.andi %830, %832 : vector<1x256xi1>
    %cst_231 = arith.constant 0.000000e+00 : f32
    %834 = vector.broadcast %cst_231 : f32 to vector<1x256xf32>
    %835 = arith.cmpf oge, %828, %834 : vector<1x256xf32>
    %836 = arith.andi %833, %835 : vector<1x256xi1>
    %cst_232 = arith.constant 1.500000e+01 : f32
    %837 = vector.broadcast %cst_232 : f32 to vector<1x256xf32>
    %838 = arith.cmpf ole, %828, %837 : vector<1x256xf32>
    %839 = arith.andi %836, %838 : vector<1x256xi1>
    %840 = arith.extui %839 : vector<1x256xi1> to vector<1x256xi32>
    %841 = arith.sitofp %840 : vector<1x256xi32> to vector<1x256xf32>
    %842 = arith.mulf %826, %841 : vector<1x256xf32>
    %843 = arith.addf %823, %842 : vector<1x256xf32>
    %844 = arith.mulf %783, %784 : vector<1x256xf32>
    %cst_233 = arith.constant 1.000000e+00 : f32
    %845 = vector.broadcast %cst_233 : f32 to vector<1x256xf32>
    %846 = arith.addf %781, %845 : vector<1x256xf32>
    %cst_234 = arith.constant 1.000000e+00 : f32
    %847 = vector.broadcast %cst_234 : f32 to vector<1x256xf32>
    %848 = arith.addf %782, %847 : vector<1x256xf32>
    %cst_235 = arith.constant 0.000000e+00 : f32
    %849 = vector.broadcast %cst_235 : f32 to vector<1x256xf32>
    %850 = arith.cmpf oge, %846, %849 : vector<1x256xf32>
    %cst_236 = arith.constant 1.500000e+01 : f32
    %851 = vector.broadcast %cst_236 : f32 to vector<1x256xf32>
    %852 = arith.cmpf ole, %846, %851 : vector<1x256xf32>
    %853 = arith.andi %850, %852 : vector<1x256xi1>
    %cst_237 = arith.constant 0.000000e+00 : f32
    %854 = vector.broadcast %cst_237 : f32 to vector<1x256xf32>
    %855 = arith.cmpf oge, %848, %854 : vector<1x256xf32>
    %856 = arith.andi %853, %855 : vector<1x256xi1>
    %cst_238 = arith.constant 1.500000e+01 : f32
    %857 = vector.broadcast %cst_238 : f32 to vector<1x256xf32>
    %858 = arith.cmpf ole, %848, %857 : vector<1x256xf32>
    %859 = arith.andi %856, %858 : vector<1x256xi1>
    %860 = arith.extui %859 : vector<1x256xi1> to vector<1x256xi32>
    %861 = arith.sitofp %860 : vector<1x256xi32> to vector<1x256xf32>
    %862 = arith.mulf %844, %861 : vector<1x256xf32>
    %863 = arith.addf %843, %862 : vector<1x256xf32>
    %cst_239 = arith.constant 9.990000e-01 : f32
    %864 = vector.broadcast %cst_239 : f32 to vector<1x256xf32>
    %865 = arith.cmpf oge, %863, %864 : vector<1x256xf32>
    %866 = arith.extui %865 : vector<1x256xi1> to vector<1x256xi32>
    %867 = arith.sitofp %866 : vector<1x256xi32> to vector<1x256xf32>
    %cst_240 = arith.constant 0.000000e+00 : f32
    %cst_241 = arith.constant 1.500000e+01 : f32
    %868 = vector.broadcast %cst_240 : f32 to vector<1x256xf32>
    %869 = arith.maximumf %868, %772 : vector<1x256xf32>
    %870 = vector.broadcast %cst_241 : f32 to vector<1x256xf32>
    %871 = arith.minimumf %870, %869 : vector<1x256xf32>
    %cst_242 = arith.constant 0.000000e+00 : f32
    %cst_243 = arith.constant 1.500000e+01 : f32
    %872 = vector.broadcast %cst_242 : f32 to vector<1x256xf32>
    %873 = arith.maximumf %872, %780 : vector<1x256xf32>
    %874 = vector.broadcast %cst_243 : f32 to vector<1x256xf32>
    %875 = arith.minimumf %874, %873 : vector<1x256xf32>
    %876 = math.floor %871 : vector<1x256xf32>
    %877 = math.floor %875 : vector<1x256xf32>
    %878 = arith.subf %871, %876 : vector<1x256xf32>
    %879 = arith.subf %875, %877 : vector<1x256xf32>
    %880 = arith.fptosi %876 : vector<1x256xf32> to vector<1x256xi32>
    %881 = arith.fptosi %877 : vector<1x256xf32> to vector<1x256xi32>
    %c1_i32_244 = arith.constant 1 : i32
    %882 = vector.broadcast %c1_i32_244 : i32 to vector<1x256xi32>
    %883 = arith.addi %880, %882 : vector<1x256xi32>
    %c15_i32_245 = arith.constant 15 : i32
    %884 = vector.broadcast %c15_i32_245 : i32 to vector<1x256xi32>
    %885 = arith.minsi %883, %884 : vector<1x256xi32>
    %c1_i32_246 = arith.constant 1 : i32
    %886 = vector.broadcast %c1_i32_246 : i32 to vector<1x256xi32>
    %887 = arith.addi %881, %886 : vector<1x256xi32>
    %c15_i32_247 = arith.constant 15 : i32
    %888 = vector.broadcast %c15_i32_247 : i32 to vector<1x256xi32>
    %889 = arith.minsi %887, %888 : vector<1x256xi32>
    %890 = vector.broadcast %880 : vector<1x256xi32> to vector<16x256xi32>
    %891 = arith.cmpi eq, %108, %890 : vector<16x256xi32>
    %cst_248 = arith.constant 1.000000e+00 : f32
    %892 = vector.broadcast %cst_248 : f32 to vector<1x256xf32>
    %893 = arith.subf %892, %878 : vector<1x256xf32>
    %cst_249 = arith.constant 0.000000e+00 : f32
    %894 = vector.shape_cast %893 : vector<1x256xf32> to vector<1x256xf32>
    %895 = vector.broadcast %894 : vector<1x256xf32> to vector<16x256xf32>
    %896 = vector.broadcast %cst_249 : f32 to vector<16x256xf32>
    %897 = arith.select %891, %895, %896 : vector<16x256xi1>, vector<16x256xf32>
    %898 = vector.broadcast %885 : vector<1x256xi32> to vector<16x256xi32>
    %899 = arith.cmpi eq, %108, %898 : vector<16x256xi32>
    %cst_250 = arith.constant 0.000000e+00 : f32
    %900 = vector.shape_cast %878 : vector<1x256xf32> to vector<1x256xf32>
    %901 = vector.broadcast %900 : vector<1x256xf32> to vector<16x256xf32>
    %902 = vector.broadcast %cst_250 : f32 to vector<16x256xf32>
    %903 = arith.select %899, %901, %902 : vector<16x256xi1>, vector<16x256xf32>
    %904 = arith.addf %897, %903 : vector<16x256xf32>
    %905 = vector.broadcast %881 : vector<1x256xi32> to vector<16x256xi32>
    %906 = arith.cmpi eq, %109, %905 : vector<16x256xi32>
    %cst_251 = arith.constant 1.000000e+00 : f32
    %907 = vector.broadcast %cst_251 : f32 to vector<1x256xf32>
    %908 = arith.subf %907, %879 : vector<1x256xf32>
    %cst_252 = arith.constant 0.000000e+00 : f32
    %909 = vector.shape_cast %908 : vector<1x256xf32> to vector<1x256xf32>
    %910 = vector.broadcast %909 : vector<1x256xf32> to vector<16x256xf32>
    %911 = vector.broadcast %cst_252 : f32 to vector<16x256xf32>
    %912 = arith.select %906, %910, %911 : vector<16x256xi1>, vector<16x256xf32>
    %913 = vector.broadcast %889 : vector<1x256xi32> to vector<16x256xi32>
    %914 = arith.cmpi eq, %109, %913 : vector<16x256xi32>
    %cst_253 = arith.constant 0.000000e+00 : f32
    %915 = vector.shape_cast %879 : vector<1x256xf32> to vector<1x256xf32>
    %916 = vector.broadcast %915 : vector<1x256xf32> to vector<16x256xf32>
    %917 = vector.broadcast %cst_253 : f32 to vector<16x256xf32>
    %918 = arith.select %914, %916, %917 : vector<16x256xi1>, vector<16x256xf32>
    %919 = arith.addf %912, %918 : vector<16x256xf32>
    %cst_254 = arith.constant dense<0.000000e+00> : vector<128x256xf32>
    %920 = tpu.matmul %93, %904, %cst_254 {dimension_numbers = #tpu.dot_dimension_numbers<[1], [0], [0], [1], [0, 0, 1, 1], [], []>} : vector<128x16xf32>, vector<16x256xf32>, vector<128x256xf32> -> vector<128x256xf32>
    %cst_255 = arith.constant 0.000000e+00 : f32
    %921 = vector.broadcast %cst_255 : f32 to vector<1x256xf32>
    %922 = vector.extract_strided_slice %920 {offsets = [0, 0], sizes = [16, 256], strides = [1, 1]} : vector<128x256xf32> to vector<16x256xf32>
    %923 = arith.mulf %922, %919 : vector<16x256xf32>
    %cst_256 = arith.constant dense<0.000000e+00> : vector<256xf32>
    %924 = vector.multi_reduction <add>, %923, %cst_256 [0] : vector<16x256xf32> to vector<256xf32>
    %925 = vector.shape_cast %924 : vector<256xf32> to vector<1x256xf32>
    %926 = arith.mulf %718, %925 : vector<1x256xf32>
    %927 = arith.addf %921, %926 : vector<1x256xf32>
    %928 = vector.extract_strided_slice %920 {offsets = [16, 0], sizes = [16, 256], strides = [1, 1]} : vector<128x256xf32> to vector<16x256xf32>
    %929 = arith.mulf %928, %919 : vector<16x256xf32>
    %cst_257 = arith.constant dense<0.000000e+00> : vector<256xf32>
    %930 = vector.multi_reduction <add>, %929, %cst_257 [0] : vector<16x256xf32> to vector<256xf32>
    %931 = vector.shape_cast %930 : vector<256xf32> to vector<1x256xf32>
    %932 = arith.mulf %722, %931 : vector<1x256xf32>
    %933 = arith.addf %927, %932 : vector<1x256xf32>
    %934 = vector.extract_strided_slice %920 {offsets = [32, 0], sizes = [16, 256], strides = [1, 1]} : vector<128x256xf32> to vector<16x256xf32>
    %935 = arith.mulf %934, %919 : vector<16x256xf32>
    %cst_258 = arith.constant dense<0.000000e+00> : vector<256xf32>
    %936 = vector.multi_reduction <add>, %935, %cst_258 [0] : vector<16x256xf32> to vector<256xf32>
    %937 = vector.shape_cast %936 : vector<256xf32> to vector<1x256xf32>
    %938 = arith.mulf %726, %937 : vector<1x256xf32>
    %939 = arith.addf %933, %938 : vector<1x256xf32>
    %940 = vector.extract_strided_slice %920 {offsets = [48, 0], sizes = [16, 256], strides = [1, 1]} : vector<128x256xf32> to vector<16x256xf32>
    %941 = arith.mulf %940, %919 : vector<16x256xf32>
    %cst_259 = arith.constant dense<0.000000e+00> : vector<256xf32>
    %942 = vector.multi_reduction <add>, %941, %cst_259 [0] : vector<16x256xf32> to vector<256xf32>
    %943 = vector.shape_cast %942 : vector<256xf32> to vector<1x256xf32>
    %944 = arith.mulf %730, %943 : vector<1x256xf32>
    %945 = arith.addf %939, %944 : vector<1x256xf32>
    %946 = vector.extract_strided_slice %920 {offsets = [64, 0], sizes = [16, 256], strides = [1, 1]} : vector<128x256xf32> to vector<16x256xf32>
    %947 = arith.mulf %946, %919 : vector<16x256xf32>
    %cst_260 = arith.constant dense<0.000000e+00> : vector<256xf32>
    %948 = vector.multi_reduction <add>, %947, %cst_260 [0] : vector<16x256xf32> to vector<256xf32>
    %949 = vector.shape_cast %948 : vector<256xf32> to vector<1x256xf32>
    %950 = arith.mulf %734, %949 : vector<1x256xf32>
    %951 = arith.addf %945, %950 : vector<1x256xf32>
    %952 = vector.extract_strided_slice %920 {offsets = [80, 0], sizes = [16, 256], strides = [1, 1]} : vector<128x256xf32> to vector<16x256xf32>
    %953 = arith.mulf %952, %919 : vector<16x256xf32>
    %cst_261 = arith.constant dense<0.000000e+00> : vector<256xf32>
    %954 = vector.multi_reduction <add>, %953, %cst_261 [0] : vector<16x256xf32> to vector<256xf32>
    %955 = vector.shape_cast %954 : vector<256xf32> to vector<1x256xf32>
    %956 = arith.mulf %738, %955 : vector<1x256xf32>
    %957 = arith.addf %951, %956 : vector<1x256xf32>
    %958 = vector.extract_strided_slice %920 {offsets = [96, 0], sizes = [16, 256], strides = [1, 1]} : vector<128x256xf32> to vector<16x256xf32>
    %959 = arith.mulf %958, %919 : vector<16x256xf32>
    %cst_262 = arith.constant dense<0.000000e+00> : vector<256xf32>
    %960 = vector.multi_reduction <add>, %959, %cst_262 [0] : vector<16x256xf32> to vector<256xf32>
    %961 = vector.shape_cast %960 : vector<256xf32> to vector<1x256xf32>
    %962 = arith.mulf %742, %961 : vector<1x256xf32>
    %963 = arith.addf %957, %962 : vector<1x256xf32>
    %964 = vector.extract_strided_slice %920 {offsets = [112, 0], sizes = [16, 256], strides = [1, 1]} : vector<128x256xf32> to vector<16x256xf32>
    %965 = arith.mulf %964, %919 : vector<16x256xf32>
    %cst_263 = arith.constant dense<0.000000e+00> : vector<256xf32>
    %966 = vector.multi_reduction <add>, %965, %cst_263 [0] : vector<16x256xf32> to vector<256xf32>
    %967 = vector.shape_cast %966 : vector<256xf32> to vector<1x256xf32>
    %968 = arith.mulf %746, %967 : vector<1x256xf32>
    %969 = arith.addf %963, %968 : vector<1x256xf32>
    %970 = arith.mulf %661, %867 : vector<1x256xf32>
    %971 = arith.mulf %969, %970 : vector<1x256xf32>
    %cst_264 = arith.constant 0.000000e+00 : f32
    %972 = vector.broadcast %cst_264 : f32 to vector<1x256xf32>
    %973 = arith.addf %96, %972 : vector<1x256xf32>
    %cst_265 = arith.constant -1.000000e+00 : f32
    %974 = vector.broadcast %cst_265 : f32 to vector<1x256xf32>
    %975 = arith.mulf %974, %973 : vector<1x256xf32>
    %976 = arith.addf %107, %975 : vector<1x256xf32>
    %977 = vector.broadcast %1 : f32 to vector<1x256xf32>
    %978 = arith.addf %97, %977 : vector<1x256xf32>
    %cst_266 = arith.constant -1.000000e+00 : f32
    %979 = vector.broadcast %cst_266 : f32 to vector<1x256xf32>
    %980 = arith.mulf %979, %978 : vector<1x256xf32>
    %981 = arith.addf %104, %980 : vector<1x256xf32>
    %cst_267 = arith.constant 0.13333334 : f32
    %982 = vector.broadcast %cst_267 : f32 to vector<1x256xf32>
    %983 = arith.mulf %982, %976 : vector<1x256xf32>
    %cst_268 = arith.constant 1.000000e+00 : f32
    %984 = vector.broadcast %cst_268 : f32 to vector<1x256xf32>
    %985 = arith.subf %983, %984 : vector<1x256xf32>
    %cst_269 = arith.constant 0.13333334 : f32
    %986 = vector.broadcast %cst_269 : f32 to vector<1x256xf32>
    %987 = arith.mulf %986, %981 : vector<1x256xf32>
    %cst_270 = arith.constant 1.000000e+00 : f32
    %988 = vector.broadcast %cst_270 : f32 to vector<1x256xf32>
    %989 = arith.subf %987, %988 : vector<1x256xf32>
    %cst_271 = arith.constant 1.000000e+00 : f32
    %990 = vector.broadcast %cst_271 : f32 to vector<1x256xf32>
    %991 = arith.addf %985, %990 : vector<1x256xf32>
    %cst_272 = arith.constant 1.600000e+01 : f32
    %992 = vector.broadcast %cst_272 : f32 to vector<1x256xf32>
    %993 = arith.mulf %991, %992 : vector<1x256xf32>
    %cst_273 = arith.constant 1.000000e+00 : f32
    %994 = vector.broadcast %cst_273 : f32 to vector<1x256xf32>
    %995 = arith.subf %993, %994 : vector<1x256xf32>
    %cst_274 = arith.constant 5.000000e-01 : f32
    %996 = vector.broadcast %cst_274 : f32 to vector<1x256xf32>
    %997 = arith.mulf %995, %996 : vector<1x256xf32>
    %cst_275 = arith.constant 1.000000e+00 : f32
    %998 = vector.broadcast %cst_275 : f32 to vector<1x256xf32>
    %999 = arith.addf %989, %998 : vector<1x256xf32>
    %cst_276 = arith.constant 1.600000e+01 : f32
    %1000 = vector.broadcast %cst_276 : f32 to vector<1x256xf32>
    %1001 = arith.mulf %999, %1000 : vector<1x256xf32>
    %cst_277 = arith.constant 1.000000e+00 : f32
    %1002 = vector.broadcast %cst_277 : f32 to vector<1x256xf32>
    %1003 = arith.subf %1001, %1002 : vector<1x256xf32>
    %cst_278 = arith.constant 5.000000e-01 : f32
    %1004 = vector.broadcast %cst_278 : f32 to vector<1x256xf32>
    %1005 = arith.mulf %1003, %1004 : vector<1x256xf32>
    %1006 = math.floor %997 : vector<1x256xf32>
    %1007 = math.floor %1005 : vector<1x256xf32>
    %1008 = arith.subf %997, %1006 : vector<1x256xf32>
    %1009 = arith.subf %1005, %1007 : vector<1x256xf32>
    %cst_279 = arith.constant 1.000000e+00 : f32
    %1010 = vector.broadcast %cst_279 : f32 to vector<1x256xf32>
    %1011 = arith.subf %1010, %1008 : vector<1x256xf32>
    %cst_280 = arith.constant 1.000000e+00 : f32
    %1012 = vector.broadcast %cst_280 : f32 to vector<1x256xf32>
    %1013 = arith.subf %1012, %1009 : vector<1x256xf32>
    %1014 = arith.mulf %1011, %1013 : vector<1x256xf32>
    %cst_281 = arith.constant 0.000000e+00 : f32
    %1015 = vector.broadcast %cst_281 : f32 to vector<1x256xf32>
    %1016 = arith.cmpf oge, %1006, %1015 : vector<1x256xf32>
    %cst_282 = arith.constant 1.500000e+01 : f32
    %1017 = vector.broadcast %cst_282 : f32 to vector<1x256xf32>
    %1018 = arith.cmpf ole, %1006, %1017 : vector<1x256xf32>
    %1019 = arith.andi %1016, %1018 : vector<1x256xi1>
    %cst_283 = arith.constant 0.000000e+00 : f32
    %1020 = vector.broadcast %cst_283 : f32 to vector<1x256xf32>
    %1021 = arith.cmpf oge, %1007, %1020 : vector<1x256xf32>
    %1022 = arith.andi %1019, %1021 : vector<1x256xi1>
    %cst_284 = arith.constant 1.500000e+01 : f32
    %1023 = vector.broadcast %cst_284 : f32 to vector<1x256xf32>
    %1024 = arith.cmpf ole, %1007, %1023 : vector<1x256xf32>
    %1025 = arith.andi %1022, %1024 : vector<1x256xi1>
    %1026 = arith.extui %1025 : vector<1x256xi1> to vector<1x256xi32>
    %1027 = arith.sitofp %1026 : vector<1x256xi32> to vector<1x256xf32>
    %1028 = arith.mulf %1014, %1027 : vector<1x256xf32>
    %cst_285 = arith.constant 1.000000e+00 : f32
    %1029 = vector.broadcast %cst_285 : f32 to vector<1x256xf32>
    %1030 = arith.subf %1029, %1009 : vector<1x256xf32>
    %1031 = arith.mulf %1008, %1030 : vector<1x256xf32>
    %cst_286 = arith.constant 1.000000e+00 : f32
    %1032 = vector.broadcast %cst_286 : f32 to vector<1x256xf32>
    %1033 = arith.addf %1006, %1032 : vector<1x256xf32>
    %cst_287 = arith.constant 0.000000e+00 : f32
    %1034 = vector.broadcast %cst_287 : f32 to vector<1x256xf32>
    %1035 = arith.cmpf oge, %1033, %1034 : vector<1x256xf32>
    %cst_288 = arith.constant 1.500000e+01 : f32
    %1036 = vector.broadcast %cst_288 : f32 to vector<1x256xf32>
    %1037 = arith.cmpf ole, %1033, %1036 : vector<1x256xf32>
    %1038 = arith.andi %1035, %1037 : vector<1x256xi1>
    %cst_289 = arith.constant 0.000000e+00 : f32
    %1039 = vector.broadcast %cst_289 : f32 to vector<1x256xf32>
    %1040 = arith.cmpf oge, %1007, %1039 : vector<1x256xf32>
    %1041 = arith.andi %1038, %1040 : vector<1x256xi1>
    %cst_290 = arith.constant 1.500000e+01 : f32
    %1042 = vector.broadcast %cst_290 : f32 to vector<1x256xf32>
    %1043 = arith.cmpf ole, %1007, %1042 : vector<1x256xf32>
    %1044 = arith.andi %1041, %1043 : vector<1x256xi1>
    %1045 = arith.extui %1044 : vector<1x256xi1> to vector<1x256xi32>
    %1046 = arith.sitofp %1045 : vector<1x256xi32> to vector<1x256xf32>
    %1047 = arith.mulf %1031, %1046 : vector<1x256xf32>
    %1048 = arith.addf %1028, %1047 : vector<1x256xf32>
    %cst_291 = arith.constant 1.000000e+00 : f32
    %1049 = vector.broadcast %cst_291 : f32 to vector<1x256xf32>
    %1050 = arith.subf %1049, %1008 : vector<1x256xf32>
    %1051 = arith.mulf %1050, %1009 : vector<1x256xf32>
    %cst_292 = arith.constant 1.000000e+00 : f32
    %1052 = vector.broadcast %cst_292 : f32 to vector<1x256xf32>
    %1053 = arith.addf %1007, %1052 : vector<1x256xf32>
    %cst_293 = arith.constant 0.000000e+00 : f32
    %1054 = vector.broadcast %cst_293 : f32 to vector<1x256xf32>
    %1055 = arith.cmpf oge, %1006, %1054 : vector<1x256xf32>
    %cst_294 = arith.constant 1.500000e+01 : f32
    %1056 = vector.broadcast %cst_294 : f32 to vector<1x256xf32>
    %1057 = arith.cmpf ole, %1006, %1056 : vector<1x256xf32>
    %1058 = arith.andi %1055, %1057 : vector<1x256xi1>
    %cst_295 = arith.constant 0.000000e+00 : f32
    %1059 = vector.broadcast %cst_295 : f32 to vector<1x256xf32>
    %1060 = arith.cmpf oge, %1053, %1059 : vector<1x256xf32>
    %1061 = arith.andi %1058, %1060 : vector<1x256xi1>
    %cst_296 = arith.constant 1.500000e+01 : f32
    %1062 = vector.broadcast %cst_296 : f32 to vector<1x256xf32>
    %1063 = arith.cmpf ole, %1053, %1062 : vector<1x256xf32>
    %1064 = arith.andi %1061, %1063 : vector<1x256xi1>
    %1065 = arith.extui %1064 : vector<1x256xi1> to vector<1x256xi32>
    %1066 = arith.sitofp %1065 : vector<1x256xi32> to vector<1x256xf32>
    %1067 = arith.mulf %1051, %1066 : vector<1x256xf32>
    %1068 = arith.addf %1048, %1067 : vector<1x256xf32>
    %1069 = arith.mulf %1008, %1009 : vector<1x256xf32>
    %cst_297 = arith.constant 1.000000e+00 : f32
    %1070 = vector.broadcast %cst_297 : f32 to vector<1x256xf32>
    %1071 = arith.addf %1006, %1070 : vector<1x256xf32>
    %cst_298 = arith.constant 1.000000e+00 : f32
    %1072 = vector.broadcast %cst_298 : f32 to vector<1x256xf32>
    %1073 = arith.addf %1007, %1072 : vector<1x256xf32>
    %cst_299 = arith.constant 0.000000e+00 : f32
    %1074 = vector.broadcast %cst_299 : f32 to vector<1x256xf32>
    %1075 = arith.cmpf oge, %1071, %1074 : vector<1x256xf32>
    %cst_300 = arith.constant 1.500000e+01 : f32
    %1076 = vector.broadcast %cst_300 : f32 to vector<1x256xf32>
    %1077 = arith.cmpf ole, %1071, %1076 : vector<1x256xf32>
    %1078 = arith.andi %1075, %1077 : vector<1x256xi1>
    %cst_301 = arith.constant 0.000000e+00 : f32
    %1079 = vector.broadcast %cst_301 : f32 to vector<1x256xf32>
    %1080 = arith.cmpf oge, %1073, %1079 : vector<1x256xf32>
    %1081 = arith.andi %1078, %1080 : vector<1x256xi1>
    %cst_302 = arith.constant 1.500000e+01 : f32
    %1082 = vector.broadcast %cst_302 : f32 to vector<1x256xf32>
    %1083 = arith.cmpf ole, %1073, %1082 : vector<1x256xf32>
    %1084 = arith.andi %1081, %1083 : vector<1x256xi1>
    %1085 = arith.extui %1084 : vector<1x256xi1> to vector<1x256xi32>
    %1086 = arith.sitofp %1085 : vector<1x256xi32> to vector<1x256xf32>
    %1087 = arith.mulf %1069, %1086 : vector<1x256xf32>
    %1088 = arith.addf %1068, %1087 : vector<1x256xf32>
    %cst_303 = arith.constant 9.990000e-01 : f32
    %1089 = vector.broadcast %cst_303 : f32 to vector<1x256xf32>
    %1090 = arith.cmpf oge, %1088, %1089 : vector<1x256xf32>
    %1091 = arith.extui %1090 : vector<1x256xi1> to vector<1x256xi32>
    %1092 = arith.sitofp %1091 : vector<1x256xi32> to vector<1x256xf32>
    %cst_304 = arith.constant 0.000000e+00 : f32
    %cst_305 = arith.constant 1.500000e+01 : f32
    %1093 = vector.broadcast %cst_304 : f32 to vector<1x256xf32>
    %1094 = arith.maximumf %1093, %997 : vector<1x256xf32>
    %1095 = vector.broadcast %cst_305 : f32 to vector<1x256xf32>
    %1096 = arith.minimumf %1095, %1094 : vector<1x256xf32>
    %cst_306 = arith.constant 0.000000e+00 : f32
    %cst_307 = arith.constant 1.500000e+01 : f32
    %1097 = vector.broadcast %cst_306 : f32 to vector<1x256xf32>
    %1098 = arith.maximumf %1097, %1005 : vector<1x256xf32>
    %1099 = vector.broadcast %cst_307 : f32 to vector<1x256xf32>
    %1100 = arith.minimumf %1099, %1098 : vector<1x256xf32>
    %1101 = math.floor %1096 : vector<1x256xf32>
    %1102 = math.floor %1100 : vector<1x256xf32>
    %1103 = arith.subf %1096, %1101 : vector<1x256xf32>
    %1104 = arith.subf %1100, %1102 : vector<1x256xf32>
    %1105 = arith.fptosi %1101 : vector<1x256xf32> to vector<1x256xi32>
    %1106 = arith.fptosi %1102 : vector<1x256xf32> to vector<1x256xi32>
    %c1_i32_308 = arith.constant 1 : i32
    %1107 = vector.broadcast %c1_i32_308 : i32 to vector<1x256xi32>
    %1108 = arith.addi %1105, %1107 : vector<1x256xi32>
    %c15_i32_309 = arith.constant 15 : i32
    %1109 = vector.broadcast %c15_i32_309 : i32 to vector<1x256xi32>
    %1110 = arith.minsi %1108, %1109 : vector<1x256xi32>
    %c1_i32_310 = arith.constant 1 : i32
    %1111 = vector.broadcast %c1_i32_310 : i32 to vector<1x256xi32>
    %1112 = arith.addi %1106, %1111 : vector<1x256xi32>
    %c15_i32_311 = arith.constant 15 : i32
    %1113 = vector.broadcast %c15_i32_311 : i32 to vector<1x256xi32>
    %1114 = arith.minsi %1112, %1113 : vector<1x256xi32>
    %1115 = vector.broadcast %1105 : vector<1x256xi32> to vector<16x256xi32>
    %1116 = arith.cmpi eq, %108, %1115 : vector<16x256xi32>
    %cst_312 = arith.constant 1.000000e+00 : f32
    %1117 = vector.broadcast %cst_312 : f32 to vector<1x256xf32>
    %1118 = arith.subf %1117, %1103 : vector<1x256xf32>
    %cst_313 = arith.constant 0.000000e+00 : f32
    %1119 = vector.shape_cast %1118 : vector<1x256xf32> to vector<1x256xf32>
    %1120 = vector.broadcast %1119 : vector<1x256xf32> to vector<16x256xf32>
    %1121 = vector.broadcast %cst_313 : f32 to vector<16x256xf32>
    %1122 = arith.select %1116, %1120, %1121 : vector<16x256xi1>, vector<16x256xf32>
    %1123 = vector.broadcast %1110 : vector<1x256xi32> to vector<16x256xi32>
    %1124 = arith.cmpi eq, %108, %1123 : vector<16x256xi32>
    %cst_314 = arith.constant 0.000000e+00 : f32
    %1125 = vector.shape_cast %1103 : vector<1x256xf32> to vector<1x256xf32>
    %1126 = vector.broadcast %1125 : vector<1x256xf32> to vector<16x256xf32>
    %1127 = vector.broadcast %cst_314 : f32 to vector<16x256xf32>
    %1128 = arith.select %1124, %1126, %1127 : vector<16x256xi1>, vector<16x256xf32>
    %1129 = arith.addf %1122, %1128 : vector<16x256xf32>
    %1130 = vector.broadcast %1106 : vector<1x256xi32> to vector<16x256xi32>
    %1131 = arith.cmpi eq, %109, %1130 : vector<16x256xi32>
    %cst_315 = arith.constant 1.000000e+00 : f32
    %1132 = vector.broadcast %cst_315 : f32 to vector<1x256xf32>
    %1133 = arith.subf %1132, %1104 : vector<1x256xf32>
    %cst_316 = arith.constant 0.000000e+00 : f32
    %1134 = vector.shape_cast %1133 : vector<1x256xf32> to vector<1x256xf32>
    %1135 = vector.broadcast %1134 : vector<1x256xf32> to vector<16x256xf32>
    %1136 = vector.broadcast %cst_316 : f32 to vector<16x256xf32>
    %1137 = arith.select %1131, %1135, %1136 : vector<16x256xi1>, vector<16x256xf32>
    %1138 = vector.broadcast %1114 : vector<1x256xi32> to vector<16x256xi32>
    %1139 = arith.cmpi eq, %109, %1138 : vector<16x256xi32>
    %cst_317 = arith.constant 0.000000e+00 : f32
    %1140 = vector.shape_cast %1104 : vector<1x256xf32> to vector<1x256xf32>
    %1141 = vector.broadcast %1140 : vector<1x256xf32> to vector<16x256xf32>
    %1142 = vector.broadcast %cst_317 : f32 to vector<16x256xf32>
    %1143 = arith.select %1139, %1141, %1142 : vector<16x256xi1>, vector<16x256xf32>
    %1144 = arith.addf %1137, %1143 : vector<16x256xf32>
    %cst_318 = arith.constant dense<0.000000e+00> : vector<128x256xf32>
    %1145 = tpu.matmul %47, %1129, %cst_318 {dimension_numbers = #tpu.dot_dimension_numbers<[1], [0], [0], [1], [0, 0, 1, 1], [], []>} : vector<128x16xf32>, vector<16x256xf32>, vector<128x256xf32> -> vector<128x256xf32>
    %1146 = vector.extract_strided_slice %1145 {offsets = [0, 0], sizes = [16, 256], strides = [1, 1]} : vector<128x256xf32> to vector<16x256xf32>
    %1147 = arith.mulf %1146, %1144 : vector<16x256xf32>
    %cst_319 = arith.constant dense<0.000000e+00> : vector<256xf32>
    %1148 = vector.multi_reduction <add>, %1147, %cst_319 [0] : vector<16x256xf32> to vector<256xf32>
    %1149 = vector.shape_cast %1148 : vector<256xf32> to vector<1x256xf32>
    %1150 = vector.extract_strided_slice %1145 {offsets = [16, 0], sizes = [16, 256], strides = [1, 1]} : vector<128x256xf32> to vector<16x256xf32>
    %1151 = arith.mulf %1150, %1144 : vector<16x256xf32>
    %cst_320 = arith.constant dense<0.000000e+00> : vector<256xf32>
    %1152 = vector.multi_reduction <add>, %1151, %cst_320 [0] : vector<16x256xf32> to vector<256xf32>
    %1153 = vector.shape_cast %1152 : vector<256xf32> to vector<1x256xf32>
    %1154 = vector.extract_strided_slice %1145 {offsets = [32, 0], sizes = [16, 256], strides = [1, 1]} : vector<128x256xf32> to vector<16x256xf32>
    %1155 = arith.mulf %1154, %1144 : vector<16x256xf32>
    %cst_321 = arith.constant dense<0.000000e+00> : vector<256xf32>
    %1156 = vector.multi_reduction <add>, %1155, %cst_321 [0] : vector<16x256xf32> to vector<256xf32>
    %1157 = vector.shape_cast %1156 : vector<256xf32> to vector<1x256xf32>
    %1158 = vector.extract_strided_slice %1145 {offsets = [48, 0], sizes = [16, 256], strides = [1, 1]} : vector<128x256xf32> to vector<16x256xf32>
    %1159 = arith.mulf %1158, %1144 : vector<16x256xf32>
    %cst_322 = arith.constant dense<0.000000e+00> : vector<256xf32>
    %1160 = vector.multi_reduction <add>, %1159, %cst_322 [0] : vector<16x256xf32> to vector<256xf32>
    %1161 = vector.shape_cast %1160 : vector<256xf32> to vector<1x256xf32>
    %1162 = vector.extract_strided_slice %1145 {offsets = [64, 0], sizes = [16, 256], strides = [1, 1]} : vector<128x256xf32> to vector<16x256xf32>
    %1163 = arith.mulf %1162, %1144 : vector<16x256xf32>
    %cst_323 = arith.constant dense<0.000000e+00> : vector<256xf32>
    %1164 = vector.multi_reduction <add>, %1163, %cst_323 [0] : vector<16x256xf32> to vector<256xf32>
    %1165 = vector.shape_cast %1164 : vector<256xf32> to vector<1x256xf32>
    %1166 = vector.extract_strided_slice %1145 {offsets = [80, 0], sizes = [16, 256], strides = [1, 1]} : vector<128x256xf32> to vector<16x256xf32>
    %1167 = arith.mulf %1166, %1144 : vector<16x256xf32>
    %cst_324 = arith.constant dense<0.000000e+00> : vector<256xf32>
    %1168 = vector.multi_reduction <add>, %1167, %cst_324 [0] : vector<16x256xf32> to vector<256xf32>
    %1169 = vector.shape_cast %1168 : vector<256xf32> to vector<1x256xf32>
    %1170 = vector.extract_strided_slice %1145 {offsets = [96, 0], sizes = [16, 256], strides = [1, 1]} : vector<128x256xf32> to vector<16x256xf32>
    %1171 = arith.mulf %1170, %1144 : vector<16x256xf32>
    %cst_325 = arith.constant dense<0.000000e+00> : vector<256xf32>
    %1172 = vector.multi_reduction <add>, %1171, %cst_325 [0] : vector<16x256xf32> to vector<256xf32>
    %1173 = vector.shape_cast %1172 : vector<256xf32> to vector<1x256xf32>
    %1174 = vector.extract_strided_slice %1145 {offsets = [112, 0], sizes = [16, 256], strides = [1, 1]} : vector<128x256xf32> to vector<16x256xf32>
    %1175 = arith.mulf %1174, %1144 : vector<16x256xf32>
    %cst_326 = arith.constant dense<0.000000e+00> : vector<256xf32>
    %1176 = vector.multi_reduction <add>, %1175, %cst_326 [0] : vector<16x256xf32> to vector<256xf32>
    %1177 = vector.shape_cast %1176 : vector<256xf32> to vector<1x256xf32>
    %cst_327 = arith.constant 0.000000e+00 : f32
    %1178 = vector.broadcast %cst_327 : f32 to vector<1x256xf32>
    %1179 = arith.addf %96, %1178 : vector<1x256xf32>
    %cst_328 = arith.constant 1.000000e+00 : f32
    %1180 = vector.broadcast %cst_328 : f32 to vector<1x256xf32>
    %1181 = arith.mulf %1180, %1179 : vector<1x256xf32>
    %1182 = arith.addf %107, %1181 : vector<1x256xf32>
    %1183 = vector.broadcast %1 : f32 to vector<1x256xf32>
    %1184 = arith.addf %97, %1183 : vector<1x256xf32>
    %cst_329 = arith.constant 1.000000e+00 : f32
    %1185 = vector.broadcast %cst_329 : f32 to vector<1x256xf32>
    %1186 = arith.mulf %1185, %1184 : vector<1x256xf32>
    %1187 = arith.addf %104, %1186 : vector<1x256xf32>
    %cst_330 = arith.constant 0.13333334 : f32
    %1188 = vector.broadcast %cst_330 : f32 to vector<1x256xf32>
    %1189 = arith.mulf %1188, %1182 : vector<1x256xf32>
    %cst_331 = arith.constant 1.000000e+00 : f32
    %1190 = vector.broadcast %cst_331 : f32 to vector<1x256xf32>
    %1191 = arith.subf %1189, %1190 : vector<1x256xf32>
    %cst_332 = arith.constant 0.13333334 : f32
    %1192 = vector.broadcast %cst_332 : f32 to vector<1x256xf32>
    %1193 = arith.mulf %1192, %1187 : vector<1x256xf32>
    %cst_333 = arith.constant 1.000000e+00 : f32
    %1194 = vector.broadcast %cst_333 : f32 to vector<1x256xf32>
    %1195 = arith.subf %1193, %1194 : vector<1x256xf32>
    %cst_334 = arith.constant 1.000000e+00 : f32
    %1196 = vector.broadcast %cst_334 : f32 to vector<1x256xf32>
    %1197 = arith.addf %1191, %1196 : vector<1x256xf32>
    %cst_335 = arith.constant 1.600000e+01 : f32
    %1198 = vector.broadcast %cst_335 : f32 to vector<1x256xf32>
    %1199 = arith.mulf %1197, %1198 : vector<1x256xf32>
    %cst_336 = arith.constant 1.000000e+00 : f32
    %1200 = vector.broadcast %cst_336 : f32 to vector<1x256xf32>
    %1201 = arith.subf %1199, %1200 : vector<1x256xf32>
    %cst_337 = arith.constant 5.000000e-01 : f32
    %1202 = vector.broadcast %cst_337 : f32 to vector<1x256xf32>
    %1203 = arith.mulf %1201, %1202 : vector<1x256xf32>
    %cst_338 = arith.constant 1.000000e+00 : f32
    %1204 = vector.broadcast %cst_338 : f32 to vector<1x256xf32>
    %1205 = arith.addf %1195, %1204 : vector<1x256xf32>
    %cst_339 = arith.constant 1.600000e+01 : f32
    %1206 = vector.broadcast %cst_339 : f32 to vector<1x256xf32>
    %1207 = arith.mulf %1205, %1206 : vector<1x256xf32>
    %cst_340 = arith.constant 1.000000e+00 : f32
    %1208 = vector.broadcast %cst_340 : f32 to vector<1x256xf32>
    %1209 = arith.subf %1207, %1208 : vector<1x256xf32>
    %cst_341 = arith.constant 5.000000e-01 : f32
    %1210 = vector.broadcast %cst_341 : f32 to vector<1x256xf32>
    %1211 = arith.mulf %1209, %1210 : vector<1x256xf32>
    %1212 = math.floor %1203 : vector<1x256xf32>
    %1213 = math.floor %1211 : vector<1x256xf32>
    %1214 = arith.subf %1203, %1212 : vector<1x256xf32>
    %1215 = arith.subf %1211, %1213 : vector<1x256xf32>
    %cst_342 = arith.constant 1.000000e+00 : f32
    %1216 = vector.broadcast %cst_342 : f32 to vector<1x256xf32>
    %1217 = arith.subf %1216, %1214 : vector<1x256xf32>
    %cst_343 = arith.constant 1.000000e+00 : f32
    %1218 = vector.broadcast %cst_343 : f32 to vector<1x256xf32>
    %1219 = arith.subf %1218, %1215 : vector<1x256xf32>
    %1220 = arith.mulf %1217, %1219 : vector<1x256xf32>
    %cst_344 = arith.constant 0.000000e+00 : f32
    %1221 = vector.broadcast %cst_344 : f32 to vector<1x256xf32>
    %1222 = arith.cmpf oge, %1212, %1221 : vector<1x256xf32>
    %cst_345 = arith.constant 1.500000e+01 : f32
    %1223 = vector.broadcast %cst_345 : f32 to vector<1x256xf32>
    %1224 = arith.cmpf ole, %1212, %1223 : vector<1x256xf32>
    %1225 = arith.andi %1222, %1224 : vector<1x256xi1>
    %cst_346 = arith.constant 0.000000e+00 : f32
    %1226 = vector.broadcast %cst_346 : f32 to vector<1x256xf32>
    %1227 = arith.cmpf oge, %1213, %1226 : vector<1x256xf32>
    %1228 = arith.andi %1225, %1227 : vector<1x256xi1>
    %cst_347 = arith.constant 1.500000e+01 : f32
    %1229 = vector.broadcast %cst_347 : f32 to vector<1x256xf32>
    %1230 = arith.cmpf ole, %1213, %1229 : vector<1x256xf32>
    %1231 = arith.andi %1228, %1230 : vector<1x256xi1>
    %1232 = arith.extui %1231 : vector<1x256xi1> to vector<1x256xi32>
    %1233 = arith.sitofp %1232 : vector<1x256xi32> to vector<1x256xf32>
    %1234 = arith.mulf %1220, %1233 : vector<1x256xf32>
    %cst_348 = arith.constant 1.000000e+00 : f32
    %1235 = vector.broadcast %cst_348 : f32 to vector<1x256xf32>
    %1236 = arith.subf %1235, %1215 : vector<1x256xf32>
    %1237 = arith.mulf %1214, %1236 : vector<1x256xf32>
    %cst_349 = arith.constant 1.000000e+00 : f32
    %1238 = vector.broadcast %cst_349 : f32 to vector<1x256xf32>
    %1239 = arith.addf %1212, %1238 : vector<1x256xf32>
    %cst_350 = arith.constant 0.000000e+00 : f32
    %1240 = vector.broadcast %cst_350 : f32 to vector<1x256xf32>
    %1241 = arith.cmpf oge, %1239, %1240 : vector<1x256xf32>
    %cst_351 = arith.constant 1.500000e+01 : f32
    %1242 = vector.broadcast %cst_351 : f32 to vector<1x256xf32>
    %1243 = arith.cmpf ole, %1239, %1242 : vector<1x256xf32>
    %1244 = arith.andi %1241, %1243 : vector<1x256xi1>
    %cst_352 = arith.constant 0.000000e+00 : f32
    %1245 = vector.broadcast %cst_352 : f32 to vector<1x256xf32>
    %1246 = arith.cmpf oge, %1213, %1245 : vector<1x256xf32>
    %1247 = arith.andi %1244, %1246 : vector<1x256xi1>
    %cst_353 = arith.constant 1.500000e+01 : f32
    %1248 = vector.broadcast %cst_353 : f32 to vector<1x256xf32>
    %1249 = arith.cmpf ole, %1213, %1248 : vector<1x256xf32>
    %1250 = arith.andi %1247, %1249 : vector<1x256xi1>
    %1251 = arith.extui %1250 : vector<1x256xi1> to vector<1x256xi32>
    %1252 = arith.sitofp %1251 : vector<1x256xi32> to vector<1x256xf32>
    %1253 = arith.mulf %1237, %1252 : vector<1x256xf32>
    %1254 = arith.addf %1234, %1253 : vector<1x256xf32>
    %cst_354 = arith.constant 1.000000e+00 : f32
    %1255 = vector.broadcast %cst_354 : f32 to vector<1x256xf32>
    %1256 = arith.subf %1255, %1214 : vector<1x256xf32>
    %1257 = arith.mulf %1256, %1215 : vector<1x256xf32>
    %cst_355 = arith.constant 1.000000e+00 : f32
    %1258 = vector.broadcast %cst_355 : f32 to vector<1x256xf32>
    %1259 = arith.addf %1213, %1258 : vector<1x256xf32>
    %cst_356 = arith.constant 0.000000e+00 : f32
    %1260 = vector.broadcast %cst_356 : f32 to vector<1x256xf32>
    %1261 = arith.cmpf oge, %1212, %1260 : vector<1x256xf32>
    %cst_357 = arith.constant 1.500000e+01 : f32
    %1262 = vector.broadcast %cst_357 : f32 to vector<1x256xf32>
    %1263 = arith.cmpf ole, %1212, %1262 : vector<1x256xf32>
    %1264 = arith.andi %1261, %1263 : vector<1x256xi1>
    %cst_358 = arith.constant 0.000000e+00 : f32
    %1265 = vector.broadcast %cst_358 : f32 to vector<1x256xf32>
    %1266 = arith.cmpf oge, %1259, %1265 : vector<1x256xf32>
    %1267 = arith.andi %1264, %1266 : vector<1x256xi1>
    %cst_359 = arith.constant 1.500000e+01 : f32
    %1268 = vector.broadcast %cst_359 : f32 to vector<1x256xf32>
    %1269 = arith.cmpf ole, %1259, %1268 : vector<1x256xf32>
    %1270 = arith.andi %1267, %1269 : vector<1x256xi1>
    %1271 = arith.extui %1270 : vector<1x256xi1> to vector<1x256xi32>
    %1272 = arith.sitofp %1271 : vector<1x256xi32> to vector<1x256xf32>
    %1273 = arith.mulf %1257, %1272 : vector<1x256xf32>
    %1274 = arith.addf %1254, %1273 : vector<1x256xf32>
    %1275 = arith.mulf %1214, %1215 : vector<1x256xf32>
    %cst_360 = arith.constant 1.000000e+00 : f32
    %1276 = vector.broadcast %cst_360 : f32 to vector<1x256xf32>
    %1277 = arith.addf %1212, %1276 : vector<1x256xf32>
    %cst_361 = arith.constant 1.000000e+00 : f32
    %1278 = vector.broadcast %cst_361 : f32 to vector<1x256xf32>
    %1279 = arith.addf %1213, %1278 : vector<1x256xf32>
    %cst_362 = arith.constant 0.000000e+00 : f32
    %1280 = vector.broadcast %cst_362 : f32 to vector<1x256xf32>
    %1281 = arith.cmpf oge, %1277, %1280 : vector<1x256xf32>
    %cst_363 = arith.constant 1.500000e+01 : f32
    %1282 = vector.broadcast %cst_363 : f32 to vector<1x256xf32>
    %1283 = arith.cmpf ole, %1277, %1282 : vector<1x256xf32>
    %1284 = arith.andi %1281, %1283 : vector<1x256xi1>
    %cst_364 = arith.constant 0.000000e+00 : f32
    %1285 = vector.broadcast %cst_364 : f32 to vector<1x256xf32>
    %1286 = arith.cmpf oge, %1279, %1285 : vector<1x256xf32>
    %1287 = arith.andi %1284, %1286 : vector<1x256xi1>
    %cst_365 = arith.constant 1.500000e+01 : f32
    %1288 = vector.broadcast %cst_365 : f32 to vector<1x256xf32>
    %1289 = arith.cmpf ole, %1279, %1288 : vector<1x256xf32>
    %1290 = arith.andi %1287, %1289 : vector<1x256xi1>
    %1291 = arith.extui %1290 : vector<1x256xi1> to vector<1x256xi32>
    %1292 = arith.sitofp %1291 : vector<1x256xi32> to vector<1x256xf32>
    %1293 = arith.mulf %1275, %1292 : vector<1x256xf32>
    %1294 = arith.addf %1274, %1293 : vector<1x256xf32>
    %cst_366 = arith.constant 9.990000e-01 : f32
    %1295 = vector.broadcast %cst_366 : f32 to vector<1x256xf32>
    %1296 = arith.cmpf oge, %1294, %1295 : vector<1x256xf32>
    %1297 = arith.extui %1296 : vector<1x256xi1> to vector<1x256xi32>
    %1298 = arith.sitofp %1297 : vector<1x256xi32> to vector<1x256xf32>
    %cst_367 = arith.constant 0.000000e+00 : f32
    %cst_368 = arith.constant 1.500000e+01 : f32
    %1299 = vector.broadcast %cst_367 : f32 to vector<1x256xf32>
    %1300 = arith.maximumf %1299, %1203 : vector<1x256xf32>
    %1301 = vector.broadcast %cst_368 : f32 to vector<1x256xf32>
    %1302 = arith.minimumf %1301, %1300 : vector<1x256xf32>
    %cst_369 = arith.constant 0.000000e+00 : f32
    %cst_370 = arith.constant 1.500000e+01 : f32
    %1303 = vector.broadcast %cst_369 : f32 to vector<1x256xf32>
    %1304 = arith.maximumf %1303, %1211 : vector<1x256xf32>
    %1305 = vector.broadcast %cst_370 : f32 to vector<1x256xf32>
    %1306 = arith.minimumf %1305, %1304 : vector<1x256xf32>
    %1307 = math.floor %1302 : vector<1x256xf32>
    %1308 = math.floor %1306 : vector<1x256xf32>
    %1309 = arith.subf %1302, %1307 : vector<1x256xf32>
    %1310 = arith.subf %1306, %1308 : vector<1x256xf32>
    %1311 = arith.fptosi %1307 : vector<1x256xf32> to vector<1x256xi32>
    %1312 = arith.fptosi %1308 : vector<1x256xf32> to vector<1x256xi32>
    %c1_i32_371 = arith.constant 1 : i32
    %1313 = vector.broadcast %c1_i32_371 : i32 to vector<1x256xi32>
    %1314 = arith.addi %1311, %1313 : vector<1x256xi32>
    %c15_i32_372 = arith.constant 15 : i32
    %1315 = vector.broadcast %c15_i32_372 : i32 to vector<1x256xi32>
    %1316 = arith.minsi %1314, %1315 : vector<1x256xi32>
    %c1_i32_373 = arith.constant 1 : i32
    %1317 = vector.broadcast %c1_i32_373 : i32 to vector<1x256xi32>
    %1318 = arith.addi %1312, %1317 : vector<1x256xi32>
    %c15_i32_374 = arith.constant 15 : i32
    %1319 = vector.broadcast %c15_i32_374 : i32 to vector<1x256xi32>
    %1320 = arith.minsi %1318, %1319 : vector<1x256xi32>
    %1321 = vector.broadcast %1311 : vector<1x256xi32> to vector<16x256xi32>
    %1322 = arith.cmpi eq, %108, %1321 : vector<16x256xi32>
    %cst_375 = arith.constant 1.000000e+00 : f32
    %1323 = vector.broadcast %cst_375 : f32 to vector<1x256xf32>
    %1324 = arith.subf %1323, %1309 : vector<1x256xf32>
    %cst_376 = arith.constant 0.000000e+00 : f32
    %1325 = vector.shape_cast %1324 : vector<1x256xf32> to vector<1x256xf32>
    %1326 = vector.broadcast %1325 : vector<1x256xf32> to vector<16x256xf32>
    %1327 = vector.broadcast %cst_376 : f32 to vector<16x256xf32>
    %1328 = arith.select %1322, %1326, %1327 : vector<16x256xi1>, vector<16x256xf32>
    %1329 = vector.broadcast %1316 : vector<1x256xi32> to vector<16x256xi32>
    %1330 = arith.cmpi eq, %108, %1329 : vector<16x256xi32>
    %cst_377 = arith.constant 0.000000e+00 : f32
    %1331 = vector.shape_cast %1309 : vector<1x256xf32> to vector<1x256xf32>
    %1332 = vector.broadcast %1331 : vector<1x256xf32> to vector<16x256xf32>
    %1333 = vector.broadcast %cst_377 : f32 to vector<16x256xf32>
    %1334 = arith.select %1330, %1332, %1333 : vector<16x256xi1>, vector<16x256xf32>
    %1335 = arith.addf %1328, %1334 : vector<16x256xf32>
    %1336 = vector.broadcast %1312 : vector<1x256xi32> to vector<16x256xi32>
    %1337 = arith.cmpi eq, %109, %1336 : vector<16x256xi32>
    %cst_378 = arith.constant 1.000000e+00 : f32
    %1338 = vector.broadcast %cst_378 : f32 to vector<1x256xf32>
    %1339 = arith.subf %1338, %1310 : vector<1x256xf32>
    %cst_379 = arith.constant 0.000000e+00 : f32
    %1340 = vector.shape_cast %1339 : vector<1x256xf32> to vector<1x256xf32>
    %1341 = vector.broadcast %1340 : vector<1x256xf32> to vector<16x256xf32>
    %1342 = vector.broadcast %cst_379 : f32 to vector<16x256xf32>
    %1343 = arith.select %1337, %1341, %1342 : vector<16x256xi1>, vector<16x256xf32>
    %1344 = vector.broadcast %1320 : vector<1x256xi32> to vector<16x256xi32>
    %1345 = arith.cmpi eq, %109, %1344 : vector<16x256xi32>
    %cst_380 = arith.constant 0.000000e+00 : f32
    %1346 = vector.shape_cast %1310 : vector<1x256xf32> to vector<1x256xf32>
    %1347 = vector.broadcast %1346 : vector<1x256xf32> to vector<16x256xf32>
    %1348 = vector.broadcast %cst_380 : f32 to vector<16x256xf32>
    %1349 = arith.select %1345, %1347, %1348 : vector<16x256xi1>, vector<16x256xf32>
    %1350 = arith.addf %1343, %1349 : vector<16x256xf32>
    %cst_381 = arith.constant dense<0.000000e+00> : vector<128x256xf32>
    %1351 = tpu.matmul %93, %1335, %cst_381 {dimension_numbers = #tpu.dot_dimension_numbers<[1], [0], [0], [1], [0, 0, 1, 1], [], []>} : vector<128x16xf32>, vector<16x256xf32>, vector<128x256xf32> -> vector<128x256xf32>
    %cst_382 = arith.constant 0.000000e+00 : f32
    %1352 = vector.broadcast %cst_382 : f32 to vector<1x256xf32>
    %1353 = vector.extract_strided_slice %1351 {offsets = [0, 0], sizes = [16, 256], strides = [1, 1]} : vector<128x256xf32> to vector<16x256xf32>
    %1354 = arith.mulf %1353, %1350 : vector<16x256xf32>
    %cst_383 = arith.constant dense<0.000000e+00> : vector<256xf32>
    %1355 = vector.multi_reduction <add>, %1354, %cst_383 [0] : vector<16x256xf32> to vector<256xf32>
    %1356 = vector.shape_cast %1355 : vector<256xf32> to vector<1x256xf32>
    %1357 = arith.mulf %1149, %1356 : vector<1x256xf32>
    %1358 = arith.addf %1352, %1357 : vector<1x256xf32>
    %1359 = vector.extract_strided_slice %1351 {offsets = [16, 0], sizes = [16, 256], strides = [1, 1]} : vector<128x256xf32> to vector<16x256xf32>
    %1360 = arith.mulf %1359, %1350 : vector<16x256xf32>
    %cst_384 = arith.constant dense<0.000000e+00> : vector<256xf32>
    %1361 = vector.multi_reduction <add>, %1360, %cst_384 [0] : vector<16x256xf32> to vector<256xf32>
    %1362 = vector.shape_cast %1361 : vector<256xf32> to vector<1x256xf32>
    %1363 = arith.mulf %1153, %1362 : vector<1x256xf32>
    %1364 = arith.addf %1358, %1363 : vector<1x256xf32>
    %1365 = vector.extract_strided_slice %1351 {offsets = [32, 0], sizes = [16, 256], strides = [1, 1]} : vector<128x256xf32> to vector<16x256xf32>
    %1366 = arith.mulf %1365, %1350 : vector<16x256xf32>
    %cst_385 = arith.constant dense<0.000000e+00> : vector<256xf32>
    %1367 = vector.multi_reduction <add>, %1366, %cst_385 [0] : vector<16x256xf32> to vector<256xf32>
    %1368 = vector.shape_cast %1367 : vector<256xf32> to vector<1x256xf32>
    %1369 = arith.mulf %1157, %1368 : vector<1x256xf32>
    %1370 = arith.addf %1364, %1369 : vector<1x256xf32>
    %1371 = vector.extract_strided_slice %1351 {offsets = [48, 0], sizes = [16, 256], strides = [1, 1]} : vector<128x256xf32> to vector<16x256xf32>
    %1372 = arith.mulf %1371, %1350 : vector<16x256xf32>
    %cst_386 = arith.constant dense<0.000000e+00> : vector<256xf32>
    %1373 = vector.multi_reduction <add>, %1372, %cst_386 [0] : vector<16x256xf32> to vector<256xf32>
    %1374 = vector.shape_cast %1373 : vector<256xf32> to vector<1x256xf32>
    %1375 = arith.mulf %1161, %1374 : vector<1x256xf32>
    %1376 = arith.addf %1370, %1375 : vector<1x256xf32>
    %1377 = vector.extract_strided_slice %1351 {offsets = [64, 0], sizes = [16, 256], strides = [1, 1]} : vector<128x256xf32> to vector<16x256xf32>
    %1378 = arith.mulf %1377, %1350 : vector<16x256xf32>
    %cst_387 = arith.constant dense<0.000000e+00> : vector<256xf32>
    %1379 = vector.multi_reduction <add>, %1378, %cst_387 [0] : vector<16x256xf32> to vector<256xf32>
    %1380 = vector.shape_cast %1379 : vector<256xf32> to vector<1x256xf32>
    %1381 = arith.mulf %1165, %1380 : vector<1x256xf32>
    %1382 = arith.addf %1376, %1381 : vector<1x256xf32>
    %1383 = vector.extract_strided_slice %1351 {offsets = [80, 0], sizes = [16, 256], strides = [1, 1]} : vector<128x256xf32> to vector<16x256xf32>
    %1384 = arith.mulf %1383, %1350 : vector<16x256xf32>
    %cst_388 = arith.constant dense<0.000000e+00> : vector<256xf32>
    %1385 = vector.multi_reduction <add>, %1384, %cst_388 [0] : vector<16x256xf32> to vector<256xf32>
    %1386 = vector.shape_cast %1385 : vector<256xf32> to vector<1x256xf32>
    %1387 = arith.mulf %1169, %1386 : vector<1x256xf32>
    %1388 = arith.addf %1382, %1387 : vector<1x256xf32>
    %1389 = vector.extract_strided_slice %1351 {offsets = [96, 0], sizes = [16, 256], strides = [1, 1]} : vector<128x256xf32> to vector<16x256xf32>
    %1390 = arith.mulf %1389, %1350 : vector<16x256xf32>
    %cst_389 = arith.constant dense<0.000000e+00> : vector<256xf32>
    %1391 = vector.multi_reduction <add>, %1390, %cst_389 [0] : vector<16x256xf32> to vector<256xf32>
    %1392 = vector.shape_cast %1391 : vector<256xf32> to vector<1x256xf32>
    %1393 = arith.mulf %1173, %1392 : vector<1x256xf32>
    %1394 = arith.addf %1388, %1393 : vector<1x256xf32>
    %1395 = vector.extract_strided_slice %1351 {offsets = [112, 0], sizes = [16, 256], strides = [1, 1]} : vector<128x256xf32> to vector<16x256xf32>
    %1396 = arith.mulf %1395, %1350 : vector<16x256xf32>
    %cst_390 = arith.constant dense<0.000000e+00> : vector<256xf32>
    %1397 = vector.multi_reduction <add>, %1396, %cst_390 [0] : vector<16x256xf32> to vector<256xf32>
    %1398 = vector.shape_cast %1397 : vector<256xf32> to vector<1x256xf32>
    %1399 = arith.mulf %1177, %1398 : vector<1x256xf32>
    %1400 = arith.addf %1394, %1399 : vector<1x256xf32>
    %1401 = arith.mulf %1092, %1298 : vector<1x256xf32>
    %1402 = arith.mulf %1400, %1401 : vector<1x256xf32>
    %cst_391 = arith.constant 1.000000e+00 : f32
    %1403 = vector.broadcast %cst_391 : f32 to vector<1x256xf32>
    %1404 = arith.addf %96, %1403 : vector<1x256xf32>
    %cst_392 = arith.constant -1.000000e+00 : f32
    %1405 = vector.broadcast %cst_392 : f32 to vector<1x256xf32>
    %1406 = arith.mulf %1405, %1404 : vector<1x256xf32>
    %1407 = arith.addf %107, %1406 : vector<1x256xf32>
    %1408 = vector.broadcast %1 : f32 to vector<1x256xf32>
    %1409 = arith.addf %97, %1408 : vector<1x256xf32>
    %cst_393 = arith.constant -1.000000e+00 : f32
    %1410 = vector.broadcast %cst_393 : f32 to vector<1x256xf32>
    %1411 = arith.mulf %1410, %1409 : vector<1x256xf32>
    %1412 = arith.addf %104, %1411 : vector<1x256xf32>
    %cst_394 = arith.constant 0.13333334 : f32
    %1413 = vector.broadcast %cst_394 : f32 to vector<1x256xf32>
    %1414 = arith.mulf %1413, %1407 : vector<1x256xf32>
    %cst_395 = arith.constant 1.000000e+00 : f32
    %1415 = vector.broadcast %cst_395 : f32 to vector<1x256xf32>
    %1416 = arith.subf %1414, %1415 : vector<1x256xf32>
    %cst_396 = arith.constant 0.13333334 : f32
    %1417 = vector.broadcast %cst_396 : f32 to vector<1x256xf32>
    %1418 = arith.mulf %1417, %1412 : vector<1x256xf32>
    %cst_397 = arith.constant 1.000000e+00 : f32
    %1419 = vector.broadcast %cst_397 : f32 to vector<1x256xf32>
    %1420 = arith.subf %1418, %1419 : vector<1x256xf32>
    %cst_398 = arith.constant 1.000000e+00 : f32
    %1421 = vector.broadcast %cst_398 : f32 to vector<1x256xf32>
    %1422 = arith.addf %1416, %1421 : vector<1x256xf32>
    %cst_399 = arith.constant 1.600000e+01 : f32
    %1423 = vector.broadcast %cst_399 : f32 to vector<1x256xf32>
    %1424 = arith.mulf %1422, %1423 : vector<1x256xf32>
    %cst_400 = arith.constant 1.000000e+00 : f32
    %1425 = vector.broadcast %cst_400 : f32 to vector<1x256xf32>
    %1426 = arith.subf %1424, %1425 : vector<1x256xf32>
    %cst_401 = arith.constant 5.000000e-01 : f32
    %1427 = vector.broadcast %cst_401 : f32 to vector<1x256xf32>
    %1428 = arith.mulf %1426, %1427 : vector<1x256xf32>
    %cst_402 = arith.constant 1.000000e+00 : f32
    %1429 = vector.broadcast %cst_402 : f32 to vector<1x256xf32>
    %1430 = arith.addf %1420, %1429 : vector<1x256xf32>
    %cst_403 = arith.constant 1.600000e+01 : f32
    %1431 = vector.broadcast %cst_403 : f32 to vector<1x256xf32>
    %1432 = arith.mulf %1430, %1431 : vector<1x256xf32>
    %cst_404 = arith.constant 1.000000e+00 : f32
    %1433 = vector.broadcast %cst_404 : f32 to vector<1x256xf32>
    %1434 = arith.subf %1432, %1433 : vector<1x256xf32>
    %cst_405 = arith.constant 5.000000e-01 : f32
    %1435 = vector.broadcast %cst_405 : f32 to vector<1x256xf32>
    %1436 = arith.mulf %1434, %1435 : vector<1x256xf32>
    %1437 = math.floor %1428 : vector<1x256xf32>
    %1438 = math.floor %1436 : vector<1x256xf32>
    %1439 = arith.subf %1428, %1437 : vector<1x256xf32>
    %1440 = arith.subf %1436, %1438 : vector<1x256xf32>
    %cst_406 = arith.constant 1.000000e+00 : f32
    %1441 = vector.broadcast %cst_406 : f32 to vector<1x256xf32>
    %1442 = arith.subf %1441, %1439 : vector<1x256xf32>
    %cst_407 = arith.constant 1.000000e+00 : f32
    %1443 = vector.broadcast %cst_407 : f32 to vector<1x256xf32>
    %1444 = arith.subf %1443, %1440 : vector<1x256xf32>
    %1445 = arith.mulf %1442, %1444 : vector<1x256xf32>
    %cst_408 = arith.constant 0.000000e+00 : f32
    %1446 = vector.broadcast %cst_408 : f32 to vector<1x256xf32>
    %1447 = arith.cmpf oge, %1437, %1446 : vector<1x256xf32>
    %cst_409 = arith.constant 1.500000e+01 : f32
    %1448 = vector.broadcast %cst_409 : f32 to vector<1x256xf32>
    %1449 = arith.cmpf ole, %1437, %1448 : vector<1x256xf32>
    %1450 = arith.andi %1447, %1449 : vector<1x256xi1>
    %cst_410 = arith.constant 0.000000e+00 : f32
    %1451 = vector.broadcast %cst_410 : f32 to vector<1x256xf32>
    %1452 = arith.cmpf oge, %1438, %1451 : vector<1x256xf32>
    %1453 = arith.andi %1450, %1452 : vector<1x256xi1>
    %cst_411 = arith.constant 1.500000e+01 : f32
    %1454 = vector.broadcast %cst_411 : f32 to vector<1x256xf32>
    %1455 = arith.cmpf ole, %1438, %1454 : vector<1x256xf32>
    %1456 = arith.andi %1453, %1455 : vector<1x256xi1>
    %1457 = arith.extui %1456 : vector<1x256xi1> to vector<1x256xi32>
    %1458 = arith.sitofp %1457 : vector<1x256xi32> to vector<1x256xf32>
    %1459 = arith.mulf %1445, %1458 : vector<1x256xf32>
    %cst_412 = arith.constant 1.000000e+00 : f32
    %1460 = vector.broadcast %cst_412 : f32 to vector<1x256xf32>
    %1461 = arith.subf %1460, %1440 : vector<1x256xf32>
    %1462 = arith.mulf %1439, %1461 : vector<1x256xf32>
    %cst_413 = arith.constant 1.000000e+00 : f32
    %1463 = vector.broadcast %cst_413 : f32 to vector<1x256xf32>
    %1464 = arith.addf %1437, %1463 : vector<1x256xf32>
    %cst_414 = arith.constant 0.000000e+00 : f32
    %1465 = vector.broadcast %cst_414 : f32 to vector<1x256xf32>
    %1466 = arith.cmpf oge, %1464, %1465 : vector<1x256xf32>
    %cst_415 = arith.constant 1.500000e+01 : f32
    %1467 = vector.broadcast %cst_415 : f32 to vector<1x256xf32>
    %1468 = arith.cmpf ole, %1464, %1467 : vector<1x256xf32>
    %1469 = arith.andi %1466, %1468 : vector<1x256xi1>
    %cst_416 = arith.constant 0.000000e+00 : f32
    %1470 = vector.broadcast %cst_416 : f32 to vector<1x256xf32>
    %1471 = arith.cmpf oge, %1438, %1470 : vector<1x256xf32>
    %1472 = arith.andi %1469, %1471 : vector<1x256xi1>
    %cst_417 = arith.constant 1.500000e+01 : f32
    %1473 = vector.broadcast %cst_417 : f32 to vector<1x256xf32>
    %1474 = arith.cmpf ole, %1438, %1473 : vector<1x256xf32>
    %1475 = arith.andi %1472, %1474 : vector<1x256xi1>
    %1476 = arith.extui %1475 : vector<1x256xi1> to vector<1x256xi32>
    %1477 = arith.sitofp %1476 : vector<1x256xi32> to vector<1x256xf32>
    %1478 = arith.mulf %1462, %1477 : vector<1x256xf32>
    %1479 = arith.addf %1459, %1478 : vector<1x256xf32>
    %cst_418 = arith.constant 1.000000e+00 : f32
    %1480 = vector.broadcast %cst_418 : f32 to vector<1x256xf32>
    %1481 = arith.subf %1480, %1439 : vector<1x256xf32>
    %1482 = arith.mulf %1481, %1440 : vector<1x256xf32>
    %cst_419 = arith.constant 1.000000e+00 : f32
    %1483 = vector.broadcast %cst_419 : f32 to vector<1x256xf32>
    %1484 = arith.addf %1438, %1483 : vector<1x256xf32>
    %cst_420 = arith.constant 0.000000e+00 : f32
    %1485 = vector.broadcast %cst_420 : f32 to vector<1x256xf32>
    %1486 = arith.cmpf oge, %1437, %1485 : vector<1x256xf32>
    %cst_421 = arith.constant 1.500000e+01 : f32
    %1487 = vector.broadcast %cst_421 : f32 to vector<1x256xf32>
    %1488 = arith.cmpf ole, %1437, %1487 : vector<1x256xf32>
    %1489 = arith.andi %1486, %1488 : vector<1x256xi1>
    %cst_422 = arith.constant 0.000000e+00 : f32
    %1490 = vector.broadcast %cst_422 : f32 to vector<1x256xf32>
    %1491 = arith.cmpf oge, %1484, %1490 : vector<1x256xf32>
    %1492 = arith.andi %1489, %1491 : vector<1x256xi1>
    %cst_423 = arith.constant 1.500000e+01 : f32
    %1493 = vector.broadcast %cst_423 : f32 to vector<1x256xf32>
    %1494 = arith.cmpf ole, %1484, %1493 : vector<1x256xf32>
    %1495 = arith.andi %1492, %1494 : vector<1x256xi1>
    %1496 = arith.extui %1495 : vector<1x256xi1> to vector<1x256xi32>
    %1497 = arith.sitofp %1496 : vector<1x256xi32> to vector<1x256xf32>
    %1498 = arith.mulf %1482, %1497 : vector<1x256xf32>
    %1499 = arith.addf %1479, %1498 : vector<1x256xf32>
    %1500 = arith.mulf %1439, %1440 : vector<1x256xf32>
    %cst_424 = arith.constant 1.000000e+00 : f32
    %1501 = vector.broadcast %cst_424 : f32 to vector<1x256xf32>
    %1502 = arith.addf %1437, %1501 : vector<1x256xf32>
    %cst_425 = arith.constant 1.000000e+00 : f32
    %1503 = vector.broadcast %cst_425 : f32 to vector<1x256xf32>
    %1504 = arith.addf %1438, %1503 : vector<1x256xf32>
    %cst_426 = arith.constant 0.000000e+00 : f32
    %1505 = vector.broadcast %cst_426 : f32 to vector<1x256xf32>
    %1506 = arith.cmpf oge, %1502, %1505 : vector<1x256xf32>
    %cst_427 = arith.constant 1.500000e+01 : f32
    %1507 = vector.broadcast %cst_427 : f32 to vector<1x256xf32>
    %1508 = arith.cmpf ole, %1502, %1507 : vector<1x256xf32>
    %1509 = arith.andi %1506, %1508 : vector<1x256xi1>
    %cst_428 = arith.constant 0.000000e+00 : f32
    %1510 = vector.broadcast %cst_428 : f32 to vector<1x256xf32>
    %1511 = arith.cmpf oge, %1504, %1510 : vector<1x256xf32>
    %1512 = arith.andi %1509, %1511 : vector<1x256xi1>
    %cst_429 = arith.constant 1.500000e+01 : f32
    %1513 = vector.broadcast %cst_429 : f32 to vector<1x256xf32>
    %1514 = arith.cmpf ole, %1504, %1513 : vector<1x256xf32>
    %1515 = arith.andi %1512, %1514 : vector<1x256xi1>
    %1516 = arith.extui %1515 : vector<1x256xi1> to vector<1x256xi32>
    %1517 = arith.sitofp %1516 : vector<1x256xi32> to vector<1x256xf32>
    %1518 = arith.mulf %1500, %1517 : vector<1x256xf32>
    %1519 = arith.addf %1499, %1518 : vector<1x256xf32>
    %cst_430 = arith.constant 9.990000e-01 : f32
    %1520 = vector.broadcast %cst_430 : f32 to vector<1x256xf32>
    %1521 = arith.cmpf oge, %1519, %1520 : vector<1x256xf32>
    %1522 = arith.extui %1521 : vector<1x256xi1> to vector<1x256xi32>
    %1523 = arith.sitofp %1522 : vector<1x256xi32> to vector<1x256xf32>
    %cst_431 = arith.constant 0.000000e+00 : f32
    %cst_432 = arith.constant 1.500000e+01 : f32
    %1524 = vector.broadcast %cst_431 : f32 to vector<1x256xf32>
    %1525 = arith.maximumf %1524, %1428 : vector<1x256xf32>
    %1526 = vector.broadcast %cst_432 : f32 to vector<1x256xf32>
    %1527 = arith.minimumf %1526, %1525 : vector<1x256xf32>
    %cst_433 = arith.constant 0.000000e+00 : f32
    %cst_434 = arith.constant 1.500000e+01 : f32
    %1528 = vector.broadcast %cst_433 : f32 to vector<1x256xf32>
    %1529 = arith.maximumf %1528, %1436 : vector<1x256xf32>
    %1530 = vector.broadcast %cst_434 : f32 to vector<1x256xf32>
    %1531 = arith.minimumf %1530, %1529 : vector<1x256xf32>
    %1532 = math.floor %1527 : vector<1x256xf32>
    %1533 = math.floor %1531 : vector<1x256xf32>
    %1534 = arith.subf %1527, %1532 : vector<1x256xf32>
    %1535 = arith.subf %1531, %1533 : vector<1x256xf32>
    %1536 = arith.fptosi %1532 : vector<1x256xf32> to vector<1x256xi32>
    %1537 = arith.fptosi %1533 : vector<1x256xf32> to vector<1x256xi32>
    %c1_i32_435 = arith.constant 1 : i32
    %1538 = vector.broadcast %c1_i32_435 : i32 to vector<1x256xi32>
    %1539 = arith.addi %1536, %1538 : vector<1x256xi32>
    %c15_i32_436 = arith.constant 15 : i32
    %1540 = vector.broadcast %c15_i32_436 : i32 to vector<1x256xi32>
    %1541 = arith.minsi %1539, %1540 : vector<1x256xi32>
    %c1_i32_437 = arith.constant 1 : i32
    %1542 = vector.broadcast %c1_i32_437 : i32 to vector<1x256xi32>
    %1543 = arith.addi %1537, %1542 : vector<1x256xi32>
    %c15_i32_438 = arith.constant 15 : i32
    %1544 = vector.broadcast %c15_i32_438 : i32 to vector<1x256xi32>
    %1545 = arith.minsi %1543, %1544 : vector<1x256xi32>
    %1546 = vector.broadcast %1536 : vector<1x256xi32> to vector<16x256xi32>
    %1547 = arith.cmpi eq, %108, %1546 : vector<16x256xi32>
    %cst_439 = arith.constant 1.000000e+00 : f32
    %1548 = vector.broadcast %cst_439 : f32 to vector<1x256xf32>
    %1549 = arith.subf %1548, %1534 : vector<1x256xf32>
    %cst_440 = arith.constant 0.000000e+00 : f32
    %1550 = vector.shape_cast %1549 : vector<1x256xf32> to vector<1x256xf32>
    %1551 = vector.broadcast %1550 : vector<1x256xf32> to vector<16x256xf32>
    %1552 = vector.broadcast %cst_440 : f32 to vector<16x256xf32>
    %1553 = arith.select %1547, %1551, %1552 : vector<16x256xi1>, vector<16x256xf32>
    %1554 = vector.broadcast %1541 : vector<1x256xi32> to vector<16x256xi32>
    %1555 = arith.cmpi eq, %108, %1554 : vector<16x256xi32>
    %cst_441 = arith.constant 0.000000e+00 : f32
    %1556 = vector.shape_cast %1534 : vector<1x256xf32> to vector<1x256xf32>
    %1557 = vector.broadcast %1556 : vector<1x256xf32> to vector<16x256xf32>
    %1558 = vector.broadcast %cst_441 : f32 to vector<16x256xf32>
    %1559 = arith.select %1555, %1557, %1558 : vector<16x256xi1>, vector<16x256xf32>
    %1560 = arith.addf %1553, %1559 : vector<16x256xf32>
    %1561 = vector.broadcast %1537 : vector<1x256xi32> to vector<16x256xi32>
    %1562 = arith.cmpi eq, %109, %1561 : vector<16x256xi32>
    %cst_442 = arith.constant 1.000000e+00 : f32
    %1563 = vector.broadcast %cst_442 : f32 to vector<1x256xf32>
    %1564 = arith.subf %1563, %1535 : vector<1x256xf32>
    %cst_443 = arith.constant 0.000000e+00 : f32
    %1565 = vector.shape_cast %1564 : vector<1x256xf32> to vector<1x256xf32>
    %1566 = vector.broadcast %1565 : vector<1x256xf32> to vector<16x256xf32>
    %1567 = vector.broadcast %cst_443 : f32 to vector<16x256xf32>
    %1568 = arith.select %1562, %1566, %1567 : vector<16x256xi1>, vector<16x256xf32>
    %1569 = vector.broadcast %1545 : vector<1x256xi32> to vector<16x256xi32>
    %1570 = arith.cmpi eq, %109, %1569 : vector<16x256xi32>
    %cst_444 = arith.constant 0.000000e+00 : f32
    %1571 = vector.shape_cast %1535 : vector<1x256xf32> to vector<1x256xf32>
    %1572 = vector.broadcast %1571 : vector<1x256xf32> to vector<16x256xf32>
    %1573 = vector.broadcast %cst_444 : f32 to vector<16x256xf32>
    %1574 = arith.select %1570, %1572, %1573 : vector<16x256xi1>, vector<16x256xf32>
    %1575 = arith.addf %1568, %1574 : vector<16x256xf32>
    %cst_445 = arith.constant dense<0.000000e+00> : vector<128x256xf32>
    %1576 = tpu.matmul %47, %1560, %cst_445 {dimension_numbers = #tpu.dot_dimension_numbers<[1], [0], [0], [1], [0, 0, 1, 1], [], []>} : vector<128x16xf32>, vector<16x256xf32>, vector<128x256xf32> -> vector<128x256xf32>
    %1577 = vector.extract_strided_slice %1576 {offsets = [0, 0], sizes = [16, 256], strides = [1, 1]} : vector<128x256xf32> to vector<16x256xf32>
    %1578 = arith.mulf %1577, %1575 : vector<16x256xf32>
    %cst_446 = arith.constant dense<0.000000e+00> : vector<256xf32>
    %1579 = vector.multi_reduction <add>, %1578, %cst_446 [0] : vector<16x256xf32> to vector<256xf32>
    %1580 = vector.shape_cast %1579 : vector<256xf32> to vector<1x256xf32>
    %1581 = vector.extract_strided_slice %1576 {offsets = [16, 0], sizes = [16, 256], strides = [1, 1]} : vector<128x256xf32> to vector<16x256xf32>
    %1582 = arith.mulf %1581, %1575 : vector<16x256xf32>
    %cst_447 = arith.constant dense<0.000000e+00> : vector<256xf32>
    %1583 = vector.multi_reduction <add>, %1582, %cst_447 [0] : vector<16x256xf32> to vector<256xf32>
    %1584 = vector.shape_cast %1583 : vector<256xf32> to vector<1x256xf32>
    %1585 = vector.extract_strided_slice %1576 {offsets = [32, 0], sizes = [16, 256], strides = [1, 1]} : vector<128x256xf32> to vector<16x256xf32>
    %1586 = arith.mulf %1585, %1575 : vector<16x256xf32>
    %cst_448 = arith.constant dense<0.000000e+00> : vector<256xf32>
    %1587 = vector.multi_reduction <add>, %1586, %cst_448 [0] : vector<16x256xf32> to vector<256xf32>
    %1588 = vector.shape_cast %1587 : vector<256xf32> to vector<1x256xf32>
    %1589 = vector.extract_strided_slice %1576 {offsets = [48, 0], sizes = [16, 256], strides = [1, 1]} : vector<128x256xf32> to vector<16x256xf32>
    %1590 = arith.mulf %1589, %1575 : vector<16x256xf32>
    %cst_449 = arith.constant dense<0.000000e+00> : vector<256xf32>
    %1591 = vector.multi_reduction <add>, %1590, %cst_449 [0] : vector<16x256xf32> to vector<256xf32>
    %1592 = vector.shape_cast %1591 : vector<256xf32> to vector<1x256xf32>
    %1593 = vector.extract_strided_slice %1576 {offsets = [64, 0], sizes = [16, 256], strides = [1, 1]} : vector<128x256xf32> to vector<16x256xf32>
    %1594 = arith.mulf %1593, %1575 : vector<16x256xf32>
    %cst_450 = arith.constant dense<0.000000e+00> : vector<256xf32>
    %1595 = vector.multi_reduction <add>, %1594, %cst_450 [0] : vector<16x256xf32> to vector<256xf32>
    %1596 = vector.shape_cast %1595 : vector<256xf32> to vector<1x256xf32>
    %1597 = vector.extract_strided_slice %1576 {offsets = [80, 0], sizes = [16, 256], strides = [1, 1]} : vector<128x256xf32> to vector<16x256xf32>
    %1598 = arith.mulf %1597, %1575 : vector<16x256xf32>
    %cst_451 = arith.constant dense<0.000000e+00> : vector<256xf32>
    %1599 = vector.multi_reduction <add>, %1598, %cst_451 [0] : vector<16x256xf32> to vector<256xf32>
    %1600 = vector.shape_cast %1599 : vector<256xf32> to vector<1x256xf32>
    %1601 = vector.extract_strided_slice %1576 {offsets = [96, 0], sizes = [16, 256], strides = [1, 1]} : vector<128x256xf32> to vector<16x256xf32>
    %1602 = arith.mulf %1601, %1575 : vector<16x256xf32>
    %cst_452 = arith.constant dense<0.000000e+00> : vector<256xf32>
    %1603 = vector.multi_reduction <add>, %1602, %cst_452 [0] : vector<16x256xf32> to vector<256xf32>
    %1604 = vector.shape_cast %1603 : vector<256xf32> to vector<1x256xf32>
    %1605 = vector.extract_strided_slice %1576 {offsets = [112, 0], sizes = [16, 256], strides = [1, 1]} : vector<128x256xf32> to vector<16x256xf32>
    %1606 = arith.mulf %1605, %1575 : vector<16x256xf32>
    %cst_453 = arith.constant dense<0.000000e+00> : vector<256xf32>
    %1607 = vector.multi_reduction <add>, %1606, %cst_453 [0] : vector<16x256xf32> to vector<256xf32>
    %1608 = vector.shape_cast %1607 : vector<256xf32> to vector<1x256xf32>
    %cst_454 = arith.constant 1.000000e+00 : f32
    %1609 = vector.broadcast %cst_454 : f32 to vector<1x256xf32>
    %1610 = arith.addf %96, %1609 : vector<1x256xf32>
    %cst_455 = arith.constant 1.000000e+00 : f32
    %1611 = vector.broadcast %cst_455 : f32 to vector<1x256xf32>
    %1612 = arith.mulf %1611, %1610 : vector<1x256xf32>
    %1613 = arith.addf %107, %1612 : vector<1x256xf32>
    %1614 = vector.broadcast %1 : f32 to vector<1x256xf32>
    %1615 = arith.addf %97, %1614 : vector<1x256xf32>
    %cst_456 = arith.constant 1.000000e+00 : f32
    %1616 = vector.broadcast %cst_456 : f32 to vector<1x256xf32>
    %1617 = arith.mulf %1616, %1615 : vector<1x256xf32>
    %1618 = arith.addf %104, %1617 : vector<1x256xf32>
    %cst_457 = arith.constant 0.13333334 : f32
    %1619 = vector.broadcast %cst_457 : f32 to vector<1x256xf32>
    %1620 = arith.mulf %1619, %1613 : vector<1x256xf32>
    %cst_458 = arith.constant 1.000000e+00 : f32
    %1621 = vector.broadcast %cst_458 : f32 to vector<1x256xf32>
    %1622 = arith.subf %1620, %1621 : vector<1x256xf32>
    %cst_459 = arith.constant 0.13333334 : f32
    %1623 = vector.broadcast %cst_459 : f32 to vector<1x256xf32>
    %1624 = arith.mulf %1623, %1618 : vector<1x256xf32>
    %cst_460 = arith.constant 1.000000e+00 : f32
    %1625 = vector.broadcast %cst_460 : f32 to vector<1x256xf32>
    %1626 = arith.subf %1624, %1625 : vector<1x256xf32>
    %cst_461 = arith.constant 1.000000e+00 : f32
    %1627 = vector.broadcast %cst_461 : f32 to vector<1x256xf32>
    %1628 = arith.addf %1622, %1627 : vector<1x256xf32>
    %cst_462 = arith.constant 1.600000e+01 : f32
    %1629 = vector.broadcast %cst_462 : f32 to vector<1x256xf32>
    %1630 = arith.mulf %1628, %1629 : vector<1x256xf32>
    %cst_463 = arith.constant 1.000000e+00 : f32
    %1631 = vector.broadcast %cst_463 : f32 to vector<1x256xf32>
    %1632 = arith.subf %1630, %1631 : vector<1x256xf32>
    %cst_464 = arith.constant 5.000000e-01 : f32
    %1633 = vector.broadcast %cst_464 : f32 to vector<1x256xf32>
    %1634 = arith.mulf %1632, %1633 : vector<1x256xf32>
    %cst_465 = arith.constant 1.000000e+00 : f32
    %1635 = vector.broadcast %cst_465 : f32 to vector<1x256xf32>
    %1636 = arith.addf %1626, %1635 : vector<1x256xf32>
    %cst_466 = arith.constant 1.600000e+01 : f32
    %1637 = vector.broadcast %cst_466 : f32 to vector<1x256xf32>
    %1638 = arith.mulf %1636, %1637 : vector<1x256xf32>
    %cst_467 = arith.constant 1.000000e+00 : f32
    %1639 = vector.broadcast %cst_467 : f32 to vector<1x256xf32>
    %1640 = arith.subf %1638, %1639 : vector<1x256xf32>
    %cst_468 = arith.constant 5.000000e-01 : f32
    %1641 = vector.broadcast %cst_468 : f32 to vector<1x256xf32>
    %1642 = arith.mulf %1640, %1641 : vector<1x256xf32>
    %1643 = math.floor %1634 : vector<1x256xf32>
    %1644 = math.floor %1642 : vector<1x256xf32>
    %1645 = arith.subf %1634, %1643 : vector<1x256xf32>
    %1646 = arith.subf %1642, %1644 : vector<1x256xf32>
    %cst_469 = arith.constant 1.000000e+00 : f32
    %1647 = vector.broadcast %cst_469 : f32 to vector<1x256xf32>
    %1648 = arith.subf %1647, %1645 : vector<1x256xf32>
    %cst_470 = arith.constant 1.000000e+00 : f32
    %1649 = vector.broadcast %cst_470 : f32 to vector<1x256xf32>
    %1650 = arith.subf %1649, %1646 : vector<1x256xf32>
    %1651 = arith.mulf %1648, %1650 : vector<1x256xf32>
    %cst_471 = arith.constant 0.000000e+00 : f32
    %1652 = vector.broadcast %cst_471 : f32 to vector<1x256xf32>
    %1653 = arith.cmpf oge, %1643, %1652 : vector<1x256xf32>
    %cst_472 = arith.constant 1.500000e+01 : f32
    %1654 = vector.broadcast %cst_472 : f32 to vector<1x256xf32>
    %1655 = arith.cmpf ole, %1643, %1654 : vector<1x256xf32>
    %1656 = arith.andi %1653, %1655 : vector<1x256xi1>
    %cst_473 = arith.constant 0.000000e+00 : f32
    %1657 = vector.broadcast %cst_473 : f32 to vector<1x256xf32>
    %1658 = arith.cmpf oge, %1644, %1657 : vector<1x256xf32>
    %1659 = arith.andi %1656, %1658 : vector<1x256xi1>
    %cst_474 = arith.constant 1.500000e+01 : f32
    %1660 = vector.broadcast %cst_474 : f32 to vector<1x256xf32>
    %1661 = arith.cmpf ole, %1644, %1660 : vector<1x256xf32>
    %1662 = arith.andi %1659, %1661 : vector<1x256xi1>
    %1663 = arith.extui %1662 : vector<1x256xi1> to vector<1x256xi32>
    %1664 = arith.sitofp %1663 : vector<1x256xi32> to vector<1x256xf32>
    %1665 = arith.mulf %1651, %1664 : vector<1x256xf32>
    %cst_475 = arith.constant 1.000000e+00 : f32
    %1666 = vector.broadcast %cst_475 : f32 to vector<1x256xf32>
    %1667 = arith.subf %1666, %1646 : vector<1x256xf32>
    %1668 = arith.mulf %1645, %1667 : vector<1x256xf32>
    %cst_476 = arith.constant 1.000000e+00 : f32
    %1669 = vector.broadcast %cst_476 : f32 to vector<1x256xf32>
    %1670 = arith.addf %1643, %1669 : vector<1x256xf32>
    %cst_477 = arith.constant 0.000000e+00 : f32
    %1671 = vector.broadcast %cst_477 : f32 to vector<1x256xf32>
    %1672 = arith.cmpf oge, %1670, %1671 : vector<1x256xf32>
    %cst_478 = arith.constant 1.500000e+01 : f32
    %1673 = vector.broadcast %cst_478 : f32 to vector<1x256xf32>
    %1674 = arith.cmpf ole, %1670, %1673 : vector<1x256xf32>
    %1675 = arith.andi %1672, %1674 : vector<1x256xi1>
    %cst_479 = arith.constant 0.000000e+00 : f32
    %1676 = vector.broadcast %cst_479 : f32 to vector<1x256xf32>
    %1677 = arith.cmpf oge, %1644, %1676 : vector<1x256xf32>
    %1678 = arith.andi %1675, %1677 : vector<1x256xi1>
    %cst_480 = arith.constant 1.500000e+01 : f32
    %1679 = vector.broadcast %cst_480 : f32 to vector<1x256xf32>
    %1680 = arith.cmpf ole, %1644, %1679 : vector<1x256xf32>
    %1681 = arith.andi %1678, %1680 : vector<1x256xi1>
    %1682 = arith.extui %1681 : vector<1x256xi1> to vector<1x256xi32>
    %1683 = arith.sitofp %1682 : vector<1x256xi32> to vector<1x256xf32>
    %1684 = arith.mulf %1668, %1683 : vector<1x256xf32>
    %1685 = arith.addf %1665, %1684 : vector<1x256xf32>
    %cst_481 = arith.constant 1.000000e+00 : f32
    %1686 = vector.broadcast %cst_481 : f32 to vector<1x256xf32>
    %1687 = arith.subf %1686, %1645 : vector<1x256xf32>
    %1688 = arith.mulf %1687, %1646 : vector<1x256xf32>
    %cst_482 = arith.constant 1.000000e+00 : f32
    %1689 = vector.broadcast %cst_482 : f32 to vector<1x256xf32>
    %1690 = arith.addf %1644, %1689 : vector<1x256xf32>
    %cst_483 = arith.constant 0.000000e+00 : f32
    %1691 = vector.broadcast %cst_483 : f32 to vector<1x256xf32>
    %1692 = arith.cmpf oge, %1643, %1691 : vector<1x256xf32>
    %cst_484 = arith.constant 1.500000e+01 : f32
    %1693 = vector.broadcast %cst_484 : f32 to vector<1x256xf32>
    %1694 = arith.cmpf ole, %1643, %1693 : vector<1x256xf32>
    %1695 = arith.andi %1692, %1694 : vector<1x256xi1>
    %cst_485 = arith.constant 0.000000e+00 : f32
    %1696 = vector.broadcast %cst_485 : f32 to vector<1x256xf32>
    %1697 = arith.cmpf oge, %1690, %1696 : vector<1x256xf32>
    %1698 = arith.andi %1695, %1697 : vector<1x256xi1>
    %cst_486 = arith.constant 1.500000e+01 : f32
    %1699 = vector.broadcast %cst_486 : f32 to vector<1x256xf32>
    %1700 = arith.cmpf ole, %1690, %1699 : vector<1x256xf32>
    %1701 = arith.andi %1698, %1700 : vector<1x256xi1>
    %1702 = arith.extui %1701 : vector<1x256xi1> to vector<1x256xi32>
    %1703 = arith.sitofp %1702 : vector<1x256xi32> to vector<1x256xf32>
    %1704 = arith.mulf %1688, %1703 : vector<1x256xf32>
    %1705 = arith.addf %1685, %1704 : vector<1x256xf32>
    %1706 = arith.mulf %1645, %1646 : vector<1x256xf32>
    %cst_487 = arith.constant 1.000000e+00 : f32
    %1707 = vector.broadcast %cst_487 : f32 to vector<1x256xf32>
    %1708 = arith.addf %1643, %1707 : vector<1x256xf32>
    %cst_488 = arith.constant 1.000000e+00 : f32
    %1709 = vector.broadcast %cst_488 : f32 to vector<1x256xf32>
    %1710 = arith.addf %1644, %1709 : vector<1x256xf32>
    %cst_489 = arith.constant 0.000000e+00 : f32
    %1711 = vector.broadcast %cst_489 : f32 to vector<1x256xf32>
    %1712 = arith.cmpf oge, %1708, %1711 : vector<1x256xf32>
    %cst_490 = arith.constant 1.500000e+01 : f32
    %1713 = vector.broadcast %cst_490 : f32 to vector<1x256xf32>
    %1714 = arith.cmpf ole, %1708, %1713 : vector<1x256xf32>
    %1715 = arith.andi %1712, %1714 : vector<1x256xi1>
    %cst_491 = arith.constant 0.000000e+00 : f32
    %1716 = vector.broadcast %cst_491 : f32 to vector<1x256xf32>
    %1717 = arith.cmpf oge, %1710, %1716 : vector<1x256xf32>
    %1718 = arith.andi %1715, %1717 : vector<1x256xi1>
    %cst_492 = arith.constant 1.500000e+01 : f32
    %1719 = vector.broadcast %cst_492 : f32 to vector<1x256xf32>
    %1720 = arith.cmpf ole, %1710, %1719 : vector<1x256xf32>
    %1721 = arith.andi %1718, %1720 : vector<1x256xi1>
    %1722 = arith.extui %1721 : vector<1x256xi1> to vector<1x256xi32>
    %1723 = arith.sitofp %1722 : vector<1x256xi32> to vector<1x256xf32>
    %1724 = arith.mulf %1706, %1723 : vector<1x256xf32>
    %1725 = arith.addf %1705, %1724 : vector<1x256xf32>
    %cst_493 = arith.constant 9.990000e-01 : f32
    %1726 = vector.broadcast %cst_493 : f32 to vector<1x256xf32>
    %1727 = arith.cmpf oge, %1725, %1726 : vector<1x256xf32>
    %1728 = arith.extui %1727 : vector<1x256xi1> to vector<1x256xi32>
    %1729 = arith.sitofp %1728 : vector<1x256xi32> to vector<1x256xf32>
    %cst_494 = arith.constant 0.000000e+00 : f32
    %cst_495 = arith.constant 1.500000e+01 : f32
    %1730 = vector.broadcast %cst_494 : f32 to vector<1x256xf32>
    %1731 = arith.maximumf %1730, %1634 : vector<1x256xf32>
    %1732 = vector.broadcast %cst_495 : f32 to vector<1x256xf32>
    %1733 = arith.minimumf %1732, %1731 : vector<1x256xf32>
    %cst_496 = arith.constant 0.000000e+00 : f32
    %cst_497 = arith.constant 1.500000e+01 : f32
    %1734 = vector.broadcast %cst_496 : f32 to vector<1x256xf32>
    %1735 = arith.maximumf %1734, %1642 : vector<1x256xf32>
    %1736 = vector.broadcast %cst_497 : f32 to vector<1x256xf32>
    %1737 = arith.minimumf %1736, %1735 : vector<1x256xf32>
    %1738 = math.floor %1733 : vector<1x256xf32>
    %1739 = math.floor %1737 : vector<1x256xf32>
    %1740 = arith.subf %1733, %1738 : vector<1x256xf32>
    %1741 = arith.subf %1737, %1739 : vector<1x256xf32>
    %1742 = arith.fptosi %1738 : vector<1x256xf32> to vector<1x256xi32>
    %1743 = arith.fptosi %1739 : vector<1x256xf32> to vector<1x256xi32>
    %c1_i32_498 = arith.constant 1 : i32
    %1744 = vector.broadcast %c1_i32_498 : i32 to vector<1x256xi32>
    %1745 = arith.addi %1742, %1744 : vector<1x256xi32>
    %c15_i32_499 = arith.constant 15 : i32
    %1746 = vector.broadcast %c15_i32_499 : i32 to vector<1x256xi32>
    %1747 = arith.minsi %1745, %1746 : vector<1x256xi32>
    %c1_i32_500 = arith.constant 1 : i32
    %1748 = vector.broadcast %c1_i32_500 : i32 to vector<1x256xi32>
    %1749 = arith.addi %1743, %1748 : vector<1x256xi32>
    %c15_i32_501 = arith.constant 15 : i32
    %1750 = vector.broadcast %c15_i32_501 : i32 to vector<1x256xi32>
    %1751 = arith.minsi %1749, %1750 : vector<1x256xi32>
    %1752 = vector.broadcast %1742 : vector<1x256xi32> to vector<16x256xi32>
    %1753 = arith.cmpi eq, %108, %1752 : vector<16x256xi32>
    %cst_502 = arith.constant 1.000000e+00 : f32
    %1754 = vector.broadcast %cst_502 : f32 to vector<1x256xf32>
    %1755 = arith.subf %1754, %1740 : vector<1x256xf32>
    %cst_503 = arith.constant 0.000000e+00 : f32
    %1756 = vector.shape_cast %1755 : vector<1x256xf32> to vector<1x256xf32>
    %1757 = vector.broadcast %1756 : vector<1x256xf32> to vector<16x256xf32>
    %1758 = vector.broadcast %cst_503 : f32 to vector<16x256xf32>
    %1759 = arith.select %1753, %1757, %1758 : vector<16x256xi1>, vector<16x256xf32>
    %1760 = vector.broadcast %1747 : vector<1x256xi32> to vector<16x256xi32>
    %1761 = arith.cmpi eq, %108, %1760 : vector<16x256xi32>
    %cst_504 = arith.constant 0.000000e+00 : f32
    %1762 = vector.shape_cast %1740 : vector<1x256xf32> to vector<1x256xf32>
    %1763 = vector.broadcast %1762 : vector<1x256xf32> to vector<16x256xf32>
    %1764 = vector.broadcast %cst_504 : f32 to vector<16x256xf32>
    %1765 = arith.select %1761, %1763, %1764 : vector<16x256xi1>, vector<16x256xf32>
    %1766 = arith.addf %1759, %1765 : vector<16x256xf32>
    %1767 = vector.broadcast %1743 : vector<1x256xi32> to vector<16x256xi32>
    %1768 = arith.cmpi eq, %109, %1767 : vector<16x256xi32>
    %cst_505 = arith.constant 1.000000e+00 : f32
    %1769 = vector.broadcast %cst_505 : f32 to vector<1x256xf32>
    %1770 = arith.subf %1769, %1741 : vector<1x256xf32>
    %cst_506 = arith.constant 0.000000e+00 : f32
    %1771 = vector.shape_cast %1770 : vector<1x256xf32> to vector<1x256xf32>
    %1772 = vector.broadcast %1771 : vector<1x256xf32> to vector<16x256xf32>
    %1773 = vector.broadcast %cst_506 : f32 to vector<16x256xf32>
    %1774 = arith.select %1768, %1772, %1773 : vector<16x256xi1>, vector<16x256xf32>
    %1775 = vector.broadcast %1751 : vector<1x256xi32> to vector<16x256xi32>
    %1776 = arith.cmpi eq, %109, %1775 : vector<16x256xi32>
    %cst_507 = arith.constant 0.000000e+00 : f32
    %1777 = vector.shape_cast %1741 : vector<1x256xf32> to vector<1x256xf32>
    %1778 = vector.broadcast %1777 : vector<1x256xf32> to vector<16x256xf32>
    %1779 = vector.broadcast %cst_507 : f32 to vector<16x256xf32>
    %1780 = arith.select %1776, %1778, %1779 : vector<16x256xi1>, vector<16x256xf32>
    %1781 = arith.addf %1774, %1780 : vector<16x256xf32>
    %cst_508 = arith.constant dense<0.000000e+00> : vector<128x256xf32>
    %1782 = tpu.matmul %93, %1766, %cst_508 {dimension_numbers = #tpu.dot_dimension_numbers<[1], [0], [0], [1], [0, 0, 1, 1], [], []>} : vector<128x16xf32>, vector<16x256xf32>, vector<128x256xf32> -> vector<128x256xf32>
    %cst_509 = arith.constant 0.000000e+00 : f32
    %1783 = vector.broadcast %cst_509 : f32 to vector<1x256xf32>
    %1784 = vector.extract_strided_slice %1782 {offsets = [0, 0], sizes = [16, 256], strides = [1, 1]} : vector<128x256xf32> to vector<16x256xf32>
    %1785 = arith.mulf %1784, %1781 : vector<16x256xf32>
    %cst_510 = arith.constant dense<0.000000e+00> : vector<256xf32>
    %1786 = vector.multi_reduction <add>, %1785, %cst_510 [0] : vector<16x256xf32> to vector<256xf32>
    %1787 = vector.shape_cast %1786 : vector<256xf32> to vector<1x256xf32>
    %1788 = arith.mulf %1580, %1787 : vector<1x256xf32>
    %1789 = arith.addf %1783, %1788 : vector<1x256xf32>
    %1790 = vector.extract_strided_slice %1782 {offsets = [16, 0], sizes = [16, 256], strides = [1, 1]} : vector<128x256xf32> to vector<16x256xf32>
    %1791 = arith.mulf %1790, %1781 : vector<16x256xf32>
    %cst_511 = arith.constant dense<0.000000e+00> : vector<256xf32>
    %1792 = vector.multi_reduction <add>, %1791, %cst_511 [0] : vector<16x256xf32> to vector<256xf32>
    %1793 = vector.shape_cast %1792 : vector<256xf32> to vector<1x256xf32>
    %1794 = arith.mulf %1584, %1793 : vector<1x256xf32>
    %1795 = arith.addf %1789, %1794 : vector<1x256xf32>
    %1796 = vector.extract_strided_slice %1782 {offsets = [32, 0], sizes = [16, 256], strides = [1, 1]} : vector<128x256xf32> to vector<16x256xf32>
    %1797 = arith.mulf %1796, %1781 : vector<16x256xf32>
    %cst_512 = arith.constant dense<0.000000e+00> : vector<256xf32>
    %1798 = vector.multi_reduction <add>, %1797, %cst_512 [0] : vector<16x256xf32> to vector<256xf32>
    %1799 = vector.shape_cast %1798 : vector<256xf32> to vector<1x256xf32>
    %1800 = arith.mulf %1588, %1799 : vector<1x256xf32>
    %1801 = arith.addf %1795, %1800 : vector<1x256xf32>
    %1802 = vector.extract_strided_slice %1782 {offsets = [48, 0], sizes = [16, 256], strides = [1, 1]} : vector<128x256xf32> to vector<16x256xf32>
    %1803 = arith.mulf %1802, %1781 : vector<16x256xf32>
    %cst_513 = arith.constant dense<0.000000e+00> : vector<256xf32>
    %1804 = vector.multi_reduction <add>, %1803, %cst_513 [0] : vector<16x256xf32> to vector<256xf32>
    %1805 = vector.shape_cast %1804 : vector<256xf32> to vector<1x256xf32>
    %1806 = arith.mulf %1592, %1805 : vector<1x256xf32>
    %1807 = arith.addf %1801, %1806 : vector<1x256xf32>
    %1808 = vector.extract_strided_slice %1782 {offsets = [64, 0], sizes = [16, 256], strides = [1, 1]} : vector<128x256xf32> to vector<16x256xf32>
    %1809 = arith.mulf %1808, %1781 : vector<16x256xf32>
    %cst_514 = arith.constant dense<0.000000e+00> : vector<256xf32>
    %1810 = vector.multi_reduction <add>, %1809, %cst_514 [0] : vector<16x256xf32> to vector<256xf32>
    %1811 = vector.shape_cast %1810 : vector<256xf32> to vector<1x256xf32>
    %1812 = arith.mulf %1596, %1811 : vector<1x256xf32>
    %1813 = arith.addf %1807, %1812 : vector<1x256xf32>
    %1814 = vector.extract_strided_slice %1782 {offsets = [80, 0], sizes = [16, 256], strides = [1, 1]} : vector<128x256xf32> to vector<16x256xf32>
    %1815 = arith.mulf %1814, %1781 : vector<16x256xf32>
    %cst_515 = arith.constant dense<0.000000e+00> : vector<256xf32>
    %1816 = vector.multi_reduction <add>, %1815, %cst_515 [0] : vector<16x256xf32> to vector<256xf32>
    %1817 = vector.shape_cast %1816 : vector<256xf32> to vector<1x256xf32>
    %1818 = arith.mulf %1600, %1817 : vector<1x256xf32>
    %1819 = arith.addf %1813, %1818 : vector<1x256xf32>
    %1820 = vector.extract_strided_slice %1782 {offsets = [96, 0], sizes = [16, 256], strides = [1, 1]} : vector<128x256xf32> to vector<16x256xf32>
    %1821 = arith.mulf %1820, %1781 : vector<16x256xf32>
    %cst_516 = arith.constant dense<0.000000e+00> : vector<256xf32>
    %1822 = vector.multi_reduction <add>, %1821, %cst_516 [0] : vector<16x256xf32> to vector<256xf32>
    %1823 = vector.shape_cast %1822 : vector<256xf32> to vector<1x256xf32>
    %1824 = arith.mulf %1604, %1823 : vector<1x256xf32>
    %1825 = arith.addf %1819, %1824 : vector<1x256xf32>
    %1826 = vector.extract_strided_slice %1782 {offsets = [112, 0], sizes = [16, 256], strides = [1, 1]} : vector<128x256xf32> to vector<16x256xf32>
    %1827 = arith.mulf %1826, %1781 : vector<16x256xf32>
    %cst_517 = arith.constant dense<0.000000e+00> : vector<256xf32>
    %1828 = vector.multi_reduction <add>, %1827, %cst_517 [0] : vector<16x256xf32> to vector<256xf32>
    %1829 = vector.shape_cast %1828 : vector<256xf32> to vector<1x256xf32>
    %1830 = arith.mulf %1608, %1829 : vector<1x256xf32>
    %1831 = arith.addf %1825, %1830 : vector<1x256xf32>
    %1832 = arith.mulf %1523, %1729 : vector<1x256xf32>
    %1833 = arith.mulf %1831, %1832 : vector<1x256xf32>
    %cst_518 = arith.constant 2.000000e+00 : f32
    %1834 = vector.broadcast %cst_518 : f32 to vector<1x256xf32>
    %1835 = arith.addf %96, %1834 : vector<1x256xf32>
    %cst_519 = arith.constant -1.000000e+00 : f32
    %1836 = vector.broadcast %cst_519 : f32 to vector<1x256xf32>
    %1837 = arith.mulf %1836, %1835 : vector<1x256xf32>
    %1838 = arith.addf %107, %1837 : vector<1x256xf32>
    %1839 = vector.broadcast %1 : f32 to vector<1x256xf32>
    %1840 = arith.addf %97, %1839 : vector<1x256xf32>
    %cst_520 = arith.constant -1.000000e+00 : f32
    %1841 = vector.broadcast %cst_520 : f32 to vector<1x256xf32>
    %1842 = arith.mulf %1841, %1840 : vector<1x256xf32>
    %1843 = arith.addf %104, %1842 : vector<1x256xf32>
    %cst_521 = arith.constant 0.13333334 : f32
    %1844 = vector.broadcast %cst_521 : f32 to vector<1x256xf32>
    %1845 = arith.mulf %1844, %1838 : vector<1x256xf32>
    %cst_522 = arith.constant 1.000000e+00 : f32
    %1846 = vector.broadcast %cst_522 : f32 to vector<1x256xf32>
    %1847 = arith.subf %1845, %1846 : vector<1x256xf32>
    %cst_523 = arith.constant 0.13333334 : f32
    %1848 = vector.broadcast %cst_523 : f32 to vector<1x256xf32>
    %1849 = arith.mulf %1848, %1843 : vector<1x256xf32>
    %cst_524 = arith.constant 1.000000e+00 : f32
    %1850 = vector.broadcast %cst_524 : f32 to vector<1x256xf32>
    %1851 = arith.subf %1849, %1850 : vector<1x256xf32>
    %cst_525 = arith.constant 1.000000e+00 : f32
    %1852 = vector.broadcast %cst_525 : f32 to vector<1x256xf32>
    %1853 = arith.addf %1847, %1852 : vector<1x256xf32>
    %cst_526 = arith.constant 1.600000e+01 : f32
    %1854 = vector.broadcast %cst_526 : f32 to vector<1x256xf32>
    %1855 = arith.mulf %1853, %1854 : vector<1x256xf32>
    %cst_527 = arith.constant 1.000000e+00 : f32
    %1856 = vector.broadcast %cst_527 : f32 to vector<1x256xf32>
    %1857 = arith.subf %1855, %1856 : vector<1x256xf32>
    %cst_528 = arith.constant 5.000000e-01 : f32
    %1858 = vector.broadcast %cst_528 : f32 to vector<1x256xf32>
    %1859 = arith.mulf %1857, %1858 : vector<1x256xf32>
    %cst_529 = arith.constant 1.000000e+00 : f32
    %1860 = vector.broadcast %cst_529 : f32 to vector<1x256xf32>
    %1861 = arith.addf %1851, %1860 : vector<1x256xf32>
    %cst_530 = arith.constant 1.600000e+01 : f32
    %1862 = vector.broadcast %cst_530 : f32 to vector<1x256xf32>
    %1863 = arith.mulf %1861, %1862 : vector<1x256xf32>
    %cst_531 = arith.constant 1.000000e+00 : f32
    %1864 = vector.broadcast %cst_531 : f32 to vector<1x256xf32>
    %1865 = arith.subf %1863, %1864 : vector<1x256xf32>
    %cst_532 = arith.constant 5.000000e-01 : f32
    %1866 = vector.broadcast %cst_532 : f32 to vector<1x256xf32>
    %1867 = arith.mulf %1865, %1866 : vector<1x256xf32>
    %1868 = math.floor %1859 : vector<1x256xf32>
    %1869 = math.floor %1867 : vector<1x256xf32>
    %1870 = arith.subf %1859, %1868 : vector<1x256xf32>
    %1871 = arith.subf %1867, %1869 : vector<1x256xf32>
    %cst_533 = arith.constant 1.000000e+00 : f32
    %1872 = vector.broadcast %cst_533 : f32 to vector<1x256xf32>
    %1873 = arith.subf %1872, %1870 : vector<1x256xf32>
    %cst_534 = arith.constant 1.000000e+00 : f32
    %1874 = vector.broadcast %cst_534 : f32 to vector<1x256xf32>
    %1875 = arith.subf %1874, %1871 : vector<1x256xf32>
    %1876 = arith.mulf %1873, %1875 : vector<1x256xf32>
    %cst_535 = arith.constant 0.000000e+00 : f32
    %1877 = vector.broadcast %cst_535 : f32 to vector<1x256xf32>
    %1878 = arith.cmpf oge, %1868, %1877 : vector<1x256xf32>
    %cst_536 = arith.constant 1.500000e+01 : f32
    %1879 = vector.broadcast %cst_536 : f32 to vector<1x256xf32>
    %1880 = arith.cmpf ole, %1868, %1879 : vector<1x256xf32>
    %1881 = arith.andi %1878, %1880 : vector<1x256xi1>
    %cst_537 = arith.constant 0.000000e+00 : f32
    %1882 = vector.broadcast %cst_537 : f32 to vector<1x256xf32>
    %1883 = arith.cmpf oge, %1869, %1882 : vector<1x256xf32>
    %1884 = arith.andi %1881, %1883 : vector<1x256xi1>
    %cst_538 = arith.constant 1.500000e+01 : f32
    %1885 = vector.broadcast %cst_538 : f32 to vector<1x256xf32>
    %1886 = arith.cmpf ole, %1869, %1885 : vector<1x256xf32>
    %1887 = arith.andi %1884, %1886 : vector<1x256xi1>
    %1888 = arith.extui %1887 : vector<1x256xi1> to vector<1x256xi32>
    %1889 = arith.sitofp %1888 : vector<1x256xi32> to vector<1x256xf32>
    %1890 = arith.mulf %1876, %1889 : vector<1x256xf32>
    %cst_539 = arith.constant 1.000000e+00 : f32
    %1891 = vector.broadcast %cst_539 : f32 to vector<1x256xf32>
    %1892 = arith.subf %1891, %1871 : vector<1x256xf32>
    %1893 = arith.mulf %1870, %1892 : vector<1x256xf32>
    %cst_540 = arith.constant 1.000000e+00 : f32
    %1894 = vector.broadcast %cst_540 : f32 to vector<1x256xf32>
    %1895 = arith.addf %1868, %1894 : vector<1x256xf32>
    %cst_541 = arith.constant 0.000000e+00 : f32
    %1896 = vector.broadcast %cst_541 : f32 to vector<1x256xf32>
    %1897 = arith.cmpf oge, %1895, %1896 : vector<1x256xf32>
    %cst_542 = arith.constant 1.500000e+01 : f32
    %1898 = vector.broadcast %cst_542 : f32 to vector<1x256xf32>
    %1899 = arith.cmpf ole, %1895, %1898 : vector<1x256xf32>
    %1900 = arith.andi %1897, %1899 : vector<1x256xi1>
    %cst_543 = arith.constant 0.000000e+00 : f32
    %1901 = vector.broadcast %cst_543 : f32 to vector<1x256xf32>
    %1902 = arith.cmpf oge, %1869, %1901 : vector<1x256xf32>
    %1903 = arith.andi %1900, %1902 : vector<1x256xi1>
    %cst_544 = arith.constant 1.500000e+01 : f32
    %1904 = vector.broadcast %cst_544 : f32 to vector<1x256xf32>
    %1905 = arith.cmpf ole, %1869, %1904 : vector<1x256xf32>
    %1906 = arith.andi %1903, %1905 : vector<1x256xi1>
    %1907 = arith.extui %1906 : vector<1x256xi1> to vector<1x256xi32>
    %1908 = arith.sitofp %1907 : vector<1x256xi32> to vector<1x256xf32>
    %1909 = arith.mulf %1893, %1908 : vector<1x256xf32>
    %1910 = arith.addf %1890, %1909 : vector<1x256xf32>
    %cst_545 = arith.constant 1.000000e+00 : f32
    %1911 = vector.broadcast %cst_545 : f32 to vector<1x256xf32>
    %1912 = arith.subf %1911, %1870 : vector<1x256xf32>
    %1913 = arith.mulf %1912, %1871 : vector<1x256xf32>
    %cst_546 = arith.constant 1.000000e+00 : f32
    %1914 = vector.broadcast %cst_546 : f32 to vector<1x256xf32>
    %1915 = arith.addf %1869, %1914 : vector<1x256xf32>
    %cst_547 = arith.constant 0.000000e+00 : f32
    %1916 = vector.broadcast %cst_547 : f32 to vector<1x256xf32>
    %1917 = arith.cmpf oge, %1868, %1916 : vector<1x256xf32>
    %cst_548 = arith.constant 1.500000e+01 : f32
    %1918 = vector.broadcast %cst_548 : f32 to vector<1x256xf32>
    %1919 = arith.cmpf ole, %1868, %1918 : vector<1x256xf32>
    %1920 = arith.andi %1917, %1919 : vector<1x256xi1>
    %cst_549 = arith.constant 0.000000e+00 : f32
    %1921 = vector.broadcast %cst_549 : f32 to vector<1x256xf32>
    %1922 = arith.cmpf oge, %1915, %1921 : vector<1x256xf32>
    %1923 = arith.andi %1920, %1922 : vector<1x256xi1>
    %cst_550 = arith.constant 1.500000e+01 : f32
    %1924 = vector.broadcast %cst_550 : f32 to vector<1x256xf32>
    %1925 = arith.cmpf ole, %1915, %1924 : vector<1x256xf32>
    %1926 = arith.andi %1923, %1925 : vector<1x256xi1>
    %1927 = arith.extui %1926 : vector<1x256xi1> to vector<1x256xi32>
    %1928 = arith.sitofp %1927 : vector<1x256xi32> to vector<1x256xf32>
    %1929 = arith.mulf %1913, %1928 : vector<1x256xf32>
    %1930 = arith.addf %1910, %1929 : vector<1x256xf32>
    %1931 = arith.mulf %1870, %1871 : vector<1x256xf32>
    %cst_551 = arith.constant 1.000000e+00 : f32
    %1932 = vector.broadcast %cst_551 : f32 to vector<1x256xf32>
    %1933 = arith.addf %1868, %1932 : vector<1x256xf32>
    %cst_552 = arith.constant 1.000000e+00 : f32
    %1934 = vector.broadcast %cst_552 : f32 to vector<1x256xf32>
    %1935 = arith.addf %1869, %1934 : vector<1x256xf32>
    %cst_553 = arith.constant 0.000000e+00 : f32
    %1936 = vector.broadcast %cst_553 : f32 to vector<1x256xf32>
    %1937 = arith.cmpf oge, %1933, %1936 : vector<1x256xf32>
    %cst_554 = arith.constant 1.500000e+01 : f32
    %1938 = vector.broadcast %cst_554 : f32 to vector<1x256xf32>
    %1939 = arith.cmpf ole, %1933, %1938 : vector<1x256xf32>
    %1940 = arith.andi %1937, %1939 : vector<1x256xi1>
    %cst_555 = arith.constant 0.000000e+00 : f32
    %1941 = vector.broadcast %cst_555 : f32 to vector<1x256xf32>
    %1942 = arith.cmpf oge, %1935, %1941 : vector<1x256xf32>
    %1943 = arith.andi %1940, %1942 : vector<1x256xi1>
    %cst_556 = arith.constant 1.500000e+01 : f32
    %1944 = vector.broadcast %cst_556 : f32 to vector<1x256xf32>
    %1945 = arith.cmpf ole, %1935, %1944 : vector<1x256xf32>
    %1946 = arith.andi %1943, %1945 : vector<1x256xi1>
    %1947 = arith.extui %1946 : vector<1x256xi1> to vector<1x256xi32>
    %1948 = arith.sitofp %1947 : vector<1x256xi32> to vector<1x256xf32>
    %1949 = arith.mulf %1931, %1948 : vector<1x256xf32>
    %1950 = arith.addf %1930, %1949 : vector<1x256xf32>
    %cst_557 = arith.constant 9.990000e-01 : f32
    %1951 = vector.broadcast %cst_557 : f32 to vector<1x256xf32>
    %1952 = arith.cmpf oge, %1950, %1951 : vector<1x256xf32>
    %1953 = arith.extui %1952 : vector<1x256xi1> to vector<1x256xi32>
    %1954 = arith.sitofp %1953 : vector<1x256xi32> to vector<1x256xf32>
    %cst_558 = arith.constant 0.000000e+00 : f32
    %cst_559 = arith.constant 1.500000e+01 : f32
    %1955 = vector.broadcast %cst_558 : f32 to vector<1x256xf32>
    %1956 = arith.maximumf %1955, %1859 : vector<1x256xf32>
    %1957 = vector.broadcast %cst_559 : f32 to vector<1x256xf32>
    %1958 = arith.minimumf %1957, %1956 : vector<1x256xf32>
    %cst_560 = arith.constant 0.000000e+00 : f32
    %cst_561 = arith.constant 1.500000e+01 : f32
    %1959 = vector.broadcast %cst_560 : f32 to vector<1x256xf32>
    %1960 = arith.maximumf %1959, %1867 : vector<1x256xf32>
    %1961 = vector.broadcast %cst_561 : f32 to vector<1x256xf32>
    %1962 = arith.minimumf %1961, %1960 : vector<1x256xf32>
    %1963 = math.floor %1958 : vector<1x256xf32>
    %1964 = math.floor %1962 : vector<1x256xf32>
    %1965 = arith.subf %1958, %1963 : vector<1x256xf32>
    %1966 = arith.subf %1962, %1964 : vector<1x256xf32>
    %1967 = arith.fptosi %1963 : vector<1x256xf32> to vector<1x256xi32>
    %1968 = arith.fptosi %1964 : vector<1x256xf32> to vector<1x256xi32>
    %c1_i32_562 = arith.constant 1 : i32
    %1969 = vector.broadcast %c1_i32_562 : i32 to vector<1x256xi32>
    %1970 = arith.addi %1967, %1969 : vector<1x256xi32>
    %c15_i32_563 = arith.constant 15 : i32
    %1971 = vector.broadcast %c15_i32_563 : i32 to vector<1x256xi32>
    %1972 = arith.minsi %1970, %1971 : vector<1x256xi32>
    %c1_i32_564 = arith.constant 1 : i32
    %1973 = vector.broadcast %c1_i32_564 : i32 to vector<1x256xi32>
    %1974 = arith.addi %1968, %1973 : vector<1x256xi32>
    %c15_i32_565 = arith.constant 15 : i32
    %1975 = vector.broadcast %c15_i32_565 : i32 to vector<1x256xi32>
    %1976 = arith.minsi %1974, %1975 : vector<1x256xi32>
    %1977 = vector.broadcast %1967 : vector<1x256xi32> to vector<16x256xi32>
    %1978 = arith.cmpi eq, %108, %1977 : vector<16x256xi32>
    %cst_566 = arith.constant 1.000000e+00 : f32
    %1979 = vector.broadcast %cst_566 : f32 to vector<1x256xf32>
    %1980 = arith.subf %1979, %1965 : vector<1x256xf32>
    %cst_567 = arith.constant 0.000000e+00 : f32
    %1981 = vector.shape_cast %1980 : vector<1x256xf32> to vector<1x256xf32>
    %1982 = vector.broadcast %1981 : vector<1x256xf32> to vector<16x256xf32>
    %1983 = vector.broadcast %cst_567 : f32 to vector<16x256xf32>
    %1984 = arith.select %1978, %1982, %1983 : vector<16x256xi1>, vector<16x256xf32>
    %1985 = vector.broadcast %1972 : vector<1x256xi32> to vector<16x256xi32>
    %1986 = arith.cmpi eq, %108, %1985 : vector<16x256xi32>
    %cst_568 = arith.constant 0.000000e+00 : f32
    %1987 = vector.shape_cast %1965 : vector<1x256xf32> to vector<1x256xf32>
    %1988 = vector.broadcast %1987 : vector<1x256xf32> to vector<16x256xf32>
    %1989 = vector.broadcast %cst_568 : f32 to vector<16x256xf32>
    %1990 = arith.select %1986, %1988, %1989 : vector<16x256xi1>, vector<16x256xf32>
    %1991 = arith.addf %1984, %1990 : vector<16x256xf32>
    %1992 = vector.broadcast %1968 : vector<1x256xi32> to vector<16x256xi32>
    %1993 = arith.cmpi eq, %109, %1992 : vector<16x256xi32>
    %cst_569 = arith.constant 1.000000e+00 : f32
    %1994 = vector.broadcast %cst_569 : f32 to vector<1x256xf32>
    %1995 = arith.subf %1994, %1966 : vector<1x256xf32>
    %cst_570 = arith.constant 0.000000e+00 : f32
    %1996 = vector.shape_cast %1995 : vector<1x256xf32> to vector<1x256xf32>
    %1997 = vector.broadcast %1996 : vector<1x256xf32> to vector<16x256xf32>
    %1998 = vector.broadcast %cst_570 : f32 to vector<16x256xf32>
    %1999 = arith.select %1993, %1997, %1998 : vector<16x256xi1>, vector<16x256xf32>
    %2000 = vector.broadcast %1976 : vector<1x256xi32> to vector<16x256xi32>
    %2001 = arith.cmpi eq, %109, %2000 : vector<16x256xi32>
    %cst_571 = arith.constant 0.000000e+00 : f32
    %2002 = vector.shape_cast %1966 : vector<1x256xf32> to vector<1x256xf32>
    %2003 = vector.broadcast %2002 : vector<1x256xf32> to vector<16x256xf32>
    %2004 = vector.broadcast %cst_571 : f32 to vector<16x256xf32>
    %2005 = arith.select %2001, %2003, %2004 : vector<16x256xi1>, vector<16x256xf32>
    %2006 = arith.addf %1999, %2005 : vector<16x256xf32>
    %cst_572 = arith.constant dense<0.000000e+00> : vector<128x256xf32>
    %2007 = tpu.matmul %47, %1991, %cst_572 {dimension_numbers = #tpu.dot_dimension_numbers<[1], [0], [0], [1], [0, 0, 1, 1], [], []>} : vector<128x16xf32>, vector<16x256xf32>, vector<128x256xf32> -> vector<128x256xf32>
    %2008 = vector.extract_strided_slice %2007 {offsets = [0, 0], sizes = [16, 256], strides = [1, 1]} : vector<128x256xf32> to vector<16x256xf32>
    %2009 = arith.mulf %2008, %2006 : vector<16x256xf32>
    %cst_573 = arith.constant dense<0.000000e+00> : vector<256xf32>
    %2010 = vector.multi_reduction <add>, %2009, %cst_573 [0] : vector<16x256xf32> to vector<256xf32>
    %2011 = vector.shape_cast %2010 : vector<256xf32> to vector<1x256xf32>
    %2012 = vector.extract_strided_slice %2007 {offsets = [16, 0], sizes = [16, 256], strides = [1, 1]} : vector<128x256xf32> to vector<16x256xf32>
    %2013 = arith.mulf %2012, %2006 : vector<16x256xf32>
    %cst_574 = arith.constant dense<0.000000e+00> : vector<256xf32>
    %2014 = vector.multi_reduction <add>, %2013, %cst_574 [0] : vector<16x256xf32> to vector<256xf32>
    %2015 = vector.shape_cast %2014 : vector<256xf32> to vector<1x256xf32>
    %2016 = vector.extract_strided_slice %2007 {offsets = [32, 0], sizes = [16, 256], strides = [1, 1]} : vector<128x256xf32> to vector<16x256xf32>
    %2017 = arith.mulf %2016, %2006 : vector<16x256xf32>
    %cst_575 = arith.constant dense<0.000000e+00> : vector<256xf32>
    %2018 = vector.multi_reduction <add>, %2017, %cst_575 [0] : vector<16x256xf32> to vector<256xf32>
    %2019 = vector.shape_cast %2018 : vector<256xf32> to vector<1x256xf32>
    %2020 = vector.extract_strided_slice %2007 {offsets = [48, 0], sizes = [16, 256], strides = [1, 1]} : vector<128x256xf32> to vector<16x256xf32>
    %2021 = arith.mulf %2020, %2006 : vector<16x256xf32>
    %cst_576 = arith.constant dense<0.000000e+00> : vector<256xf32>
    %2022 = vector.multi_reduction <add>, %2021, %cst_576 [0] : vector<16x256xf32> to vector<256xf32>
    %2023 = vector.shape_cast %2022 : vector<256xf32> to vector<1x256xf32>
    %2024 = vector.extract_strided_slice %2007 {offsets = [64, 0], sizes = [16, 256], strides = [1, 1]} : vector<128x256xf32> to vector<16x256xf32>
    %2025 = arith.mulf %2024, %2006 : vector<16x256xf32>
    %cst_577 = arith.constant dense<0.000000e+00> : vector<256xf32>
    %2026 = vector.multi_reduction <add>, %2025, %cst_577 [0] : vector<16x256xf32> to vector<256xf32>
    %2027 = vector.shape_cast %2026 : vector<256xf32> to vector<1x256xf32>
    %2028 = vector.extract_strided_slice %2007 {offsets = [80, 0], sizes = [16, 256], strides = [1, 1]} : vector<128x256xf32> to vector<16x256xf32>
    %2029 = arith.mulf %2028, %2006 : vector<16x256xf32>
    %cst_578 = arith.constant dense<0.000000e+00> : vector<256xf32>
    %2030 = vector.multi_reduction <add>, %2029, %cst_578 [0] : vector<16x256xf32> to vector<256xf32>
    %2031 = vector.shape_cast %2030 : vector<256xf32> to vector<1x256xf32>
    %2032 = vector.extract_strided_slice %2007 {offsets = [96, 0], sizes = [16, 256], strides = [1, 1]} : vector<128x256xf32> to vector<16x256xf32>
    %2033 = arith.mulf %2032, %2006 : vector<16x256xf32>
    %cst_579 = arith.constant dense<0.000000e+00> : vector<256xf32>
    %2034 = vector.multi_reduction <add>, %2033, %cst_579 [0] : vector<16x256xf32> to vector<256xf32>
    %2035 = vector.shape_cast %2034 : vector<256xf32> to vector<1x256xf32>
    %2036 = vector.extract_strided_slice %2007 {offsets = [112, 0], sizes = [16, 256], strides = [1, 1]} : vector<128x256xf32> to vector<16x256xf32>
    %2037 = arith.mulf %2036, %2006 : vector<16x256xf32>
    %cst_580 = arith.constant dense<0.000000e+00> : vector<256xf32>
    %2038 = vector.multi_reduction <add>, %2037, %cst_580 [0] : vector<16x256xf32> to vector<256xf32>
    %2039 = vector.shape_cast %2038 : vector<256xf32> to vector<1x256xf32>
    %cst_581 = arith.constant 2.000000e+00 : f32
    %2040 = vector.broadcast %cst_581 : f32 to vector<1x256xf32>
    %2041 = arith.addf %96, %2040 : vector<1x256xf32>
    %cst_582 = arith.constant 1.000000e+00 : f32
    %2042 = vector.broadcast %cst_582 : f32 to vector<1x256xf32>
    %2043 = arith.mulf %2042, %2041 : vector<1x256xf32>
    %2044 = arith.addf %107, %2043 : vector<1x256xf32>
    %2045 = vector.broadcast %1 : f32 to vector<1x256xf32>
    %2046 = arith.addf %97, %2045 : vector<1x256xf32>
    %cst_583 = arith.constant 1.000000e+00 : f32
    %2047 = vector.broadcast %cst_583 : f32 to vector<1x256xf32>
    %2048 = arith.mulf %2047, %2046 : vector<1x256xf32>
    %2049 = arith.addf %104, %2048 : vector<1x256xf32>
    %cst_584 = arith.constant 0.13333334 : f32
    %2050 = vector.broadcast %cst_584 : f32 to vector<1x256xf32>
    %2051 = arith.mulf %2050, %2044 : vector<1x256xf32>
    %cst_585 = arith.constant 1.000000e+00 : f32
    %2052 = vector.broadcast %cst_585 : f32 to vector<1x256xf32>
    %2053 = arith.subf %2051, %2052 : vector<1x256xf32>
    %cst_586 = arith.constant 0.13333334 : f32
    %2054 = vector.broadcast %cst_586 : f32 to vector<1x256xf32>
    %2055 = arith.mulf %2054, %2049 : vector<1x256xf32>
    %cst_587 = arith.constant 1.000000e+00 : f32
    %2056 = vector.broadcast %cst_587 : f32 to vector<1x256xf32>
    %2057 = arith.subf %2055, %2056 : vector<1x256xf32>
    %cst_588 = arith.constant 1.000000e+00 : f32
    %2058 = vector.broadcast %cst_588 : f32 to vector<1x256xf32>
    %2059 = arith.addf %2053, %2058 : vector<1x256xf32>
    %cst_589 = arith.constant 1.600000e+01 : f32
    %2060 = vector.broadcast %cst_589 : f32 to vector<1x256xf32>
    %2061 = arith.mulf %2059, %2060 : vector<1x256xf32>
    %cst_590 = arith.constant 1.000000e+00 : f32
    %2062 = vector.broadcast %cst_590 : f32 to vector<1x256xf32>
    %2063 = arith.subf %2061, %2062 : vector<1x256xf32>
    %cst_591 = arith.constant 5.000000e-01 : f32
    %2064 = vector.broadcast %cst_591 : f32 to vector<1x256xf32>
    %2065 = arith.mulf %2063, %2064 : vector<1x256xf32>
    %cst_592 = arith.constant 1.000000e+00 : f32
    %2066 = vector.broadcast %cst_592 : f32 to vector<1x256xf32>
    %2067 = arith.addf %2057, %2066 : vector<1x256xf32>
    %cst_593 = arith.constant 1.600000e+01 : f32
    %2068 = vector.broadcast %cst_593 : f32 to vector<1x256xf32>
    %2069 = arith.mulf %2067, %2068 : vector<1x256xf32>
    %cst_594 = arith.constant 1.000000e+00 : f32
    %2070 = vector.broadcast %cst_594 : f32 to vector<1x256xf32>
    %2071 = arith.subf %2069, %2070 : vector<1x256xf32>
    %cst_595 = arith.constant 5.000000e-01 : f32
    %2072 = vector.broadcast %cst_595 : f32 to vector<1x256xf32>
    %2073 = arith.mulf %2071, %2072 : vector<1x256xf32>
    %2074 = math.floor %2065 : vector<1x256xf32>
    %2075 = math.floor %2073 : vector<1x256xf32>
    %2076 = arith.subf %2065, %2074 : vector<1x256xf32>
    %2077 = arith.subf %2073, %2075 : vector<1x256xf32>
    %cst_596 = arith.constant 1.000000e+00 : f32
    %2078 = vector.broadcast %cst_596 : f32 to vector<1x256xf32>
    %2079 = arith.subf %2078, %2076 : vector<1x256xf32>
    %cst_597 = arith.constant 1.000000e+00 : f32
    %2080 = vector.broadcast %cst_597 : f32 to vector<1x256xf32>
    %2081 = arith.subf %2080, %2077 : vector<1x256xf32>
    %2082 = arith.mulf %2079, %2081 : vector<1x256xf32>
    %cst_598 = arith.constant 0.000000e+00 : f32
    %2083 = vector.broadcast %cst_598 : f32 to vector<1x256xf32>
    %2084 = arith.cmpf oge, %2074, %2083 : vector<1x256xf32>
    %cst_599 = arith.constant 1.500000e+01 : f32
    %2085 = vector.broadcast %cst_599 : f32 to vector<1x256xf32>
    %2086 = arith.cmpf ole, %2074, %2085 : vector<1x256xf32>
    %2087 = arith.andi %2084, %2086 : vector<1x256xi1>
    %cst_600 = arith.constant 0.000000e+00 : f32
    %2088 = vector.broadcast %cst_600 : f32 to vector<1x256xf32>
    %2089 = arith.cmpf oge, %2075, %2088 : vector<1x256xf32>
    %2090 = arith.andi %2087, %2089 : vector<1x256xi1>
    %cst_601 = arith.constant 1.500000e+01 : f32
    %2091 = vector.broadcast %cst_601 : f32 to vector<1x256xf32>
    %2092 = arith.cmpf ole, %2075, %2091 : vector<1x256xf32>
    %2093 = arith.andi %2090, %2092 : vector<1x256xi1>
    %2094 = arith.extui %2093 : vector<1x256xi1> to vector<1x256xi32>
    %2095 = arith.sitofp %2094 : vector<1x256xi32> to vector<1x256xf32>
    %2096 = arith.mulf %2082, %2095 : vector<1x256xf32>
    %cst_602 = arith.constant 1.000000e+00 : f32
    %2097 = vector.broadcast %cst_602 : f32 to vector<1x256xf32>
    %2098 = arith.subf %2097, %2077 : vector<1x256xf32>
    %2099 = arith.mulf %2076, %2098 : vector<1x256xf32>
    %cst_603 = arith.constant 1.000000e+00 : f32
    %2100 = vector.broadcast %cst_603 : f32 to vector<1x256xf32>
    %2101 = arith.addf %2074, %2100 : vector<1x256xf32>
    %cst_604 = arith.constant 0.000000e+00 : f32
    %2102 = vector.broadcast %cst_604 : f32 to vector<1x256xf32>
    %2103 = arith.cmpf oge, %2101, %2102 : vector<1x256xf32>
    %cst_605 = arith.constant 1.500000e+01 : f32
    %2104 = vector.broadcast %cst_605 : f32 to vector<1x256xf32>
    %2105 = arith.cmpf ole, %2101, %2104 : vector<1x256xf32>
    %2106 = arith.andi %2103, %2105 : vector<1x256xi1>
    %cst_606 = arith.constant 0.000000e+00 : f32
    %2107 = vector.broadcast %cst_606 : f32 to vector<1x256xf32>
    %2108 = arith.cmpf oge, %2075, %2107 : vector<1x256xf32>
    %2109 = arith.andi %2106, %2108 : vector<1x256xi1>
    %cst_607 = arith.constant 1.500000e+01 : f32
    %2110 = vector.broadcast %cst_607 : f32 to vector<1x256xf32>
    %2111 = arith.cmpf ole, %2075, %2110 : vector<1x256xf32>
    %2112 = arith.andi %2109, %2111 : vector<1x256xi1>
    %2113 = arith.extui %2112 : vector<1x256xi1> to vector<1x256xi32>
    %2114 = arith.sitofp %2113 : vector<1x256xi32> to vector<1x256xf32>
    %2115 = arith.mulf %2099, %2114 : vector<1x256xf32>
    %2116 = arith.addf %2096, %2115 : vector<1x256xf32>
    %cst_608 = arith.constant 1.000000e+00 : f32
    %2117 = vector.broadcast %cst_608 : f32 to vector<1x256xf32>
    %2118 = arith.subf %2117, %2076 : vector<1x256xf32>
    %2119 = arith.mulf %2118, %2077 : vector<1x256xf32>
    %cst_609 = arith.constant 1.000000e+00 : f32
    %2120 = vector.broadcast %cst_609 : f32 to vector<1x256xf32>
    %2121 = arith.addf %2075, %2120 : vector<1x256xf32>
    %cst_610 = arith.constant 0.000000e+00 : f32
    %2122 = vector.broadcast %cst_610 : f32 to vector<1x256xf32>
    %2123 = arith.cmpf oge, %2074, %2122 : vector<1x256xf32>
    %cst_611 = arith.constant 1.500000e+01 : f32
    %2124 = vector.broadcast %cst_611 : f32 to vector<1x256xf32>
    %2125 = arith.cmpf ole, %2074, %2124 : vector<1x256xf32>
    %2126 = arith.andi %2123, %2125 : vector<1x256xi1>
    %cst_612 = arith.constant 0.000000e+00 : f32
    %2127 = vector.broadcast %cst_612 : f32 to vector<1x256xf32>
    %2128 = arith.cmpf oge, %2121, %2127 : vector<1x256xf32>
    %2129 = arith.andi %2126, %2128 : vector<1x256xi1>
    %cst_613 = arith.constant 1.500000e+01 : f32
    %2130 = vector.broadcast %cst_613 : f32 to vector<1x256xf32>
    %2131 = arith.cmpf ole, %2121, %2130 : vector<1x256xf32>
    %2132 = arith.andi %2129, %2131 : vector<1x256xi1>
    %2133 = arith.extui %2132 : vector<1x256xi1> to vector<1x256xi32>
    %2134 = arith.sitofp %2133 : vector<1x256xi32> to vector<1x256xf32>
    %2135 = arith.mulf %2119, %2134 : vector<1x256xf32>
    %2136 = arith.addf %2116, %2135 : vector<1x256xf32>
    %2137 = arith.mulf %2076, %2077 : vector<1x256xf32>
    %cst_614 = arith.constant 1.000000e+00 : f32
    %2138 = vector.broadcast %cst_614 : f32 to vector<1x256xf32>
    %2139 = arith.addf %2074, %2138 : vector<1x256xf32>
    %cst_615 = arith.constant 1.000000e+00 : f32
    %2140 = vector.broadcast %cst_615 : f32 to vector<1x256xf32>
    %2141 = arith.addf %2075, %2140 : vector<1x256xf32>
    %cst_616 = arith.constant 0.000000e+00 : f32
    %2142 = vector.broadcast %cst_616 : f32 to vector<1x256xf32>
    %2143 = arith.cmpf oge, %2139, %2142 : vector<1x256xf32>
    %cst_617 = arith.constant 1.500000e+01 : f32
    %2144 = vector.broadcast %cst_617 : f32 to vector<1x256xf32>
    %2145 = arith.cmpf ole, %2139, %2144 : vector<1x256xf32>
    %2146 = arith.andi %2143, %2145 : vector<1x256xi1>
    %cst_618 = arith.constant 0.000000e+00 : f32
    %2147 = vector.broadcast %cst_618 : f32 to vector<1x256xf32>
    %2148 = arith.cmpf oge, %2141, %2147 : vector<1x256xf32>
    %2149 = arith.andi %2146, %2148 : vector<1x256xi1>
    %cst_619 = arith.constant 1.500000e+01 : f32
    %2150 = vector.broadcast %cst_619 : f32 to vector<1x256xf32>
    %2151 = arith.cmpf ole, %2141, %2150 : vector<1x256xf32>
    %2152 = arith.andi %2149, %2151 : vector<1x256xi1>
    %2153 = arith.extui %2152 : vector<1x256xi1> to vector<1x256xi32>
    %2154 = arith.sitofp %2153 : vector<1x256xi32> to vector<1x256xf32>
    %2155 = arith.mulf %2137, %2154 : vector<1x256xf32>
    %2156 = arith.addf %2136, %2155 : vector<1x256xf32>
    %cst_620 = arith.constant 9.990000e-01 : f32
    %2157 = vector.broadcast %cst_620 : f32 to vector<1x256xf32>
    %2158 = arith.cmpf oge, %2156, %2157 : vector<1x256xf32>
    %2159 = arith.extui %2158 : vector<1x256xi1> to vector<1x256xi32>
    %2160 = arith.sitofp %2159 : vector<1x256xi32> to vector<1x256xf32>
    %cst_621 = arith.constant 0.000000e+00 : f32
    %cst_622 = arith.constant 1.500000e+01 : f32
    %2161 = vector.broadcast %cst_621 : f32 to vector<1x256xf32>
    %2162 = arith.maximumf %2161, %2065 : vector<1x256xf32>
    %2163 = vector.broadcast %cst_622 : f32 to vector<1x256xf32>
    %2164 = arith.minimumf %2163, %2162 : vector<1x256xf32>
    %cst_623 = arith.constant 0.000000e+00 : f32
    %cst_624 = arith.constant 1.500000e+01 : f32
    %2165 = vector.broadcast %cst_623 : f32 to vector<1x256xf32>
    %2166 = arith.maximumf %2165, %2073 : vector<1x256xf32>
    %2167 = vector.broadcast %cst_624 : f32 to vector<1x256xf32>
    %2168 = arith.minimumf %2167, %2166 : vector<1x256xf32>
    %2169 = math.floor %2164 : vector<1x256xf32>
    %2170 = math.floor %2168 : vector<1x256xf32>
    %2171 = arith.subf %2164, %2169 : vector<1x256xf32>
    %2172 = arith.subf %2168, %2170 : vector<1x256xf32>
    %2173 = arith.fptosi %2169 : vector<1x256xf32> to vector<1x256xi32>
    %2174 = arith.fptosi %2170 : vector<1x256xf32> to vector<1x256xi32>
    %c1_i32_625 = arith.constant 1 : i32
    %2175 = vector.broadcast %c1_i32_625 : i32 to vector<1x256xi32>
    %2176 = arith.addi %2173, %2175 : vector<1x256xi32>
    %c15_i32_626 = arith.constant 15 : i32
    %2177 = vector.broadcast %c15_i32_626 : i32 to vector<1x256xi32>
    %2178 = arith.minsi %2176, %2177 : vector<1x256xi32>
    %c1_i32_627 = arith.constant 1 : i32
    %2179 = vector.broadcast %c1_i32_627 : i32 to vector<1x256xi32>
    %2180 = arith.addi %2174, %2179 : vector<1x256xi32>
    %c15_i32_628 = arith.constant 15 : i32
    %2181 = vector.broadcast %c15_i32_628 : i32 to vector<1x256xi32>
    %2182 = arith.minsi %2180, %2181 : vector<1x256xi32>
    %2183 = vector.broadcast %2173 : vector<1x256xi32> to vector<16x256xi32>
    %2184 = arith.cmpi eq, %108, %2183 : vector<16x256xi32>
    %cst_629 = arith.constant 1.000000e+00 : f32
    %2185 = vector.broadcast %cst_629 : f32 to vector<1x256xf32>
    %2186 = arith.subf %2185, %2171 : vector<1x256xf32>
    %cst_630 = arith.constant 0.000000e+00 : f32
    %2187 = vector.shape_cast %2186 : vector<1x256xf32> to vector<1x256xf32>
    %2188 = vector.broadcast %2187 : vector<1x256xf32> to vector<16x256xf32>
    %2189 = vector.broadcast %cst_630 : f32 to vector<16x256xf32>
    %2190 = arith.select %2184, %2188, %2189 : vector<16x256xi1>, vector<16x256xf32>
    %2191 = vector.broadcast %2178 : vector<1x256xi32> to vector<16x256xi32>
    %2192 = arith.cmpi eq, %108, %2191 : vector<16x256xi32>
    %cst_631 = arith.constant 0.000000e+00 : f32
    %2193 = vector.shape_cast %2171 : vector<1x256xf32> to vector<1x256xf32>
    %2194 = vector.broadcast %2193 : vector<1x256xf32> to vector<16x256xf32>
    %2195 = vector.broadcast %cst_631 : f32 to vector<16x256xf32>
    %2196 = arith.select %2192, %2194, %2195 : vector<16x256xi1>, vector<16x256xf32>
    %2197 = arith.addf %2190, %2196 : vector<16x256xf32>
    %2198 = vector.broadcast %2174 : vector<1x256xi32> to vector<16x256xi32>
    %2199 = arith.cmpi eq, %109, %2198 : vector<16x256xi32>
    %cst_632 = arith.constant 1.000000e+00 : f32
    %2200 = vector.broadcast %cst_632 : f32 to vector<1x256xf32>
    %2201 = arith.subf %2200, %2172 : vector<1x256xf32>
    %cst_633 = arith.constant 0.000000e+00 : f32
    %2202 = vector.shape_cast %2201 : vector<1x256xf32> to vector<1x256xf32>
    %2203 = vector.broadcast %2202 : vector<1x256xf32> to vector<16x256xf32>
    %2204 = vector.broadcast %cst_633 : f32 to vector<16x256xf32>
    %2205 = arith.select %2199, %2203, %2204 : vector<16x256xi1>, vector<16x256xf32>
    %2206 = vector.broadcast %2182 : vector<1x256xi32> to vector<16x256xi32>
    %2207 = arith.cmpi eq, %109, %2206 : vector<16x256xi32>
    %cst_634 = arith.constant 0.000000e+00 : f32
    %2208 = vector.shape_cast %2172 : vector<1x256xf32> to vector<1x256xf32>
    %2209 = vector.broadcast %2208 : vector<1x256xf32> to vector<16x256xf32>
    %2210 = vector.broadcast %cst_634 : f32 to vector<16x256xf32>
    %2211 = arith.select %2207, %2209, %2210 : vector<16x256xi1>, vector<16x256xf32>
    %2212 = arith.addf %2205, %2211 : vector<16x256xf32>
    %cst_635 = arith.constant dense<0.000000e+00> : vector<128x256xf32>
    %2213 = tpu.matmul %93, %2197, %cst_635 {dimension_numbers = #tpu.dot_dimension_numbers<[1], [0], [0], [1], [0, 0, 1, 1], [], []>} : vector<128x16xf32>, vector<16x256xf32>, vector<128x256xf32> -> vector<128x256xf32>
    %cst_636 = arith.constant 0.000000e+00 : f32
    %2214 = vector.broadcast %cst_636 : f32 to vector<1x256xf32>
    %2215 = vector.extract_strided_slice %2213 {offsets = [0, 0], sizes = [16, 256], strides = [1, 1]} : vector<128x256xf32> to vector<16x256xf32>
    %2216 = arith.mulf %2215, %2212 : vector<16x256xf32>
    %cst_637 = arith.constant dense<0.000000e+00> : vector<256xf32>
    %2217 = vector.multi_reduction <add>, %2216, %cst_637 [0] : vector<16x256xf32> to vector<256xf32>
    %2218 = vector.shape_cast %2217 : vector<256xf32> to vector<1x256xf32>
    %2219 = arith.mulf %2011, %2218 : vector<1x256xf32>
    %2220 = arith.addf %2214, %2219 : vector<1x256xf32>
    %2221 = vector.extract_strided_slice %2213 {offsets = [16, 0], sizes = [16, 256], strides = [1, 1]} : vector<128x256xf32> to vector<16x256xf32>
    %2222 = arith.mulf %2221, %2212 : vector<16x256xf32>
    %cst_638 = arith.constant dense<0.000000e+00> : vector<256xf32>
    %2223 = vector.multi_reduction <add>, %2222, %cst_638 [0] : vector<16x256xf32> to vector<256xf32>
    %2224 = vector.shape_cast %2223 : vector<256xf32> to vector<1x256xf32>
    %2225 = arith.mulf %2015, %2224 : vector<1x256xf32>
    %2226 = arith.addf %2220, %2225 : vector<1x256xf32>
    %2227 = vector.extract_strided_slice %2213 {offsets = [32, 0], sizes = [16, 256], strides = [1, 1]} : vector<128x256xf32> to vector<16x256xf32>
    %2228 = arith.mulf %2227, %2212 : vector<16x256xf32>
    %cst_639 = arith.constant dense<0.000000e+00> : vector<256xf32>
    %2229 = vector.multi_reduction <add>, %2228, %cst_639 [0] : vector<16x256xf32> to vector<256xf32>
    %2230 = vector.shape_cast %2229 : vector<256xf32> to vector<1x256xf32>
    %2231 = arith.mulf %2019, %2230 : vector<1x256xf32>
    %2232 = arith.addf %2226, %2231 : vector<1x256xf32>
    %2233 = vector.extract_strided_slice %2213 {offsets = [48, 0], sizes = [16, 256], strides = [1, 1]} : vector<128x256xf32> to vector<16x256xf32>
    %2234 = arith.mulf %2233, %2212 : vector<16x256xf32>
    %cst_640 = arith.constant dense<0.000000e+00> : vector<256xf32>
    %2235 = vector.multi_reduction <add>, %2234, %cst_640 [0] : vector<16x256xf32> to vector<256xf32>
    %2236 = vector.shape_cast %2235 : vector<256xf32> to vector<1x256xf32>
    %2237 = arith.mulf %2023, %2236 : vector<1x256xf32>
    %2238 = arith.addf %2232, %2237 : vector<1x256xf32>
    %2239 = vector.extract_strided_slice %2213 {offsets = [64, 0], sizes = [16, 256], strides = [1, 1]} : vector<128x256xf32> to vector<16x256xf32>
    %2240 = arith.mulf %2239, %2212 : vector<16x256xf32>
    %cst_641 = arith.constant dense<0.000000e+00> : vector<256xf32>
    %2241 = vector.multi_reduction <add>, %2240, %cst_641 [0] : vector<16x256xf32> to vector<256xf32>
    %2242 = vector.shape_cast %2241 : vector<256xf32> to vector<1x256xf32>
    %2243 = arith.mulf %2027, %2242 : vector<1x256xf32>
    %2244 = arith.addf %2238, %2243 : vector<1x256xf32>
    %2245 = vector.extract_strided_slice %2213 {offsets = [80, 0], sizes = [16, 256], strides = [1, 1]} : vector<128x256xf32> to vector<16x256xf32>
    %2246 = arith.mulf %2245, %2212 : vector<16x256xf32>
    %cst_642 = arith.constant dense<0.000000e+00> : vector<256xf32>
    %2247 = vector.multi_reduction <add>, %2246, %cst_642 [0] : vector<16x256xf32> to vector<256xf32>
    %2248 = vector.shape_cast %2247 : vector<256xf32> to vector<1x256xf32>
    %2249 = arith.mulf %2031, %2248 : vector<1x256xf32>
    %2250 = arith.addf %2244, %2249 : vector<1x256xf32>
    %2251 = vector.extract_strided_slice %2213 {offsets = [96, 0], sizes = [16, 256], strides = [1, 1]} : vector<128x256xf32> to vector<16x256xf32>
    %2252 = arith.mulf %2251, %2212 : vector<16x256xf32>
    %cst_643 = arith.constant dense<0.000000e+00> : vector<256xf32>
    %2253 = vector.multi_reduction <add>, %2252, %cst_643 [0] : vector<16x256xf32> to vector<256xf32>
    %2254 = vector.shape_cast %2253 : vector<256xf32> to vector<1x256xf32>
    %2255 = arith.mulf %2035, %2254 : vector<1x256xf32>
    %2256 = arith.addf %2250, %2255 : vector<1x256xf32>
    %2257 = vector.extract_strided_slice %2213 {offsets = [112, 0], sizes = [16, 256], strides = [1, 1]} : vector<128x256xf32> to vector<16x256xf32>
    %2258 = arith.mulf %2257, %2212 : vector<16x256xf32>
    %cst_644 = arith.constant dense<0.000000e+00> : vector<256xf32>
    %2259 = vector.multi_reduction <add>, %2258, %cst_644 [0] : vector<16x256xf32> to vector<256xf32>
    %2260 = vector.shape_cast %2259 : vector<256xf32> to vector<1x256xf32>
    %2261 = arith.mulf %2039, %2260 : vector<1x256xf32>
    %2262 = arith.addf %2256, %2261 : vector<1x256xf32>
    %2263 = arith.mulf %1954, %2160 : vector<1x256xf32>
    %2264 = arith.mulf %2262, %2263 : vector<1x256xf32>
    %2265 = tpu.concatenate %540, %971, %1402, %1833, %2264 in 0 : vector<1x256xf32>, vector<1x256xf32>, vector<1x256xf32>, vector<1x256xf32>, vector<1x256xf32> -> vector<5x256xf32>
    %c0_645 = arith.constant 0 : index
    %c0_646 = arith.constant 0 : index
    %c0_647 = arith.constant 0 : index
    %c0_648 = arith.constant 0 : index
    %2266 = vector.load %arg5[%c0_645, %c0_646, %c0_647, %c0_648] : memref<1x1x5x256xf32, #tpu.memory_space<vmem>>, vector<1x1x5x256xf32>
    %2267 = vector.shape_cast %2266 : vector<1x1x5x256xf32> to vector<5x256xf32>
    %2268 = vector.shape_cast %2265 : vector<5x256xf32> to vector<1x1x5x256xf32>
    tpu.vector_store %arg5[%c0_645, %c0_646, %c0_647, %c0_648], %2268 {strides = array<i32>} : memref<1x1x5x256xf32, #tpu.memory_space<vmem>>, vector<1x1x5x256xf32>,
    return
  }
  func.func @transform_0(%arg0: i32, %arg1: i32) -> (i32, i32, i32) {
    %c0_i32 = arith.constant 0 : i32
    %c0_i32_0 = arith.constant 0 : i32
    %c0_i32_1 = arith.constant 0 : i32
    return %arg0, %c0_i32, %c0_i32_0 : i32, i32, i32
  }
  func.func @transform_1(%arg0: i32, %arg1: i32) -> (i32, i32, i32) {
    %c0_i32 = arith.constant 0 : i32
    %c0_i32_0 = arith.constant 0 : i32
    %c0_i32_1 = arith.constant 0 : i32
    return %arg0, %c0_i32, %c0_i32_0 : i32, i32, i32
  }
  func.func @transform_2(%arg0: i32, %arg1: i32) -> (i32, i32, i32) {
    %c0_i32 = arith.constant 0 : i32
    %c0_i32_0 = arith.constant 0 : i32
    %c0_i32_1 = arith.constant 0 : i32
    return %arg0, %c0_i32, %c0_i32_0 : i32, i32, i32
  }
  func.func @transform_3(%arg0: i32, %arg1: i32) -> (i32, i32, i32, i32) {
    %c0_i32 = arith.constant 0 : i32
    %c0_i32_0 = arith.constant 0 : i32
    %c0_i32_1 = arith.constant 0 : i32
    return %arg0, %arg1, %c0_i32, %c0_i32_0 : i32, i32, i32, i32
  }
}

</mosaic_0001>

<llo_original>
// kernel: tpu_custom_call.1
$region0: #{tpu_custom_call.1}
  #allocation0 [shape = 'u32[]', space=smem, size = 0x4, offset = 0x4, fixed_abs, tag = 'smem constant byte address 0x4 - core index']
  #allocation1 [shape = 'u32[144,128]{1,0:T(1,128)}', space=vmem, size = 0x12000, scoped, tag = 'internal scratch']
  %s0 = inlined_call_operand.vmem [shape: f32[2,128,16], index: 0, kind: input, shape index: {}]
  %s1 = inlined_call_operand.vmem [shape: f32[2,128,16], index: 1, kind: input, shape index: {}]
  %s2 = inlined_call_operand.vmem [shape: f32[2,2,256], index: 2, kind: input, shape index: {}]
  %s3 = inlined_call_operand.vmem [shape: f32[2,5,5,256], index: 3, kind: output, shape index: {}]
  %s4 = sld [smem:[#allocation0]]
  $region45: #{tpu_custom_call.1} parent=0
    _
  %s6 = ssub.s32 1, %s4
  %s7 = scalar_select 0, %s6, %s4
  loop: start=0, step=1, limit=12
  $region2: #{tpu_custom_call.1} parent=0 // loop_pre_header
    _
  $region3: #{tpu_custom_call.1} parent=0 // loop_header
    %s9 = sphi 0, %s13
    %p10 = scmp.ge.s32.totalorder %s9, 12
    %s16 = sphi 0, %s28
    %s17 = sphi 0, %s24
    %s18 = sphi 0, %s16
    %s19 = sphi 0, %s17
    %s20 = sphi 0, %s18
    %s21 = sphi 0, %s19
    %s31 = sphi 0, %s33
    %s34 = sphi 0, %s31
    %s35 = sphi 0, %s34
    %s51 = sphi 0, %s35
    %s57 = sphi 0, %s59
    %s60 = sphi 0, %s57
    %s61 = sphi 0, %s60
    %s77 = sphi 0, %s61
    %s83 = sphi 0, %s85
    %s86 = sphi 0, %s83
    %s87 = sphi 0, %s86
    %s103 = sphi 0, %s87
    %s111 = sphi 0, %s113
    %s114 = sphi 0, %s111
    %s115 = sphi 0, %s114
    %s131 = sphi 0, %s115
  $region4: #{tpu_custom_call.1} parent=0 // loop_header_branch
    %12 = sbr.rel (%p10) target = $region8
  $region5: #{tpu_custom_call.1} parent=0 // loop_body
    %s14 = ssub.s32 %s9, 1
    %s15 = ssub.s32 %s9, 2
    %s22 = sadd.s32 1, %s17
    %p23 = scmp.ge.s32.totalorder %s22, 5
    %s24 = scalar_select %p23, 0, %s22
    %s25 = sadd.s32 1, %s16
    %s26 = scalar_select %p23, %s25, %s16
    %p27 = scmp.ge.s32.totalorder %s26, 2
    %s28 = scalar_select %p27, 0, %s26
    %s29 = ssub.s32 %s16, %s28
    %p30 = scmp.eq.s32.totalorder %s29, 0
    %s32 = sadd.s32 %s31, 1
    %s33 = scalar_select %p30, %s31, %s32
    %p36 = pneg %p30
    %p37 = scmp.eq.s32.totalorder %s9, 9
    %p38 = por %p36, %p37
    %p39 = scmp.ne.s32.totalorder %s31, %s34
    %p40 = scmp.eq.s32.totalorder %s9, 0
    %p41 = por %p39, %p40
    %p42 = scmp.ne.s32.totalorder %s31, %s34
    %p43 = scmp.eq.s32.totalorder %s14, 9
    %p44 = por %p42, %p43
    %p45 = scmp.ne.s32.totalorder %s34, %s35
    %p46 = scmp.eq.s32.totalorder %s14, 0
    %p47 = por %p45, %p46
    %p48 = scmp.ne.s32.totalorder %s34, %s35
    %p49 = scmp.eq.s32.totalorder %s15, 9
    %p50 = por %p48, %p49
    %p52 = scmp.ne.s32.totalorder %s35, %s51
    %p53 = scmp.eq.s32.totalorder %s15, 0
    %p54 = por %p52, %p53
    %s55 = ssub.s32 %s16, %s28
    %p56 = scmp.eq.s32.totalorder %s55, 0
    %s58 = sadd.s32 %s57, 1
    %s59 = scalar_select %p56, %s57, %s58
    %p62 = pneg %p56
    %p63 = scmp.eq.s32.totalorder %s9, 9
    %p64 = por %p62, %p63
    %p65 = scmp.ne.s32.totalorder %s57, %s60
    %p66 = scmp.eq.s32.totalorder %s9, 0
    %p67 = por %p65, %p66
    %p68 = scmp.ne.s32.totalorder %s57, %s60
    %p69 = scmp.eq.s32.totalorder %s14, 9
    %p70 = por %p68, %p69
    %p71 = scmp.ne.s32.totalorder %s60, %s61
    %p72 = scmp.eq.s32.totalorder %s14, 0
    %p73 = por %p71, %p72
    %p74 = scmp.ne.s32.totalorder %s60, %s61
    %p75 = scmp.eq.s32.totalorder %s15, 9
    %p76 = por %p74, %p75
    %p78 = scmp.ne.s32.totalorder %s61, %s77
    %p79 = scmp.eq.s32.totalorder %s15, 0
    %p80 = por %p78, %p79
    %s81 = ssub.s32 %s16, %s28
    %p82 = scmp.eq.s32.totalorder %s81, 0
    %s84 = sadd.s32 %s83, 1
    %s85 = scalar_select %p82, %s83, %s84
    %p88 = pneg %p82
    %p89 = scmp.eq.s32.totalorder %s9, 9
    %p90 = por %p88, %p89
    %p91 = scmp.ne.s32.totalorder %s83, %s86
    %p92 = scmp.eq.s32.totalorder %s9, 0
    %p93 = por %p91, %p92
    %p94 = scmp.ne.s32.totalorder %s83, %s86
    %p95 = scmp.eq.s32.totalorder %s14, 9
    %p96 = por %p94, %p95
    %p97 = scmp.ne.s32.totalorder %s86, %s87
    %p98 = scmp.eq.s32.totalorder %s14, 0
    %p99 = por %p97, %p98
    %p100 = scmp.ne.s32.totalorder %s86, %s87
    %p101 = scmp.eq.s32.totalorder %s15, 9
    %p102 = por %p100, %p101
    %p104 = scmp.ne.s32.totalorder %s87, %s103
    %p105 = scmp.eq.s32.totalorder %s15, 0
    %p106 = por %p104, %p105
    %s107 = ssub.s32 %s16, %s28
    %s108 = ssub.s32 %s17, %s24
    %s109 = sor.u32 %s107, %s108
    %p110 = scmp.eq.s32.totalorder %s109, 0
    %s112 = sadd.s32 %s111, 1
    %s113 = scalar_select %p110, %s111, %s112
    %p116 = pneg %p110
    %p117 = scmp.eq.s32.totalorder %s9, 9
    %p118 = por %p116, %p117
    %p119 = scmp.ne.s32.totalorder %s111, %s114
    %p120 = scmp.eq.s32.totalorder %s9, 0
    %p121 = por %p119, %p120
    %p122 = scmp.ne.s32.totalorder %s111, %s114
    %p123 = scmp.eq.s32.totalorder %s14, 9
    %p124 = por %p122, %p123
    %p125 = scmp.ne.s32.totalorder %s114, %s115
    %p126 = scmp.eq.s32.totalorder %s14, 0
    %p127 = por %p125, %p126
    %p128 = scmp.ne.s32.totalorder %s114, %s115
    %p129 = scmp.eq.s32.totalorder %s15, 9
    %p130 = por %p128, %p129
    %p132 = scmp.ne.s32.totalorder %s115, %s131
    %p133 = scmp.eq.s32.totalorder %s15, 0
    %p134 = por %p132, %p133
    %p135 = scmp.le.s32.totalorder 1, %s9
    %p136 = scmp.lt.s32.totalorder %s9, 11
    %p137 = pnand %p135, %p136
    %p138 = pneg %p137
    // Predicated region
    $region9: #{tpu_custom_call.1} parent=5 // pred_check
      _
    $region10: #{tpu_custom_call.1} parent=5 // pred_check_branch
      %140 = sbr.rel (%p137) target = $region12
    $region11: #{tpu_custom_call.1} parent=5 // pred_region
      %s141 = ssub.s32 %s9, 1
    $region12: #{tpu_custom_call.1} parent=5 // pred_fallthru
      _
    %p142 = scmp.lt.s32.totalorder %s9, 10
    // Predicated region
    $region13: #{tpu_custom_call.1} parent=5 // pred_check
      %p143 = pneg %p142
    $region14: #{tpu_custom_call.1} parent=5 // pred_check_branch
      %145 = sbr.rel (%p143) target = $region16
    $region15: #{tpu_custom_call.1} parent=5 // pred_region
      // Predicated region
      $region17: #{tpu_custom_call.1} parent=15 // pred_check
        %p146 = pneg %p41
      $region18: #{tpu_custom_call.1} parent=15 // pred_check_branch
        %148 = sbr.rel (%p146) target = $region20
      $region19: #{tpu_custom_call.1} parent=15 // pred_region
        %p149 = scmp.lt.s32.totalorder %s16, 1
        %s150 = scalar_select %p149, %s16, 1
        %s151 = smul.addr %s150, 16
        %s152 = smul.addr %s151, 8
        %s153 = scalar_lea.vmem %s0, %s152
      $region20: #{tpu_custom_call.1} parent=15 // pred_fallthru
        _
      // Predicated region
      $region21: #{tpu_custom_call.1} parent=15 // pred_check
        %p154 = pneg %p67
      $region22: #{tpu_custom_call.1} parent=15 // pred_check_branch
        %156 = sbr.rel (%p154) target = $region24
      $region23: #{tpu_custom_call.1} parent=15 // pred_region
        %p157 = scmp.lt.s32.totalorder %s16, 1
        %s158 = scalar_select %p157, %s16, 1
        %s159 = smul.addr %s158, 16
        %s160 = smul.addr %s159, 8
        %s161 = scalar_lea.vmem %s1, %s160
      $region24: #{tpu_custom_call.1} parent=15 // pred_fallthru
        _
      // Predicated region
      $region25: #{tpu_custom_call.1} parent=15 // pred_check
        %p162 = pneg %p93
      $region26: #{tpu_custom_call.1} parent=15 // pred_check_branch
        %164 = sbr.rel (%p162) target = $region28
      $region27: #{tpu_custom_call.1} parent=15 // pred_region
        %p165 = scmp.lt.s32.totalorder %s16, 1
        %s166 = scalar_select %p165, %s16, 1
        %s167 = smul.addr %s166, 2
        %s168 = smul.addr %s167, 2
        %s169 = scalar_lea.vmem %s2, %s168
      $region28: #{tpu_custom_call.1} parent=15 // pred_fallthru
        _
    $region16: #{tpu_custom_call.1} parent=5 // pred_fallthru
      _
    %p170 = scmp.le.s32.totalorder 1, %s9
    %p171 = scmp.lt.s32.totalorder %s9, 11
    %p172 = pnand %p170, %p171
    %p173 = pneg %p172
    // Predicated region
    $region29: #{tpu_custom_call.1} parent=5 // pred_check
      _
    $region30: #{tpu_custom_call.1} parent=5 // pred_check_branch
      %175 = sbr.rel (%p172) target = $region32
    $region31: #{tpu_custom_call.1} parent=5 // pred_region
      %s176 = ssub.s32 %s9, 1
      %p177 = scmp.lt.s32.totalorder %s18, 1
      %s178 = scalar_select %p177, %s18, 1
      %s179 = smul.addr %s178, 16
      %s180 = smul.addr %s179, 8
      %s181 = scalar_lea.vmem %s0, %s180
      %p182 = pneg %p47
      %p183 = pneg %p44
      %p184 = scmp.lt.s32.totalorder %s18, 1
      %s185 = scalar_select %p184, %s18, 1
      %s186 = smul.addr %s185, 16
      %s187 = smul.addr %s186, 8
      %s188 = scalar_lea.vmem %s1, %s187
      %p189 = pneg %p73
      %p190 = pneg %p70
      %p191 = scmp.lt.s32.totalorder %s18, 1
      %s192 = scalar_select %p191, %s18, 1
      %s193 = smul.addr %s192, 2
      %s194 = smul.addr %s193, 2
      %s195 = scalar_lea.vmem %s2, %s194
      %p196 = pneg %p99
      %p197 = pneg %p96
      %p198 = pneg %p127
      %p199 = pneg %p124
      %p200 = scmp.lt.s32.totalorder %s18, 1
      %s201 = scalar_select %p200, %s18, 1
      %p202 = scmp.lt.s32.totalorder %s19, 4
      %s203 = scalar_select %p202, %s19, 4
      %s204 = smul.addr %s203, 2
      %s205 = smul.addr %s201, 10
      %s206 = sadd.s32 %s204, %s205
      %s207 = smul.addr %s206, 8
      %s208 = scalar_lea.vmem %s3, %s207
      %p209 = scmp.lt.s32.totalorder %s18, 1
      %s210 = scalar_select %p209, %s18, 1
      %s211 = smul.addr %s210, 16
      %s212 = smul.addr %s211, 8
      %s213 = scalar_lea.vmem %s0, %s212
      %p214 = scmp.lt.s32.totalorder %s18, 1
      %s215 = scalar_select %p214, %s18, 1
      %s216 = smul.addr %s215, 16
      %s217 = smul.addr %s216, 8
      %s218 = scalar_lea.vmem %s1, %s217
      %p219 = scmp.lt.s32.totalorder %s18, 1
      %s220 = scalar_select %p219, %s18, 1
      %s221 = smul.addr %s220, 2
      %s222 = smul.addr %s221, 2
      %s223 = scalar_lea.vmem %s2, %s222
      %p224 = scmp.lt.s32.totalorder %s18, 1
      %s225 = scalar_select %p224, %s18, 1
      %p226 = scmp.lt.s32.totalorder %s19, 4
      %s227 = scalar_select %p226, %s19, 4
      %s228 = smul.addr %s227, 2
      %s229 = smul.addr %s225, 10
      %s230 = sadd.s32 %s228, %s229
      %s231 = smul.addr %s230, 8
      %s232 = scalar_lea.vmem %s3, %s231
      %s233 = ssub.s32 %s19, 2
      %s234 = scvt.s32.f32 %s233
      %v235 = vld [vmem:[%s213] sm:$0xff]
      %v236 = vld [vmem:[%s213 + $0x8] sm:$0xff]
      %v237 = vld [vmem:[%s213 + $0x10] sm:$0xff]
      %v238 = vld [vmem:[%s213 + $0x18] sm:$0xff]
      %v239 = vld [vmem:[%s213 + $0x20] sm:$0xff]
      %v240 = vld [vmem:[%s213 + $0x28] sm:$0xff]
      %v241 = vld [vmem:[%s213 + $0x30] sm:$0xff]
      %v242 = vld [vmem:[%s213 + $0x38] sm:$0xff]
      %v243 = vld [vmem:[%s213 + $0x40] sm:$0xff]
      %v244 = vld [vmem:[%s213 + $0x48] sm:$0xff]
      %v245 = vld [vmem:[%s213 + $0x50] sm:$0xff]
      %v246 = vld [vmem:[%s213 + $0x58] sm:$0xff]
      %v247 = vld [vmem:[%s213 + $0x60] sm:$0xff]
      %v248 = vld [vmem:[%s213 + $0x68] sm:$0xff]
      %v249 = vld [vmem:[%s213 + $0x70] sm:$0xff]
      %v250 = vld [vmem:[%s213 + $0x78] sm:$0xff]
      %v251 = vmul.f32 %v235, %v235
      %v252 = vmul.f32 %v236, %v236
      %v253 = vmul.f32 %v237, %v237
      %v254 = vmul.f32 %v238, %v238
      %v255 = vadd.f32 %v251, %v253
      %v256 = vadd.f32 %v252, %v254
      %v257 = vmul.f32 %v239, %v239
      %v258 = vmul.f32 %v240, %v240
      %v259 = vadd.f32 %v255, %v257
      %v260 = vadd.f32 %v256, %v258
      %v261 = vmul.f32 %v241, %v241
      %v262 = vmul.f32 %v242, %v242
      %v263 = vadd.f32 %v259, %v261
      %v264 = vadd.f32 %v260, %v262
      %v265 = vmul.f32 %v243, %v243
      %v266 = vmul.f32 %v244, %v244
      %v267 = vadd.f32 %v263, %v265
      %v268 = vadd.f32 %v264, %v266
      %v269 = vmul.f32 %v245, %v245
      %v270 = vmul.f32 %v246, %v246
      %v271 = vadd.f32 %v267, %v269
      %v272 = vadd.f32 %v268, %v270
      %v273 = vmul.f32 %v247, %v247
      %v274 = vmul.f32 %v248, %v248
      %v275 = vadd.f32 %v271, %v273
      %v276 = vadd.f32 %v272, %v274
      %v277 = vmul.f32 %v249, %v249
      %v278 = vmul.f32 %v250, %v250
      %v279 = vadd.f32 %v275, %v277
      %v280 = vadd.f32 %v276, %v278
      %v281 = vadd.f32 %v279, 1e-06
      %v282 = vadd.f32 %v280, 1e-06
      %v283 = vrsqrt.pop %v281
      %v284 = vrsqrt.pop %v282
      %v285 = vmul.f32 %v235, %v283
      %v286 = vmul.f32 %v236, %v284
      %v287 = vmul.f32 %v237, %v283
      %v288 = vmul.f32 %v238, %v284
      %v289 = vmul.f32 %v239, %v283
      %v290 = vmul.f32 %v240, %v284
      %v291 = vmul.f32 %v241, %v283
      %v292 = vmul.f32 %v242, %v284
      %v293 = vmul.f32 %v243, %v283
      %v294 = vmul.f32 %v244, %v284
      %v295 = vmul.f32 %v245, %v283
      %v296 = vmul.f32 %v246, %v284
      %v297 = vmul.f32 %v247, %v283
      %v298 = vmul.f32 %v248, %v284
      %v299 = vmul.f32 %v249, %v283
      %v300 = vmul.f32 %v250, %v284
      %v301 = vld [vmem:[%s218] sm:$0xff]
      %v302 = vld [vmem:[%s218 + $0x8] sm:$0xff]
      %v303 = vld [vmem:[%s218 + $0x10] sm:$0xff]
      %v304 = vld [vmem:[%s218 + $0x18] sm:$0xff]
      %v305 = vld [vmem:[%s218 + $0x20] sm:$0xff]
      %v306 = vld [vmem:[%s218 + $0x28] sm:$0xff]
      %v307 = vld [vmem:[%s218 + $0x30] sm:$0xff]
      %v308 = vld [vmem:[%s218 + $0x38] sm:$0xff]
      %v309 = vld [vmem:[%s218 + $0x40] sm:$0xff]
      %v310 = vld [vmem:[%s218 + $0x48] sm:$0xff]
      %v311 = vld [vmem:[%s218 + $0x50] sm:$0xff]
      %v312 = vld [vmem:[%s218 + $0x58] sm:$0xff]
      %v313 = vld [vmem:[%s218 + $0x60] sm:$0xff]
      %v314 = vld [vmem:[%s218 + $0x68] sm:$0xff]
      %v315 = vld [vmem:[%s218 + $0x70] sm:$0xff]
      %v316 = vld [vmem:[%s218 + $0x78] sm:$0xff]
      %v317 = vmul.f32 %v301, %v301
      %v318 = vmul.f32 %v302, %v302
      %v319 = vmul.f32 %v303, %v303
      %v320 = vmul.f32 %v304, %v304
      %v321 = vadd.f32 %v317, %v319
      %v322 = vadd.f32 %v318, %v320
      %v323 = vmul.f32 %v305, %v305
      %v324 = vmul.f32 %v306, %v306
      %v325 = vadd.f32 %v321, %v323
      %v326 = vadd.f32 %v322, %v324
      %v327 = vmul.f32 %v307, %v307
      %v328 = vmul.f32 %v308, %v308
      %v329 = vadd.f32 %v325, %v327
      %v330 = vadd.f32 %v326, %v328
      %v331 = vmul.f32 %v309, %v309
      %v332 = vmul.f32 %v310, %v310
      %v333 = vadd.f32 %v329, %v331
      %v334 = vadd.f32 %v330, %v332
      %v335 = vmul.f32 %v311, %v311
      %v336 = vmul.f32 %v312, %v312
      %v337 = vadd.f32 %v333, %v335
      %v338 = vadd.f32 %v334, %v336
      %v339 = vmul.f32 %v313, %v313
      %v340 = vmul.f32 %v314, %v314
      %v341 = vadd.f32 %v337, %v339
      %v342 = vadd.f32 %v338, %v340
      %v343 = vmul.f32 %v315, %v315
      %v344 = vmul.f32 %v316, %v316
      %v345 = vadd.f32 %v341, %v343
      %v346 = vadd.f32 %v342, %v344
      %v347 = vadd.f32 %v345, 1e-06
      %v348 = vadd.f32 %v346, 1e-06
      %v349 = vrsqrt.pop %v347
      %v350 = vrsqrt.pop %v348
      %v351 = vmul.f32 %v301, %v349
      %v352 = vmul.f32 %v302, %v350
      %v353 = vmul.f32 %v303, %v349
      %v354 = vmul.f32 %v304, %v350
      %v355 = vmul.f32 %v305, %v349
      %v356 = vmul.f32 %v306, %v350
      %v357 = vmul.f32 %v307, %v349
      %v358 = vmul.f32 %v308, %v350
      %v359 = vmul.f32 %v309, %v349
      %v360 = vmul.f32 %v310, %v350
      %v361 = vmul.f32 %v311, %v349
      %v362 = vmul.f32 %v312, %v350
      %v363 = vmul.f32 %v313, %v349
      %v364 = vmul.f32 %v314, %v350
      %v365 = vmul.f32 %v315, %v349
      %v366 = vmul.f32 %v316, %v350
      %v367 = vld [vmem:[%s223] sm:$0xf]
      %v368 = vlaneseq
      %v369 = vand.u32 %v368, 127
      %v370 = vadd.s32 %v369, 128
      %v371 = vcvt.s32.f32 %v369
      %v372 = vcvt.s32.f32 %v370
      %v373 = vadd.f32 %v371, 0.5
      %v374 = vadd.f32 %v372, 0.5
      %v375 = vmul.f32 %v373, 0.0625
      %v376 = vmul.f32 %v374, 0.0625
      %v377 = vfloor.f32 %v375
      %v378 = vfloor.f32 %v376
      %v379 = vmul.f32 %v377, 16.0
      %v380 = vmul.f32 %v378, 16.0
      %v381 = vsub.f32 %v371, %v379
      %v382 = vsub.f32 %v372, %v380
      %v383 = vlaneseq
      %v384 = vshrl.u32 %v383, 7
      %v385 = vadd.s32 %v384, 8
      %v386 = vadd.f32 %v367, -2.0
      %v387 = vmul.f32 %v386, -1.0
      %v389 = vlaneseq
      %v390 = vshrl.u32 %v389, 7
      %v391 = vsub.s32 0, %v390
      %v392 = vrot.slane %v387, %v391
      %v393 = vlaneseq
      %v394 = vshrl.u32 %v393, 7
      %v395 = vsub.s32 2, %v394
      %v396 = vrot.slane %v387, %v395
      %v399 = vadd.f32 %v381, %v392
      %v400 = vadd.f32 %v382, %v396
      %v401 = vstv %s234
      %v402 = vadd.f32 %v367, %v401
      %v403 = vmul.f32 %v402, -1.0
      %v405 = vlaneseq
      %v406 = vshrl.u32 %v405, 7
      %v407 = vsub.s32 1, %v406
      %v408 = vrot.slane %v403, %v407
      %v409 = vlaneseq
      %v410 = vshrl.u32 %v409, 7
      %v411 = vsub.s32 3, %v410
      %v412 = vrot.slane %v403, %v411
      %v415 = vadd.f32 %v377, %v408
      %v416 = vadd.f32 %v378, %v412
      %v417 = vmul.f32 %v399, 0.13333334
      %v418 = vmul.f32 %v400, 0.13333334
      %v419 = vsub.f32 %v417, 1.0
      %v420 = vsub.f32 %v418, 1.0
      %v421 = vmul.f32 %v415, 0.13333334
      %v422 = vmul.f32 %v416, 0.13333334
      %v423 = vsub.f32 %v421, 1.0
      %v424 = vsub.f32 %v422, 1.0
      %v425 = vadd.f32 %v419, 1.0
      %v426 = vadd.f32 %v420, 1.0
      %v427 = vmul.f32 %v425, 16.0
      %v428 = vmul.f32 %v426, 16.0
      %v429 = vsub.f32 %v427, 1.0
      %v430 = vsub.f32 %v428, 1.0
      %v431 = vmul.f32 %v429, 0.5
      %v432 = vmul.f32 %v430, 0.5
      %v433 = vadd.f32 %v423, 1.0
      %v434 = vadd.f32 %v424, 1.0
      %v435 = vmul.f32 %v433, 16.0
      %v436 = vmul.f32 %v434, 16.0
      %v437 = vsub.f32 %v435, 1.0
      %v438 = vsub.f32 %v436, 1.0
      %v439 = vmul.f32 %v437, 0.5
      %v440 = vmul.f32 %v438, 0.5
      %v441 = vfloor.f32 %v431
      %v442 = vfloor.f32 %v432
      %v443 = vfloor.f32 %v439
      %v444 = vfloor.f32 %v440
      %v445 = vsub.f32 %v431, %v441
      %v446 = vsub.f32 %v432, %v442
      %v447 = vsub.f32 %v439, %v443
      %v448 = vsub.f32 %v440, %v444
      %v449 = vsub.f32 1.0, %v445
      %v450 = vsub.f32 1.0, %v446
      %v451 = vsub.f32 1.0, %v447
      %v452 = vsub.f32 1.0, %v448
      %v453 = vmul.f32 %v449, %v451
      %v454 = vmul.f32 %v450, %v452
      %vm455 = vcmp.ge.f32.partialorder %v441, 0.0
      %vm456 = vcmp.ge.f32.partialorder %v442, 0.0
      %vm457 = vcmp.le.f32.partialorder %v441, 15.0
      %vm458 = vcmp.le.f32.partialorder %v442, 15.0
      %vm459 = vmand %vm455, %vm457
      %vm460 = vmand %vm456, %vm458
      %vm461 = vcmp.ge.f32.partialorder %v443, 0.0
      %vm462 = vcmp.ge.f32.partialorder %v444, 0.0
      %vm463 = vmand %vm459, %vm461
      %vm464 = vmand %vm460, %vm462
      %vm465 = vcmp.le.f32.partialorder %v443, 15.0
      %vm466 = vcmp.le.f32.partialorder %v444, 15.0
      %vm467 = vmand %vm463, %vm465
      %vm468 = vmand %vm464, %vm466
      %v469 = vsel %vm467, 1, 0
      %v470 = vsel %vm468, 1, 0
      %v471 = vcvt.s32.f32 %v469
      %v472 = vcvt.s32.f32 %v470
      %v473 = vmul.f32 %v453, %v471
      %v474 = vmul.f32 %v454, %v472
      %v475 = vmul.f32 %v445, %v451
      %v476 = vmul.f32 %v446, %v452
      %v477 = vadd.f32 %v441, 1.0
      %v478 = vadd.f32 %v442, 1.0
      %vm479 = vcmp.ge.f32.partialorder %v477, 0.0
      %vm480 = vcmp.ge.f32.partialorder %v478, 0.0
      %vm481 = vcmp.le.f32.partialorder %v477, 15.0
      %vm482 = vcmp.le.f32.partialorder %v478, 15.0
      %vm483 = vmand %vm479, %vm481
      %vm484 = vmand %vm480, %vm482
      %vm485 = vmand %vm483, %vm461
      %vm486 = vmand %vm484, %vm462
      %vm487 = vmand %vm485, %vm465
      %vm488 = vmand %vm486, %vm466
      %v489 = vsel %vm487, 1, 0
      %v490 = vsel %vm488, 1, 0
      %v491 = vcvt.s32.f32 %v489
      %v492 = vcvt.s32.f32 %v490
      %v493 = vmul.f32 %v475, %v491
      %v494 = vmul.f32 %v476, %v492
      %v495 = vadd.f32 %v473, %v493
      %v496 = vadd.f32 %v474, %v494
      %v497 = vmul.f32 %v449, %v447
      %v498 = vmul.f32 %v450, %v448
      %v499 = vadd.f32 %v443, 1.0
      %v500 = vadd.f32 %v444, 1.0
      %vm501 = vcmp.ge.f32.partialorder %v499, 0.0
      %vm502 = vcmp.ge.f32.partialorder %v500, 0.0
      %vm503 = vmand %vm459, %vm501
      %vm504 = vmand %vm460, %vm502
      %vm505 = vcmp.le.f32.partialorder %v499, 15.0
      %vm506 = vcmp.le.f32.partialorder %v500, 15.0
      %vm507 = vmand %vm503, %vm505
      %vm508 = vmand %vm504, %vm506
      %v509 = vsel %vm507, 1, 0
      %v510 = vsel %vm508, 1, 0
      %v511 = vcvt.s32.f32 %v509
      %v512 = vcvt.s32.f32 %v510
      %v513 = vmul.f32 %v497, %v511
      %v514 = vmul.f32 %v498, %v512
      %v515 = vadd.f32 %v495, %v513
      %v516 = vadd.f32 %v496, %v514
      %v517 = vmul.f32 %v445, %v447
      %v518 = vmul.f32 %v446, %v448
      %vm519 = vmand %vm483, %vm501
      %vm520 = vmand %vm484, %vm502
      %vm521 = vmand %vm519, %vm505
      %vm522 = vmand %vm520, %vm506
      %v523 = vsel %vm521, 1, 0
      %v524 = vsel %vm522, 1, 0
      %v525 = vcvt.s32.f32 %v523
      %v526 = vcvt.s32.f32 %v524
      %v527 = vmul.f32 %v517, %v525
      %v528 = vmul.f32 %v518, %v526
      %v529 = vadd.f32 %v515, %v527
      %v530 = vadd.f32 %v516, %v528
      %vm531 = vcmp.ge.f32.partialorder %v529, 0.999
      %vm532 = vcmp.ge.f32.partialorder %v530, 0.999
      %v533 = vsel %vm531, 1, 0
      %v534 = vsel %vm532, 1, 0
      %v535 = vcvt.s32.f32 %v533
      %v536 = vcvt.s32.f32 %v534
      %v537 = vmax.f32 %v431, 0.0
      %v538 = vmax.f32 %v432, 0.0
      %v539 = vmin.f32 %v537, 15.0
      %v540 = vmin.f32 %v538, 15.0
      %v541 = vmax.f32 %v439, 0.0
      %v542 = vmax.f32 %v440, 0.0
      %v543 = vmin.f32 %v541, 15.0
      %v544 = vmin.f32 %v542, 15.0
      %v545 = vfloor.f32 %v539
      %v546 = vfloor.f32 %v540
      %v547 = vfloor.f32 %v543
      %v548 = vfloor.f32 %v544
      %v549 = vsub.f32 %v539, %v545
      %v550 = vsub.f32 %v540, %v546
      %v551 = vsub.f32 %v543, %v547
      %v552 = vsub.f32 %v544, %v548
      %v553 = vcvt.f32.s32.to.zero.pseudo %v545
      %v554 = vcvt.f32.s32.to.zero.pseudo %v546
      %v555 = vcvt.f32.s32.to.zero.pseudo %v547
      %v556 = vcvt.f32.s32.to.zero.pseudo %v548
      %v557 = vadd.s32 %v553, 1
      %v558 = vadd.s32 %v554, 1
      %vm559 = vcmp.lt.s32.totalorder %v557, 15
      %v560 = vsel %vm559, %v557, 15
      %vm561 = vcmp.lt.s32.totalorder %v558, 15
      %v562 = vsel %vm561, %v558, 15
      %v563 = vadd.s32 %v555, 1
      %v564 = vadd.s32 %v556, 1
      %vm565 = vcmp.lt.s32.totalorder %v563, 15
      %v566 = vsel %vm565, %v563, 15
      %vm567 = vcmp.lt.s32.totalorder %v564, 15
      %v568 = vsel %vm567, %v564, 15
      %v569 = vlaneseq
      %v570 = vshrl.u32 %v569, 7
      %v571 = vsub.s32 0, %v570
      %v572 = vrot.slane %v553, %v571
      %v573 = vlaneseq
      %v574 = vshrl.u32 %v573, 7
      %v575 = vsub.s32 0, %v574
      %v576 = vrot.slane %v554, %v575
      %vm577 = vcmp.eq.s32.totalorder %v384, %v572
      %vm578 = vcmp.eq.s32.totalorder %v384, %v576
      %vm579 = vcmp.eq.s32.totalorder %v385, %v572
      %vm580 = vcmp.eq.s32.totalorder %v385, %v576
      %v581 = vsub.f32 1.0, %v549
      %v582 = vsub.f32 1.0, %v550
      %v583 = vlaneseq
      %v584 = vshrl.u32 %v583, 7
      %v585 = vsub.s32 0, %v584
      %v586 = vrot.slane %v581, %v585
      %v587 = vlaneseq
      %v588 = vshrl.u32 %v587, 7
      %v589 = vsub.s32 0, %v588
      %v590 = vrot.slane %v582, %v589
      %v591 = vsel %vm577, %v586, 0.0
      %v592 = vsel %vm578, %v590, 0.0
      %v593 = vsel %vm579, %v586, 0.0
      %v594 = vsel %vm580, %v590, 0.0
      %v595 = vlaneseq
      %v596 = vshrl.u32 %v595, 7
      %v597 = vsub.s32 0, %v596
      %v598 = vrot.slane %v560, %v597
      %v599 = vlaneseq
      %v600 = vshrl.u32 %v599, 7
      %v601 = vsub.s32 0, %v600
      %v602 = vrot.slane %v562, %v601
      %vm603 = vcmp.eq.s32.totalorder %v384, %v598
      %vm604 = vcmp.eq.s32.totalorder %v384, %v602
      %vm605 = vcmp.eq.s32.totalorder %v385, %v598
      %vm606 = vcmp.eq.s32.totalorder %v385, %v602
      %v607 = vlaneseq
      %v608 = vshrl.u32 %v607, 7
      %v609 = vsub.s32 0, %v608
      %v610 = vrot.slane %v549, %v609
      %v611 = vlaneseq
      %v612 = vshrl.u32 %v611, 7
      %v613 = vsub.s32 0, %v612
      %v614 = vrot.slane %v550, %v613
      %v615 = vsel %vm603, %v610, 0.0
      %v616 = vsel %vm604, %v614, 0.0
      %v617 = vsel %vm605, %v610, 0.0
      %v618 = vsel %vm606, %v614, 0.0
      %v619 = vadd.f32 %v591, %v615
      %v620 = vadd.f32 %v592, %v616
      %v621 = vadd.f32 %v593, %v617
      %v622 = vadd.f32 %v594, %v618
      %v623 = vlaneseq
      %v624 = vshrl.u32 %v623, 7
      %v625 = vsub.s32 0, %v624
      %v626 = vrot.slane %v555, %v625
      %v627 = vlaneseq
      %v628 = vshrl.u32 %v627, 7
      %v629 = vsub.s32 0, %v628
      %v630 = vrot.slane %v556, %v629
      %vm631 = vcmp.eq.s32.totalorder %v384, %v626
      %vm632 = vcmp.eq.s32.totalorder %v384, %v630
      %vm633 = vcmp.eq.s32.totalorder %v385, %v626
      %vm634 = vcmp.eq.s32.totalorder %v385, %v630
      %v635 = vsub.f32 1.0, %v551
      %v636 = vsub.f32 1.0, %v552
      %v637 = vlaneseq
      %v638 = vshrl.u32 %v637, 7
      %v639 = vsub.s32 0, %v638
      %v640 = vrot.slane %v635, %v639
      %v641 = vlaneseq
      %v642 = vshrl.u32 %v641, 7
      %v643 = vsub.s32 0, %v642
      %v644 = vrot.slane %v636, %v643
      %v645 = vsel %vm631, %v640, 0.0
      %v646 = vsel %vm632, %v644, 0.0
      %v647 = vsel %vm633, %v640, 0.0
      %v648 = vsel %vm634, %v644, 0.0
      %v649 = vlaneseq
      %v650 = vshrl.u32 %v649, 7
      %v651 = vsub.s32 0, %v650
      %v652 = vrot.slane %v566, %v651
      %v653 = vlaneseq
      %v654 = vshrl.u32 %v653, 7
      %v655 = vsub.s32 0, %v654
      %v656 = vrot.slane %v568, %v655
      %vm657 = vcmp.eq.s32.totalorder %v384, %v652
      %vm658 = vcmp.eq.s32.totalorder %v384, %v656
      %vm659 = vcmp.eq.s32.totalorder %v385, %v652
      %vm660 = vcmp.eq.s32.totalorder %v385, %v656
      %v661 = vlaneseq
      %v662 = vshrl.u32 %v661, 7
      %v663 = vsub.s32 0, %v662
      %v664 = vrot.slane %v551, %v663
      %v665 = vlaneseq
      %v666 = vshrl.u32 %v665, 7
      %v667 = vsub.s32 0, %v666
      %v668 = vrot.slane %v552, %v667
      %v669 = vsel %vm657, %v664, 0.0
      %v670 = vsel %vm658, %v668, 0.0
      %v671 = vsel %vm659, %v664, 0.0
      %v672 = vsel %vm660, %v668, 0.0
      %v673 = vadd.f32 %v645, %v669
      %v674 = vadd.f32 %v646, %v670
      %v675 = vadd.f32 %v647, %v671
      %v676 = vadd.f32 %v648, %v672
      %vm677 = vcmask 130048
      %v679 = vsel %vm677, %v285, 0
      %v682 = vsel %vm677, %v286, 0
      %v685 = vsel %vm677, %v287, 0
      %v688 = vsel %vm677, %v288, 0
      %v691 = vsel %vm677, %v289, 0
      %v694 = vsel %vm677, %v290, 0
      %v697 = vsel %vm677, %v291, 0
      %v700 = vsel %vm677, %v292, 0
      %v703 = vsel %vm677, %v293, 0
      %v706 = vsel %vm677, %v294, 0
      %v709 = vsel %vm677, %v295, 0
      %v712 = vsel %vm677, %v296, 0
      %v715 = vsel %vm677, %v297, 0
      %v718 = vsel %vm677, %v298, 0
      %v721 = vsel %vm677, %v299, 0
      %v724 = vsel %vm677, %v300, 0
      %726 = vmatprep.subr.mxu0 %v620
      %727 = vmatpush1.msra.mxu0 %v619
      %728 = vmatprep.subr.mxu0 %v622
      %729 = vmatpush1.msra.mxu0 %v621
      %730 = vmatprep.subr.mxu0 0.0
      %731 = vmatpush1.msra.mxu0 0.0
      %732 = vmatprep.subr.mxu0 0.0
      %733 = vmatpush1.msra.mxu0 0.0
      %734 = vmatprep.subr.mxu0 0.0
      %735 = vmatpush1.msra.mxu0 0.0
      %736 = vmatprep.subr.mxu0 0.0
      %737 = vmatpush1.msra.mxu0 0.0
      %738 = vmatprep.subr.mxu0 0.0
      %739 = vmatpush1.msra.mxu0 0.0
      %740 = vmatprep.subr.mxu0 0.0
      %741 = vmatpush1.msra.mxu0 0.0
      %742 = vmatprep.subr.mxu0 0.0
      %743 = vmatpush1.msra.mxu0 0.0
      %744 = vmatprep.subr.mxu0 0.0
      %745 = vmatpush1.msra.mxu0 0.0
      %746 = vmatprep.subr.mxu0 0.0
      %747 = vmatpush1.msra.mxu0 0.0
      %748 = vmatprep.subr.mxu0 0.0
      %749 = vmatpush1.msra.mxu0 0.0
      %750 = vmatprep.subr.mxu0 0.0
      %751 = vmatpush1.msra.mxu0 0.0
      %752 = vmatprep.subr.mxu0 0.0
      %753 = vmatpush1.msra.mxu0 0.0
      %754 = vmatprep.subr.mxu0 0.0
      %755 = vmatpush1.msra.mxu0 0.0
      %756 = vmatprep.subr.mxu0 0.0
      %757 = vmatpush1.msra.mxu0 0.0
      %758 = vmatprep.subr.mxu0 0.0
      %759 = vmatpush1.msra.mxu0 0.0
      %760 = vmatprep.subr.mxu0 0.0
      %761 = vmatpush1.msra.mxu0 0.0
      %762 = vmatprep.subr.mxu0 0.0
      %763 = vmatpush1.msra.mxu0 0.0
      %764 = vmatprep.subr.mxu0 0.0
      %765 = vmatpush1.msra.mxu0 0.0
      %766 = vmatprep.subr.mxu0 0.0
      %767 = vmatpush1.msra.mxu0 0.0
      %768 = vmatprep.subr.mxu0 0.0
      %769 = vmatpush1.msra.mxu0 0.0
      %770 = vmatprep.subr.mxu0 0.0
      %771 = vmatpush1.msra.mxu0 0.0
      %772 = vmatprep.subr.mxu0 0.0
      %773 = vmatpush1.msra.mxu0 0.0
      %774 = vmatprep.subr.mxu0 0.0
      %775 = vmatpush1.msra.mxu0 0.0
      %776 = vmatprep.subr.mxu0 0.0
      %777 = vmatpush1.msra.mxu0 0.0
      %778 = vmatprep.subr.mxu0 0.0
      %779 = vmatpush1.msra.mxu0 0.0
      %780 = vmatprep.subr.mxu0 0.0
      %781 = vmatpush1.msra.mxu0 0.0
      %782 = vmatprep.subr.mxu0 0.0
      %783 = vmatpush1.msra.mxu0 0.0
      %784 = vmatprep.subr.mxu0 0.0
      %785 = vmatpush1.msra.mxu0 0.0
      %786 = vmatprep.subr.mxu0 0.0
      %787 = vmatpush1.msra.mxu0 0.0
      %788 = vmatprep.subr.mxu0 0.0
      %789 = vmatpush1.msra.mxu0 0.0
      %790 = vmatprep.mubr.f32.mxu0 0.0
      %791 = vmatmul.mubr.f32.gmra.mrb[0].mxu0 %v679
      %v792 = vpop.f32.mrb[0].mxu0
      %v793 = vadd.f32 0.0, %v792
      %v794 = vpop.f32.mrb[0].mxu0
      %v795 = vadd.f32 0.0, %v794
      %796 = vmatprep.mubr.f32.mxu0 0.0
      %797 = vmatmul.mubr.f32.gmra.mrb[0].mxu0 %v682
      %v798 = vpop.f32.mrb[0].mxu0
      %v799 = vadd.f32 0.0, %v798
      %v800 = vpop.f32.mrb[0].mxu0
      %v801 = vadd.f32 0.0, %v800
      %802 = vmatprep.mubr.f32.mxu0 0.0
      %803 = vmatmul.mubr.f32.gmra.mrb[0].mxu0 %v685
      %v804 = vpop.f32.mrb[0].mxu0
      %v805 = vadd.f32 0.0, %v804
      %v806 = vpop.f32.mrb[0].mxu0
      %v807 = vadd.f32 0.0, %v806
      %808 = vmatprep.mubr.f32.mxu0 0.0
      %809 = vmatmul.mubr.f32.gmra.mrb[0].mxu0 %v688
      %v810 = vpop.f32.mrb[0].mxu0
      %v811 = vadd.f32 0.0, %v810
      %v812 = vpop.f32.mrb[0].mxu0
      %v813 = vadd.f32 0.0, %v812
      %814 = vmatprep.mubr.f32.mxu0 0.0
      %815 = vmatmul.mubr.f32.gmra.mrb[0].mxu0 %v691
      %v816 = vpop.f32.mrb[0].mxu0
      %v817 = vadd.f32 0.0, %v816
      %v818 = vpop.f32.mrb[0].mxu0
      %v819 = vadd.f32 0.0, %v818
      %820 = vmatprep.mubr.f32.mxu0 0.0
      %821 = vmatmul.mubr.f32.gmra.mrb[0].mxu0 %v694
      %v822 = vpop.f32.mrb[0].mxu0
      %v823 = vadd.f32 0.0, %v822
      %v824 = vpop.f32.mrb[0].mxu0
      %v825 = vadd.f32 0.0, %v824
      %826 = vmatprep.mubr.f32.mxu0 0.0
      %827 = vmatmul.mubr.f32.gmra.mrb[0].mxu0 %v697
      %v828 = vpop.f32.mrb[0].mxu0
      %v829 = vadd.f32 0.0, %v828
      %v830 = vpop.f32.mrb[0].mxu0
      %v831 = vadd.f32 0.0, %v830
      %832 = vmatprep.mubr.f32.mxu0 0.0
      %833 = vmatmul.mubr.f32.gmra.mrb[0].mxu0 %v700
      %v834 = vpop.f32.mrb[0].mxu0
      %v835 = vadd.f32 0.0, %v834
      %v836 = vpop.f32.mrb[0].mxu0
      %v837 = vadd.f32 0.0, %v836
      %838 = vmatprep.mubr.f32.mxu0 0.0
      %839 = vmatmul.mubr.f32.gmra.mrb[0].mxu0 %v703
      %v840 = vpop.f32.mrb[0].mxu0
      %v841 = vadd.f32 0.0, %v840
      %v842 = vpop.f32.mrb[0].mxu0
      %v843 = vadd.f32 0.0, %v842
      %844 = vmatprep.mubr.f32.mxu0 0.0
      %845 = vmatmul.mubr.f32.gmra.mrb[0].mxu0 %v706
      %v846 = vpop.f32.mrb[0].mxu0
      %v847 = vadd.f32 0.0, %v846
      %v848 = vpop.f32.mrb[0].mxu0
      %v849 = vadd.f32 0.0, %v848
      %850 = vmatprep.mubr.f32.mxu0 0.0
      %851 = vmatmul.mubr.f32.gmra.mrb[0].mxu0 %v709
      %v852 = vpop.f32.mrb[0].mxu0
      %v853 = vadd.f32 0.0, %v852
      %v854 = vpop.f32.mrb[0].mxu0
      %v855 = vadd.f32 0.0, %v854
      %856 = vmatprep.mubr.f32.mxu0 0.0
      %857 = vmatmul.mubr.f32.gmra.mrb[0].mxu0 %v712
      %v858 = vpop.f32.mrb[0].mxu0
      %v859 = vadd.f32 0.0, %v858
      %v860 = vpop.f32.mrb[0].mxu0
      %v861 = vadd.f32 0.0, %v860
      %862 = vmatprep.mubr.f32.mxu0 0.0
      %863 = vmatmul.mubr.f32.gmra.mrb[0].mxu0 %v715
      %v864 = vpop.f32.mrb[0].mxu0
      %v865 = vadd.f32 0.0, %v864
      %v866 = vpop.f32.mrb[0].mxu0
      %v867 = vadd.f32 0.0, %v866
      %868 = vmatprep.mubr.f32.mxu0 0.0
      %869 = vmatmul.mubr.f32.gmra.mrb[0].mxu0 %v718
      %v870 = vpop.f32.mrb[0].mxu0
      %v871 = vadd.f32 0.0, %v870
      %v872 = vpop.f32.mrb[0].mxu0
      %v873 = vadd.f32 0.0, %v872
      %874 = vmatprep.mubr.f32.mxu0 0.0
      %875 = vmatmul.mubr.f32.gmra.mrb[0].mxu0 %v721
      %v876 = vpop.f32.mrb[0].mxu0
      %v877 = vadd.f32 0.0, %v876
      %v878 = vpop.f32.mrb[0].mxu0
      %v879 = vadd.f32 0.0, %v878
      %880 = vmatprep.mubr.f32.mxu0 0.0
      %881 = vmatmul.mubr.f32.gmra.mrb[0].mxu0 %v724
      %v882 = vpop.f32.mrb[0].mxu0
      %v883 = vadd.f32 0.0, %v882
      %v884 = vpop.f32.mrb[0].mxu0
      %v885 = vadd.f32 0.0, %v884
      %886 = vdwg.mxu0
      %v887 = vmul.f32 %v793, %v673
      %v888 = vmul.f32 %v795, %v674
      %v889 = vmul.f32 %v799, %v675
      %v890 = vmul.f32 %v801, %v676
      %v891 = vadd.f32 %v887, %v889
      %v892 = vrot.slane %v891, 4
      %v893 = vadd.f32 %v891, %v892
      %v894 = vrot.slane %v893, 2
      %v895 = vadd.f32 %v893, %v894
      %v896 = vrot.slane %v895, 1
      %v897 = vadd.f32 %v895, %v896
      %v898 = vadd.f32 %v888, %v890
      %v899 = vrot.slane %v898, 4
      %v900 = vadd.f32 %v898, %v899
      %v901 = vrot.slane %v900, 2
      %v902 = vadd.f32 %v900, %v901
      %v903 = vrot.slane %v902, 1
      %v904 = vadd.f32 %v902, %v903
      %v905 = vmul.f32 %v805, %v673
      %v906 = vmul.f32 %v807, %v674
      %v907 = vmul.f32 %v811, %v675
      %v908 = vmul.f32 %v813, %v676
      %v909 = vadd.f32 %v905, %v907
      %v910 = vrot.slane %v909, 4
      %v911 = vadd.f32 %v909, %v910
      %v912 = vrot.slane %v911, 2
      %v913 = vadd.f32 %v911, %v912
      %v914 = vrot.slane %v913, 1
      %v915 = vadd.f32 %v913, %v914
      %v916 = vadd.f32 %v906, %v908
      %v917 = vrot.slane %v916, 4
      %v918 = vadd.f32 %v916, %v917
      %v919 = vrot.slane %v918, 2
      %v920 = vadd.f32 %v918, %v919
      %v921 = vrot.slane %v920, 1
      %v922 = vadd.f32 %v920, %v921
      %v923 = vmul.f32 %v817, %v673
      %v924 = vmul.f32 %v819, %v674
      %v925 = vmul.f32 %v823, %v675
      %v926 = vmul.f32 %v825, %v676
      %v927 = vadd.f32 %v923, %v925
      %v928 = vrot.slane %v927, 4
      %v929 = vadd.f32 %v927, %v928
      %v930 = vrot.slane %v929, 2
      %v931 = vadd.f32 %v929, %v930
      %v932 = vrot.slane %v931, 1
      %v933 = vadd.f32 %v931, %v932
      %v934 = vadd.f32 %v924, %v926
      %v935 = vrot.slane %v934, 4
      %v936 = vadd.f32 %v934, %v935
      %v937 = vrot.slane %v936, 2
      %v938 = vadd.f32 %v936, %v937
      %v939 = vrot.slane %v938, 1
      %v940 = vadd.f32 %v938, %v939
      %v941 = vmul.f32 %v829, %v673
      %v942 = vmul.f32 %v831, %v674
      %v943 = vmul.f32 %v835, %v675
      %v944 = vmul.f32 %v837, %v676
      %v945 = vadd.f32 %v941, %v943
      %v946 = vrot.slane %v945, 4
      %v947 = vadd.f32 %v945, %v946
      %v948 = vrot.slane %v947, 2
      %v949 = vadd.f32 %v947, %v948
      %v950 = vrot.slane %v949, 1
      %v951 = vadd.f32 %v949, %v950
      %v952 = vadd.f32 %v942, %v944
      %v953 = vrot.slane %v952, 4
      %v954 = vadd.f32 %v952, %v953
      %v955 = vrot.slane %v954, 2
      %v956 = vadd.f32 %v954, %v955
      %v957 = vrot.slane %v956, 1
      %v958 = vadd.f32 %v956, %v957
      %v959 = vmul.f32 %v841, %v673
      %v960 = vmul.f32 %v843, %v674
      %v961 = vmul.f32 %v847, %v675
      %v962 = vmul.f32 %v849, %v676
      %v963 = vadd.f32 %v959, %v961
      %v964 = vrot.slane %v963, 4
      %v965 = vadd.f32 %v963, %v964
      %v966 = vrot.slane %v965, 2
      %v967 = vadd.f32 %v965, %v966
      %v968 = vrot.slane %v967, 1
      %v969 = vadd.f32 %v967, %v968
      %v970 = vadd.f32 %v960, %v962
      %v971 = vrot.slane %v970, 4
      %v972 = vadd.f32 %v970, %v971
      %v973 = vrot.slane %v972, 2
      %v974 = vadd.f32 %v972, %v973
      %v975 = vrot.slane %v974, 1
      %v976 = vadd.f32 %v974, %v975
      %v977 = vmul.f32 %v853, %v673
      %v978 = vmul.f32 %v855, %v674
      %v979 = vmul.f32 %v859, %v675
      %v980 = vmul.f32 %v861, %v676
      %v981 = vadd.f32 %v977, %v979
      %v982 = vrot.slane %v981, 4
      %v983 = vadd.f32 %v981, %v982
      %v984 = vrot.slane %v983, 2
      %v985 = vadd.f32 %v983, %v984
      %v986 = vrot.slane %v985, 1
      %v987 = vadd.f32 %v985, %v986
      %v988 = vadd.f32 %v978, %v980
      %v989 = vrot.slane %v988, 4
      %v990 = vadd.f32 %v988, %v989
      %v991 = vrot.slane %v990, 2
      %v992 = vadd.f32 %v990, %v991
      %v993 = vrot.slane %v992, 1
      %v994 = vadd.f32 %v992, %v993
      %v995 = vmul.f32 %v865, %v673
      %v996 = vmul.f32 %v867, %v674
      %v997 = vmul.f32 %v871, %v675
      %v998 = vmul.f32 %v873, %v676
      %v999 = vadd.f32 %v995, %v997
      %v1000 = vrot.slane %v999, 4
      %v1001 = vadd.f32 %v999, %v1000
      %v1002 = vrot.slane %v1001, 2
      %v1003 = vadd.f32 %v1001, %v1002
      %v1004 = vrot.slane %v1003, 1
      %v1005 = vadd.f32 %v1003, %v1004
      %v1006 = vadd.f32 %v996, %v998
      %v1007 = vrot.slane %v1006, 4
      %v1008 = vadd.f32 %v1006, %v1007
      %v1009 = vrot.slane %v1008, 2
      %v1010 = vadd.f32 %v1008, %v1009
      %v1011 = vrot.slane %v1010, 1
      %v1012 = vadd.f32 %v1010, %v1011
      %v1013 = vmul.f32 %v877, %v673
      %v1014 = vmul.f32 %v879, %v674
      %v1015 = vmul.f32 %v883, %v675
      %v1016 = vmul.f32 %v885, %v676
      %v1017 = vadd.f32 %v1013, %v1015
      %v1018 = vrot.slane %v1017, 4
      %v1019 = vadd.f32 %v1017, %v1018
      %v1020 = vrot.slane %v1019, 2
      %v1021 = vadd.f32 %v1019, %v1020
      %v1022 = vrot.slane %v1021, 1
      %v1023 = vadd.f32 %v1021, %v1022
      %v1024 = vadd.f32 %v1014, %v1016
      %v1025 = vrot.slane %v1024, 4
      %v1026 = vadd.f32 %v1024, %v1025
      %v1027 = vrot.slane %v1026, 2
      %v1028 = vadd.f32 %v1026, %v1027
      %v1029 = vrot.slane %v1028, 1
      %v1030 = vadd.f32 %v1028, %v1029
      %v1032 = vlaneseq
      %v1033 = vshrl.u32 %v1032, 7
      %v1034 = vsub.s32 0, %v1033
      %v1035 = vrot.slane %v386, %v1034
      %v1036 = vlaneseq
      %v1037 = vshrl.u32 %v1036, 7
      %v1038 = vsub.s32 2, %v1037
      %v1039 = vrot.slane %v386, %v1038
      %v1042 = vadd.f32 %v381, %v1035
      %v1043 = vadd.f32 %v382, %v1039
      %v1045 = vlaneseq
      %v1046 = vshrl.u32 %v1045, 7
      %v1047 = vsub.s32 1, %v1046
      %v1048 = vrot.slane %v402, %v1047
      %v1049 = vlaneseq
      %v1050 = vshrl.u32 %v1049, 7
      %v1051 = vsub.s32 3, %v1050
      %v1052 = vrot.slane %v402, %v1051
      %v1055 = vadd.f32 %v377, %v1048
      %v1056 = vadd.f32 %v378, %v1052
      %v1057 = vmul.f32 %v1042, 0.13333334
      %v1058 = vmul.f32 %v1043, 0.13333334
      %v1059 = vsub.f32 %v1057, 1.0
      %v1060 = vsub.f32 %v1058, 1.0
      %v1061 = vmul.f32 %v1055, 0.13333334
      %v1062 = vmul.f32 %v1056, 0.13333334
      %v1063 = vsub.f32 %v1061, 1.0
      %v1064 = vsub.f32 %v1062, 1.0
      %v1065 = vadd.f32 %v1059, 1.0
      %v1066 = vadd.f32 %v1060, 1.0
      %v1067 = vmul.f32 %v1065, 16.0
      %v1068 = vmul.f32 %v1066, 16.0
      %v1069 = vsub.f32 %v1067, 1.0
      %v1070 = vsub.f32 %v1068, 1.0
      %v1071 = vmul.f32 %v1069, 0.5
      %v1072 = vmul.f32 %v1070, 0.5
      %v1073 = vadd.f32 %v1063, 1.0
      %v1074 = vadd.f32 %v1064, 1.0
      %v1075 = vmul.f32 %v1073, 16.0
      %v1076 = vmul.f32 %v1074, 16.0
      %v1077 = vsub.f32 %v1075, 1.0
      %v1078 = vsub.f32 %v1076, 1.0
      %v1079 = vmul.f32 %v1077, 0.5
      %v1080 = vmul.f32 %v1078, 0.5
      %v1081 = vfloor.f32 %v1071
      %v1082 = vfloor.f32 %v1072
      %v1083 = vfloor.f32 %v1079
      %v1084 = vfloor.f32 %v1080
      %v1085 = vsub.f32 %v1071, %v1081
      %v1086 = vsub.f32 %v1072, %v1082
      %v1087 = vsub.f32 %v1079, %v1083
      %v1088 = vsub.f32 %v1080, %v1084
      %v1089 = vsub.f32 1.0, %v1085
      %v1090 = vsub.f32 1.0, %v1086
      %v1091 = vsub.f32 1.0, %v1087
      %v1092 = vsub.f32 1.0, %v1088
      %v1093 = vmul.f32 %v1089, %v1091
      %v1094 = vmul.f32 %v1090, %v1092
      %vm1095 = vcmp.ge.f32.partialorder %v1081, 0.0
      %vm1096 = vcmp.ge.f32.partialorder %v1082, 0.0
      %vm1097 = vcmp.le.f32.partialorder %v1081, 15.0
      %vm1098 = vcmp.le.f32.partialorder %v1082, 15.0
      %vm1099 = vmand %vm1095, %vm1097
      %vm1100 = vmand %vm1096, %vm1098
      %vm1101 = vcmp.ge.f32.partialorder %v1083, 0.0
      %vm1102 = vcmp.ge.f32.partialorder %v1084, 0.0
      %vm1103 = vmand %vm1099, %vm1101
      %vm1104 = vmand %vm1100, %vm1102
      %vm1105 = vcmp.le.f32.partialorder %v1083, 15.0
      %vm1106 = vcmp.le.f32.partialorder %v1084, 15.0
      %vm1107 = vmand %vm1103, %vm1105
      %vm1108 = vmand %vm1104, %vm1106
      %v1109 = vsel %vm1107, 1, 0
      %v1110 = vsel %vm1108, 1, 0
      %v1111 = vcvt.s32.f32 %v1109
      %v1112 = vcvt.s32.f32 %v1110
      %v1113 = vmul.f32 %v1093, %v1111
      %v1114 = vmul.f32 %v1094, %v1112
      %v1115 = vmul.f32 %v1085, %v1091
      %v1116 = vmul.f32 %v1086, %v1092
      %v1117 = vadd.f32 %v1081, 1.0
      %v1118 = vadd.f32 %v1082, 1.0
      %vm1119 = vcmp.ge.f32.partialorder %v1117, 0.0
      %vm1120 = vcmp.ge.f32.partialorder %v1118, 0.0
      %vm1121 = vcmp.le.f32.partialorder %v1117, 15.0
      %vm1122 = vcmp.le.f32.partialorder %v1118, 15.0
      %vm1123 = vmand %vm1119, %vm1121
      %vm1124 = vmand %vm1120, %vm1122
      %vm1125 = vmand %vm1123, %vm1101
      %vm1126 = vmand %vm1124, %vm1102
      %vm1127 = vmand %vm1125, %vm1105
      %vm1128 = vmand %vm1126, %vm1106
      %v1129 = vsel %vm1127, 1, 0
      %v1130 = vsel %vm1128, 1, 0
      %v1131 = vcvt.s32.f32 %v1129
      %v1132 = vcvt.s32.f32 %v1130
      %v1133 = vmul.f32 %v1115, %v1131
      %v1134 = vmul.f32 %v1116, %v1132
      %v1135 = vadd.f32 %v1113, %v1133
      %v1136 = vadd.f32 %v1114, %v1134
      %v1137 = vmul.f32 %v1089, %v1087
      %v1138 = vmul.f32 %v1090, %v1088
      %v1139 = vadd.f32 %v1083, 1.0
      %v1140 = vadd.f32 %v1084, 1.0
      %vm1141 = vcmp.ge.f32.partialorder %v1139, 0.0
      %vm1142 = vcmp.ge.f32.partialorder %v1140, 0.0
      %vm1143 = vmand %vm1099, %vm1141
      %vm1144 = vmand %vm1100, %vm1142
      %vm1145 = vcmp.le.f32.partialorder %v1139, 15.0
      %vm1146 = vcmp.le.f32.partialorder %v1140, 15.0
      %vm1147 = vmand %vm1143, %vm1145
      %vm1148 = vmand %vm1144, %vm1146
      %v1149 = vsel %vm1147, 1, 0
      %v1150 = vsel %vm1148, 1, 0
      %v1151 = vcvt.s32.f32 %v1149
      %v1152 = vcvt.s32.f32 %v1150
      %v1153 = vmul.f32 %v1137, %v1151
      %v1154 = vmul.f32 %v1138, %v1152
      %v1155 = vadd.f32 %v1135, %v1153
      %v1156 = vadd.f32 %v1136, %v1154
      %v1157 = vmul.f32 %v1085, %v1087
      %v1158 = vmul.f32 %v1086, %v1088
      %vm1159 = vmand %vm1123, %vm1141
      %vm1160 = vmand %vm1124, %vm1142
      %vm1161 = vmand %vm1159, %vm1145
      %vm1162 = vmand %vm1160, %vm1146
      %v1163 = vsel %vm1161, 1, 0
      %v1164 = vsel %vm1162, 1, 0
      %v1165 = vcvt.s32.f32 %v1163
      %v1166 = vcvt.s32.f32 %v1164
      %v1167 = vmul.f32 %v1157, %v1165
      %v1168 = vmul.f32 %v1158, %v1166
      %v1169 = vadd.f32 %v1155, %v1167
      %v1170 = vadd.f32 %v1156, %v1168
      %vm1171 = vcmp.ge.f32.partialorder %v1169, 0.999
      %vm1172 = vcmp.ge.f32.partialorder %v1170, 0.999
      %v1173 = vsel %vm1171, 1, 0
      %v1174 = vsel %vm1172, 1, 0
      %v1175 = vcvt.s32.f32 %v1173
      %v1176 = vcvt.s32.f32 %v1174
      %v1177 = vmax.f32 %v1071, 0.0
      %v1178 = vmax.f32 %v1072, 0.0
      %v1179 = vmin.f32 %v1177, 15.0
      %v1180 = vmin.f32 %v1178, 15.0
      %v1181 = vmax.f32 %v1079, 0.0
      %v1182 = vmax.f32 %v1080, 0.0
      %v1183 = vmin.f32 %v1181, 15.0
      %v1184 = vmin.f32 %v1182, 15.0
      %v1185 = vfloor.f32 %v1179
      %v1186 = vfloor.f32 %v1180
      %v1187 = vfloor.f32 %v1183
      %v1188 = vfloor.f32 %v1184
      %v1189 = vsub.f32 %v1179, %v1185
      %v1190 = vsub.f32 %v1180, %v1186
      %v1191 = vsub.f32 %v1183, %v1187
      %v1192 = vsub.f32 %v1184, %v1188
      %v1193 = vcvt.f32.s32.to.zero.pseudo %v1185
      %v1194 = vcvt.f32.s32.to.zero.pseudo %v1186
      %v1195 = vcvt.f32.s32.to.zero.pseudo %v1187
      %v1196 = vcvt.f32.s32.to.zero.pseudo %v1188
      %v1197 = vadd.s32 %v1193, 1
      %v1198 = vadd.s32 %v1194, 1
      %vm1199 = vcmp.lt.s32.totalorder %v1197, 15
      %v1200 = vsel %vm1199, %v1197, 15
      %vm1201 = vcmp.lt.s32.totalorder %v1198, 15
      %v1202 = vsel %vm1201, %v1198, 15
      %v1203 = vadd.s32 %v1195, 1
      %v1204 = vadd.s32 %v1196, 1
      %vm1205 = vcmp.lt.s32.totalorder %v1203, 15
      %v1206 = vsel %vm1205, %v1203, 15
      %vm1207 = vcmp.lt.s32.totalorder %v1204, 15
      %v1208 = vsel %vm1207, %v1204, 15
      %v1209 = vlaneseq
      %v1210 = vshrl.u32 %v1209, 7
      %v1211 = vsub.s32 0, %v1210
      %v1212 = vrot.slane %v1193, %v1211
      %v1213 = vlaneseq
      %v1214 = vshrl.u32 %v1213, 7
      %v1215 = vsub.s32 0, %v1214
      %v1216 = vrot.slane %v1194, %v1215
      %vm1217 = vcmp.eq.s32.totalorder %v384, %v1212
      %vm1218 = vcmp.eq.s32.totalorder %v384, %v1216
      %vm1219 = vcmp.eq.s32.totalorder %v385, %v1212
      %vm1220 = vcmp.eq.s32.totalorder %v385, %v1216
      %v1221 = vsub.f32 1.0, %v1189
      %v1222 = vsub.f32 1.0, %v1190
      %v1223 = vlaneseq
      %v1224 = vshrl.u32 %v1223, 7
      %v1225 = vsub.s32 0, %v1224
      %v1226 = vrot.slane %v1221, %v1225
      %v1227 = vlaneseq
      %v1228 = vshrl.u32 %v1227, 7
      %v1229 = vsub.s32 0, %v1228
      %v1230 = vrot.slane %v1222, %v1229
      %v1231 = vsel %vm1217, %v1226, 0.0
      %v1232 = vsel %vm1218, %v1230, 0.0
      %v1233 = vsel %vm1219, %v1226, 0.0
      %v1234 = vsel %vm1220, %v1230, 0.0
      %v1235 = vlaneseq
      %v1236 = vshrl.u32 %v1235, 7
      %v1237 = vsub.s32 0, %v1236
      %v1238 = vrot.slane %v1200, %v1237
      %v1239 = vlaneseq
      %v1240 = vshrl.u32 %v1239, 7
      %v1241 = vsub.s32 0, %v1240
      %v1242 = vrot.slane %v1202, %v1241
      %vm1243 = vcmp.eq.s32.totalorder %v384, %v1238
      %vm1244 = vcmp.eq.s32.totalorder %v384, %v1242
      %vm1245 = vcmp.eq.s32.totalorder %v385, %v1238
      %vm1246 = vcmp.eq.s32.totalorder %v385, %v1242
      %v1247 = vlaneseq
      %v1248 = vshrl.u32 %v1247, 7
      %v1249 = vsub.s32 0, %v1248
      %v1250 = vrot.slane %v1189, %v1249
      %v1251 = vlaneseq
      %v1252 = vshrl.u32 %v1251, 7
      %v1253 = vsub.s32 0, %v1252
      %v1254 = vrot.slane %v1190, %v1253
      %v1255 = vsel %vm1243, %v1250, 0.0
      %v1256 = vsel %vm1244, %v1254, 0.0
      %v1257 = vsel %vm1245, %v1250, 0.0
      %v1258 = vsel %vm1246, %v1254, 0.0
      %v1259 = vadd.f32 %v1231, %v1255
      %v1260 = vadd.f32 %v1232, %v1256
      %v1261 = vadd.f32 %v1233, %v1257
      %v1262 = vadd.f32 %v1234, %v1258
      %v1263 = vlaneseq
      %v1264 = vshrl.u32 %v1263, 7
      %v1265 = vsub.s32 0, %v1264
      %v1266 = vrot.slane %v1195, %v1265
      %v1267 = vlaneseq
      %v1268 = vshrl.u32 %v1267, 7
      %v1269 = vsub.s32 0, %v1268
      %v1270 = vrot.slane %v1196, %v1269
      %vm1271 = vcmp.eq.s32.totalorder %v384, %v1266
      %vm1272 = vcmp.eq.s32.totalorder %v384, %v1270
      %vm1273 = vcmp.eq.s32.totalorder %v385, %v1266
      %vm1274 = vcmp.eq.s32.totalorder %v385, %v1270
      %v1275 = vsub.f32 1.0, %v1191
      %v1276 = vsub.f32 1.0, %v1192
      %v1277 = vlaneseq
      %v1278 = vshrl.u32 %v1277, 7
      %v1279 = vsub.s32 0, %v1278
      %v1280 = vrot.slane %v1275, %v1279
      %v1281 = vlaneseq
      %v1282 = vshrl.u32 %v1281, 7
      %v1283 = vsub.s32 0, %v1282
      %v1284 = vrot.slane %v1276, %v1283
      %v1285 = vsel %vm1271, %v1280, 0.0
      %v1286 = vsel %vm1272, %v1284, 0.0
      %v1287 = vsel %vm1273, %v1280, 0.0
      %v1288 = vsel %vm1274, %v1284, 0.0
      %v1289 = vlaneseq
      %v1290 = vshrl.u32 %v1289, 7
      %v1291 = vsub.s32 0, %v1290
      %v1292 = vrot.slane %v1206, %v1291
      %v1293 = vlaneseq
      %v1294 = vshrl.u32 %v1293, 7
      %v1295 = vsub.s32 0, %v1294
      %v1296 = vrot.slane %v1208, %v1295
      %vm1297 = vcmp.eq.s32.totalorder %v384, %v1292
      %vm1298 = vcmp.eq.s32.totalorder %v384, %v1296
      %vm1299 = vcmp.eq.s32.totalorder %v385, %v1292
      %vm1300 = vcmp.eq.s32.totalorder %v385, %v1296
      %v1301 = vlaneseq
      %v1302 = vshrl.u32 %v1301, 7
      %v1303 = vsub.s32 0, %v1302
      %v1304 = vrot.slane %v1191, %v1303
      %v1305 = vlaneseq
      %v1306 = vshrl.u32 %v1305, 7
      %v1307 = vsub.s32 0, %v1306
      %v1308 = vrot.slane %v1192, %v1307
      %v1309 = vsel %vm1297, %v1304, 0.0
      %v1310 = vsel %vm1298, %v1308, 0.0
      %v1311 = vsel %vm1299, %v1304, 0.0
      %v1312 = vsel %vm1300, %v1308, 0.0
      %v1313 = vadd.f32 %v1285, %v1309
      %v1314 = vadd.f32 %v1286, %v1310
      %v1315 = vadd.f32 %v1287, %v1311
      %v1316 = vadd.f32 %v1288, %v1312
      %v1318 = vsel %vm677, %v351, 0
      %v1321 = vsel %vm677, %v352, 0
      %v1324 = vsel %vm677, %v353, 0
      %v1327 = vsel %vm677, %v354, 0
      %v1330 = vsel %vm677, %v355, 0
      %v1333 = vsel %vm677, %v356, 0
      %v1336 = vsel %vm677, %v357, 0
      %v1339 = vsel %vm677, %v358, 0
      %v1342 = vsel %vm677, %v359, 0
      %v1345 = vsel %vm677, %v360, 0
      %v1348 = vsel %vm677, %v361, 0
      %v1351 = vsel %vm677, %v362, 0
      %v1354 = vsel %vm677, %v363, 0
      %v1357 = vsel %vm677, %v364, 0
      %v1360 = vsel %vm677, %v365, 0
      %v1363 = vsel %vm677, %v366, 0
      %1365 = vmatprep.subr.mxu0 %v1260
      %1366 = vmatpush1.msra.mxu0 %v1259
      %1367 = vmatprep.subr.mxu0 %v1262
      %1368 = vmatpush1.msra.mxu0 %v1261
      %1369 = vmatprep.subr.mxu0 0.0
      %1370 = vmatpush1.msra.mxu0 0.0
      %1371 = vmatprep.subr.mxu0 0.0
      %1372 = vmatpush1.msra.mxu0 0.0
      %1373 = vmatprep.subr.mxu0 0.0
      %1374 = vmatpush1.msra.mxu0 0.0
      %1375 = vmatprep.subr.mxu0 0.0
      %1376 = vmatpush1.msra.mxu0 0.0
      %1377 = vmatprep.subr.mxu0 0.0
      %1378 = vmatpush1.msra.mxu0 0.0
      %1379 = vmatprep.subr.mxu0 0.0
      %1380 = vmatpush1.msra.mxu0 0.0
      %1381 = vmatprep.subr.mxu0 0.0
      %1382 = vmatpush1.msra.mxu0 0.0
      %1383 = vmatprep.subr.mxu0 0.0
      %1384 = vmatpush1.msra.mxu0 0.0
      %1385 = vmatprep.subr.mxu0 0.0
      %1386 = vmatpush1.msra.mxu0 0.0
      %1387 = vmatprep.subr.mxu0 0.0
      %1388 = vmatpush1.msra.mxu0 0.0
      %1389 = vmatprep.subr.mxu0 0.0
      %1390 = vmatpush1.msra.mxu0 0.0
      %1391 = vmatprep.subr.mxu0 0.0
      %1392 = vmatpush1.msra.mxu0 0.0
      %1393 = vmatprep.subr.mxu0 0.0
      %1394 = vmatpush1.msra.mxu0 0.0
      %1395 = vmatprep.subr.mxu0 0.0
      %1396 = vmatpush1.msra.mxu0 0.0
      %1397 = vmatprep.subr.mxu0 0.0
      %1398 = vmatpush1.msra.mxu0 0.0
      %1399 = vmatprep.subr.mxu0 0.0
      %1400 = vmatpush1.msra.mxu0 0.0
      %1401 = vmatprep.subr.mxu0 0.0
      %1402 = vmatpush1.msra.mxu0 0.0
      %1403 = vmatprep.subr.mxu0 0.0
      %1404 = vmatpush1.msra.mxu0 0.0
      %1405 = vmatprep.subr.mxu0 0.0
      %1406 = vmatpush1.msra.mxu0 0.0
      %1407 = vmatprep.subr.mxu0 0.0
      %1408 = vmatpush1.msra.mxu0 0.0
      %1409 = vmatprep.subr.mxu0 0.0
      %1410 = vmatpush1.msra.mxu0 0.0
      %1411 = vmatprep.subr.mxu0 0.0
      %1412 = vmatpush1.msra.mxu0 0.0
      %1413 = vmatprep.subr.mxu0 0.0
      %1414 = vmatpush1.msra.mxu0 0.0
      %1415 = vmatprep.subr.mxu0 0.0
      %1416 = vmatpush1.msra.mxu0 0.0
      %1417 = vmatprep.subr.mxu0 0.0
      %1418 = vmatpush1.msra.mxu0 0.0
      %1419 = vmatprep.subr.mxu0 0.0
      %1420 = vmatpush1.msra.mxu0 0.0
      %1421 = vmatprep.subr.mxu0 0.0
      %1422 = vmatpush1.msra.mxu0 0.0
      %1423 = vmatprep.subr.mxu0 0.0
      %1424 = vmatpush1.msra.mxu0 0.0
      %1425 = vmatprep.subr.mxu0 0.0
      %1426 = vmatpush1.msra.mxu0 0.0
      %1427 = vmatprep.subr.mxu0 0.0
      %1428 = vmatpush1.msra.mxu0 0.0
      %1429 = vmatprep.mubr.f32.mxu0 0.0
      %1430 = vmatmul.mubr.f32.gmra.mrb[0].mxu0 %v1318
      %v1431 = vpop.f32.mrb[0].mxu0
      %v1432 = vadd.f32 0.0, %v1431
      %v1433 = vpop.f32.mrb[0].mxu0
      %v1434 = vadd.f32 0.0, %v1433
      %1435 = vmatprep.mubr.f32.mxu0 0.0
      %1436 = vmatmul.mubr.f32.gmra.mrb[0].mxu0 %v1321
      %v1437 = vpop.f32.mrb[0].mxu0
      %v1438 = vadd.f32 0.0, %v1437
      %v1439 = vpop.f32.mrb[0].mxu0
      %v1440 = vadd.f32 0.0, %v1439
      %1441 = vmatprep.mubr.f32.mxu0 0.0
      %1442 = vmatmul.mubr.f32.gmra.mrb[0].mxu0 %v1324
      %v1443 = vpop.f32.mrb[0].mxu0
      %v1444 = vadd.f32 0.0, %v1443
      %v1445 = vpop.f32.mrb[0].mxu0
      %v1446 = vadd.f32 0.0, %v1445
      %1447 = vmatprep.mubr.f32.mxu0 0.0
      %1448 = vmatmul.mubr.f32.gmra.mrb[0].mxu0 %v1327
      %v1449 = vpop.f32.mrb[0].mxu0
      %v1450 = vadd.f32 0.0, %v1449
      %v1451 = vpop.f32.mrb[0].mxu0
      %v1452 = vadd.f32 0.0, %v1451
      %1453 = vmatprep.mubr.f32.mxu0 0.0
      %1454 = vmatmul.mubr.f32.gmra.mrb[0].mxu0 %v1330
      %v1455 = vpop.f32.mrb[0].mxu0
      %v1456 = vadd.f32 0.0, %v1455
      %v1457 = vpop.f32.mrb[0].mxu0
      %v1458 = vadd.f32 0.0, %v1457
      %1459 = vmatprep.mubr.f32.mxu0 0.0
      %1460 = vmatmul.mubr.f32.gmra.mrb[0].mxu0 %v1333
      %v1461 = vpop.f32.mrb[0].mxu0
      %v1462 = vadd.f32 0.0, %v1461
      %v1463 = vpop.f32.mrb[0].mxu0
      %v1464 = vadd.f32 0.0, %v1463
      %1465 = vmatprep.mubr.f32.mxu0 0.0
      %1466 = vmatmul.mubr.f32.gmra.mrb[0].mxu0 %v1336
      %v1467 = vpop.f32.mrb[0].mxu0
      %v1468 = vadd.f32 0.0, %v1467
      %v1469 = vpop.f32.mrb[0].mxu0
      %v1470 = vadd.f32 0.0, %v1469
      %1471 = vmatprep.mubr.f32.mxu0 0.0
      %1472 = vmatmul.mubr.f32.gmra.mrb[0].mxu0 %v1339
      %v1473 = vpop.f32.mrb[0].mxu0
      %v1474 = vadd.f32 0.0, %v1473
      %v1475 = vpop.f32.mrb[0].mxu0
      %v1476 = vadd.f32 0.0, %v1475
      %1477 = vmatprep.mubr.f32.mxu0 0.0
      %1478 = vmatmul.mubr.f32.gmra.mrb[0].mxu0 %v1342
      %v1479 = vpop.f32.mrb[0].mxu0
      %v1480 = vadd.f32 0.0, %v1479
      %v1481 = vpop.f32.mrb[0].mxu0
      %v1482 = vadd.f32 0.0, %v1481
      %1483 = vmatprep.mubr.f32.mxu0 0.0
      %1484 = vmatmul.mubr.f32.gmra.mrb[0].mxu0 %v1345
      %v1485 = vpop.f32.mrb[0].mxu0
      %v1486 = vadd.f32 0.0, %v1485
      %v1487 = vpop.f32.mrb[0].mxu0
      %v1488 = vadd.f32 0.0, %v1487
      %1489 = vmatprep.mubr.f32.mxu0 0.0
      %1490 = vmatmul.mubr.f32.gmra.mrb[0].mxu0 %v1348
      %v1491 = vpop.f32.mrb[0].mxu0
      %v1492 = vadd.f32 0.0, %v1491
      %v1493 = vpop.f32.mrb[0].mxu0
      %v1494 = vadd.f32 0.0, %v1493
      %1495 = vmatprep.mubr.f32.mxu0 0.0
      %1496 = vmatmul.mubr.f32.gmra.mrb[0].mxu0 %v1351
      %v1497 = vpop.f32.mrb[0].mxu0
      %v1498 = vadd.f32 0.0, %v1497
      %v1499 = vpop.f32.mrb[0].mxu0
      %v1500 = vadd.f32 0.0, %v1499
      %1501 = vmatprep.mubr.f32.mxu0 0.0
      %1502 = vmatmul.mubr.f32.gmra.mrb[0].mxu0 %v1354
      %v1503 = vpop.f32.mrb[0].mxu0
      %v1504 = vadd.f32 0.0, %v1503
      %v1505 = vpop.f32.mrb[0].mxu0
      %v1506 = vadd.f32 0.0, %v1505
      %1507 = vmatprep.mubr.f32.mxu0 0.0
      %1508 = vmatmul.mubr.f32.gmra.mrb[0].mxu0 %v1357
      %v1509 = vpop.f32.mrb[0].mxu0
      %v1510 = vadd.f32 0.0, %v1509
      %v1511 = vpop.f32.mrb[0].mxu0
      %v1512 = vadd.f32 0.0, %v1511
      %1513 = vmatprep.mubr.f32.mxu0 0.0
      %1514 = vmatmul.mubr.f32.gmra.mrb[0].mxu0 %v1360
      %v1515 = vpop.f32.mrb[0].mxu0
      %v1516 = vadd.f32 0.0, %v1515
      %v1517 = vpop.f32.mrb[0].mxu0
      %v1518 = vadd.f32 0.0, %v1517
      %1519 = vmatprep.mubr.f32.mxu0 0.0
      %1520 = vmatmul.mubr.f32.gmra.mrb[0].mxu0 %v1363
      %v1521 = vpop.f32.mrb[0].mxu0
      %v1522 = vadd.f32 0.0, %v1521
      %v1523 = vpop.f32.mrb[0].mxu0
      %v1524 = vadd.f32 0.0, %v1523
      %1525 = vdwg.mxu0
      %v1526 = vmul.f32 %v1432, %v1313
      %v1527 = vmul.f32 %v1434, %v1314
      %v1528 = vmul.f32 %v1438, %v1315
      %v1529 = vmul.f32 %v1440, %v1316
      %v1530 = vadd.f32 %v1526, %v1528
      %v1531 = vrot.slane %v1530, 4
      %v1532 = vadd.f32 %v1530, %v1531
      %v1533 = vrot.slane %v1532, 2
      %v1534 = vadd.f32 %v1532, %v1533
      %v1535 = vrot.slane %v1534, 1
      %v1536 = vadd.f32 %v1534, %v1535
      %v1537 = vadd.f32 %v1527, %v1529
      %v1538 = vrot.slane %v1537, 4
      %v1539 = vadd.f32 %v1537, %v1538
      %v1540 = vrot.slane %v1539, 2
      %v1541 = vadd.f32 %v1539, %v1540
      %v1542 = vrot.slane %v1541, 1
      %v1543 = vadd.f32 %v1541, %v1542
      %v1544 = vmul.f32 %v897, %v1536
      %v1545 = vmul.f32 %v904, %v1543
      %v1546 = vadd.f32 %v1544, 0.0
      %v1547 = vadd.f32 %v1545, 0.0
      %v1548 = vmul.f32 %v1444, %v1313
      %v1549 = vmul.f32 %v1446, %v1314
      %v1550 = vmul.f32 %v1450, %v1315
      %v1551 = vmul.f32 %v1452, %v1316
      %v1552 = vadd.f32 %v1548, %v1550
      %v1553 = vrot.slane %v1552, 4
      %v1554 = vadd.f32 %v1552, %v1553
      %v1555 = vrot.slane %v1554, 2
      %v1556 = vadd.f32 %v1554, %v1555
      %v1557 = vrot.slane %v1556, 1
      %v1558 = vadd.f32 %v1556, %v1557
      %v1559 = vadd.f32 %v1549, %v1551
      %v1560 = vrot.slane %v1559, 4
      %v1561 = vadd.f32 %v1559, %v1560
      %v1562 = vrot.slane %v1561, 2
      %v1563 = vadd.f32 %v1561, %v1562
      %v1564 = vrot.slane %v1563, 1
      %v1565 = vadd.f32 %v1563, %v1564
      %v1566 = vmul.f32 %v915, %v1558
      %v1567 = vmul.f32 %v922, %v1565
      %v1568 = vadd.f32 %v1546, %v1566
      %v1569 = vadd.f32 %v1547, %v1567
      %v1570 = vmul.f32 %v1456, %v1313
      %v1571 = vmul.f32 %v1458, %v1314
      %v1572 = vmul.f32 %v1462, %v1315
      %v1573 = vmul.f32 %v1464, %v1316
      %v1574 = vadd.f32 %v1570, %v1572
      %v1575 = vrot.slane %v1574, 4
      %v1576 = vadd.f32 %v1574, %v1575
      %v1577 = vrot.slane %v1576, 2
      %v1578 = vadd.f32 %v1576, %v1577
      %v1579 = vrot.slane %v1578, 1
      %v1580 = vadd.f32 %v1578, %v1579
      %v1581 = vadd.f32 %v1571, %v1573
      %v1582 = vrot.slane %v1581, 4
      %v1583 = vadd.f32 %v1581, %v1582
      %v1584 = vrot.slane %v1583, 2
      %v1585 = vadd.f32 %v1583, %v1584
      %v1586 = vrot.slane %v1585, 1
      %v1587 = vadd.f32 %v1585, %v1586
      %v1588 = vmul.f32 %v933, %v1580
      %v1589 = vmul.f32 %v940, %v1587
      %v1590 = vadd.f32 %v1568, %v1588
      %v1591 = vadd.f32 %v1569, %v1589
      %v1592 = vmul.f32 %v1468, %v1313
      %v1593 = vmul.f32 %v1470, %v1314
      %v1594 = vmul.f32 %v1474, %v1315
      %v1595 = vmul.f32 %v1476, %v1316
      %v1596 = vadd.f32 %v1592, %v1594
      %v1597 = vrot.slane %v1596, 4
      %v1598 = vadd.f32 %v1596, %v1597
      %v1599 = vrot.slane %v1598, 2
      %v1600 = vadd.f32 %v1598, %v1599
      %v1601 = vrot.slane %v1600, 1
      %v1602 = vadd.f32 %v1600, %v1601
      %v1603 = vadd.f32 %v1593, %v1595
      %v1604 = vrot.slane %v1603, 4
      %v1605 = vadd.f32 %v1603, %v1604
      %v1606 = vrot.slane %v1605, 2
      %v1607 = vadd.f32 %v1605, %v1606
      %v1608 = vrot.slane %v1607, 1
      %v1609 = vadd.f32 %v1607, %v1608
      %v1610 = vmul.f32 %v951, %v1602
      %v1611 = vmul.f32 %v958, %v1609
      %v1612 = vadd.f32 %v1590, %v1610
      %v1613 = vadd.f32 %v1591, %v1611
      %v1614 = vmul.f32 %v1480, %v1313
      %v1615 = vmul.f32 %v1482, %v1314
      %v1616 = vmul.f32 %v1486, %v1315
      %v1617 = vmul.f32 %v1488, %v1316
      %v1618 = vadd.f32 %v1614, %v1616
      %v1619 = vrot.slane %v1618, 4
      %v1620 = vadd.f32 %v1618, %v1619
      %v1621 = vrot.slane %v1620, 2
      %v1622 = vadd.f32 %v1620, %v1621
      %v1623 = vrot.slane %v1622, 1
      %v1624 = vadd.f32 %v1622, %v1623
      %v1625 = vadd.f32 %v1615, %v1617
      %v1626 = vrot.slane %v1625, 4
      %v1627 = vadd.f32 %v1625, %v1626
      %v1628 = vrot.slane %v1627, 2
      %v1629 = vadd.f32 %v1627, %v1628
      %v1630 = vrot.slane %v1629, 1
      %v1631 = vadd.f32 %v1629, %v1630
      %v1632 = vmul.f32 %v969, %v1624
      %v1633 = vmul.f32 %v976, %v1631
      %v1634 = vadd.f32 %v1612, %v1632
      %v1635 = vadd.f32 %v1613, %v1633
      %v1636 = vmul.f32 %v1492, %v1313
      %v1637 = vmul.f32 %v1494, %v1314
      %v1638 = vmul.f32 %v1498, %v1315
      %v1639 = vmul.f32 %v1500, %v1316
      %v1640 = vadd.f32 %v1636, %v1638
      %v1641 = vrot.slane %v1640, 4
      %v1642 = vadd.f32 %v1640, %v1641
      %v1643 = vrot.slane %v1642, 2
      %v1644 = vadd.f32 %v1642, %v1643
      %v1645 = vrot.slane %v1644, 1
      %v1646 = vadd.f32 %v1644, %v1645
      %v1647 = vadd.f32 %v1637, %v1639
      %v1648 = vrot.slane %v1647, 4
      %v1649 = vadd.f32 %v1647, %v1648
      %v1650 = vrot.slane %v1649, 2
      %v1651 = vadd.f32 %v1649, %v1650
      %v1652 = vrot.slane %v1651, 1
      %v1653 = vadd.f32 %v1651, %v1652
      %v1654 = vmul.f32 %v987, %v1646
      %v1655 = vmul.f32 %v994, %v1653
      %v1656 = vadd.f32 %v1634, %v1654
      %v1657 = vadd.f32 %v1635, %v1655
      %v1658 = vmul.f32 %v1504, %v1313
      %v1659 = vmul.f32 %v1506, %v1314
      %v1660 = vmul.f32 %v1510, %v1315
      %v1661 = vmul.f32 %v1512, %v1316
      %v1662 = vadd.f32 %v1658, %v1660
      %v1663 = vrot.slane %v1662, 4
      %v1664 = vadd.f32 %v1662, %v1663
      %v1665 = vrot.slane %v1664, 2
      %v1666 = vadd.f32 %v1664, %v1665
      %v1667 = vrot.slane %v1666, 1
      %v1668 = vadd.f32 %v1666, %v1667
      %v1669 = vadd.f32 %v1659, %v1661
      %v1670 = vrot.slane %v1669, 4
      %v1671 = vadd.f32 %v1669, %v1670
      %v1672 = vrot.slane %v1671, 2
      %v1673 = vadd.f32 %v1671, %v1672
      %v1674 = vrot.slane %v1673, 1
      %v1675 = vadd.f32 %v1673, %v1674
      %v1676 = vmul.f32 %v1005, %v1668
      %v1677 = vmul.f32 %v1012, %v1675
      %v1678 = vadd.f32 %v1656, %v1676
      %v1679 = vadd.f32 %v1657, %v1677
      %v1680 = vmul.f32 %v1516, %v1313
      %v1681 = vmul.f32 %v1518, %v1314
      %v1682 = vmul.f32 %v1522, %v1315
      %v1683 = vmul.f32 %v1524, %v1316
      %v1684 = vadd.f32 %v1680, %v1682
      %v1685 = vrot.slane %v1684, 4
      %v1686 = vadd.f32 %v1684, %v1685
      %v1687 = vrot.slane %v1686, 2
      %v1688 = vadd.f32 %v1686, %v1687
      %v1689 = vrot.slane %v1688, 1
      %v1690 = vadd.f32 %v1688, %v1689
      %v1691 = vadd.f32 %v1681, %v1683
      %v1692 = vrot.slane %v1691, 4
      %v1693 = vadd.f32 %v1691, %v1692
      %v1694 = vrot.slane %v1693, 2
      %v1695 = vadd.f32 %v1693, %v1694
      %v1696 = vrot.slane %v1695, 1
      %v1697 = vadd.f32 %v1695, %v1696
      %v1698 = vmul.f32 %v1023, %v1690
      %v1699 = vmul.f32 %v1030, %v1697
      %v1700 = vadd.f32 %v1678, %v1698
      %v1701 = vadd.f32 %v1679, %v1699
      %v1702 = vmul.f32 %v535, %v1175
      %v1703 = vmul.f32 %v536, %v1176
      %v1704 = vmul.f32 %v1700, %v1702
      %v1705 = vmul.f32 %v1701, %v1703
      %v1706 = vadd.f32 %v367, -1.0
      %v1707 = vmul.f32 %v1706, -1.0
      %v1709 = vlaneseq
      %v1710 = vshrl.u32 %v1709, 7
      %v1711 = vsub.s32 0, %v1710
      %v1712 = vrot.slane %v1707, %v1711
      %v1713 = vlaneseq
      %v1714 = vshrl.u32 %v1713, 7
      %v1715 = vsub.s32 2, %v1714
      %v1716 = vrot.slane %v1707, %v1715
      %v1719 = vadd.f32 %v381, %v1712
      %v1720 = vadd.f32 %v382, %v1716
      %v1721 = vmul.f32 %v1719, 0.13333334
      %v1722 = vmul.f32 %v1720, 0.13333334
      %v1723 = vsub.f32 %v1721, 1.0
      %v1724 = vsub.f32 %v1722, 1.0
      %v1725 = vadd.f32 %v1723, 1.0
      %v1726 = vadd.f32 %v1724, 1.0
      %v1727 = vmul.f32 %v1725, 16.0
      %v1728 = vmul.f32 %v1726, 16.0
      %v1729 = vsub.f32 %v1727, 1.0
      %v1730 = vsub.f32 %v1728, 1.0
      %v1731 = vmul.f32 %v1729, 0.5
      %v1732 = vmul.f32 %v1730, 0.5
      %v1733 = vfloor.f32 %v1731
      %v1734 = vfloor.f32 %v1732
      %v1735 = vsub.f32 %v1731, %v1733
      %v1736 = vsub.f32 %v1732, %v1734
      %v1737 = vsub.f32 1.0, %v1735
      %v1738 = vsub.f32 1.0, %v1736
      %v1739 = vmul.f32 %v1737, %v451
      %v1740 = vmul.f32 %v1738, %v452
      %vm1741 = vcmp.ge.f32.partialorder %v1733, 0.0
      %vm1742 = vcmp.ge.f32.partialorder %v1734, 0.0
      %vm1743 = vcmp.le.f32.partialorder %v1733, 15.0
      %vm1744 = vcmp.le.f32.partialorder %v1734, 15.0
      %vm1745 = vmand %vm1741, %vm1743
      %vm1746 = vmand %vm1742, %vm1744
      %vm1747 = vmand %vm1745, %vm461
      %vm1748 = vmand %vm1746, %vm462
      %vm1749 = vmand %vm1747, %vm465
      %vm1750 = vmand %vm1748, %vm466
      %v1751 = vsel %vm1749, 1, 0
      %v1752 = vsel %vm1750, 1, 0
      %v1753 = vcvt.s32.f32 %v1751
      %v1754 = vcvt.s32.f32 %v1752
      %v1755 = vmul.f32 %v1739, %v1753
      %v1756 = vmul.f32 %v1740, %v1754
      %v1757 = vmul.f32 %v1735, %v451
      %v1758 = vmul.f32 %v1736, %v452
      %v1759 = vadd.f32 %v1733, 1.0
      %v1760 = vadd.f32 %v1734, 1.0
      %vm1761 = vcmp.ge.f32.partialorder %v1759, 0.0
      %vm1762 = vcmp.ge.f32.partialorder %v1760, 0.0
      %vm1763 = vcmp.le.f32.partialorder %v1759, 15.0
      %vm1764 = vcmp.le.f32.partialorder %v1760, 15.0
      %vm1765 = vmand %vm1761, %vm1763
      %vm1766 = vmand %vm1762, %vm1764
      %vm1767 = vmand %vm1765, %vm461
      %vm1768 = vmand %vm1766, %vm462
      %vm1769 = vmand %vm1767, %vm465
      %vm1770 = vmand %vm1768, %vm466
      %v1771 = vsel %vm1769, 1, 0
      %v1772 = vsel %vm1770, 1, 0
      %v1773 = vcvt.s32.f32 %v1771
      %v1774 = vcvt.s32.f32 %v1772
      %v1775 = vmul.f32 %v1757, %v1773
      %v1776 = vmul.f32 %v1758, %v1774
      %v1777 = vadd.f32 %v1755, %v1775
      %v1778 = vadd.f32 %v1756, %v1776
      %v1779 = vmul.f32 %v1737, %v447
      %v1780 = vmul.f32 %v1738, %v448
      %vm1781 = vmand %vm1745, %vm501
      %vm1782 = vmand %vm1746, %vm502
      %vm1783 = vmand %vm1781, %vm505
      %vm1784 = vmand %vm1782, %vm506
      %v1785 = vsel %vm1783, 1, 0
      %v1786 = vsel %vm1784, 1, 0
      %v1787 = vcvt.s32.f32 %v1785
      %v1788 = vcvt.s32.f32 %v1786
      %v1789 = vmul.f32 %v1779, %v1787
      %v1790 = vmul.f32 %v1780, %v1788
      %v1791 = vadd.f32 %v1777, %v1789
      %v1792 = vadd.f32 %v1778, %v1790
      %v1793 = vmul.f32 %v1735, %v447
      %v1794 = vmul.f32 %v1736, %v448
      %vm1795 = vmand %vm1765, %vm501
      %vm1796 = vmand %vm1766, %vm502
      %vm1797 = vmand %vm1795, %vm505
      %vm1798 = vmand %vm1796, %vm506
      %v1799 = vsel %vm1797, 1, 0
      %v1800 = vsel %vm1798, 1, 0
      %v1801 = vcvt.s32.f32 %v1799
      %v1802 = vcvt.s32.f32 %v1800
      %v1803 = vmul.f32 %v1793, %v1801
      %v1804 = vmul.f32 %v1794, %v1802
      %v1805 = vadd.f32 %v1791, %v1803
      %v1806 = vadd.f32 %v1792, %v1804
      %vm1807 = vcmp.ge.f32.partialorder %v1805, 0.999
      %vm1808 = vcmp.ge.f32.partialorder %v1806, 0.999
      %v1809 = vsel %vm1807, 1, 0
      %v1810 = vsel %vm1808, 1, 0
      %v1811 = vcvt.s32.f32 %v1809
      %v1812 = vcvt.s32.f32 %v1810
      %v1813 = vmax.f32 %v1731, 0.0
      %v1814 = vmax.f32 %v1732, 0.0
      %v1815 = vmin.f32 %v1813, 15.0
      %v1816 = vmin.f32 %v1814, 15.0
      %v1817 = vfloor.f32 %v1815
      %v1818 = vfloor.f32 %v1816
      %v1819 = vsub.f32 %v1815, %v1817
      %v1820 = vsub.f32 %v1816, %v1818
      %v1821 = vcvt.f32.s32.to.zero.pseudo %v1817
      %v1822 = vcvt.f32.s32.to.zero.pseudo %v1818
      %v1823 = vadd.s32 %v1821, 1
      %v1824 = vadd.s32 %v1822, 1
      %vm1825 = vcmp.lt.s32.totalorder %v1823, 15
      %v1826 = vsel %vm1825, %v1823, 15
      %vm1827 = vcmp.lt.s32.totalorder %v1824, 15
      %v1828 = vsel %vm1827, %v1824, 15
      %v1829 = vlaneseq
      %v1830 = vshrl.u32 %v1829, 7
      %v1831 = vsub.s32 0, %v1830
      %v1832 = vrot.slane %v1821, %v1831
      %v1833 = vlaneseq
      %v1834 = vshrl.u32 %v1833, 7
      %v1835 = vsub.s32 0, %v1834
      %v1836 = vrot.slane %v1822, %v1835
      %vm1837 = vcmp.eq.s32.totalorder %v384, %v1832
      %vm1838 = vcmp.eq.s32.totalorder %v384, %v1836
      %vm1839 = vcmp.eq.s32.totalorder %v385, %v1832
      %vm1840 = vcmp.eq.s32.totalorder %v385, %v1836
      %v1841 = vsub.f32 1.0, %v1819
      %v1842 = vsub.f32 1.0, %v1820
      %v1843 = vlaneseq
      %v1844 = vshrl.u32 %v1843, 7
      %v1845 = vsub.s32 0, %v1844
      %v1846 = vrot.slane %v1841, %v1845
      %v1847 = vlaneseq
      %v1848 = vshrl.u32 %v1847, 7
      %v1849 = vsub.s32 0, %v1848
      %v1850 = vrot.slane %v1842, %v1849
      %v1851 = vsel %vm1837, %v1846, 0.0
      %v1852 = vsel %vm1838, %v1850, 0.0
      %v1853 = vsel %vm1839, %v1846, 0.0
      %v1854 = vsel %vm1840, %v1850, 0.0
      %v1855 = vlaneseq
      %v1856 = vshrl.u32 %v1855, 7
      %v1857 = vsub.s32 0, %v1856
      %v1858 = vrot.slane %v1826, %v1857
      %v1859 = vlaneseq
      %v1860 = vshrl.u32 %v1859, 7
      %v1861 = vsub.s32 0, %v1860
      %v1862 = vrot.slane %v1828, %v1861
      %vm1863 = vcmp.eq.s32.totalorder %v384, %v1858
      %vm1864 = vcmp.eq.s32.totalorder %v384, %v1862
      %vm1865 = vcmp.eq.s32.totalorder %v385, %v1858
      %vm1866 = vcmp.eq.s32.totalorder %v385, %v1862
      %v1867 = vlaneseq
      %v1868 = vshrl.u32 %v1867, 7
      %v1869 = vsub.s32 0, %v1868
      %v1870 = vrot.slane %v1819, %v1869
      %v1871 = vlaneseq
      %v1872 = vshrl.u32 %v1871, 7
      %v1873 = vsub.s32 0, %v1872
      %v1874 = vrot.slane %v1820, %v1873
      %v1875 = vsel %vm1863, %v1870, 0.0
      %v1876 = vsel %vm1864, %v1874, 0.0
      %v1877 = vsel %vm1865, %v1870, 0.0
      %v1878 = vsel %vm1866, %v1874, 0.0
      %v1879 = vadd.f32 %v1851, %v1875
      %v1880 = vadd.f32 %v1852, %v1876
      %v1881 = vadd.f32 %v1853, %v1877
      %v1882 = vadd.f32 %v1854, %v1878
      %1883 = vmatprep.subr.mxu0 %v1880
      %1884 = vmatpush1.msra.mxu0 %v1879
      %1885 = vmatprep.subr.mxu0 %v1882
      %1886 = vmatpush1.msra.mxu0 %v1881
      %1887 = vmatprep.subr.mxu0 0.0
      %1888 = vmatpush1.msra.mxu0 0.0
      %1889 = vmatprep.subr.mxu0 0.0
      %1890 = vmatpush1.msra.mxu0 0.0
      %1891 = vmatprep.subr.mxu0 0.0
      %1892 = vmatpush1.msra.mxu0 0.0
      %1893 = vmatprep.subr.mxu0 0.0
      %1894 = vmatpush1.msra.mxu0 0.0
      %1895 = vmatprep.subr.mxu0 0.0
      %1896 = vmatpush1.msra.mxu0 0.0
      %1897 = vmatprep.subr.mxu0 0.0
      %1898 = vmatpush1.msra.mxu0 0.0
      %1899 = vmatprep.subr.mxu0 0.0
      %1900 = vmatpush1.msra.mxu0 0.0
      %1901 = vmatprep.subr.mxu0 0.0
      %1902 = vmatpush1.msra.mxu0 0.0
      %1903 = vmatprep.subr.mxu0 0.0
      %1904 = vmatpush1.msra.mxu0 0.0
      %1905 = vmatprep.subr.mxu0 0.0
      %1906 = vmatpush1.msra.mxu0 0.0
      %1907 = vmatprep.subr.mxu0 0.0
      %1908 = vmatpush1.msra.mxu0 0.0
      %1909 = vmatprep.subr.mxu0 0.0
      %1910 = vmatpush1.msra.mxu0 0.0
      %1911 = vmatprep.subr.mxu0 0.0
      %1912 = vmatpush1.msra.mxu0 0.0
      %1913 = vmatprep.subr.mxu0 0.0
      %1914 = vmatpush1.msra.mxu0 0.0
      %1915 = vmatprep.subr.mxu0 0.0
      %1916 = vmatpush1.msra.mxu0 0.0
      %1917 = vmatprep.subr.mxu0 0.0
      %1918 = vmatpush1.msra.mxu0 0.0
      %1919 = vmatprep.subr.mxu0 0.0
      %1920 = vmatpush1.msra.mxu0 0.0
      %1921 = vmatprep.subr.mxu0 0.0
      %1922 = vmatpush1.msra.mxu0 0.0
      %1923 = vmatprep.subr.mxu0 0.0
      %1924 = vmatpush1.msra.mxu0 0.0
      %1925 = vmatprep.subr.mxu0 0.0
      %1926 = vmatpush1.msra.mxu0 0.0
      %1927 = vmatprep.subr.mxu0 0.0
      %1928 = vmatpush1.msra.mxu0 0.0
      %1929 = vmatprep.subr.mxu0 0.0
      %1930 = vmatpush1.msra.mxu0 0.0
      %1931 = vmatprep.subr.mxu0 0.0
      %1932 = vmatpush1.msra.mxu0 0.0
      %1933 = vmatprep.subr.mxu0 0.0
      %1934 = vmatpush1.msra.mxu0 0.0
      %1935 = vmatprep.subr.mxu0 0.0
      %1936 = vmatpush1.msra.mxu0 0.0
      %1937 = vmatprep.subr.mxu0 0.0
      %1938 = vmatpush1.msra.mxu0 0.0
      %1939 = vmatprep.subr.mxu0 0.0
      %1940 = vmatpush1.msra.mxu0 0.0
      %1941 = vmatprep.subr.mxu0 0.0
      %1942 = vmatpush1.msra.mxu0 0.0
      %1943 = vmatprep.subr.mxu0 0.0
      %1944 = vmatpush1.msra.mxu0 0.0
      %1945 = vmatprep.subr.mxu0 0.0
      %1946 = vmatpush1.msra.mxu0 0.0
      %1947 = vmatprep.mubr.f32.mxu0 0.0
      %1948 = vmatmul.mubr.f32.gmra.mrb[0].mxu0 %v679
      %v1949 = vpop.f32.mrb[0].mxu0
      %v1950 = vadd.f32 0.0, %v1949
      %v1951 = vpop.f32.mrb[0].mxu0
      %v1952 = vadd.f32 0.0, %v1951
      %1953 = vmatprep.mubr.f32.mxu0 0.0
      %1954 = vmatmul.mubr.f32.gmra.mrb[0].mxu0 %v682
      %v1955 = vpop.f32.mrb[0].mxu0
      %v1956 = vadd.f32 0.0, %v1955
      %v1957 = vpop.f32.mrb[0].mxu0
      %v1958 = vadd.f32 0.0, %v1957
      %1959 = vmatprep.mubr.f32.mxu0 0.0
      %1960 = vmatmul.mubr.f32.gmra.mrb[0].mxu0 %v685
      %v1961 = vpop.f32.mrb[0].mxu0
      %v1962 = vadd.f32 0.0, %v1961
      %v1963 = vpop.f32.mrb[0].mxu0
      %v1964 = vadd.f32 0.0, %v1963
      %1965 = vmatprep.mubr.f32.mxu0 0.0
      %1966 = vmatmul.mubr.f32.gmra.mrb[0].mxu0 %v688
      %v1967 = vpop.f32.mrb[0].mxu0
      %v1968 = vadd.f32 0.0, %v1967
      %v1969 = vpop.f32.mrb[0].mxu0
      %v1970 = vadd.f32 0.0, %v1969
      %1971 = vmatprep.mubr.f32.mxu0 0.0
      %1972 = vmatmul.mubr.f32.gmra.mrb[0].mxu0 %v691
      %v1973 = vpop.f32.mrb[0].mxu0
      %v1974 = vadd.f32 0.0, %v1973
      %v1975 = vpop.f32.mrb[0].mxu0
      %v1976 = vadd.f32 0.0, %v1975
      %1977 = vmatprep.mubr.f32.mxu0 0.0
      %1978 = vmatmul.mubr.f32.gmra.mrb[0].mxu0 %v694
      %v1979 = vpop.f32.mrb[0].mxu0
      %v1980 = vadd.f32 0.0, %v1979
      %v1981 = vpop.f32.mrb[0].mxu0
      %v1982 = vadd.f32 0.0, %v1981
      %1983 = vmatprep.mubr.f32.mxu0 0.0
      %1984 = vmatmul.mubr.f32.gmra.mrb[0].mxu0 %v697
      %v1985 = vpop.f32.mrb[0].mxu0
      %v1986 = vadd.f32 0.0, %v1985
      %v1987 = vpop.f32.mrb[0].mxu0
      %v1988 = vadd.f32 0.0, %v1987
      %1989 = vmatprep.mubr.f32.mxu0 0.0
      %1990 = vmatmul.mubr.f32.gmra.mrb[0].mxu0 %v700
      %v1991 = vpop.f32.mrb[0].mxu0
      %v1992 = vadd.f32 0.0, %v1991
      %v1993 = vpop.f32.mrb[0].mxu0
      %v1994 = vadd.f32 0.0, %v1993
      %1995 = vmatprep.mubr.f32.mxu0 0.0
      %1996 = vmatmul.mubr.f32.gmra.mrb[0].mxu0 %v703
      %v1997 = vpop.f32.mrb[0].mxu0
      %v1998 = vadd.f32 0.0, %v1997
      %v1999 = vpop.f32.mrb[0].mxu0
      %v2000 = vadd.f32 0.0, %v1999
      %2001 = vmatprep.mubr.f32.mxu0 0.0
      %2002 = vmatmul.mubr.f32.gmra.mrb[0].mxu0 %v706
      %v2003 = vpop.f32.mrb[0].mxu0
      %v2004 = vadd.f32 0.0, %v2003
      %v2005 = vpop.f32.mrb[0].mxu0
      %v2006 = vadd.f32 0.0, %v2005
      %2007 = vmatprep.mubr.f32.mxu0 0.0
      %2008 = vmatmul.mubr.f32.gmra.mrb[0].mxu0 %v709
      %v2009 = vpop.f32.mrb[0].mxu0
      %v2010 = vadd.f32 0.0, %v2009
      %v2011 = vpop.f32.mrb[0].mxu0
      %v2012 = vadd.f32 0.0, %v2011
      %2013 = vmatprep.mubr.f32.mxu0 0.0
      %2014 = vmatmul.mubr.f32.gmra.mrb[0].mxu0 %v712
      %v2015 = vpop.f32.mrb[0].mxu0
      %v2016 = vadd.f32 0.0, %v2015
      %v2017 = vpop.f32.mrb[0].mxu0
      %v2018 = vadd.f32 0.0, %v2017
      %2019 = vmatprep.mubr.f32.mxu0 0.0
      %2020 = vmatmul.mubr.f32.gmra.mrb[0].mxu0 %v715
      %v2021 = vpop.f32.mrb[0].mxu0
      %v2022 = vadd.f32 0.0, %v2021
      %v2023 = vpop.f32.mrb[0].mxu0
      %v2024 = vadd.f32 0.0, %v2023
      %2025 = vmatprep.mubr.f32.mxu0 0.0
      %2026 = vmatmul.mubr.f32.gmra.mrb[0].mxu0 %v718
      %v2027 = vpop.f32.mrb[0].mxu0
      %v2028 = vadd.f32 0.0, %v2027
      %v2029 = vpop.f32.mrb[0].mxu0
      %v2030 = vadd.f32 0.0, %v2029
      %2031 = vmatprep.mubr.f32.mxu0 0.0
      %2032 = vmatmul.mubr.f32.gmra.mrb[0].mxu0 %v721
      %v2033 = vpop.f32.mrb[0].mxu0
      %v2034 = vadd.f32 0.0, %v2033
      %v2035 = vpop.f32.mrb[0].mxu0
      %v2036 = vadd.f32 0.0, %v2035
      %2037 = vmatprep.mubr.f32.mxu0 0.0
      %2038 = vmatmul.mubr.f32.gmra.mrb[0].mxu0 %v724
      %v2039 = vpop.f32.mrb[0].mxu0
      %v2040 = vadd.f32 0.0, %v2039
      %v2041 = vpop.f32.mrb[0].mxu0
      %v2042 = vadd.f32 0.0, %v2041
      %2043 = vdwg.mxu0
      %v2044 = vmul.f32 %v1950, %v673
      %v2045 = vmul.f32 %v1952, %v674
      %v2046 = vmul.f32 %v1956, %v675
      %v2047 = vmul.f32 %v1958, %v676
      %v2048 = vadd.f32 %v2044, %v2046
      %v2049 = vrot.slane %v2048, 4
      %v2050 = vadd.f32 %v2048, %v2049
      %v2051 = vrot.slane %v2050, 2
      %v2052 = vadd.f32 %v2050, %v2051
      %v2053 = vrot.slane %v2052, 1
      %v2054 = vadd.f32 %v2052, %v2053
      %v2055 = vadd.f32 %v2045, %v2047
      %v2056 = vrot.slane %v2055, 4
      %v2057 = vadd.f32 %v2055, %v2056
      %v2058 = vrot.slane %v2057, 2
      %v2059 = vadd.f32 %v2057, %v2058
      %v2060 = vrot.slane %v2059, 1
      %v2061 = vadd.f32 %v2059, %v2060
      %v2062 = vmul.f32 %v1962, %v673
      %v2063 = vmul.f32 %v1964, %v674
      %v2064 = vmul.f32 %v1968, %v675
      %v2065 = vmul.f32 %v1970, %v676
      %v2066 = vadd.f32 %v2062, %v2064
      %v2067 = vrot.slane %v2066, 4
      %v2068 = vadd.f32 %v2066, %v2067
      %v2069 = vrot.slane %v2068, 2
      %v2070 = vadd.f32 %v2068, %v2069
      %v2071 = vrot.slane %v2070, 1
      %v2072 = vadd.f32 %v2070, %v2071
      %v2073 = vadd.f32 %v2063, %v2065
      %v2074 = vrot.slane %v2073, 4
      %v2075 = vadd.f32 %v2073, %v2074
      %v2076 = vrot.slane %v2075, 2
      %v2077 = vadd.f32 %v2075, %v2076
      %v2078 = vrot.slane %v2077, 1
      %v2079 = vadd.f32 %v2077, %v2078
      %v2080 = vmul.f32 %v1974, %v673
      %v2081 = vmul.f32 %v1976, %v674
      %v2082 = vmul.f32 %v1980, %v675
      %v2083 = vmul.f32 %v1982, %v676
      %v2084 = vadd.f32 %v2080, %v2082
      %v2085 = vrot.slane %v2084, 4
      %v2086 = vadd.f32 %v2084, %v2085
      %v2087 = vrot.slane %v2086, 2
      %v2088 = vadd.f32 %v2086, %v2087
      %v2089 = vrot.slane %v2088, 1
      %v2090 = vadd.f32 %v2088, %v2089
      %v2091 = vadd.f32 %v2081, %v2083
      %v2092 = vrot.slane %v2091, 4
      %v2093 = vadd.f32 %v2091, %v2092
      %v2094 = vrot.slane %v2093, 2
      %v2095 = vadd.f32 %v2093, %v2094
      %v2096 = vrot.slane %v2095, 1
      %v2097 = vadd.f32 %v2095, %v2096
      %v2098 = vmul.f32 %v1986, %v673
      %v2099 = vmul.f32 %v1988, %v674
      %v2100 = vmul.f32 %v1992, %v675
      %v2101 = vmul.f32 %v1994, %v676
      %v2102 = vadd.f32 %v2098, %v2100
      %v2103 = vrot.slane %v2102, 4
      %v2104 = vadd.f32 %v2102, %v2103
      %v2105 = vrot.slane %v2104, 2
      %v2106 = vadd.f32 %v2104, %v2105
      %v2107 = vrot.slane %v2106, 1
      %v2108 = vadd.f32 %v2106, %v2107
      %v2109 = vadd.f32 %v2099, %v2101
      %v2110 = vrot.slane %v2109, 4
      %v2111 = vadd.f32 %v2109, %v2110
      %v2112 = vrot.slane %v2111, 2
      %v2113 = vadd.f32 %v2111, %v2112
      %v2114 = vrot.slane %v2113, 1
      %v2115 = vadd.f32 %v2113, %v2114
      %v2116 = vmul.f32 %v1998, %v673
      %v2117 = vmul.f32 %v2000, %v674
      %v2118 = vmul.f32 %v2004, %v675
      %v2119 = vmul.f32 %v2006, %v676
      %v2120 = vadd.f32 %v2116, %v2118
      %v2121 = vrot.slane %v2120, 4
      %v2122 = vadd.f32 %v2120, %v2121
      %v2123 = vrot.slane %v2122, 2
      %v2124 = vadd.f32 %v2122, %v2123
      %v2125 = vrot.slane %v2124, 1
      %v2126 = vadd.f32 %v2124, %v2125
      %v2127 = vadd.f32 %v2117, %v2119
      %v2128 = vrot.slane %v2127, 4
      %v2129 = vadd.f32 %v2127, %v2128
      %v2130 = vrot.slane %v2129, 2
      %v2131 = vadd.f32 %v2129, %v2130
      %v2132 = vrot.slane %v2131, 1
      %v2133 = vadd.f32 %v2131, %v2132
      %v2134 = vmul.f32 %v2010, %v673
      %v2135 = vmul.f32 %v2012, %v674
      %v2136 = vmul.f32 %v2016, %v675
      %v2137 = vmul.f32 %v2018, %v676
      %v2138 = vadd.f32 %v2134, %v2136
      %v2139 = vrot.slane %v2138, 4
      %v2140 = vadd.f32 %v2138, %v2139
      %v2141 = vrot.slane %v2140, 2
      %v2142 = vadd.f32 %v2140, %v2141
      %v2143 = vrot.slane %v2142, 1
      %v2144 = vadd.f32 %v2142, %v2143
      %v2145 = vadd.f32 %v2135, %v2137
      %v2146 = vrot.slane %v2145, 4
      %v2147 = vadd.f32 %v2145, %v2146
      %v2148 = vrot.slane %v2147, 2
      %v2149 = vadd.f32 %v2147, %v2148
      %v2150 = vrot.slane %v2149, 1
      %v2151 = vadd.f32 %v2149, %v2150
      %v2152 = vmul.f32 %v2022, %v673
      %v2153 = vmul.f32 %v2024, %v674
      %v2154 = vmul.f32 %v2028, %v675
      %v2155 = vmul.f32 %v2030, %v676
      %v2156 = vadd.f32 %v2152, %v2154
      %v2157 = vrot.slane %v2156, 4
      %v2158 = vadd.f32 %v2156, %v2157
      %v2159 = vrot.slane %v2158, 2
      %v2160 = vadd.f32 %v2158, %v2159
      %v2161 = vrot.slane %v2160, 1
      %v2162 = vadd.f32 %v2160, %v2161
      %v2163 = vadd.f32 %v2153, %v2155
      %v2164 = vrot.slane %v2163, 4
      %v2165 = vadd.f32 %v2163, %v2164
      %v2166 = vrot.slane %v2165, 2
      %v2167 = vadd.f32 %v2165, %v2166
      %v2168 = vrot.slane %v2167, 1
      %v2169 = vadd.f32 %v2167, %v2168
      %v2170 = vmul.f32 %v2034, %v673
      %v2171 = vmul.f32 %v2036, %v674
      %v2172 = vmul.f32 %v2040, %v675
      %v2173 = vmul.f32 %v2042, %v676
      %v2174 = vadd.f32 %v2170, %v2172
      %v2175 = vrot.slane %v2174, 4
      %v2176 = vadd.f32 %v2174, %v2175
      %v2177 = vrot.slane %v2176, 2
      %v2178 = vadd.f32 %v2176, %v2177
      %v2179 = vrot.slane %v2178, 1
      %v2180 = vadd.f32 %v2178, %v2179
      %v2181 = vadd.f32 %v2171, %v2173
      %v2182 = vrot.slane %v2181, 4
      %v2183 = vadd.f32 %v2181, %v2182
      %v2184 = vrot.slane %v2183, 2
      %v2185 = vadd.f32 %v2183, %v2184
      %v2186 = vrot.slane %v2185, 1
      %v2187 = vadd.f32 %v2185, %v2186
      %v2189 = vlaneseq
      %v2190 = vshrl.u32 %v2189, 7
      %v2191 = vsub.s32 0, %v2190
      %v2192 = vrot.slane %v1706, %v2191
      %v2193 = vlaneseq
      %v2194 = vshrl.u32 %v2193, 7
      %v2195 = vsub.s32 2, %v2194
      %v2196 = vrot.slane %v1706, %v2195
      %v2199 = vadd.f32 %v381, %v2192
      %v2200 = vadd.f32 %v382, %v2196
      %v2201 = vmul.f32 %v2199, 0.13333334
      %v2202 = vmul.f32 %v2200, 0.13333334
      %v2203 = vsub.f32 %v2201, 1.0
      %v2204 = vsub.f32 %v2202, 1.0
      %v2205 = vadd.f32 %v2203, 1.0
      %v2206 = vadd.f32 %v2204, 1.0
      %v2207 = vmul.f32 %v2205, 16.0
      %v2208 = vmul.f32 %v2206, 16.0
      %v2209 = vsub.f32 %v2207, 1.0
      %v2210 = vsub.f32 %v2208, 1.0
      %v2211 = vmul.f32 %v2209, 0.5
      %v2212 = vmul.f32 %v2210, 0.5
      %v2213 = vfloor.f32 %v2211
      %v2214 = vfloor.f32 %v2212
      %v2215 = vsub.f32 %v2211, %v2213
      %v2216 = vsub.f32 %v2212, %v2214
      %v2217 = vsub.f32 1.0, %v2215
      %v2218 = vsub.f32 1.0, %v2216
      %v2219 = vmul.f32 %v2217, %v1091
      %v2220 = vmul.f32 %v2218, %v1092
      %vm2221 = vcmp.ge.f32.partialorder %v2213, 0.0
      %vm2222 = vcmp.ge.f32.partialorder %v2214, 0.0
      %vm2223 = vcmp.le.f32.partialorder %v2213, 15.0
      %vm2224 = vcmp.le.f32.partialorder %v2214, 15.0
      %vm2225 = vmand %vm2221, %vm2223
      %vm2226 = vmand %vm2222, %vm2224
      %vm2227 = vmand %vm2225, %vm1101
      %vm2228 = vmand %vm2226, %vm1102
      %vm2229 = vmand %vm2227, %vm1105
      %vm2230 = vmand %vm2228, %vm1106
      %v2231 = vsel %vm2229, 1, 0
      %v2232 = vsel %vm2230, 1, 0
      %v2233 = vcvt.s32.f32 %v2231
      %v2234 = vcvt.s32.f32 %v2232
      %v2235 = vmul.f32 %v2219, %v2233
      %v2236 = vmul.f32 %v2220, %v2234
      %v2237 = vmul.f32 %v2215, %v1091
      %v2238 = vmul.f32 %v2216, %v1092
      %v2239 = vadd.f32 %v2213, 1.0
      %v2240 = vadd.f32 %v2214, 1.0
      %vm2241 = vcmp.ge.f32.partialorder %v2239, 0.0
      %vm2242 = vcmp.ge.f32.partialorder %v2240, 0.0
      %vm2243 = vcmp.le.f32.partialorder %v2239, 15.0
      %vm2244 = vcmp.le.f32.partialorder %v2240, 15.0
      %vm2245 = vmand %vm2241, %vm2243
      %vm2246 = vmand %vm2242, %vm2244
      %vm2247 = vmand %vm2245, %vm1101
      %vm2248 = vmand %vm2246, %vm1102
      %vm2249 = vmand %vm2247, %vm1105
      %vm2250 = vmand %vm2248, %vm1106
      %v2251 = vsel %vm2249, 1, 0
      %v2252 = vsel %vm2250, 1, 0
      %v2253 = vcvt.s32.f32 %v2251
      %v2254 = vcvt.s32.f32 %v2252
      %v2255 = vmul.f32 %v2237, %v2253
      %v2256 = vmul.f32 %v2238, %v2254
      %v2257 = vadd.f32 %v2235, %v2255
      %v2258 = vadd.f32 %v2236, %v2256
      %v2259 = vmul.f32 %v2217, %v1087
      %v2260 = vmul.f32 %v2218, %v1088
      %vm2261 = vmand %vm2225, %vm1141
      %vm2262 = vmand %vm2226, %vm1142
      %vm2263 = vmand %vm2261, %vm1145
      %vm2264 = vmand %vm2262, %vm1146
      %v2265 = vsel %vm2263, 1, 0
      %v2266 = vsel %vm2264, 1, 0
      %v2267 = vcvt.s32.f32 %v2265
      %v2268 = vcvt.s32.f32 %v2266
      %v2269 = vmul.f32 %v2259, %v2267
      %v2270 = vmul.f32 %v2260, %v2268
      %v2271 = vadd.f32 %v2257, %v2269
      %v2272 = vadd.f32 %v2258, %v2270
      %v2273 = vmul.f32 %v2215, %v1087
      %v2274 = vmul.f32 %v2216, %v1088
      %vm2275 = vmand %vm2245, %vm1141
      %vm2276 = vmand %vm2246, %vm1142
      %vm2277 = vmand %vm2275, %vm1145
      %vm2278 = vmand %vm2276, %vm1146
      %v2279 = vsel %vm2277, 1, 0
      %v2280 = vsel %vm2278, 1, 0
      %v2281 = vcvt.s32.f32 %v2279
      %v2282 = vcvt.s32.f32 %v2280
      %v2283 = vmul.f32 %v2273, %v2281
      %v2284 = vmul.f32 %v2274, %v2282
      %v2285 = vadd.f32 %v2271, %v2283
      %v2286 = vadd.f32 %v2272, %v2284
      %vm2287 = vcmp.ge.f32.partialorder %v2285, 0.999
      %vm2288 = vcmp.ge.f32.partialorder %v2286, 0.999
      %v2289 = vsel %vm2287, 1, 0
      %v2290 = vsel %vm2288, 1, 0
      %v2291 = vcvt.s32.f32 %v2289
      %v2292 = vcvt.s32.f32 %v2290
      %v2293 = vmax.f32 %v2211, 0.0
      %v2294 = vmax.f32 %v2212, 0.0
      %v2295 = vmin.f32 %v2293, 15.0
      %v2296 = vmin.f32 %v2294, 15.0
      %v2297 = vfloor.f32 %v2295
      %v2298 = vfloor.f32 %v2296
      %v2299 = vsub.f32 %v2295, %v2297
      %v2300 = vsub.f32 %v2296, %v2298
      %v2301 = vcvt.f32.s32.to.zero.pseudo %v2297
      %v2302 = vcvt.f32.s32.to.zero.pseudo %v2298
      %v2303 = vadd.s32 %v2301, 1
      %v2304 = vadd.s32 %v2302, 1
      %vm2305 = vcmp.lt.s32.totalorder %v2303, 15
      %v2306 = vsel %vm2305, %v2303, 15
      %vm2307 = vcmp.lt.s32.totalorder %v2304, 15
      %v2308 = vsel %vm2307, %v2304, 15
      %v2309 = vlaneseq
      %v2310 = vshrl.u32 %v2309, 7
      %v2311 = vsub.s32 0, %v2310
      %v2312 = vrot.slane %v2301, %v2311
      %v2313 = vlaneseq
      %v2314 = vshrl.u32 %v2313, 7
      %v2315 = vsub.s32 0, %v2314
      %v2316 = vrot.slane %v2302, %v2315
      %vm2317 = vcmp.eq.s32.totalorder %v384, %v2312
      %vm2318 = vcmp.eq.s32.totalorder %v384, %v2316
      %vm2319 = vcmp.eq.s32.totalorder %v385, %v2312
      %vm2320 = vcmp.eq.s32.totalorder %v385, %v2316
      %v2321 = vsub.f32 1.0, %v2299
      %v2322 = vsub.f32 1.0, %v2300
      %v2323 = vlaneseq
      %v2324 = vshrl.u32 %v2323, 7
      %v2325 = vsub.s32 0, %v2324
      %v2326 = vrot.slane %v2321, %v2325
      %v2327 = vlaneseq
      %v2328 = vshrl.u32 %v2327, 7
      %v2329 = vsub.s32 0, %v2328
      %v2330 = vrot.slane %v2322, %v2329
      %v2331 = vsel %vm2317, %v2326, 0.0
      %v2332 = vsel %vm2318, %v2330, 0.0
      %v2333 = vsel %vm2319, %v2326, 0.0
      %v2334 = vsel %vm2320, %v2330, 0.0
      %v2335 = vlaneseq
      %v2336 = vshrl.u32 %v2335, 7
      %v2337 = vsub.s32 0, %v2336
      %v2338 = vrot.slane %v2306, %v2337
      %v2339 = vlaneseq
      %v2340 = vshrl.u32 %v2339, 7
      %v2341 = vsub.s32 0, %v2340
      %v2342 = vrot.slane %v2308, %v2341
      %vm2343 = vcmp.eq.s32.totalorder %v384, %v2338
      %vm2344 = vcmp.eq.s32.totalorder %v384, %v2342
      %vm2345 = vcmp.eq.s32.totalorder %v385, %v2338
      %vm2346 = vcmp.eq.s32.totalorder %v385, %v2342
      %v2347 = vlaneseq
      %v2348 = vshrl.u32 %v2347, 7
      %v2349 = vsub.s32 0, %v2348
      %v2350 = vrot.slane %v2299, %v2349
      %v2351 = vlaneseq
      %v2352 = vshrl.u32 %v2351, 7
      %v2353 = vsub.s32 0, %v2352
      %v2354 = vrot.slane %v2300, %v2353
      %v2355 = vsel %vm2343, %v2350, 0.0
      %v2356 = vsel %vm2344, %v2354, 0.0
      %v2357 = vsel %vm2345, %v2350, 0.0
      %v2358 = vsel %vm2346, %v2354, 0.0
      %v2359 = vadd.f32 %v2331, %v2355
      %v2360 = vadd.f32 %v2332, %v2356
      %v2361 = vadd.f32 %v2333, %v2357
      %v2362 = vadd.f32 %v2334, %v2358
      %2363 = vmatprep.subr.mxu0 %v2360
      %2364 = vmatpush1.msra.mxu0 %v2359
      %2365 = vmatprep.subr.mxu0 %v2362
      %2366 = vmatpush1.msra.mxu0 %v2361
      %2367 = vmatprep.subr.mxu0 0.0
      %2368 = vmatpush1.msra.mxu0 0.0
      %2369 = vmatprep.subr.mxu0 0.0
      %2370 = vmatpush1.msra.mxu0 0.0
      %2371 = vmatprep.subr.mxu0 0.0
      %2372 = vmatpush1.msra.mxu0 0.0
      %2373 = vmatprep.subr.mxu0 0.0
      %2374 = vmatpush1.msra.mxu0 0.0
      %2375 = vmatprep.subr.mxu0 0.0
      %2376 = vmatpush1.msra.mxu0 0.0
      %2377 = vmatprep.subr.mxu0 0.0
      %2378 = vmatpush1.msra.mxu0 0.0
      %2379 = vmatprep.subr.mxu0 0.0
      %2380 = vmatpush1.msra.mxu0 0.0
      %2381 = vmatprep.subr.mxu0 0.0
      %2382 = vmatpush1.msra.mxu0 0.0
      %2383 = vmatprep.subr.mxu0 0.0
      %2384 = vmatpush1.msra.mxu0 0.0
      %2385 = vmatprep.subr.mxu0 0.0
      %2386 = vmatpush1.msra.mxu0 0.0
      %2387 = vmatprep.subr.mxu0 0.0
      %2388 = vmatpush1.msra.mxu0 0.0
      %2389 = vmatprep.subr.mxu0 0.0
      %2390 = vmatpush1.msra.mxu0 0.0
      %2391 = vmatprep.subr.mxu0 0.0
      %2392 = vmatpush1.msra.mxu0 0.0
      %2393 = vmatprep.subr.mxu0 0.0
      %2394 = vmatpush1.msra.mxu0 0.0
      %2395 = vmatprep.subr.mxu0 0.0
      %2396 = vmatpush1.msra.mxu0 0.0
      %2397 = vmatprep.subr.mxu0 0.0
      %2398 = vmatpush1.msra.mxu0 0.0
      %2399 = vmatprep.subr.mxu0 0.0
      %2400 = vmatpush1.msra.mxu0 0.0
      %2401 = vmatprep.subr.mxu0 0.0
      %2402 = vmatpush1.msra.mxu0 0.0
      %2403 = vmatprep.subr.mxu0 0.0
      %2404 = vmatpush1.msra.mxu0 0.0
      %2405 = vmatprep.subr.mxu0 0.0
      %2406 = vmatpush1.msra.mxu0 0.0
      %2407 = vmatprep.subr.mxu0 0.0
      %2408 = vmatpush1.msra.mxu0 0.0
      %2409 = vmatprep.subr.mxu0 0.0
      %2410 = vmatpush1.msra.mxu0 0.0
      %2411 = vmatprep.subr.mxu0 0.0
      %2412 = vmatpush1.msra.mxu0 0.0
      %2413 = vmatprep.subr.mxu0 0.0
      %2414 = vmatpush1.msra.mxu0 0.0
      %2415 = vmatprep.subr.mxu0 0.0
      %2416 = vmatpush1.msra.mxu0 0.0
      %2417 = vmatprep.subr.mxu0 0.0
      %2418 = vmatpush1.msra.mxu0 0.0
      %2419 = vmatprep.subr.mxu0 0.0
      %2420 = vmatpush1.msra.mxu0 0.0
      %2421 = vmatprep.subr.mxu0 0.0
      %2422 = vmatpush1.msra.mxu0 0.0
      %2423 = vmatprep.subr.mxu0 0.0
      %2424 = vmatpush1.msra.mxu0 0.0
      %2425 = vmatprep.subr.mxu0 0.0
      %2426 = vmatpush1.msra.mxu0 0.0
      %2427 = vmatprep.mubr.f32.mxu0 0.0
      %2428 = vmatmul.mubr.f32.gmra.mrb[0].mxu0 %v1318
      %v2429 = vpop.f32.mrb[0].mxu0
      %v2430 = vadd.f32 0.0, %v2429
      %v2431 = vpop.f32.mrb[0].mxu0
      %v2432 = vadd.f32 0.0, %v2431
      %2433 = vmatprep.mubr.f32.mxu0 0.0
      %2434 = vmatmul.mubr.f32.gmra.mrb[0].mxu0 %v1321
      %v2435 = vpop.f32.mrb[0].mxu0
      %v2436 = vadd.f32 0.0, %v2435
      %v2437 = vpop.f32.mrb[0].mxu0
      %v2438 = vadd.f32 0.0, %v2437
      %2439 = vmatprep.mubr.f32.mxu0 0.0
      %2440 = vmatmul.mubr.f32.gmra.mrb[0].mxu0 %v1324
      %v2441 = vpop.f32.mrb[0].mxu0
      %v2442 = vadd.f32 0.0, %v2441
      %v2443 = vpop.f32.mrb[0].mxu0
      %v2444 = vadd.f32 0.0, %v2443
      %2445 = vmatprep.mubr.f32.mxu0 0.0
      %2446 = vmatmul.mubr.f32.gmra.mrb[0].mxu0 %v1327
      %v2447 = vpop.f32.mrb[0].mxu0
      %v2448 = vadd.f32 0.0, %v2447
      %v2449 = vpop.f32.mrb[0].mxu0
      %v2450 = vadd.f32 0.0, %v2449
      %2451 = vmatprep.mubr.f32.mxu0 0.0
      %2452 = vmatmul.mubr.f32.gmra.mrb[0].mxu0 %v1330
      %v2453 = vpop.f32.mrb[0].mxu0
      %v2454 = vadd.f32 0.0, %v2453
      %v2455 = vpop.f32.mrb[0].mxu0
      %v2456 = vadd.f32 0.0, %v2455
      %2457 = vmatprep.mubr.f32.mxu0 0.0
      %2458 = vmatmul.mubr.f32.gmra.mrb[0].mxu0 %v1333
      %v2459 = vpop.f32.mrb[0].mxu0
      %v2460 = vadd.f32 0.0, %v2459
      %v2461 = vpop.f32.mrb[0].mxu0
      %v2462 = vadd.f32 0.0, %v2461
      %2463 = vmatprep.mubr.f32.mxu0 0.0
      %2464 = vmatmul.mubr.f32.gmra.mrb[0].mxu0 %v1336
      %v2465 = vpop.f32.mrb[0].mxu0
      %v2466 = vadd.f32 0.0, %v2465
      %v2467 = vpop.f32.mrb[0].mxu0
      %v2468 = vadd.f32 0.0, %v2467
      %2469 = vmatprep.mubr.f32.mxu0 0.0
      %2470 = vmatmul.mubr.f32.gmra.mrb[0].mxu0 %v1339
      %v2471 = vpop.f32.mrb[0].mxu0
      %v2472 = vadd.f32 0.0, %v2471
      %v2473 = vpop.f32.mrb[0].mxu0
      %v2474 = vadd.f32 0.0, %v2473
      %2475 = vmatprep.mubr.f32.mxu0 0.0
      %2476 = vmatmul.mubr.f32.gmra.mrb[0].mxu0 %v1342
      %v2477 = vpop.f32.mrb[0].mxu0
      %v2478 = vadd.f32 0.0, %v2477
      %v2479 = vpop.f32.mrb[0].mxu0
      %v2480 = vadd.f32 0.0, %v2479
      %2481 = vmatprep.mubr.f32.mxu0 0.0
      %2482 = vmatmul.mubr.f32.gmra.mrb[0].mxu0 %v1345
      %v2483 = vpop.f32.mrb[0].mxu0
      %v2484 = vadd.f32 0.0, %v2483
      %v2485 = vpop.f32.mrb[0].mxu0
      %v2486 = vadd.f32 0.0, %v2485
      %2487 = vmatprep.mubr.f32.mxu0 0.0
      %2488 = vmatmul.mubr.f32.gmra.mrb[0].mxu0 %v1348
      %v2489 = vpop.f32.mrb[0].mxu0
      %v2490 = vadd.f32 0.0, %v2489
      %v2491 = vpop.f32.mrb[0].mxu0
      %v2492 = vadd.f32 0.0, %v2491
      %2493 = vmatprep.mubr.f32.mxu0 0.0
      %2494 = vmatmul.mubr.f32.gmra.mrb[0].mxu0 %v1351
      %v2495 = vpop.f32.mrb[0].mxu0
      %v2496 = vadd.f32 0.0, %v2495
      %v2497 = vpop.f32.mrb[0].mxu0
      %v2498 = vadd.f32 0.0, %v2497
      %2499 = vmatprep.mubr.f32.mxu0 0.0
      %2500 = vmatmul.mubr.f32.gmra.mrb[0].mxu0 %v1354
      %v2501 = vpop.f32.mrb[0].mxu0
      %v2502 = vadd.f32 0.0, %v2501
      %v2503 = vpop.f32.mrb[0].mxu0
      %v2504 = vadd.f32 0.0, %v2503
      %2505 = vmatprep.mubr.f32.mxu0 0.0
      %2506 = vmatmul.mubr.f32.gmra.mrb[0].mxu0 %v1357
      %v2507 = vpop.f32.mrb[0].mxu0
      %v2508 = vadd.f32 0.0, %v2507
      %v2509 = vpop.f32.mrb[0].mxu0
      %v2510 = vadd.f32 0.0, %v2509
      %2511 = vmatprep.mubr.f32.mxu0 0.0
      %2512 = vmatmul.mubr.f32.gmra.mrb[0].mxu0 %v1360
      %v2513 = vpop.f32.mrb[0].mxu0
      %v2514 = vadd.f32 0.0, %v2513
      %v2515 = vpop.f32.mrb[0].mxu0
      %v2516 = vadd.f32 0.0, %v2515
      %2517 = vmatprep.mubr.f32.mxu0 0.0
      %2518 = vmatmul.mubr.f32.gmra.mrb[0].mxu0 %v1363
      %v2519 = vpop.f32.mrb[0].mxu0
      %v2520 = vadd.f32 0.0, %v2519
      %v2521 = vpop.f32.mrb[0].mxu0
      %v2522 = vadd.f32 0.0, %v2521
      %2523 = vdwg.mxu0
      %v2524 = vmul.f32 %v2430, %v1313
      %v2525 = vmul.f32 %v2432, %v1314
      %v2526 = vmul.f32 %v2436, %v1315
      %v2527 = vmul.f32 %v2438, %v1316
      %v2528 = vadd.f32 %v2524, %v2526
      %v2529 = vrot.slane %v2528, 4
      %v2530 = vadd.f32 %v2528, %v2529
      %v2531 = vrot.slane %v2530, 2
      %v2532 = vadd.f32 %v2530, %v2531
      %v2533 = vrot.slane %v2532, 1
      %v2534 = vadd.f32 %v2532, %v2533
      %v2535 = vadd.f32 %v2525, %v2527
      %v2536 = vrot.slane %v2535, 4
      %v2537 = vadd.f32 %v2535, %v2536
      %v2538 = vrot.slane %v2537, 2
      %v2539 = vadd.f32 %v2537, %v2538
      %v2540 = vrot.slane %v2539, 1
      %v2541 = vadd.f32 %v2539, %v2540
      %v2542 = vmul.f32 %v2054, %v2534
      %v2543 = vmul.f32 %v2061, %v2541
      %v2544 = vadd.f32 %v2542, 0.0
      %v2545 = vadd.f32 %v2543, 0.0
      %v2546 = vmul.f32 %v2442, %v1313
      %v2547 = vmul.f32 %v2444, %v1314
      %v2548 = vmul.f32 %v2448, %v1315
      %v2549 = vmul.f32 %v2450, %v1316
      %v2550 = vadd.f32 %v2546, %v2548
      %v2551 = vrot.slane %v2550, 4
      %v2552 = vadd.f32 %v2550, %v2551
      %v2553 = vrot.slane %v2552, 2
      %v2554 = vadd.f32 %v2552, %v2553
      %v2555 = vrot.slane %v2554, 1
      %v2556 = vadd.f32 %v2554, %v2555
      %v2557 = vadd.f32 %v2547, %v2549
      %v2558 = vrot.slane %v2557, 4
      %v2559 = vadd.f32 %v2557, %v2558
      %v2560 = vrot.slane %v2559, 2
      %v2561 = vadd.f32 %v2559, %v2560
      %v2562 = vrot.slane %v2561, 1
      %v2563 = vadd.f32 %v2561, %v2562
      %v2564 = vmul.f32 %v2072, %v2556
      %v2565 = vmul.f32 %v2079, %v2563
      %v2566 = vadd.f32 %v2544, %v2564
      %v2567 = vadd.f32 %v2545, %v2565
      %v2568 = vmul.f32 %v2454, %v1313
      %v2569 = vmul.f32 %v2456, %v1314
      %v2570 = vmul.f32 %v2460, %v1315
      %v2571 = vmul.f32 %v2462, %v1316
      %v2572 = vadd.f32 %v2568, %v2570
      %v2573 = vrot.slane %v2572, 4
      %v2574 = vadd.f32 %v2572, %v2573
      %v2575 = vrot.slane %v2574, 2
      %v2576 = vadd.f32 %v2574, %v2575
      %v2577 = vrot.slane %v2576, 1
      %v2578 = vadd.f32 %v2576, %v2577
      %v2579 = vadd.f32 %v2569, %v2571
      %v2580 = vrot.slane %v2579, 4
      %v2581 = vadd.f32 %v2579, %v2580
      %v2582 = vrot.slane %v2581, 2
      %v2583 = vadd.f32 %v2581, %v2582
      %v2584 = vrot.slane %v2583, 1
      %v2585 = vadd.f32 %v2583, %v2584
      %v2586 = vmul.f32 %v2090, %v2578
      %v2587 = vmul.f32 %v2097, %v2585
      %v2588 = vadd.f32 %v2566, %v2586
      %v2589 = vadd.f32 %v2567, %v2587
      %v2590 = vmul.f32 %v2466, %v1313
      %v2591 = vmul.f32 %v2468, %v1314
      %v2592 = vmul.f32 %v2472, %v1315
      %v2593 = vmul.f32 %v2474, %v1316
      %v2594 = vadd.f32 %v2590, %v2592
      %v2595 = vrot.slane %v2594, 4
      %v2596 = vadd.f32 %v2594, %v2595
      %v2597 = vrot.slane %v2596, 2
      %v2598 = vadd.f32 %v2596, %v2597
      %v2599 = vrot.slane %v2598, 1
      %v2600 = vadd.f32 %v2598, %v2599
      %v2601 = vadd.f32 %v2591, %v2593
      %v2602 = vrot.slane %v2601, 4
      %v2603 = vadd.f32 %v2601, %v2602
      %v2604 = vrot.slane %v2603, 2
      %v2605 = vadd.f32 %v2603, %v2604
      %v2606 = vrot.slane %v2605, 1
      %v2607 = vadd.f32 %v2605, %v2606
      %v2608 = vmul.f32 %v2108, %v2600
      %v2609 = vmul.f32 %v2115, %v2607
      %v2610 = vadd.f32 %v2588, %v2608
      %v2611 = vadd.f32 %v2589, %v2609
      %v2612 = vmul.f32 %v2478, %v1313
      %v2613 = vmul.f32 %v2480, %v1314
      %v2614 = vmul.f32 %v2484, %v1315
      %v2615 = vmul.f32 %v2486, %v1316
      %v2616 = vadd.f32 %v2612, %v2614
      %v2617 = vrot.slane %v2616, 4
      %v2618 = vadd.f32 %v2616, %v2617
      %v2619 = vrot.slane %v2618, 2
      %v2620 = vadd.f32 %v2618, %v2619
      %v2621 = vrot.slane %v2620, 1
      %v2622 = vadd.f32 %v2620, %v2621
      %v2623 = vadd.f32 %v2613, %v2615
      %v2624 = vrot.slane %v2623, 4
      %v2625 = vadd.f32 %v2623, %v2624
      %v2626 = vrot.slane %v2625, 2
      %v2627 = vadd.f32 %v2625, %v2626
      %v2628 = vrot.slane %v2627, 1
      %v2629 = vadd.f32 %v2627, %v2628
      %v2630 = vmul.f32 %v2126, %v2622
      %v2631 = vmul.f32 %v2133, %v2629
      %v2632 = vadd.f32 %v2610, %v2630
      %v2633 = vadd.f32 %v2611, %v2631
      %v2634 = vmul.f32 %v2490, %v1313
      %v2635 = vmul.f32 %v2492, %v1314
      %v2636 = vmul.f32 %v2496, %v1315
      %v2637 = vmul.f32 %v2498, %v1316
      %v2638 = vadd.f32 %v2634, %v2636
      %v2639 = vrot.slane %v2638, 4
      %v2640 = vadd.f32 %v2638, %v2639
      %v2641 = vrot.slane %v2640, 2
      %v2642 = vadd.f32 %v2640, %v2641
      %v2643 = vrot.slane %v2642, 1
      %v2644 = vadd.f32 %v2642, %v2643
      %v2645 = vadd.f32 %v2635, %v2637
      %v2646 = vrot.slane %v2645, 4
      %v2647 = vadd.f32 %v2645, %v2646
      %v2648 = vrot.slane %v2647, 2
      %v2649 = vadd.f32 %v2647, %v2648
      %v2650 = vrot.slane %v2649, 1
      %v2651 = vadd.f32 %v2649, %v2650
      %v2652 = vmul.f32 %v2144, %v2644
      %v2653 = vmul.f32 %v2151, %v2651
      %v2654 = vadd.f32 %v2632, %v2652
      %v2655 = vadd.f32 %v2633, %v2653
      %v2656 = vmul.f32 %v2502, %v1313
      %v2657 = vmul.f32 %v2504, %v1314
      %v2658 = vmul.f32 %v2508, %v1315
      %v2659 = vmul.f32 %v2510, %v1316
      %v2660 = vadd.f32 %v2656, %v2658
      %v2661 = vrot.slane %v2660, 4
      %v2662 = vadd.f32 %v2660, %v2661
      %v2663 = vrot.slane %v2662, 2
      %v2664 = vadd.f32 %v2662, %v2663
      %v2665 = vrot.slane %v2664, 1
      %v2666 = vadd.f32 %v2664, %v2665
      %v2667 = vadd.f32 %v2657, %v2659
      %v2668 = vrot.slane %v2667, 4
      %v2669 = vadd.f32 %v2667, %v2668
      %v2670 = vrot.slane %v2669, 2
      %v2671 = vadd.f32 %v2669, %v2670
      %v2672 = vrot.slane %v2671, 1
      %v2673 = vadd.f32 %v2671, %v2672
      %v2674 = vmul.f32 %v2162, %v2666
      %v2675 = vmul.f32 %v2169, %v2673
      %v2676 = vadd.f32 %v2654, %v2674
      %v2677 = vadd.f32 %v2655, %v2675
      %v2678 = vmul.f32 %v2514, %v1313
      %v2679 = vmul.f32 %v2516, %v1314
      %v2680 = vmul.f32 %v2520, %v1315
      %v2681 = vmul.f32 %v2522, %v1316
      %v2682 = vadd.f32 %v2678, %v2680
      %v2683 = vrot.slane %v2682, 4
      %v2684 = vadd.f32 %v2682, %v2683
      %v2685 = vrot.slane %v2684, 2
      %v2686 = vadd.f32 %v2684, %v2685
      %v2687 = vrot.slane %v2686, 1
      %v2688 = vadd.f32 %v2686, %v2687
      %v2689 = vadd.f32 %v2679, %v2681
      %v2690 = vrot.slane %v2689, 4
      %v2691 = vadd.f32 %v2689, %v2690
      %v2692 = vrot.slane %v2691, 2
      %v2693 = vadd.f32 %v2691, %v2692
      %v2694 = vrot.slane %v2693, 1
      %v2695 = vadd.f32 %v2693, %v2694
      %v2696 = vmul.f32 %v2180, %v2688
      %v2697 = vmul.f32 %v2187, %v2695
      %v2698 = vadd.f32 %v2676, %v2696
      %v2699 = vadd.f32 %v2677, %v2697
      %v2700 = vmul.f32 %v1811, %v2291
      %v2701 = vmul.f32 %v1812, %v2292
      %v2702 = vmul.f32 %v2698, %v2700
      %v2703 = vmul.f32 %v2699, %v2701
      %v2704 = vadd.f32 %v367, 0.0
      %v2705 = vmul.f32 %v2704, -1.0
      %v2707 = vlaneseq
      %v2708 = vshrl.u32 %v2707, 7
      %v2709 = vsub.s32 0, %v2708
      %v2710 = vrot.slane %v2705, %v2709
      %v2711 = vlaneseq
      %v2712 = vshrl.u32 %v2711, 7
      %v2713 = vsub.s32 2, %v2712
      %v2714 = vrot.slane %v2705, %v2713
      %v2717 = vadd.f32 %v381, %v2710
      %v2718 = vadd.f32 %v382, %v2714
      %v2719 = vmul.f32 %v2717, 0.13333334
      %v2720 = vmul.f32 %v2718, 0.13333334
      %v2721 = vsub.f32 %v2719, 1.0
      %v2722 = vsub.f32 %v2720, 1.0
      %v2723 = vadd.f32 %v2721, 1.0
      %v2724 = vadd.f32 %v2722, 1.0
      %v2725 = vmul.f32 %v2723, 16.0
      %v2726 = vmul.f32 %v2724, 16.0
      %v2727 = vsub.f32 %v2725, 1.0
      %v2728 = vsub.f32 %v2726, 1.0
      %v2729 = vmul.f32 %v2727, 0.5
      %v2730 = vmul.f32 %v2728, 0.5
      %v2731 = vfloor.f32 %v2729
      %v2732 = vfloor.f32 %v2730
      %v2733 = vsub.f32 %v2729, %v2731
      %v2734 = vsub.f32 %v2730, %v2732
      %v2735 = vsub.f32 1.0, %v2733
      %v2736 = vsub.f32 1.0, %v2734
      %v2737 = vmul.f32 %v2735, %v451
      %v2738 = vmul.f32 %v2736, %v452
      %vm2739 = vcmp.ge.f32.partialorder %v2731, 0.0
      %vm2740 = vcmp.ge.f32.partialorder %v2732, 0.0
      %vm2741 = vcmp.le.f32.partialorder %v2731, 15.0
      %vm2742 = vcmp.le.f32.partialorder %v2732, 15.0
      %vm2743 = vmand %vm2739, %vm2741
      %vm2744 = vmand %vm2740, %vm2742
      %vm2745 = vmand %vm2743, %vm461
      %vm2746 = vmand %vm2744, %vm462
      %vm2747 = vmand %vm2745, %vm465
      %vm2748 = vmand %vm2746, %vm466
      %v2749 = vsel %vm2747, 1, 0
      %v2750 = vsel %vm2748, 1, 0
      %v2751 = vcvt.s32.f32 %v2749
      %v2752 = vcvt.s32.f32 %v2750
      %v2753 = vmul.f32 %v2737, %v2751
      %v2754 = vmul.f32 %v2738, %v2752
      %v2755 = vmul.f32 %v2733, %v451
      %v2756 = vmul.f32 %v2734, %v452
      %v2757 = vadd.f32 %v2731, 1.0
      %v2758 = vadd.f32 %v2732, 1.0
      %vm2759 = vcmp.ge.f32.partialorder %v2757, 0.0
      %vm2760 = vcmp.ge.f32.partialorder %v2758, 0.0
      %vm2761 = vcmp.le.f32.partialorder %v2757, 15.0
      %vm2762 = vcmp.le.f32.partialorder %v2758, 15.0
      %vm2763 = vmand %vm2759, %vm2761
      %vm2764 = vmand %vm2760, %vm2762
      %vm2765 = vmand %vm2763, %vm461
      %vm2766 = vmand %vm2764, %vm462
      %vm2767 = vmand %vm2765, %vm465
      %vm2768 = vmand %vm2766, %vm466
      %v2769 = vsel %vm2767, 1, 0
      %v2770 = vsel %vm2768, 1, 0
      %v2771 = vcvt.s32.f32 %v2769
      %v2772 = vcvt.s32.f32 %v2770
      %v2773 = vmul.f32 %v2755, %v2771
      %v2774 = vmul.f32 %v2756, %v2772
      %v2775 = vadd.f32 %v2753, %v2773
      %v2776 = vadd.f32 %v2754, %v2774
      %v2777 = vmul.f32 %v2735, %v447
      %v2778 = vmul.f32 %v2736, %v448
      %vm2779 = vmand %vm2743, %vm501
      %vm2780 = vmand %vm2744, %vm502
      %vm2781 = vmand %vm2779, %vm505
      %vm2782 = vmand %vm2780, %vm506
      %v2783 = vsel %vm2781, 1, 0
      %v2784 = vsel %vm2782, 1, 0
      %v2785 = vcvt.s32.f32 %v2783
      %v2786 = vcvt.s32.f32 %v2784
      %v2787 = vmul.f32 %v2777, %v2785
      %v2788 = vmul.f32 %v2778, %v2786
      %v2789 = vadd.f32 %v2775, %v2787
      %v2790 = vadd.f32 %v2776, %v2788
      %v2791 = vmul.f32 %v2733, %v447
      %v2792 = vmul.f32 %v2734, %v448
      %vm2793 = vmand %vm2763, %vm501
      %vm2794 = vmand %vm2764, %vm502
      %vm2795 = vmand %vm2793, %vm505
      %vm2796 = vmand %vm2794, %vm506
      %v2797 = vsel %vm2795, 1, 0
      %v2798 = vsel %vm2796, 1, 0
      %v2799 = vcvt.s32.f32 %v2797
      %v2800 = vcvt.s32.f32 %v2798
      %v2801 = vmul.f32 %v2791, %v2799
      %v2802 = vmul.f32 %v2792, %v2800
      %v2803 = vadd.f32 %v2789, %v2801
      %v2804 = vadd.f32 %v2790, %v2802
      %vm2805 = vcmp.ge.f32.partialorder %v2803, 0.999
      %vm2806 = vcmp.ge.f32.partialorder %v2804, 0.999
      %v2807 = vsel %vm2805, 1, 0
      %v2808 = vsel %vm2806, 1, 0
      %v2809 = vcvt.s32.f32 %v2807
      %v2810 = vcvt.s32.f32 %v2808
      %v2811 = vmax.f32 %v2729, 0.0
      %v2812 = vmax.f32 %v2730, 0.0
      %v2813 = vmin.f32 %v2811, 15.0
      %v2814 = vmin.f32 %v2812, 15.0
      %v2815 = vfloor.f32 %v2813
      %v2816 = vfloor.f32 %v2814
      %v2817 = vsub.f32 %v2813, %v2815
      %v2818 = vsub.f32 %v2814, %v2816
      %v2819 = vcvt.f32.s32.to.zero.pseudo %v2815
      %v2820 = vcvt.f32.s32.to.zero.pseudo %v2816
      %v2821 = vadd.s32 %v2819, 1
      %v2822 = vadd.s32 %v2820, 1
      %vm2823 = vcmp.lt.s32.totalorder %v2821, 15
      %v2824 = vsel %vm2823, %v2821, 15
      %vm2825 = vcmp.lt.s32.totalorder %v2822, 15
      %v2826 = vsel %vm2825, %v2822, 15
      %v2827 = vlaneseq
      %v2828 = vshrl.u32 %v2827, 7
      %v2829 = vsub.s32 0, %v2828
      %v2830 = vrot.slane %v2819, %v2829
      %v2831 = vlaneseq
      %v2832 = vshrl.u32 %v2831, 7
      %v2833 = vsub.s32 0, %v2832
      %v2834 = vrot.slane %v2820, %v2833
      %vm2835 = vcmp.eq.s32.totalorder %v384, %v2830
      %vm2836 = vcmp.eq.s32.totalorder %v384, %v2834
      %vm2837 = vcmp.eq.s32.totalorder %v385, %v2830
      %vm2838 = vcmp.eq.s32.totalorder %v385, %v2834
      %v2839 = vsub.f32 1.0, %v2817
      %v2840 = vsub.f32 1.0, %v2818
      %v2841 = vlaneseq
      %v2842 = vshrl.u32 %v2841, 7
      %v2843 = vsub.s32 0, %v2842
      %v2844 = vrot.slane %v2839, %v2843
      %v2845 = vlaneseq
      %v2846 = vshrl.u32 %v2845, 7
      %v2847 = vsub.s32 0, %v2846
      %v2848 = vrot.slane %v2840, %v2847
      %v2849 = vsel %vm2835, %v2844, 0.0
      %v2850 = vsel %vm2836, %v2848, 0.0
      %v2851 = vsel %vm2837, %v2844, 0.0
      %v2852 = vsel %vm2838, %v2848, 0.0
      %v2853 = vlaneseq
      %v2854 = vshrl.u32 %v2853, 7
      %v2855 = vsub.s32 0, %v2854
      %v2856 = vrot.slane %v2824, %v2855
      %v2857 = vlaneseq
      %v2858 = vshrl.u32 %v2857, 7
      %v2859 = vsub.s32 0, %v2858
      %v2860 = vrot.slane %v2826, %v2859
      %vm2861 = vcmp.eq.s32.totalorder %v384, %v2856
      %vm2862 = vcmp.eq.s32.totalorder %v384, %v2860
      %vm2863 = vcmp.eq.s32.totalorder %v385, %v2856
      %vm2864 = vcmp.eq.s32.totalorder %v385, %v2860
      %v2865 = vlaneseq
      %v2866 = vshrl.u32 %v2865, 7
      %v2867 = vsub.s32 0, %v2866
      %v2868 = vrot.slane %v2817, %v2867
      %v2869 = vlaneseq
      %v2870 = vshrl.u32 %v2869, 7
      %v2871 = vsub.s32 0, %v2870
      %v2872 = vrot.slane %v2818, %v2871
      %v2873 = vsel %vm2861, %v2868, 0.0
      %v2874 = vsel %vm2862, %v2872, 0.0
      %v2875 = vsel %vm2863, %v2868, 0.0
      %v2876 = vsel %vm2864, %v2872, 0.0
      %v2877 = vadd.f32 %v2849, %v2873
      %v2878 = vadd.f32 %v2850, %v2874
      %v2879 = vadd.f32 %v2851, %v2875
      %v2880 = vadd.f32 %v2852, %v2876
      %2881 = vmatprep.subr.mxu0 %v2878
      %2882 = vmatpush1.msra.mxu0 %v2877
      %2883 = vmatprep.subr.mxu0 %v2880
      %2884 = vmatpush1.msra.mxu0 %v2879
      %2885 = vmatprep.subr.mxu0 0.0
      %2886 = vmatpush1.msra.mxu0 0.0
      %2887 = vmatprep.subr.mxu0 0.0
      %2888 = vmatpush1.msra.mxu0 0.0
      %2889 = vmatprep.subr.mxu0 0.0
      %2890 = vmatpush1.msra.mxu0 0.0
      %2891 = vmatprep.subr.mxu0 0.0
      %2892 = vmatpush1.msra.mxu0 0.0
      %2893 = vmatprep.subr.mxu0 0.0
      %2894 = vmatpush1.msra.mxu0 0.0
      %2895 = vmatprep.subr.mxu0 0.0
      %2896 = vmatpush1.msra.mxu0 0.0
      %2897 = vmatprep.subr.mxu0 0.0
      %2898 = vmatpush1.msra.mxu0 0.0
      %2899 = vmatprep.subr.mxu0 0.0
      %2900 = vmatpush1.msra.mxu0 0.0
      %2901 = vmatprep.subr.mxu0 0.0
      %2902 = vmatpush1.msra.mxu0 0.0
      %2903 = vmatprep.subr.mxu0 0.0
      %2904 = vmatpush1.msra.mxu0 0.0
      %2905 = vmatprep.subr.mxu0 0.0
      %2906 = vmatpush1.msra.mxu0 0.0
      %2907 = vmatprep.subr.mxu0 0.0
      %2908 = vmatpush1.msra.mxu0 0.0
      %2909 = vmatprep.subr.mxu0 0.0
      %2910 = vmatpush1.msra.mxu0 0.0
      %2911 = vmatprep.subr.mxu0 0.0
      %2912 = vmatpush1.msra.mxu0 0.0
      %2913 = vmatprep.subr.mxu0 0.0
      %2914 = vmatpush1.msra.mxu0 0.0
      %2915 = vmatprep.subr.mxu0 0.0
      %2916 = vmatpush1.msra.mxu0 0.0
      %2917 = vmatprep.subr.mxu0 0.0
      %2918 = vmatpush1.msra.mxu0 0.0
      %2919 = vmatprep.subr.mxu0 0.0
      %2920 = vmatpush1.msra.mxu0 0.0
      %2921 = vmatprep.subr.mxu0 0.0
      %2922 = vmatpush1.msra.mxu0 0.0
      %2923 = vmatprep.subr.mxu0 0.0
      %2924 = vmatpush1.msra.mxu0 0.0
      %2925 = vmatprep.subr.mxu0 0.0
      %2926 = vmatpush1.msra.mxu0 0.0
      %2927 = vmatprep.subr.mxu0 0.0
      %2928 = vmatpush1.msra.mxu0 0.0
      %2929 = vmatprep.subr.mxu0 0.0
      %2930 = vmatpush1.msra.mxu0 0.0
      %2931 = vmatprep.subr.mxu0 0.0
      %2932 = vmatpush1.msra.mxu0 0.0
      %2933 = vmatprep.subr.mxu0 0.0
      %2934 = vmatpush1.msra.mxu0 0.0
      %2935 = vmatprep.subr.mxu0 0.0
      %2936 = vmatpush1.msra.mxu0 0.0
      %2937 = vmatprep.subr.mxu0 0.0
      %2938 = vmatpush1.msra.mxu0 0.0
      %2939 = vmatprep.subr.mxu0 0.0
      %2940 = vmatpush1.msra.mxu0 0.0
      %2941 = vmatprep.subr.mxu0 0.0
      %2942 = vmatpush1.msra.mxu0 0.0
      %2943 = vmatprep.subr.mxu0 0.0
      %2944 = vmatpush1.msra.mxu0 0.0
      %2945 = vmatprep.mubr.f32.mxu0 0.0
      %2946 = vmatmul.mubr.f32.gmra.mrb[0].mxu0 %v679
      %v2947 = vpop.f32.mrb[0].mxu0
      %v2948 = vadd.f32 0.0, %v2947
      %v2949 = vpop.f32.mrb[0].mxu0
      %v2950 = vadd.f32 0.0, %v2949
      %2951 = vmatprep.mubr.f32.mxu0 0.0
      %2952 = vmatmul.mubr.f32.gmra.mrb[0].mxu0 %v682
      %v2953 = vpop.f32.mrb[0].mxu0
      %v2954 = vadd.f32 0.0, %v2953
      %v2955 = vpop.f32.mrb[0].mxu0
      %v2956 = vadd.f32 0.0, %v2955
      %2957 = vmatprep.mubr.f32.mxu0 0.0
      %2958 = vmatmul.mubr.f32.gmra.mrb[0].mxu0 %v685
      %v2959 = vpop.f32.mrb[0].mxu0
      %v2960 = vadd.f32 0.0, %v2959
      %v2961 = vpop.f32.mrb[0].mxu0
      %v2962 = vadd.f32 0.0, %v2961
      %2963 = vmatprep.mubr.f32.mxu0 0.0
      %2964 = vmatmul.mubr.f32.gmra.mrb[0].mxu0 %v688
      %v2965 = vpop.f32.mrb[0].mxu0
      %v2966 = vadd.f32 0.0, %v2965
      %v2967 = vpop.f32.mrb[0].mxu0
      %v2968 = vadd.f32 0.0, %v2967
      %2969 = vmatprep.mubr.f32.mxu0 0.0
      %2970 = vmatmul.mubr.f32.gmra.mrb[0].mxu0 %v691
      %v2971 = vpop.f32.mrb[0].mxu0
      %v2972 = vadd.f32 0.0, %v2971
      %v2973 = vpop.f32.mrb[0].mxu0
      %v2974 = vadd.f32 0.0, %v2973
      %2975 = vmatprep.mubr.f32.mxu0 0.0
      %2976 = vmatmul.mubr.f32.gmra.mrb[0].mxu0 %v694
      %v2977 = vpop.f32.mrb[0].mxu0
      %v2978 = vadd.f32 0.0, %v2977
      %v2979 = vpop.f32.mrb[0].mxu0
      %v2980 = vadd.f32 0.0, %v2979
      %2981 = vmatprep.mubr.f32.mxu0 0.0
      %2982 = vmatmul.mubr.f32.gmra.mrb[0].mxu0 %v697
      %v2983 = vpop.f32.mrb[0].mxu0
      %v2984 = vadd.f32 0.0, %v2983
      %v2985 = vpop.f32.mrb[0].mxu0
      %v2986 = vadd.f32 0.0, %v2985
      %2987 = vmatprep.mubr.f32.mxu0 0.0
      %2988 = vmatmul.mubr.f32.gmra.mrb[0].mxu0 %v700
      %v2989 = vpop.f32.mrb[0].mxu0
      %v2990 = vadd.f32 0.0, %v2989
      %v2991 = vpop.f32.mrb[0].mxu0
      %v2992 = vadd.f32 0.0, %v2991
      %2993 = vmatprep.mubr.f32.mxu0 0.0
      %2994 = vmatmul.mubr.f32.gmra.mrb[0].mxu0 %v703
      %v2995 = vpop.f32.mrb[0].mxu0
      %v2996 = vadd.f32 0.0, %v2995
      %v2997 = vpop.f32.mrb[0].mxu0
      %v2998 = vadd.f32 0.0, %v2997
      %2999 = vmatprep.mubr.f32.mxu0 0.0
      %3000 = vmatmul.mubr.f32.gmra.mrb[0].mxu0 %v706
      %v3001 = vpop.f32.mrb[0].mxu0
      %v3002 = vadd.f32 0.0, %v3001
      %v3003 = vpop.f32.mrb[0].mxu0
      %v3004 = vadd.f32 0.0, %v3003
      %3005 = vmatprep.mubr.f32.mxu0 0.0
      %3006 = vmatmul.mubr.f32.gmra.mrb[0].mxu0 %v709
      %v3007 = vpop.f32.mrb[0].mxu0
      %v3008 = vadd.f32 0.0, %v3007
      %v3009 = vpop.f32.mrb[0].mxu0
      %v3010 = vadd.f32 0.0, %v3009
      %3011 = vmatprep.mubr.f32.mxu0 0.0
      %3012 = vmatmul.mubr.f32.gmra.mrb[0].mxu0 %v712
      %v3013 = vpop.f32.mrb[0].mxu0
      %v3014 = vadd.f32 0.0, %v3013
      %v3015 = vpop.f32.mrb[0].mxu0
      %v3016 = vadd.f32 0.0, %v3015
      %3017 = vmatprep.mubr.f32.mxu0 0.0
      %3018 = vmatmul.mubr.f32.gmra.mrb[0].mxu0 %v715
      %v3019 = vpop.f32.mrb[0].mxu0
      %v3020 = vadd.f32 0.0, %v3019
      %v3021 = vpop.f32.mrb[0].mxu0
      %v3022 = vadd.f32 0.0, %v3021
      %3023 = vmatprep.mubr.f32.mxu0 0.0
      %3024 = vmatmul.mubr.f32.gmra.mrb[0].mxu0 %v718
      %v3025 = vpop.f32.mrb[0].mxu0
      %v3026 = vadd.f32 0.0, %v3025
      %v3027 = vpop.f32.mrb[0].mxu0
      %v3028 = vadd.f32 0.0, %v3027
      %3029 = vmatprep.mubr.f32.mxu0 0.0
      %3030 = vmatmul.mubr.f32.gmra.mrb[0].mxu0 %v721
      %v3031 = vpop.f32.mrb[0].mxu0
      %v3032 = vadd.f32 0.0, %v3031
      %v3033 = vpop.f32.mrb[0].mxu0
      %v3034 = vadd.f32 0.0, %v3033
      %3035 = vmatprep.mubr.f32.mxu0 0.0
      %3036 = vmatmul.mubr.f32.gmra.mrb[0].mxu0 %v724
      %v3037 = vpop.f32.mrb[0].mxu0
      %v3038 = vadd.f32 0.0, %v3037
      %v3039 = vpop.f32.mrb[0].mxu0
      %v3040 = vadd.f32 0.0, %v3039
      %3041 = vdwg.mxu0
      %v3042 = vmul.f32 %v2948, %v673
      %v3043 = vmul.f32 %v2950, %v674
      %v3044 = vmul.f32 %v2954, %v675
      %v3045 = vmul.f32 %v2956, %v676
      %v3046 = vadd.f32 %v3042, %v3044
      %v3047 = vrot.slane %v3046, 4
      %v3048 = vadd.f32 %v3046, %v3047
      %v3049 = vrot.slane %v3048, 2
      %v3050 = vadd.f32 %v3048, %v3049
      %v3051 = vrot.slane %v3050, 1
      %v3052 = vadd.f32 %v3050, %v3051
      %v3053 = vadd.f32 %v3043, %v3045
      %v3054 = vrot.slane %v3053, 4
      %v3055 = vadd.f32 %v3053, %v3054
      %v3056 = vrot.slane %v3055, 2
      %v3057 = vadd.f32 %v3055, %v3056
      %v3058 = vrot.slane %v3057, 1
      %v3059 = vadd.f32 %v3057, %v3058
      %v3060 = vmul.f32 %v2960, %v673
      %v3061 = vmul.f32 %v2962, %v674
      %v3062 = vmul.f32 %v2966, %v675
      %v3063 = vmul.f32 %v2968, %v676
      %v3064 = vadd.f32 %v3060, %v3062
      %v3065 = vrot.slane %v3064, 4
      %v3066 = vadd.f32 %v3064, %v3065
      %v3067 = vrot.slane %v3066, 2
      %v3068 = vadd.f32 %v3066, %v3067
      %v3069 = vrot.slane %v3068, 1
      %v3070 = vadd.f32 %v3068, %v3069
      %v3071 = vadd.f32 %v3061, %v3063
      %v3072 = vrot.slane %v3071, 4
      %v3073 = vadd.f32 %v3071, %v3072
      %v3074 = vrot.slane %v3073, 2
      %v3075 = vadd.f32 %v3073, %v3074
      %v3076 = vrot.slane %v3075, 1
      %v3077 = vadd.f32 %v3075, %v3076
      %v3078 = vmul.f32 %v2972, %v673
      %v3079 = vmul.f32 %v2974, %v674
      %v3080 = vmul.f32 %v2978, %v675
      %v3081 = vmul.f32 %v2980, %v676
      %v3082 = vadd.f32 %v3078, %v3080
      %v3083 = vrot.slane %v3082, 4
      %v3084 = vadd.f32 %v3082, %v3083
      %v3085 = vrot.slane %v3084, 2
      %v3086 = vadd.f32 %v3084, %v3085
      %v3087 = vrot.slane %v3086, 1
      %v3088 = vadd.f32 %v3086, %v3087
      %v3089 = vadd.f32 %v3079, %v3081
      %v3090 = vrot.slane %v3089, 4
      %v3091 = vadd.f32 %v3089, %v3090
      %v3092 = vrot.slane %v3091, 2
      %v3093 = vadd.f32 %v3091, %v3092
      %v3094 = vrot.slane %v3093, 1
      %v3095 = vadd.f32 %v3093, %v3094
      %v3096 = vmul.f32 %v2984, %v673
      %v3097 = vmul.f32 %v2986, %v674
      %v3098 = vmul.f32 %v2990, %v675
      %v3099 = vmul.f32 %v2992, %v676
      %v3100 = vadd.f32 %v3096, %v3098
      %v3101 = vrot.slane %v3100, 4
      %v3102 = vadd.f32 %v3100, %v3101
      %v3103 = vrot.slane %v3102, 2
      %v3104 = vadd.f32 %v3102, %v3103
      %v3105 = vrot.slane %v3104, 1
      %v3106 = vadd.f32 %v3104, %v3105
      %v3107 = vadd.f32 %v3097, %v3099
      %v3108 = vrot.slane %v3107, 4
      %v3109 = vadd.f32 %v3107, %v3108
      %v3110 = vrot.slane %v3109, 2
      %v3111 = vadd.f32 %v3109, %v3110
      %v3112 = vrot.slane %v3111, 1
      %v3113 = vadd.f32 %v3111, %v3112
      %v3114 = vmul.f32 %v2996, %v673
      %v3115 = vmul.f32 %v2998, %v674
      %v3116 = vmul.f32 %v3002, %v675
      %v3117 = vmul.f32 %v3004, %v676
      %v3118 = vadd.f32 %v3114, %v3116
      %v3119 = vrot.slane %v3118, 4
      %v3120 = vadd.f32 %v3118, %v3119
      %v3121 = vrot.slane %v3120, 2
      %v3122 = vadd.f32 %v3120, %v3121
      %v3123 = vrot.slane %v3122, 1
      %v3124 = vadd.f32 %v3122, %v3123
      %v3125 = vadd.f32 %v3115, %v3117
      %v3126 = vrot.slane %v3125, 4
      %v3127 = vadd.f32 %v3125, %v3126
      %v3128 = vrot.slane %v3127, 2
      %v3129 = vadd.f32 %v3127, %v3128
      %v3130 = vrot.slane %v3129, 1
      %v3131 = vadd.f32 %v3129, %v3130
      %v3132 = vmul.f32 %v3008, %v673
      %v3133 = vmul.f32 %v3010, %v674
      %v3134 = vmul.f32 %v3014, %v675
      %v3135 = vmul.f32 %v3016, %v676
      %v3136 = vadd.f32 %v3132, %v3134
      %v3137 = vrot.slane %v3136, 4
      %v3138 = vadd.f32 %v3136, %v3137
      %v3139 = vrot.slane %v3138, 2
      %v3140 = vadd.f32 %v3138, %v3139
      %v3141 = vrot.slane %v3140, 1
      %v3142 = vadd.f32 %v3140, %v3141
      %v3143 = vadd.f32 %v3133, %v3135
      %v3144 = vrot.slane %v3143, 4
      %v3145 = vadd.f32 %v3143, %v3144
      %v3146 = vrot.slane %v3145, 2
      %v3147 = vadd.f32 %v3145, %v3146
      %v3148 = vrot.slane %v3147, 1
      %v3149 = vadd.f32 %v3147, %v3148
      %v3150 = vmul.f32 %v3020, %v673
      %v3151 = vmul.f32 %v3022, %v674
      %v3152 = vmul.f32 %v3026, %v675
      %v3153 = vmul.f32 %v3028, %v676
      %v3154 = vadd.f32 %v3150, %v3152
      %v3155 = vrot.slane %v3154, 4
      %v3156 = vadd.f32 %v3154, %v3155
      %v3157 = vrot.slane %v3156, 2
      %v3158 = vadd.f32 %v3156, %v3157
      %v3159 = vrot.slane %v3158, 1
      %v3160 = vadd.f32 %v3158, %v3159
      %v3161 = vadd.f32 %v3151, %v3153
      %v3162 = vrot.slane %v3161, 4
      %v3163 = vadd.f32 %v3161, %v3162
      %v3164 = vrot.slane %v3163, 2
      %v3165 = vadd.f32 %v3163, %v3164
      %v3166 = vrot.slane %v3165, 1
      %v3167 = vadd.f32 %v3165, %v3166
      %v3168 = vmul.f32 %v3032, %v673
      %v3169 = vmul.f32 %v3034, %v674
      %v3170 = vmul.f32 %v3038, %v675
      %v3171 = vmul.f32 %v3040, %v676
      %v3172 = vadd.f32 %v3168, %v3170
      %v3173 = vrot.slane %v3172, 4
      %v3174 = vadd.f32 %v3172, %v3173
      %v3175 = vrot.slane %v3174, 2
      %v3176 = vadd.f32 %v3174, %v3175
      %v3177 = vrot.slane %v3176, 1
      %v3178 = vadd.f32 %v3176, %v3177
      %v3179 = vadd.f32 %v3169, %v3171
      %v3180 = vrot.slane %v3179, 4
      %v3181 = vadd.f32 %v3179, %v3180
      %v3182 = vrot.slane %v3181, 2
      %v3183 = vadd.f32 %v3181, %v3182
      %v3184 = vrot.slane %v3183, 1
      %v3185 = vadd.f32 %v3183, %v3184
      %v3187 = vlaneseq
      %v3188 = vshrl.u32 %v3187, 7
      %v3189 = vsub.s32 0, %v3188
      %v3190 = vrot.slane %v2704, %v3189
      %v3191 = vlaneseq
      %v3192 = vshrl.u32 %v3191, 7
      %v3193 = vsub.s32 2, %v3192
      %v3194 = vrot.slane %v2704, %v3193
      %v3197 = vadd.f32 %v381, %v3190
      %v3198 = vadd.f32 %v382, %v3194
      %v3199 = vmul.f32 %v3197, 0.13333334
      %v3200 = vmul.f32 %v3198, 0.13333334
      %v3201 = vsub.f32 %v3199, 1.0
      %v3202 = vsub.f32 %v3200, 1.0
      %v3203 = vadd.f32 %v3201, 1.0
      %v3204 = vadd.f32 %v3202, 1.0
      %v3205 = vmul.f32 %v3203, 16.0
      %v3206 = vmul.f32 %v3204, 16.0
      %v3207 = vsub.f32 %v3205, 1.0
      %v3208 = vsub.f32 %v3206, 1.0
      %v3209 = vmul.f32 %v3207, 0.5
      %v3210 = vmul.f32 %v3208, 0.5
      %v3211 = vfloor.f32 %v3209
      %v3212 = vfloor.f32 %v3210
      %v3213 = vsub.f32 %v3209, %v3211
      %v3214 = vsub.f32 %v3210, %v3212
      %v3215 = vsub.f32 1.0, %v3213
      %v3216 = vsub.f32 1.0, %v3214
      %v3217 = vmul.f32 %v3215, %v1091
      %v3218 = vmul.f32 %v3216, %v1092
      %vm3219 = vcmp.ge.f32.partialorder %v3211, 0.0
      %vm3220 = vcmp.ge.f32.partialorder %v3212, 0.0
      %vm3221 = vcmp.le.f32.partialorder %v3211, 15.0
      %vm3222 = vcmp.le.f32.partialorder %v3212, 15.0
      %vm3223 = vmand %vm3219, %vm3221
      %vm3224 = vmand %vm3220, %vm3222
      %vm3225 = vmand %vm3223, %vm1101
      %vm3226 = vmand %vm3224, %vm1102
      %vm3227 = vmand %vm3225, %vm1105
      %vm3228 = vmand %vm3226, %vm1106
      %v3229 = vsel %vm3227, 1, 0
      %v3230 = vsel %vm3228, 1, 0
      %v3231 = vcvt.s32.f32 %v3229
      %v3232 = vcvt.s32.f32 %v3230
      %v3233 = vmul.f32 %v3217, %v3231
      %v3234 = vmul.f32 %v3218, %v3232
      %v3235 = vmul.f32 %v3213, %v1091
      %v3236 = vmul.f32 %v3214, %v1092
      %v3237 = vadd.f32 %v3211, 1.0
      %v3238 = vadd.f32 %v3212, 1.0
      %vm3239 = vcmp.ge.f32.partialorder %v3237, 0.0
      %vm3240 = vcmp.ge.f32.partialorder %v3238, 0.0
      %vm3241 = vcmp.le.f32.partialorder %v3237, 15.0
      %vm3242 = vcmp.le.f32.partialorder %v3238, 15.0
      %vm3243 = vmand %vm3239, %vm3241
      %vm3244 = vmand %vm3240, %vm3242
      %vm3245 = vmand %vm3243, %vm1101
      %vm3246 = vmand %vm3244, %vm1102
      %vm3247 = vmand %vm3245, %vm1105
      %vm3248 = vmand %vm3246, %vm1106
      %v3249 = vsel %vm3247, 1, 0
      %v3250 = vsel %vm3248, 1, 0
      %v3251 = vcvt.s32.f32 %v3249
      %v3252 = vcvt.s32.f32 %v3250
      %v3253 = vmul.f32 %v3235, %v3251
      %v3254 = vmul.f32 %v3236, %v3252
      %v3255 = vadd.f32 %v3233, %v3253
      %v3256 = vadd.f32 %v3234, %v3254
      %v3257 = vmul.f32 %v3215, %v1087
      %v3258 = vmul.f32 %v3216, %v1088
      %vm3259 = vmand %vm3223, %vm1141
      %vm3260 = vmand %vm3224, %vm1142
      %vm3261 = vmand %vm3259, %vm1145
      %vm3262 = vmand %vm3260, %vm1146
      %v3263 = vsel %vm3261, 1, 0
      %v3264 = vsel %vm3262, 1, 0
      %v3265 = vcvt.s32.f32 %v3263
      %v3266 = vcvt.s32.f32 %v3264
      %v3267 = vmul.f32 %v3257, %v3265
      %v3268 = vmul.f32 %v3258, %v3266
      %v3269 = vadd.f32 %v3255, %v3267
      %v3270 = vadd.f32 %v3256, %v3268
      %v3271 = vmul.f32 %v3213, %v1087
      %v3272 = vmul.f32 %v3214, %v1088
      %vm3273 = vmand %vm3243, %vm1141
      %vm3274 = vmand %vm3244, %vm1142
      %vm3275 = vmand %vm3273, %vm1145
      %vm3276 = vmand %vm3274, %vm1146
      %v3277 = vsel %vm3275, 1, 0
      %v3278 = vsel %vm3276, 1, 0
      %v3279 = vcvt.s32.f32 %v3277
      %v3280 = vcvt.s32.f32 %v3278
      %v3281 = vmul.f32 %v3271, %v3279
      %v3282 = vmul.f32 %v3272, %v3280
      %v3283 = vadd.f32 %v3269, %v3281
      %v3284 = vadd.f32 %v3270, %v3282
      %vm3285 = vcmp.ge.f32.partialorder %v3283, 0.999
      %vm3286 = vcmp.ge.f32.partialorder %v3284, 0.999
      %v3287 = vsel %vm3285, 1, 0
      %v3288 = vsel %vm3286, 1, 0
      %v3289 = vcvt.s32.f32 %v3287
      %v3290 = vcvt.s32.f32 %v3288
      %v3291 = vmax.f32 %v3209, 0.0
      %v3292 = vmax.f32 %v3210, 0.0
      %v3293 = vmin.f32 %v3291, 15.0
      %v3294 = vmin.f32 %v3292, 15.0
      %v3295 = vfloor.f32 %v3293
      %v3296 = vfloor.f32 %v3294
      %v3297 = vsub.f32 %v3293, %v3295
      %v3298 = vsub.f32 %v3294, %v3296
      %v3299 = vcvt.f32.s32.to.zero.pseudo %v3295
      %v3300 = vcvt.f32.s32.to.zero.pseudo %v3296
      %v3301 = vadd.s32 %v3299, 1
      %v3302 = vadd.s32 %v3300, 1
      %vm3303 = vcmp.lt.s32.totalorder %v3301, 15
      %v3304 = vsel %vm3303, %v3301, 15
      %vm3305 = vcmp.lt.s32.totalorder %v3302, 15
      %v3306 = vsel %vm3305, %v3302, 15
      %v3307 = vlaneseq
      %v3308 = vshrl.u32 %v3307, 7
      %v3309 = vsub.s32 0, %v3308
      %v3310 = vrot.slane %v3299, %v3309
      %v3311 = vlaneseq
      %v3312 = vshrl.u32 %v3311, 7
      %v3313 = vsub.s32 0, %v3312
      %v3314 = vrot.slane %v3300, %v3313
      %vm3315 = vcmp.eq.s32.totalorder %v384, %v3310
      %vm3316 = vcmp.eq.s32.totalorder %v384, %v3314
      %vm3317 = vcmp.eq.s32.totalorder %v385, %v3310
      %vm3318 = vcmp.eq.s32.totalorder %v385, %v3314
      %v3319 = vsub.f32 1.0, %v3297
      %v3320 = vsub.f32 1.0, %v3298
      %v3321 = vlaneseq
      %v3322 = vshrl.u32 %v3321, 7
      %v3323 = vsub.s32 0, %v3322
      %v3324 = vrot.slane %v3319, %v3323
      %v3325 = vlaneseq
      %v3326 = vshrl.u32 %v3325, 7
      %v3327 = vsub.s32 0, %v3326
      %v3328 = vrot.slane %v3320, %v3327
      %v3329 = vsel %vm3315, %v3324, 0.0
      %v3330 = vsel %vm3316, %v3328, 0.0
      %v3331 = vsel %vm3317, %v3324, 0.0
      %v3332 = vsel %vm3318, %v3328, 0.0
      %v3333 = vlaneseq
      %v3334 = vshrl.u32 %v3333, 7
      %v3335 = vsub.s32 0, %v3334
      %v3336 = vrot.slane %v3304, %v3335
      %v3337 = vlaneseq
      %v3338 = vshrl.u32 %v3337, 7
      %v3339 = vsub.s32 0, %v3338
      %v3340 = vrot.slane %v3306, %v3339
      %vm3341 = vcmp.eq.s32.totalorder %v384, %v3336
      %vm3342 = vcmp.eq.s32.totalorder %v384, %v3340
      %vm3343 = vcmp.eq.s32.totalorder %v385, %v3336
      %vm3344 = vcmp.eq.s32.totalorder %v385, %v3340
      %v3345 = vlaneseq
      %v3346 = vshrl.u32 %v3345, 7
      %v3347 = vsub.s32 0, %v3346
      %v3348 = vrot.slane %v3297, %v3347
      %v3349 = vlaneseq
      %v3350 = vshrl.u32 %v3349, 7
      %v3351 = vsub.s32 0, %v3350
      %v3352 = vrot.slane %v3298, %v3351
      %v3353 = vsel %vm3341, %v3348, 0.0
      %v3354 = vsel %vm3342, %v3352, 0.0
      %v3355 = vsel %vm3343, %v3348, 0.0
      %v3356 = vsel %vm3344, %v3352, 0.0
      %v3357 = vadd.f32 %v3329, %v3353
      %v3358 = vadd.f32 %v3330, %v3354
      %v3359 = vadd.f32 %v3331, %v3355
      %v3360 = vadd.f32 %v3332, %v3356
      %3361 = vmatprep.subr.mxu0 %v3358
      %3362 = vmatpush1.msra.mxu0 %v3357
      %3363 = vmatprep.subr.mxu0 %v3360
      %3364 = vmatpush1.msra.mxu0 %v3359
      %3365 = vmatprep.subr.mxu0 0.0
      %3366 = vmatpush1.msra.mxu0 0.0
      %3367 = vmatprep.subr.mxu0 0.0
      %3368 = vmatpush1.msra.mxu0 0.0
      %3369 = vmatprep.subr.mxu0 0.0
      %3370 = vmatpush1.msra.mxu0 0.0
      %3371 = vmatprep.subr.mxu0 0.0
      %3372 = vmatpush1.msra.mxu0 0.0
      %3373 = vmatprep.subr.mxu0 0.0
      %3374 = vmatpush1.msra.mxu0 0.0
      %3375 = vmatprep.subr.mxu0 0.0
      %3376 = vmatpush1.msra.mxu0 0.0
      %3377 = vmatprep.subr.mxu0 0.0
      %3378 = vmatpush1.msra.mxu0 0.0
      %3379 = vmatprep.subr.mxu0 0.0
      %3380 = vmatpush1.msra.mxu0 0.0
      %3381 = vmatprep.subr.mxu0 0.0
      %3382 = vmatpush1.msra.mxu0 0.0
      %3383 = vmatprep.subr.mxu0 0.0
      %3384 = vmatpush1.msra.mxu0 0.0
      %3385 = vmatprep.subr.mxu0 0.0
      %3386 = vmatpush1.msra.mxu0 0.0
      %3387 = vmatprep.subr.mxu0 0.0
      %3388 = vmatpush1.msra.mxu0 0.0
      %3389 = vmatprep.subr.mxu0 0.0
      %3390 = vmatpush1.msra.mxu0 0.0
      %3391 = vmatprep.subr.mxu0 0.0
      %3392 = vmatpush1.msra.mxu0 0.0
      %3393 = vmatprep.subr.mxu0 0.0
      %3394 = vmatpush1.msra.mxu0 0.0
      %3395 = vmatprep.subr.mxu0 0.0
      %3396 = vmatpush1.msra.mxu0 0.0
      %3397 = vmatprep.subr.mxu0 0.0
      %3398 = vmatpush1.msra.mxu0 0.0
      %3399 = vmatprep.subr.mxu0 0.0
      %3400 = vmatpush1.msra.mxu0 0.0
      %3401 = vmatprep.subr.mxu0 0.0
      %3402 = vmatpush1.msra.mxu0 0.0
      %3403 = vmatprep.subr.mxu0 0.0
      %3404 = vmatpush1.msra.mxu0 0.0
      %3405 = vmatprep.subr.mxu0 0.0
      %3406 = vmatpush1.msra.mxu0 0.0
      %3407 = vmatprep.subr.mxu0 0.0
      %3408 = vmatpush1.msra.mxu0 0.0
      %3409 = vmatprep.subr.mxu0 0.0
      %3410 = vmatpush1.msra.mxu0 0.0
      %3411 = vmatprep.subr.mxu0 0.0
      %3412 = vmatpush1.msra.mxu0 0.0
      %3413 = vmatprep.subr.mxu0 0.0
      %3414 = vmatpush1.msra.mxu0 0.0
      %3415 = vmatprep.subr.mxu0 0.0
      %3416 = vmatpush1.msra.mxu0 0.0
      %3417 = vmatprep.subr.mxu0 0.0
      %3418 = vmatpush1.msra.mxu0 0.0
      %3419 = vmatprep.subr.mxu0 0.0
      %3420 = vmatpush1.msra.mxu0 0.0
      %3421 = vmatprep.subr.mxu0 0.0
      %3422 = vmatpush1.msra.mxu0 0.0
      %3423 = vmatprep.subr.mxu0 0.0
      %3424 = vmatpush1.msra.mxu0 0.0
      %3425 = vmatprep.mubr.f32.mxu0 0.0
      %3426 = vmatmul.mubr.f32.gmra.mrb[0].mxu0 %v1318
      %v3427 = vpop.f32.mrb[0].mxu0
      %v3428 = vadd.f32 0.0, %v3427
      %v3429 = vpop.f32.mrb[0].mxu0
      %v3430 = vadd.f32 0.0, %v3429
      %3431 = vmatprep.mubr.f32.mxu0 0.0
      %3432 = vmatmul.mubr.f32.gmra.mrb[0].mxu0 %v1321
      %v3433 = vpop.f32.mrb[0].mxu0
      %v3434 = vadd.f32 0.0, %v3433
      %v3435 = vpop.f32.mrb[0].mxu0
      %v3436 = vadd.f32 0.0, %v3435
      %3437 = vmatprep.mubr.f32.mxu0 0.0
      %3438 = vmatmul.mubr.f32.gmra.mrb[0].mxu0 %v1324
      %v3439 = vpop.f32.mrb[0].mxu0
      %v3440 = vadd.f32 0.0, %v3439
      %v3441 = vpop.f32.mrb[0].mxu0
      %v3442 = vadd.f32 0.0, %v3441
      %3443 = vmatprep.mubr.f32.mxu0 0.0
      %3444 = vmatmul.mubr.f32.gmra.mrb[0].mxu0 %v1327
      %v3445 = vpop.f32.mrb[0].mxu0
      %v3446 = vadd.f32 0.0, %v3445
      %v3447 = vpop.f32.mrb[0].mxu0
      %v3448 = vadd.f32 0.0, %v3447
      %3449 = vmatprep.mubr.f32.mxu0 0.0
      %3450 = vmatmul.mubr.f32.gmra.mrb[0].mxu0 %v1330
      %v3451 = vpop.f32.mrb[0].mxu0
      %v3452 = vadd.f32 0.0, %v3451
      %v3453 = vpop.f32.mrb[0].mxu0
      %v3454 = vadd.f32 0.0, %v3453
      %3455 = vmatprep.mubr.f32.mxu0 0.0
      %3456 = vmatmul.mubr.f32.gmra.mrb[0].mxu0 %v1333
      %v3457 = vpop.f32.mrb[0].mxu0
      %v3458 = vadd.f32 0.0, %v3457
      %v3459 = vpop.f32.mrb[0].mxu0
      %v3460 = vadd.f32 0.0, %v3459
      %3461 = vmatprep.mubr.f32.mxu0 0.0
      %3462 = vmatmul.mubr.f32.gmra.mrb[0].mxu0 %v1336
      %v3463 = vpop.f32.mrb[0].mxu0
      %v3464 = vadd.f32 0.0, %v3463
      %v3465 = vpop.f32.mrb[0].mxu0
      %v3466 = vadd.f32 0.0, %v3465
      %3467 = vmatprep.mubr.f32.mxu0 0.0
      %3468 = vmatmul.mubr.f32.gmra.mrb[0].mxu0 %v1339
      %v3469 = vpop.f32.mrb[0].mxu0
      %v3470 = vadd.f32 0.0, %v3469
      %v3471 = vpop.f32.mrb[0].mxu0
      %v3472 = vadd.f32 0.0, %v3471
      %3473 = vmatprep.mubr.f32.mxu0 0.0
      %3474 = vmatmul.mubr.f32.gmra.mrb[0].mxu0 %v1342
      %v3475 = vpop.f32.mrb[0].mxu0
      %v3476 = vadd.f32 0.0, %v3475
      %v3477 = vpop.f32.mrb[0].mxu0
      %v3478 = vadd.f32 0.0, %v3477
      %3479 = vmatprep.mubr.f32.mxu0 0.0
      %3480 = vmatmul.mubr.f32.gmra.mrb[0].mxu0 %v1345
      %v3481 = vpop.f32.mrb[0].mxu0
      %v3482 = vadd.f32 0.0, %v3481
      %v3483 = vpop.f32.mrb[0].mxu0
      %v3484 = vadd.f32 0.0, %v3483
      %3485 = vmatprep.mubr.f32.mxu0 0.0
      %3486 = vmatmul.mubr.f32.gmra.mrb[0].mxu0 %v1348
      %v3487 = vpop.f32.mrb[0].mxu0
      %v3488 = vadd.f32 0.0, %v3487
      %v3489 = vpop.f32.mrb[0].mxu0
      %v3490 = vadd.f32 0.0, %v3489
      %3491 = vmatprep.mubr.f32.mxu0 0.0
      %3492 = vmatmul.mubr.f32.gmra.mrb[0].mxu0 %v1351
      %v3493 = vpop.f32.mrb[0].mxu0
      %v3494 = vadd.f32 0.0, %v3493
      %v3495 = vpop.f32.mrb[0].mxu0
      %v3496 = vadd.f32 0.0, %v3495
      %3497 = vmatprep.mubr.f32.mxu0 0.0
      %3498 = vmatmul.mubr.f32.gmra.mrb[0].mxu0 %v1354
      %v3499 = vpop.f32.mrb[0].mxu0
      %v3500 = vadd.f32 0.0, %v3499
      %v3501 = vpop.f32.mrb[0].mxu0
      %v3502 = vadd.f32 0.0, %v3501
      %3503 = vmatprep.mubr.f32.mxu0 0.0
      %3504 = vmatmul.mubr.f32.gmra.mrb[0].mxu0 %v1357
      %v3505 = vpop.f32.mrb[0].mxu0
      %v3506 = vadd.f32 0.0, %v3505
      %v3507 = vpop.f32.mrb[0].mxu0
      %v3508 = vadd.f32 0.0, %v3507
      %3509 = vmatprep.mubr.f32.mxu0 0.0
      %3510 = vmatmul.mubr.f32.gmra.mrb[0].mxu0 %v1360
      %v3511 = vpop.f32.mrb[0].mxu0
      %v3512 = vadd.f32 0.0, %v3511
      %v3513 = vpop.f32.mrb[0].mxu0
      %v3514 = vadd.f32 0.0, %v3513
      %3515 = vmatprep.mubr.f32.mxu0 0.0
      %3516 = vmatmul.mubr.f32.gmra.mrb[0].mxu0 %v1363
      %v3517 = vpop.f32.mrb[0].mxu0
      %v3518 = vadd.f32 0.0, %v3517
      %v3519 = vpop.f32.mrb[0].mxu0
      %v3520 = vadd.f32 0.0, %v3519
      %3521 = vdwg.mxu0
      %v3522 = vmul.f32 %v3428, %v1313
      %v3523 = vmul.f32 %v3430, %v1314
      %v3524 = vmul.f32 %v3434, %v1315
      %v3525 = vmul.f32 %v3436, %v1316
      %v3526 = vadd.f32 %v3522, %v3524
      %v3527 = vrot.slane %v3526, 4
      %v3528 = vadd.f32 %v3526, %v3527
      %v3529 = vrot.slane %v3528, 2
      %v3530 = vadd.f32 %v3528, %v3529
      %v3531 = vrot.slane %v3530, 1
      %v3532 = vadd.f32 %v3530, %v3531
      %v3533 = vadd.f32 %v3523, %v3525
      %v3534 = vrot.slane %v3533, 4
      %v3535 = vadd.f32 %v3533, %v3534
      %v3536 = vrot.slane %v3535, 2
      %v3537 = vadd.f32 %v3535, %v3536
      %v3538 = vrot.slane %v3537, 1
      %v3539 = vadd.f32 %v3537, %v3538
      %v3540 = vmul.f32 %v3052, %v3532
      %v3541 = vmul.f32 %v3059, %v3539
      %v3542 = vadd.f32 %v3540, 0.0
      %v3543 = vadd.f32 %v3541, 0.0
      %v3544 = vmul.f32 %v3440, %v1313
      %v3545 = vmul.f32 %v3442, %v1314
      %v3546 = vmul.f32 %v3446, %v1315
      %v3547 = vmul.f32 %v3448, %v1316
      %v3548 = vadd.f32 %v3544, %v3546
      %v3549 = vrot.slane %v3548, 4
      %v3550 = vadd.f32 %v3548, %v3549
      %v3551 = vrot.slane %v3550, 2
      %v3552 = vadd.f32 %v3550, %v3551
      %v3553 = vrot.slane %v3552, 1
      %v3554 = vadd.f32 %v3552, %v3553
      %v3555 = vadd.f32 %v3545, %v3547
      %v3556 = vrot.slane %v3555, 4
      %v3557 = vadd.f32 %v3555, %v3556
      %v3558 = vrot.slane %v3557, 2
      %v3559 = vadd.f32 %v3557, %v3558
      %v3560 = vrot.slane %v3559, 1
      %v3561 = vadd.f32 %v3559, %v3560
      %v3562 = vmul.f32 %v3070, %v3554
      %v3563 = vmul.f32 %v3077, %v3561
      %v3564 = vadd.f32 %v3542, %v3562
      %v3565 = vadd.f32 %v3543, %v3563
      %v3566 = vmul.f32 %v3452, %v1313
      %v3567 = vmul.f32 %v3454, %v1314
      %v3568 = vmul.f32 %v3458, %v1315
      %v3569 = vmul.f32 %v3460, %v1316
      %v3570 = vadd.f32 %v3566, %v3568
      %v3571 = vrot.slane %v3570, 4
      %v3572 = vadd.f32 %v3570, %v3571
      %v3573 = vrot.slane %v3572, 2
      %v3574 = vadd.f32 %v3572, %v3573
      %v3575 = vrot.slane %v3574, 1
      %v3576 = vadd.f32 %v3574, %v3575
      %v3577 = vadd.f32 %v3567, %v3569
      %v3578 = vrot.slane %v3577, 4
      %v3579 = vadd.f32 %v3577, %v3578
      %v3580 = vrot.slane %v3579, 2
      %v3581 = vadd.f32 %v3579, %v3580
      %v3582 = vrot.slane %v3581, 1
      %v3583 = vadd.f32 %v3581, %v3582
      %v3584 = vmul.f32 %v3088, %v3576
      %v3585 = vmul.f32 %v3095, %v3583
      %v3586 = vadd.f32 %v3564, %v3584
      %v3587 = vadd.f32 %v3565, %v3585
      %v3588 = vmul.f32 %v3464, %v1313
      %v3589 = vmul.f32 %v3466, %v1314
      %v3590 = vmul.f32 %v3470, %v1315
      %v3591 = vmul.f32 %v3472, %v1316
      %v3592 = vadd.f32 %v3588, %v3590
      %v3593 = vrot.slane %v3592, 4
      %v3594 = vadd.f32 %v3592, %v3593
      %v3595 = vrot.slane %v3594, 2
      %v3596 = vadd.f32 %v3594, %v3595
      %v3597 = vrot.slane %v3596, 1
      %v3598 = vadd.f32 %v3596, %v3597
      %v3599 = vadd.f32 %v3589, %v3591
      %v3600 = vrot.slane %v3599, 4
      %v3601 = vadd.f32 %v3599, %v3600
      %v3602 = vrot.slane %v3601, 2
      %v3603 = vadd.f32 %v3601, %v3602
      %v3604 = vrot.slane %v3603, 1
      %v3605 = vadd.f32 %v3603, %v3604
      %v3606 = vmul.f32 %v3106, %v3598
      %v3607 = vmul.f32 %v3113, %v3605
      %v3608 = vadd.f32 %v3586, %v3606
      %v3609 = vadd.f32 %v3587, %v3607
      %v3610 = vmul.f32 %v3476, %v1313
      %v3611 = vmul.f32 %v3478, %v1314
      %v3612 = vmul.f32 %v3482, %v1315
      %v3613 = vmul.f32 %v3484, %v1316
      %v3614 = vadd.f32 %v3610, %v3612
      %v3615 = vrot.slane %v3614, 4
      %v3616 = vadd.f32 %v3614, %v3615
      %v3617 = vrot.slane %v3616, 2
      %v3618 = vadd.f32 %v3616, %v3617
      %v3619 = vrot.slane %v3618, 1
      %v3620 = vadd.f32 %v3618, %v3619
      %v3621 = vadd.f32 %v3611, %v3613
      %v3622 = vrot.slane %v3621, 4
      %v3623 = vadd.f32 %v3621, %v3622
      %v3624 = vrot.slane %v3623, 2
      %v3625 = vadd.f32 %v3623, %v3624
      %v3626 = vrot.slane %v3625, 1
      %v3627 = vadd.f32 %v3625, %v3626
      %v3628 = vmul.f32 %v3124, %v3620
      %v3629 = vmul.f32 %v3131, %v3627
      %v3630 = vadd.f32 %v3608, %v3628
      %v3631 = vadd.f32 %v3609, %v3629
      %v3632 = vmul.f32 %v3488, %v1313
      %v3633 = vmul.f32 %v3490, %v1314
      %v3634 = vmul.f32 %v3494, %v1315
      %v3635 = vmul.f32 %v3496, %v1316
      %v3636 = vadd.f32 %v3632, %v3634
      %v3637 = vrot.slane %v3636, 4
      %v3638 = vadd.f32 %v3636, %v3637
      %v3639 = vrot.slane %v3638, 2
      %v3640 = vadd.f32 %v3638, %v3639
      %v3641 = vrot.slane %v3640, 1
      %v3642 = vadd.f32 %v3640, %v3641
      %v3643 = vadd.f32 %v3633, %v3635
      %v3644 = vrot.slane %v3643, 4
      %v3645 = vadd.f32 %v3643, %v3644
      %v3646 = vrot.slane %v3645, 2
      %v3647 = vadd.f32 %v3645, %v3646
      %v3648 = vrot.slane %v3647, 1
      %v3649 = vadd.f32 %v3647, %v3648
      %v3650 = vmul.f32 %v3142, %v3642
      %v3651 = vmul.f32 %v3149, %v3649
      %v3652 = vadd.f32 %v3630, %v3650
      %v3653 = vadd.f32 %v3631, %v3651
      %v3654 = vmul.f32 %v3500, %v1313
      %v3655 = vmul.f32 %v3502, %v1314
      %v3656 = vmul.f32 %v3506, %v1315
      %v3657 = vmul.f32 %v3508, %v1316
      %v3658 = vadd.f32 %v3654, %v3656
      %v3659 = vrot.slane %v3658, 4
      %v3660 = vadd.f32 %v3658, %v3659
      %v3661 = vrot.slane %v3660, 2
      %v3662 = vadd.f32 %v3660, %v3661
      %v3663 = vrot.slane %v3662, 1
      %v3664 = vadd.f32 %v3662, %v3663
      %v3665 = vadd.f32 %v3655, %v3657
      %v3666 = vrot.slane %v3665, 4
      %v3667 = vadd.f32 %v3665, %v3666
      %v3668 = vrot.slane %v3667, 2
      %v3669 = vadd.f32 %v3667, %v3668
      %v3670 = vrot.slane %v3669, 1
      %v3671 = vadd.f32 %v3669, %v3670
      %v3672 = vmul.f32 %v3160, %v3664
      %v3673 = vmul.f32 %v3167, %v3671
      %v3674 = vadd.f32 %v3652, %v3672
      %v3675 = vadd.f32 %v3653, %v3673
      %v3676 = vmul.f32 %v3512, %v1313
      %v3677 = vmul.f32 %v3514, %v1314
      %v3678 = vmul.f32 %v3518, %v1315
      %v3679 = vmul.f32 %v3520, %v1316
      %v3680 = vadd.f32 %v3676, %v3678
      %v3681 = vrot.slane %v3680, 4
      %v3682 = vadd.f32 %v3680, %v3681
      %v3683 = vrot.slane %v3682, 2
      %v3684 = vadd.f32 %v3682, %v3683
      %v3685 = vrot.slane %v3684, 1
      %v3686 = vadd.f32 %v3684, %v3685
      %v3687 = vadd.f32 %v3677, %v3679
      %v3688 = vrot.slane %v3687, 4
      %v3689 = vadd.f32 %v3687, %v3688
      %v3690 = vrot.slane %v3689, 2
      %v3691 = vadd.f32 %v3689, %v3690
      %v3692 = vrot.slane %v3691, 1
      %v3693 = vadd.f32 %v3691, %v3692
      %v3694 = vmul.f32 %v3178, %v3686
      %v3695 = vmul.f32 %v3185, %v3693
      %v3696 = vadd.f32 %v3674, %v3694
      %v3697 = vadd.f32 %v3675, %v3695
      %v3698 = vmul.f32 %v2809, %v3289
      %v3699 = vmul.f32 %v2810, %v3290
      %v3700 = vmul.f32 %v3696, %v3698
      %v3701 = vmul.f32 %v3697, %v3699
      %v3702 = vadd.f32 %v367, 1.0
      %v3703 = vmul.f32 %v3702, -1.0
      %v3705 = vlaneseq
      %v3706 = vshrl.u32 %v3705, 7
      %v3707 = vsub.s32 0, %v3706
      %v3708 = vrot.slane %v3703, %v3707
      %v3709 = vlaneseq
      %v3710 = vshrl.u32 %v3709, 7
      %v3711 = vsub.s32 2, %v3710
      %v3712 = vrot.slane %v3703, %v3711
      %v3715 = vadd.f32 %v381, %v3708
      %v3716 = vadd.f32 %v382, %v3712
      %v3717 = vmul.f32 %v3715, 0.13333334
      %v3718 = vmul.f32 %v3716, 0.13333334
      %v3719 = vsub.f32 %v3717, 1.0
      %v3720 = vsub.f32 %v3718, 1.0
      %v3721 = vadd.f32 %v3719, 1.0
      %v3722 = vadd.f32 %v3720, 1.0
      %v3723 = vmul.f32 %v3721, 16.0
      %v3724 = vmul.f32 %v3722, 16.0
      %v3725 = vsub.f32 %v3723, 1.0
      %v3726 = vsub.f32 %v3724, 1.0
      %v3727 = vmul.f32 %v3725, 0.5
      %v3728 = vmul.f32 %v3726, 0.5
      %v3729 = vfloor.f32 %v3727
      %v3730 = vfloor.f32 %v3728
      %v3731 = vsub.f32 %v3727, %v3729
      %v3732 = vsub.f32 %v3728, %v3730
      %v3733 = vsub.f32 1.0, %v3731
      %v3734 = vsub.f32 1.0, %v3732
      %v3735 = vmul.f32 %v3733, %v451
      %v3736 = vmul.f32 %v3734, %v452
      %vm3737 = vcmp.ge.f32.partialorder %v3729, 0.0
      %vm3738 = vcmp.ge.f32.partialorder %v3730, 0.0
      %vm3739 = vcmp.le.f32.partialorder %v3729, 15.0
      %vm3740 = vcmp.le.f32.partialorder %v3730, 15.0
      %vm3741 = vmand %vm3737, %vm3739
      %vm3742 = vmand %vm3738, %vm3740
      %vm3743 = vmand %vm3741, %vm461
      %vm3744 = vmand %vm3742, %vm462
      %vm3745 = vmand %vm3743, %vm465
      %vm3746 = vmand %vm3744, %vm466
      %v3747 = vsel %vm3745, 1, 0
      %v3748 = vsel %vm3746, 1, 0
      %v3749 = vcvt.s32.f32 %v3747
      %v3750 = vcvt.s32.f32 %v3748
      %v3751 = vmul.f32 %v3735, %v3749
      %v3752 = vmul.f32 %v3736, %v3750
      %v3753 = vmul.f32 %v3731, %v451
      %v3754 = vmul.f32 %v3732, %v452
      %v3755 = vadd.f32 %v3729, 1.0
      %v3756 = vadd.f32 %v3730, 1.0
      %vm3757 = vcmp.ge.f32.partialorder %v3755, 0.0
      %vm3758 = vcmp.ge.f32.partialorder %v3756, 0.0
      %vm3759 = vcmp.le.f32.partialorder %v3755, 15.0
      %vm3760 = vcmp.le.f32.partialorder %v3756, 15.0
      %vm3761 = vmand %vm3757, %vm3759
      %vm3762 = vmand %vm3758, %vm3760
      %vm3763 = vmand %vm3761, %vm461
      %vm3764 = vmand %vm3762, %vm462
      %vm3765 = vmand %vm3763, %vm465
      %vm3766 = vmand %vm3764, %vm466
      %v3767 = vsel %vm3765, 1, 0
      %v3768 = vsel %vm3766, 1, 0
      %v3769 = vcvt.s32.f32 %v3767
      %v3770 = vcvt.s32.f32 %v3768
      %v3771 = vmul.f32 %v3753, %v3769
      %v3772 = vmul.f32 %v3754, %v3770
      %v3773 = vadd.f32 %v3751, %v3771
      %v3774 = vadd.f32 %v3752, %v3772
      %v3775 = vmul.f32 %v3733, %v447
      %v3776 = vmul.f32 %v3734, %v448
      %vm3777 = vmand %vm3741, %vm501
      %vm3778 = vmand %vm3742, %vm502
      %vm3779 = vmand %vm3777, %vm505
      %vm3780 = vmand %vm3778, %vm506
      %v3781 = vsel %vm3779, 1, 0
      %v3782 = vsel %vm3780, 1, 0
      %v3783 = vcvt.s32.f32 %v3781
      %v3784 = vcvt.s32.f32 %v3782
      %v3785 = vmul.f32 %v3775, %v3783
      %v3786 = vmul.f32 %v3776, %v3784
      %v3787 = vadd.f32 %v3773, %v3785
      %v3788 = vadd.f32 %v3774, %v3786
      %v3789 = vmul.f32 %v3731, %v447
      %v3790 = vmul.f32 %v3732, %v448
      %vm3791 = vmand %vm3761, %vm501
      %vm3792 = vmand %vm3762, %vm502
      %vm3793 = vmand %vm3791, %vm505
      %vm3794 = vmand %vm3792, %vm506
      %v3795 = vsel %vm3793, 1, 0
      %v3796 = vsel %vm3794, 1, 0
      %v3797 = vcvt.s32.f32 %v3795
      %v3798 = vcvt.s32.f32 %v3796
      %v3799 = vmul.f32 %v3789, %v3797
      %v3800 = vmul.f32 %v3790, %v3798
      %v3801 = vadd.f32 %v3787, %v3799
      %v3802 = vadd.f32 %v3788, %v3800
      %vm3803 = vcmp.ge.f32.partialorder %v3801, 0.999
      %vm3804 = vcmp.ge.f32.partialorder %v3802, 0.999
      %v3805 = vsel %vm3803, 1, 0
      %v3806 = vsel %vm3804, 1, 0
      %v3807 = vcvt.s32.f32 %v3805
      %v3808 = vcvt.s32.f32 %v3806
      %v3809 = vmax.f32 %v3727, 0.0
      %v3810 = vmax.f32 %v3728, 0.0
      %v3811 = vmin.f32 %v3809, 15.0
      %v3812 = vmin.f32 %v3810, 15.0
      %v3813 = vfloor.f32 %v3811
      %v3814 = vfloor.f32 %v3812
      %v3815 = vsub.f32 %v3811, %v3813
      %v3816 = vsub.f32 %v3812, %v3814
      %v3817 = vcvt.f32.s32.to.zero.pseudo %v3813
      %v3818 = vcvt.f32.s32.to.zero.pseudo %v3814
      %v3819 = vadd.s32 %v3817, 1
      %v3820 = vadd.s32 %v3818, 1
      %vm3821 = vcmp.lt.s32.totalorder %v3819, 15
      %v3822 = vsel %vm3821, %v3819, 15
      %vm3823 = vcmp.lt.s32.totalorder %v3820, 15
      %v3824 = vsel %vm3823, %v3820, 15
      %v3825 = vlaneseq
      %v3826 = vshrl.u32 %v3825, 7
      %v3827 = vsub.s32 0, %v3826
      %v3828 = vrot.slane %v3817, %v3827
      %v3829 = vlaneseq
      %v3830 = vshrl.u32 %v3829, 7
      %v3831 = vsub.s32 0, %v3830
      %v3832 = vrot.slane %v3818, %v3831
      %vm3833 = vcmp.eq.s32.totalorder %v384, %v3828
      %vm3834 = vcmp.eq.s32.totalorder %v384, %v3832
      %vm3835 = vcmp.eq.s32.totalorder %v385, %v3828
      %vm3836 = vcmp.eq.s32.totalorder %v385, %v3832
      %v3837 = vsub.f32 1.0, %v3815
      %v3838 = vsub.f32 1.0, %v3816
      %v3839 = vlaneseq
      %v3840 = vshrl.u32 %v3839, 7
      %v3841 = vsub.s32 0, %v3840
      %v3842 = vrot.slane %v3837, %v3841
      %v3843 = vlaneseq
      %v3844 = vshrl.u32 %v3843, 7
      %v3845 = vsub.s32 0, %v3844
      %v3846 = vrot.slane %v3838, %v3845
      %v3847 = vsel %vm3833, %v3842, 0.0
      %v3848 = vsel %vm3834, %v3846, 0.0
      %v3849 = vsel %vm3835, %v3842, 0.0
      %v3850 = vsel %vm3836, %v3846, 0.0
      %v3851 = vlaneseq
      %v3852 = vshrl.u32 %v3851, 7
      %v3853 = vsub.s32 0, %v3852
      %v3854 = vrot.slane %v3822, %v3853
      %v3855 = vlaneseq
      %v3856 = vshrl.u32 %v3855, 7
      %v3857 = vsub.s32 0, %v3856
      %v3858 = vrot.slane %v3824, %v3857
      %vm3859 = vcmp.eq.s32.totalorder %v384, %v3854
      %vm3860 = vcmp.eq.s32.totalorder %v384, %v3858
      %vm3861 = vcmp.eq.s32.totalorder %v385, %v3854
      %vm3862 = vcmp.eq.s32.totalorder %v385, %v3858
      %v3863 = vlaneseq
      %v3864 = vshrl.u32 %v3863, 7
      %v3865 = vsub.s32 0, %v3864
      %v3866 = vrot.slane %v3815, %v3865
      %v3867 = vlaneseq
      %v3868 = vshrl.u32 %v3867, 7
      %v3869 = vsub.s32 0, %v3868
      %v3870 = vrot.slane %v3816, %v3869
      %v3871 = vsel %vm3859, %v3866, 0.0
      %v3872 = vsel %vm3860, %v3870, 0.0
      %v3873 = vsel %vm3861, %v3866, 0.0
      %v3874 = vsel %vm3862, %v3870, 0.0
      %v3875 = vadd.f32 %v3847, %v3871
      %v3876 = vadd.f32 %v3848, %v3872
      %v3877 = vadd.f32 %v3849, %v3873
      %v3878 = vadd.f32 %v3850, %v3874
      %3879 = vmatprep.subr.mxu0 %v3876
      %3880 = vmatpush1.msra.mxu0 %v3875
      %3881 = vmatprep.subr.mxu0 %v3878
      %3882 = vmatpush1.msra.mxu0 %v3877
      %3883 = vmatprep.subr.mxu0 0.0
      %3884 = vmatpush1.msra.mxu0 0.0
      %3885 = vmatprep.subr.mxu0 0.0
      %3886 = vmatpush1.msra.mxu0 0.0
      %3887 = vmatprep.subr.mxu0 0.0
      %3888 = vmatpush1.msra.mxu0 0.0
      %3889 = vmatprep.subr.mxu0 0.0
      %3890 = vmatpush1.msra.mxu0 0.0
      %3891 = vmatprep.subr.mxu0 0.0
      %3892 = vmatpush1.msra.mxu0 0.0
      %3893 = vmatprep.subr.mxu0 0.0
      %3894 = vmatpush1.msra.mxu0 0.0
      %3895 = vmatprep.subr.mxu0 0.0
      %3896 = vmatpush1.msra.mxu0 0.0
      %3897 = vmatprep.subr.mxu0 0.0
      %3898 = vmatpush1.msra.mxu0 0.0
      %3899 = vmatprep.subr.mxu0 0.0
      %3900 = vmatpush1.msra.mxu0 0.0
      %3901 = vmatprep.subr.mxu0 0.0
      %3902 = vmatpush1.msra.mxu0 0.0
      %3903 = vmatprep.subr.mxu0 0.0
      %3904 = vmatpush1.msra.mxu0 0.0
      %3905 = vmatprep.subr.mxu0 0.0
      %3906 = vmatpush1.msra.mxu0 0.0
      %3907 = vmatprep.subr.mxu0 0.0
      %3908 = vmatpush1.msra.mxu0 0.0
      %3909 = vmatprep.subr.mxu0 0.0
      %3910 = vmatpush1.msra.mxu0 0.0
      %3911 = vmatprep.subr.mxu0 0.0
      %3912 = vmatpush1.msra.mxu0 0.0
      %3913 = vmatprep.subr.mxu0 0.0
      %3914 = vmatpush1.msra.mxu0 0.0
      %3915 = vmatprep.subr.mxu0 0.0
      %3916 = vmatpush1.msra.mxu0 0.0
      %3917 = vmatprep.subr.mxu0 0.0
      %3918 = vmatpush1.msra.mxu0 0.0
      %3919 = vmatprep.subr.mxu0 0.0
      %3920 = vmatpush1.msra.mxu0 0.0
      %3921 = vmatprep.subr.mxu0 0.0
      %3922 = vmatpush1.msra.mxu0 0.0
      %3923 = vmatprep.subr.mxu0 0.0
      %3924 = vmatpush1.msra.mxu0 0.0
      %3925 = vmatprep.subr.mxu0 0.0
      %3926 = vmatpush1.msra.mxu0 0.0
      %3927 = vmatprep.subr.mxu0 0.0
      %3928 = vmatpush1.msra.mxu0 0.0
      %3929 = vmatprep.subr.mxu0 0.0
      %3930 = vmatpush1.msra.mxu0 0.0
      %3931 = vmatprep.subr.mxu0 0.0
      %3932 = vmatpush1.msra.mxu0 0.0
      %3933 = vmatprep.subr.mxu0 0.0
      %3934 = vmatpush1.msra.mxu0 0.0
      %3935 = vmatprep.subr.mxu0 0.0
      %3936 = vmatpush1.msra.mxu0 0.0
      %3937 = vmatprep.subr.mxu0 0.0
      %3938 = vmatpush1.msra.mxu0 0.0
      %3939 = vmatprep.subr.mxu0 0.0
      %3940 = vmatpush1.msra.mxu0 0.0
      %3941 = vmatprep.subr.mxu0 0.0
      %3942 = vmatpush1.msra.mxu0 0.0
      %3943 = vmatprep.mubr.f32.mxu0 0.0
      %3944 = vmatmul.mubr.f32.gmra.mrb[0].mxu0 %v679
      %v3945 = vpop.f32.mrb[0].mxu0
      %v3946 = vadd.f32 0.0, %v3945
      %v3947 = vpop.f32.mrb[0].mxu0
      %v3948 = vadd.f32 0.0, %v3947
      %3949 = vmatprep.mubr.f32.mxu0 0.0
      %3950 = vmatmul.mubr.f32.gmra.mrb[0].mxu0 %v682
      %v3951 = vpop.f32.mrb[0].mxu0
      %v3952 = vadd.f32 0.0, %v3951
      %v3953 = vpop.f32.mrb[0].mxu0
      %v3954 = vadd.f32 0.0, %v3953
      %3955 = vmatprep.mubr.f32.mxu0 0.0
      %3956 = vmatmul.mubr.f32.gmra.mrb[0].mxu0 %v685
      %v3957 = vpop.f32.mrb[0].mxu0
      %v3958 = vadd.f32 0.0, %v3957
      %v3959 = vpop.f32.mrb[0].mxu0
      %v3960 = vadd.f32 0.0, %v3959
      %3961 = vmatprep.mubr.f32.mxu0 0.0
      %3962 = vmatmul.mubr.f32.gmra.mrb[0].mxu0 %v688
      %v3963 = vpop.f32.mrb[0].mxu0
      %v3964 = vadd.f32 0.0, %v3963
      %v3965 = vpop.f32.mrb[0].mxu0
      %v3966 = vadd.f32 0.0, %v3965
      %3967 = vmatprep.mubr.f32.mxu0 0.0
      %3968 = vmatmul.mubr.f32.gmra.mrb[0].mxu0 %v691
      %v3969 = vpop.f32.mrb[0].mxu0
      %v3970 = vadd.f32 0.0, %v3969
      %v3971 = vpop.f32.mrb[0].mxu0
      %v3972 = vadd.f32 0.0, %v3971
      %3973 = vmatprep.mubr.f32.mxu0 0.0
      %3974 = vmatmul.mubr.f32.gmra.mrb[0].mxu0 %v694
      %v3975 = vpop.f32.mrb[0].mxu0
      %v3976 = vadd.f32 0.0, %v3975
      %v3977 = vpop.f32.mrb[0].mxu0
      %v3978 = vadd.f32 0.0, %v3977
      %3979 = vmatprep.mubr.f32.mxu0 0.0
      %3980 = vmatmul.mubr.f32.gmra.mrb[0].mxu0 %v697
      %v3981 = vpop.f32.mrb[0].mxu0
      %v3982 = vadd.f32 0.0, %v3981
      %v3983 = vpop.f32.mrb[0].mxu0
      %v3984 = vadd.f32 0.0, %v3983
      %3985 = vmatprep.mubr.f32.mxu0 0.0
      %3986 = vmatmul.mubr.f32.gmra.mrb[0].mxu0 %v700
      %v3987 = vpop.f32.mrb[0].mxu0
      %v3988 = vadd.f32 0.0, %v3987
      %v3989 = vpop.f32.mrb[0].mxu0
      %v3990 = vadd.f32 0.0, %v3989
      %3991 = vmatprep.mubr.f32.mxu0 0.0
      %3992 = vmatmul.mubr.f32.gmra.mrb[0].mxu0 %v703
      %v3993 = vpop.f32.mrb[0].mxu0
      %v3994 = vadd.f32 0.0, %v3993
      %v3995 = vpop.f32.mrb[0].mxu0
      %v3996 = vadd.f32 0.0, %v3995
      %3997 = vmatprep.mubr.f32.mxu0 0.0
      %3998 = vmatmul.mubr.f32.gmra.mrb[0].mxu0 %v706
      %v3999 = vpop.f32.mrb[0].mxu0
      %v4000 = vadd.f32 0.0, %v3999
      %v4001 = vpop.f32.mrb[0].mxu0
      %v4002 = vadd.f32 0.0, %v4001
      %4003 = vmatprep.mubr.f32.mxu0 0.0
      %4004 = vmatmul.mubr.f32.gmra.mrb[0].mxu0 %v709
      %v4005 = vpop.f32.mrb[0].mxu0
      %v4006 = vadd.f32 0.0, %v4005
      %v4007 = vpop.f32.mrb[0].mxu0
      %v4008 = vadd.f32 0.0, %v4007
      %4009 = vmatprep.mubr.f32.mxu0 0.0
      %4010 = vmatmul.mubr.f32.gmra.mrb[0].mxu0 %v712
      %v4011 = vpop.f32.mrb[0].mxu0
      %v4012 = vadd.f32 0.0, %v4011
      %v4013 = vpop.f32.mrb[0].mxu0
      %v4014 = vadd.f32 0.0, %v4013
      %4015 = vmatprep.mubr.f32.mxu0 0.0
      %4016 = vmatmul.mubr.f32.gmra.mrb[0].mxu0 %v715
      %v4017 = vpop.f32.mrb[0].mxu0
      %v4018 = vadd.f32 0.0, %v4017
      %v4019 = vpop.f32.mrb[0].mxu0
      %v4020 = vadd.f32 0.0, %v4019
      %4021 = vmatprep.mubr.f32.mxu0 0.0
      %4022 = vmatmul.mubr.f32.gmra.mrb[0].mxu0 %v718
      %v4023 = vpop.f32.mrb[0].mxu0
      %v4024 = vadd.f32 0.0, %v4023
      %v4025 = vpop.f32.mrb[0].mxu0
      %v4026 = vadd.f32 0.0, %v4025
      %4027 = vmatprep.mubr.f32.mxu0 0.0
      %4028 = vmatmul.mubr.f32.gmra.mrb[0].mxu0 %v721
      %v4029 = vpop.f32.mrb[0].mxu0
      %v4030 = vadd.f32 0.0, %v4029
      %v4031 = vpop.f32.mrb[0].mxu0
      %v4032 = vadd.f32 0.0, %v4031
      %4033 = vmatprep.mubr.f32.mxu0 0.0
      %4034 = vmatmul.mubr.f32.gmra.mrb[0].mxu0 %v724
      %v4035 = vpop.f32.mrb[0].mxu0
      %v4036 = vadd.f32 0.0, %v4035
      %v4037 = vpop.f32.mrb[0].mxu0
      %v4038 = vadd.f32 0.0, %v4037
      %4039 = vdwg.mxu0
      %v4040 = vmul.f32 %v3946, %v673
      %v4041 = vmul.f32 %v3948, %v674
      %v4042 = vmul.f32 %v3952, %v675
      %v4043 = vmul.f32 %v3954, %v676
      %v4044 = vadd.f32 %v4040, %v4042
      %v4045 = vrot.slane %v4044, 4
      %v4046 = vadd.f32 %v4044, %v4045
      %v4047 = vrot.slane %v4046, 2
      %v4048 = vadd.f32 %v4046, %v4047
      %v4049 = vrot.slane %v4048, 1
      %v4050 = vadd.f32 %v4048, %v4049
      %v4051 = vadd.f32 %v4041, %v4043
      %v4052 = vrot.slane %v4051, 4
      %v4053 = vadd.f32 %v4051, %v4052
      %v4054 = vrot.slane %v4053, 2
      %v4055 = vadd.f32 %v4053, %v4054
      %v4056 = vrot.slane %v4055, 1
      %v4057 = vadd.f32 %v4055, %v4056
      %v4058 = vmul.f32 %v3958, %v673
      %v4059 = vmul.f32 %v3960, %v674
      %v4060 = vmul.f32 %v3964, %v675
      %v4061 = vmul.f32 %v3966, %v676
      %v4062 = vadd.f32 %v4058, %v4060
      %v4063 = vrot.slane %v4062, 4
      %v4064 = vadd.f32 %v4062, %v4063
      %v4065 = vrot.slane %v4064, 2
      %v4066 = vadd.f32 %v4064, %v4065
      %v4067 = vrot.slane %v4066, 1
      %v4068 = vadd.f32 %v4066, %v4067
      %v4069 = vadd.f32 %v4059, %v4061
      %v4070 = vrot.slane %v4069, 4
      %v4071 = vadd.f32 %v4069, %v4070
      %v4072 = vrot.slane %v4071, 2
      %v4073 = vadd.f32 %v4071, %v4072
      %v4074 = vrot.slane %v4073, 1
      %v4075 = vadd.f32 %v4073, %v4074
      %v4076 = vmul.f32 %v3970, %v673
      %v4077 = vmul.f32 %v3972, %v674
      %v4078 = vmul.f32 %v3976, %v675
      %v4079 = vmul.f32 %v3978, %v676
      %v4080 = vadd.f32 %v4076, %v4078
      %v4081 = vrot.slane %v4080, 4
      %v4082 = vadd.f32 %v4080, %v4081
      %v4083 = vrot.slane %v4082, 2
      %v4084 = vadd.f32 %v4082, %v4083
      %v4085 = vrot.slane %v4084, 1
      %v4086 = vadd.f32 %v4084, %v4085
      %v4087 = vadd.f32 %v4077, %v4079
      %v4088 = vrot.slane %v4087, 4
      %v4089 = vadd.f32 %v4087, %v4088
      %v4090 = vrot.slane %v4089, 2
      %v4091 = vadd.f32 %v4089, %v4090
      %v4092 = vrot.slane %v4091, 1
      %v4093 = vadd.f32 %v4091, %v4092
      %v4094 = vmul.f32 %v3982, %v673
      %v4095 = vmul.f32 %v3984, %v674
      %v4096 = vmul.f32 %v3988, %v675
      %v4097 = vmul.f32 %v3990, %v676
      %v4098 = vadd.f32 %v4094, %v4096
      %v4099 = vrot.slane %v4098, 4
      %v4100 = vadd.f32 %v4098, %v4099
      %v4101 = vrot.slane %v4100, 2
      %v4102 = vadd.f32 %v4100, %v4101
      %v4103 = vrot.slane %v4102, 1
      %v4104 = vadd.f32 %v4102, %v4103
      %v4105 = vadd.f32 %v4095, %v4097
      %v4106 = vrot.slane %v4105, 4
      %v4107 = vadd.f32 %v4105, %v4106
      %v4108 = vrot.slane %v4107, 2
      %v4109 = vadd.f32 %v4107, %v4108
      %v4110 = vrot.slane %v4109, 1
      %v4111 = vadd.f32 %v4109, %v4110
      %v4112 = vmul.f32 %v3994, %v673
      %v4113 = vmul.f32 %v3996, %v674
      %v4114 = vmul.f32 %v4000, %v675
      %v4115 = vmul.f32 %v4002, %v676
      %v4116 = vadd.f32 %v4112, %v4114
      %v4117 = vrot.slane %v4116, 4
      %v4118 = vadd.f32 %v4116, %v4117
      %v4119 = vrot.slane %v4118, 2
      %v4120 = vadd.f32 %v4118, %v4119
      %v4121 = vrot.slane %v4120, 1
      %v4122 = vadd.f32 %v4120, %v4121
      %v4123 = vadd.f32 %v4113, %v4115
      %v4124 = vrot.slane %v4123, 4
      %v4125 = vadd.f32 %v4123, %v4124
      %v4126 = vrot.slane %v4125, 2
      %v4127 = vadd.f32 %v4125, %v4126
      %v4128 = vrot.slane %v4127, 1
      %v4129 = vadd.f32 %v4127, %v4128
      %v4130 = vmul.f32 %v4006, %v673
      %v4131 = vmul.f32 %v4008, %v674
      %v4132 = vmul.f32 %v4012, %v675
      %v4133 = vmul.f32 %v4014, %v676
      %v4134 = vadd.f32 %v4130, %v4132
      %v4135 = vrot.slane %v4134, 4
      %v4136 = vadd.f32 %v4134, %v4135
      %v4137 = vrot.slane %v4136, 2
      %v4138 = vadd.f32 %v4136, %v4137
      %v4139 = vrot.slane %v4138, 1
      %v4140 = vadd.f32 %v4138, %v4139
      %v4141 = vadd.f32 %v4131, %v4133
      %v4142 = vrot.slane %v4141, 4
      %v4143 = vadd.f32 %v4141, %v4142
      %v4144 = vrot.slane %v4143, 2
      %v4145 = vadd.f32 %v4143, %v4144
      %v4146 = vrot.slane %v4145, 1
      %v4147 = vadd.f32 %v4145, %v4146
      %v4148 = vmul.f32 %v4018, %v673
      %v4149 = vmul.f32 %v4020, %v674
      %v4150 = vmul.f32 %v4024, %v675
      %v4151 = vmul.f32 %v4026, %v676
      %v4152 = vadd.f32 %v4148, %v4150
      %v4153 = vrot.slane %v4152, 4
      %v4154 = vadd.f32 %v4152, %v4153
      %v4155 = vrot.slane %v4154, 2
      %v4156 = vadd.f32 %v4154, %v4155
      %v4157 = vrot.slane %v4156, 1
      %v4158 = vadd.f32 %v4156, %v4157
      %v4159 = vadd.f32 %v4149, %v4151
      %v4160 = vrot.slane %v4159, 4
      %v4161 = vadd.f32 %v4159, %v4160
      %v4162 = vrot.slane %v4161, 2
      %v4163 = vadd.f32 %v4161, %v4162
      %v4164 = vrot.slane %v4163, 1
      %v4165 = vadd.f32 %v4163, %v4164
      %v4166 = vmul.f32 %v4030, %v673
      %v4167 = vmul.f32 %v4032, %v674
      %v4168 = vmul.f32 %v4036, %v675
      %v4169 = vmul.f32 %v4038, %v676
      %v4170 = vadd.f32 %v4166, %v4168
      %v4171 = vrot.slane %v4170, 4
      %v4172 = vadd.f32 %v4170, %v4171
      %v4173 = vrot.slane %v4172, 2
      %v4174 = vadd.f32 %v4172, %v4173
      %v4175 = vrot.slane %v4174, 1
      %v4176 = vadd.f32 %v4174, %v4175
      %v4177 = vadd.f32 %v4167, %v4169
      %v4178 = vrot.slane %v4177, 4
      %v4179 = vadd.f32 %v4177, %v4178
      %v4180 = vrot.slane %v4179, 2
      %v4181 = vadd.f32 %v4179, %v4180
      %v4182 = vrot.slane %v4181, 1
      %v4183 = vadd.f32 %v4181, %v4182
      %v4185 = vlaneseq
      %v4186 = vshrl.u32 %v4185, 7
      %v4187 = vsub.s32 0, %v4186
      %v4188 = vrot.slane %v3702, %v4187
      %v4189 = vlaneseq
      %v4190 = vshrl.u32 %v4189, 7
      %v4191 = vsub.s32 2, %v4190
      %v4192 = vrot.slane %v3702, %v4191
      %v4195 = vadd.f32 %v381, %v4188
      %v4196 = vadd.f32 %v382, %v4192
      %v4197 = vmul.f32 %v4195, 0.13333334
      %v4198 = vmul.f32 %v4196, 0.13333334
      %v4199 = vsub.f32 %v4197, 1.0
      %v4200 = vsub.f32 %v4198, 1.0
      %v4201 = vadd.f32 %v4199, 1.0
      %v4202 = vadd.f32 %v4200, 1.0
      %v4203 = vmul.f32 %v4201, 16.0
      %v4204 = vmul.f32 %v4202, 16.0
      %v4205 = vsub.f32 %v4203, 1.0
      %v4206 = vsub.f32 %v4204, 1.0
      %v4207 = vmul.f32 %v4205, 0.5
      %v4208 = vmul.f32 %v4206, 0.5
      %v4209 = vfloor.f32 %v4207
      %v4210 = vfloor.f32 %v4208
      %v4211 = vsub.f32 %v4207, %v4209
      %v4212 = vsub.f32 %v4208, %v4210
      %v4213 = vsub.f32 1.0, %v4211
      %v4214 = vsub.f32 1.0, %v4212
      %v4215 = vmul.f32 %v4213, %v1091
      %v4216 = vmul.f32 %v4214, %v1092
      %vm4217 = vcmp.ge.f32.partialorder %v4209, 0.0
      %vm4218 = vcmp.ge.f32.partialorder %v4210, 0.0
      %vm4219 = vcmp.le.f32.partialorder %v4209, 15.0
      %vm4220 = vcmp.le.f32.partialorder %v4210, 15.0
      %vm4221 = vmand %vm4217, %vm4219
      %vm4222 = vmand %vm4218, %vm4220
      %vm4223 = vmand %vm4221, %vm1101
      %vm4224 = vmand %vm4222, %vm1102
      %vm4225 = vmand %vm4223, %vm1105
      %vm4226 = vmand %vm4224, %vm1106
      %v4227 = vsel %vm4225, 1, 0
      %v4228 = vsel %vm4226, 1, 0
      %v4229 = vcvt.s32.f32 %v4227
      %v4230 = vcvt.s32.f32 %v4228
      %v4231 = vmul.f32 %v4215, %v4229
      %v4232 = vmul.f32 %v4216, %v4230
      %v4233 = vmul.f32 %v4211, %v1091
      %v4234 = vmul.f32 %v4212, %v1092
      %v4235 = vadd.f32 %v4209, 1.0
      %v4236 = vadd.f32 %v4210, 1.0
      %vm4237 = vcmp.ge.f32.partialorder %v4235, 0.0
      %vm4238 = vcmp.ge.f32.partialorder %v4236, 0.0
      %vm4239 = vcmp.le.f32.partialorder %v4235, 15.0
      %vm4240 = vcmp.le.f32.partialorder %v4236, 15.0
      %vm4241 = vmand %vm4237, %vm4239
      %vm4242 = vmand %vm4238, %vm4240
      %vm4243 = vmand %vm4241, %vm1101
      %vm4244 = vmand %vm4242, %vm1102
      %vm4245 = vmand %vm4243, %vm1105
      %vm4246 = vmand %vm4244, %vm1106
      %v4247 = vsel %vm4245, 1, 0
      %v4248 = vsel %vm4246, 1, 0
      %v4249 = vcvt.s32.f32 %v4247
      %v4250 = vcvt.s32.f32 %v4248
      %v4251 = vmul.f32 %v4233, %v4249
      %v4252 = vmul.f32 %v4234, %v4250
      %v4253 = vadd.f32 %v4231, %v4251
      %v4254 = vadd.f32 %v4232, %v4252
      %v4255 = vmul.f32 %v4213, %v1087
      %v4256 = vmul.f32 %v4214, %v1088
      %vm4257 = vmand %vm4221, %vm1141
      %vm4258 = vmand %vm4222, %vm1142
      %vm4259 = vmand %vm4257, %vm1145
      %vm4260 = vmand %vm4258, %vm1146
      %v4261 = vsel %vm4259, 1, 0
      %v4262 = vsel %vm4260, 1, 0
      %v4263 = vcvt.s32.f32 %v4261
      %v4264 = vcvt.s32.f32 %v4262
      %v4265 = vmul.f32 %v4255, %v4263
      %v4266 = vmul.f32 %v4256, %v4264
      %v4267 = vadd.f32 %v4253, %v4265
      %v4268 = vadd.f32 %v4254, %v4266
      %v4269 = vmul.f32 %v4211, %v1087
      %v4270 = vmul.f32 %v4212, %v1088
      %vm4271 = vmand %vm4241, %vm1141
      %vm4272 = vmand %vm4242, %vm1142
      %vm4273 = vmand %vm4271, %vm1145
      %vm4274 = vmand %vm4272, %vm1146
      %v4275 = vsel %vm4273, 1, 0
      %v4276 = vsel %vm4274, 1, 0
      %v4277 = vcvt.s32.f32 %v4275
      %v4278 = vcvt.s32.f32 %v4276
      %v4279 = vmul.f32 %v4269, %v4277
      %v4280 = vmul.f32 %v4270, %v4278
      %v4281 = vadd.f32 %v4267, %v4279
      %v4282 = vadd.f32 %v4268, %v4280
      %vm4283 = vcmp.ge.f32.partialorder %v4281, 0.999
      %vm4284 = vcmp.ge.f32.partialorder %v4282, 0.999
      %v4285 = vsel %vm4283, 1, 0
      %v4286 = vsel %vm4284, 1, 0
      %v4287 = vcvt.s32.f32 %v4285
      %v4288 = vcvt.s32.f32 %v4286
      %v4289 = vmax.f32 %v4207, 0.0
      %v4290 = vmax.f32 %v4208, 0.0
      %v4291 = vmin.f32 %v4289, 15.0
      %v4292 = vmin.f32 %v4290, 15.0
      %v4293 = vfloor.f32 %v4291
      %v4294 = vfloor.f32 %v4292
      %v4295 = vsub.f32 %v4291, %v4293
      %v4296 = vsub.f32 %v4292, %v4294
      %v4297 = vcvt.f32.s32.to.zero.pseudo %v4293
      %v4298 = vcvt.f32.s32.to.zero.pseudo %v4294
      %v4299 = vadd.s32 %v4297, 1
      %v4300 = vadd.s32 %v4298, 1
      %vm4301 = vcmp.lt.s32.totalorder %v4299, 15
      %v4302 = vsel %vm4301, %v4299, 15
      %vm4303 = vcmp.lt.s32.totalorder %v4300, 15
      %v4304 = vsel %vm4303, %v4300, 15
      %v4305 = vlaneseq
      %v4306 = vshrl.u32 %v4305, 7
      %v4307 = vsub.s32 0, %v4306
      %v4308 = vrot.slane %v4297, %v4307
      %v4309 = vlaneseq
      %v4310 = vshrl.u32 %v4309, 7
      %v4311 = vsub.s32 0, %v4310
      %v4312 = vrot.slane %v4298, %v4311
      %vm4313 = vcmp.eq.s32.totalorder %v384, %v4308
      %vm4314 = vcmp.eq.s32.totalorder %v384, %v4312
      %vm4315 = vcmp.eq.s32.totalorder %v385, %v4308
      %vm4316 = vcmp.eq.s32.totalorder %v385, %v4312
      %v4317 = vsub.f32 1.0, %v4295
      %v4318 = vsub.f32 1.0, %v4296
      %v4319 = vlaneseq
      %v4320 = vshrl.u32 %v4319, 7
      %v4321 = vsub.s32 0, %v4320
      %v4322 = vrot.slane %v4317, %v4321
      %v4323 = vlaneseq
      %v4324 = vshrl.u32 %v4323, 7
      %v4325 = vsub.s32 0, %v4324
      %v4326 = vrot.slane %v4318, %v4325
      %v4327 = vsel %vm4313, %v4322, 0.0
      %v4328 = vsel %vm4314, %v4326, 0.0
      %v4329 = vsel %vm4315, %v4322, 0.0
      %v4330 = vsel %vm4316, %v4326, 0.0
      %v4331 = vlaneseq
      %v4332 = vshrl.u32 %v4331, 7
      %v4333 = vsub.s32 0, %v4332
      %v4334 = vrot.slane %v4302, %v4333
      %v4335 = vlaneseq
      %v4336 = vshrl.u32 %v4335, 7
      %v4337 = vsub.s32 0, %v4336
      %v4338 = vrot.slane %v4304, %v4337
      %vm4339 = vcmp.eq.s32.totalorder %v384, %v4334
      %vm4340 = vcmp.eq.s32.totalorder %v384, %v4338
      %vm4341 = vcmp.eq.s32.totalorder %v385, %v4334
      %vm4342 = vcmp.eq.s32.totalorder %v385, %v4338
      %v4343 = vlaneseq
      %v4344 = vshrl.u32 %v4343, 7
      %v4345 = vsub.s32 0, %v4344
      %v4346 = vrot.slane %v4295, %v4345
      %v4347 = vlaneseq
      %v4348 = vshrl.u32 %v4347, 7
      %v4349 = vsub.s32 0, %v4348
      %v4350 = vrot.slane %v4296, %v4349
      %v4351 = vsel %vm4339, %v4346, 0.0
      %v4352 = vsel %vm4340, %v4350, 0.0
      %v4353 = vsel %vm4341, %v4346, 0.0
      %v4354 = vsel %vm4342, %v4350, 0.0
      %v4355 = vadd.f32 %v4327, %v4351
      %v4356 = vadd.f32 %v4328, %v4352
      %v4357 = vadd.f32 %v4329, %v4353
      %v4358 = vadd.f32 %v4330, %v4354
      %4359 = vmatprep.subr.mxu0 %v4356
      %4360 = vmatpush1.msra.mxu0 %v4355
      %4361 = vmatprep.subr.mxu0 %v4358
      %4362 = vmatpush1.msra.mxu0 %v4357
      %4363 = vmatprep.subr.mxu0 0.0
      %4364 = vmatpush1.msra.mxu0 0.0
      %4365 = vmatprep.subr.mxu0 0.0
      %4366 = vmatpush1.msra.mxu0 0.0
      %4367 = vmatprep.subr.mxu0 0.0
      %4368 = vmatpush1.msra.mxu0 0.0
      %4369 = vmatprep.subr.mxu0 0.0
      %4370 = vmatpush1.msra.mxu0 0.0
      %4371 = vmatprep.subr.mxu0 0.0
      %4372 = vmatpush1.msra.mxu0 0.0
      %4373 = vmatprep.subr.mxu0 0.0
      %4374 = vmatpush1.msra.mxu0 0.0
      %4375 = vmatprep.subr.mxu0 0.0
      %4376 = vmatpush1.msra.mxu0 0.0
      %4377 = vmatprep.subr.mxu0 0.0
      %4378 = vmatpush1.msra.mxu0 0.0
      %4379 = vmatprep.subr.mxu0 0.0
      %4380 = vmatpush1.msra.mxu0 0.0
      %4381 = vmatprep.subr.mxu0 0.0
      %4382 = vmatpush1.msra.mxu0 0.0
      %4383 = vmatprep.subr.mxu0 0.0
      %4384 = vmatpush1.msra.mxu0 0.0
      %4385 = vmatprep.subr.mxu0 0.0
      %4386 = vmatpush1.msra.mxu0 0.0
      %4387 = vmatprep.subr.mxu0 0.0
      %4388 = vmatpush1.msra.mxu0 0.0
      %4389 = vmatprep.subr.mxu0 0.0
      %4390 = vmatpush1.msra.mxu0 0.0
      %4391 = vmatprep.subr.mxu0 0.0
      %4392 = vmatpush1.msra.mxu0 0.0
      %4393 = vmatprep.subr.mxu0 0.0
      %4394 = vmatpush1.msra.mxu0 0.0
      %4395 = vmatprep.subr.mxu0 0.0
      %4396 = vmatpush1.msra.mxu0 0.0
      %4397 = vmatprep.subr.mxu0 0.0
      %4398 = vmatpush1.msra.mxu0 0.0
      %4399 = vmatprep.subr.mxu0 0.0
      %4400 = vmatpush1.msra.mxu0 0.0
      %4401 = vmatprep.subr.mxu0 0.0
      %4402 = vmatpush1.msra.mxu0 0.0
      %4403 = vmatprep.subr.mxu0 0.0
      %4404 = vmatpush1.msra.mxu0 0.0
      %4405 = vmatprep.subr.mxu0 0.0
      %4406 = vmatpush1.msra.mxu0 0.0
      %4407 = vmatprep.subr.mxu0 0.0
      %4408 = vmatpush1.msra.mxu0 0.0
      %4409 = vmatprep.subr.mxu0 0.0
      %4410 = vmatpush1.msra.mxu0 0.0
      %4411 = vmatprep.subr.mxu0 0.0
      %4412 = vmatpush1.msra.mxu0 0.0
      %4413 = vmatprep.subr.mxu0 0.0
      %4414 = vmatpush1.msra.mxu0 0.0
      %4415 = vmatprep.subr.mxu0 0.0
      %4416 = vmatpush1.msra.mxu0 0.0
      %4417 = vmatprep.subr.mxu0 0.0
      %4418 = vmatpush1.msra.mxu0 0.0
      %4419 = vmatprep.subr.mxu0 0.0
      %4420 = vmatpush1.msra.mxu0 0.0
      %4421 = vmatprep.subr.mxu0 0.0
      %4422 = vmatpush1.msra.mxu0 0.0
      %4423 = vmatprep.mubr.f32.mxu0 0.0
      %4424 = vmatmul.mubr.f32.gmra.mrb[0].mxu0 %v1318
      %v4425 = vpop.f32.mrb[0].mxu0
      %v4426 = vadd.f32 0.0, %v4425
      %v4427 = vpop.f32.mrb[0].mxu0
      %v4428 = vadd.f32 0.0, %v4427
      %4429 = vmatprep.mubr.f32.mxu0 0.0
      %4430 = vmatmul.mubr.f32.gmra.mrb[0].mxu0 %v1321
      %v4431 = vpop.f32.mrb[0].mxu0
      %v4432 = vadd.f32 0.0, %v4431
      %v4433 = vpop.f32.mrb[0].mxu0
      %v4434 = vadd.f32 0.0, %v4433
      %4435 = vmatprep.mubr.f32.mxu0 0.0
      %4436 = vmatmul.mubr.f32.gmra.mrb[0].mxu0 %v1324
      %v4437 = vpop.f32.mrb[0].mxu0
      %v4438 = vadd.f32 0.0, %v4437
      %v4439 = vpop.f32.mrb[0].mxu0
      %v4440 = vadd.f32 0.0, %v4439
      %4441 = vmatprep.mubr.f32.mxu0 0.0
      %4442 = vmatmul.mubr.f32.gmra.mrb[0].mxu0 %v1327
      %v4443 = vpop.f32.mrb[0].mxu0
      %v4444 = vadd.f32 0.0, %v4443
      %v4445 = vpop.f32.mrb[0].mxu0
      %v4446 = vadd.f32 0.0, %v4445
      %4447 = vmatprep.mubr.f32.mxu0 0.0
      %4448 = vmatmul.mubr.f32.gmra.mrb[0].mxu0 %v1330
      %v4449 = vpop.f32.mrb[0].mxu0
      %v4450 = vadd.f32 0.0, %v4449
      %v4451 = vpop.f32.mrb[0].mxu0
      %v4452 = vadd.f32 0.0, %v4451
      %4453 = vmatprep.mubr.f32.mxu0 0.0
      %4454 = vmatmul.mubr.f32.gmra.mrb[0].mxu0 %v1333
      %v4455 = vpop.f32.mrb[0].mxu0
      %v4456 = vadd.f32 0.0, %v4455
      %v4457 = vpop.f32.mrb[0].mxu0
      %v4458 = vadd.f32 0.0, %v4457
      %4459 = vmatprep.mubr.f32.mxu0 0.0
      %4460 = vmatmul.mubr.f32.gmra.mrb[0].mxu0 %v1336
      %v4461 = vpop.f32.mrb[0].mxu0
      %v4462 = vadd.f32 0.0, %v4461
      %v4463 = vpop.f32.mrb[0].mxu0
      %v4464 = vadd.f32 0.0, %v4463
      %4465 = vmatprep.mubr.f32.mxu0 0.0
      %4466 = vmatmul.mubr.f32.gmra.mrb[0].mxu0 %v1339
      %v4467 = vpop.f32.mrb[0].mxu0
      %v4468 = vadd.f32 0.0, %v4467
      %v4469 = vpop.f32.mrb[0].mxu0
      %v4470 = vadd.f32 0.0, %v4469
      %4471 = vmatprep.mubr.f32.mxu0 0.0
      %4472 = vmatmul.mubr.f32.gmra.mrb[0].mxu0 %v1342
      %v4473 = vpop.f32.mrb[0].mxu0
      %v4474 = vadd.f32 0.0, %v4473
      %v4475 = vpop.f32.mrb[0].mxu0
      %v4476 = vadd.f32 0.0, %v4475
      %4477 = vmatprep.mubr.f32.mxu0 0.0
      %4478 = vmatmul.mubr.f32.gmra.mrb[0].mxu0 %v1345
      %v4479 = vpop.f32.mrb[0].mxu0
      %v4480 = vadd.f32 0.0, %v4479
      %v4481 = vpop.f32.mrb[0].mxu0
      %v4482 = vadd.f32 0.0, %v4481
      %4483 = vmatprep.mubr.f32.mxu0 0.0
      %4484 = vmatmul.mubr.f32.gmra.mrb[0].mxu0 %v1348
      %v4485 = vpop.f32.mrb[0].mxu0
      %v4486 = vadd.f32 0.0, %v4485
      %v4487 = vpop.f32.mrb[0].mxu0
      %v4488 = vadd.f32 0.0, %v4487
      %4489 = vmatprep.mubr.f32.mxu0 0.0
      %4490 = vmatmul.mubr.f32.gmra.mrb[0].mxu0 %v1351
      %v4491 = vpop.f32.mrb[0].mxu0
      %v4492 = vadd.f32 0.0, %v4491
      %v4493 = vpop.f32.mrb[0].mxu0
      %v4494 = vadd.f32 0.0, %v4493
      %4495 = vmatprep.mubr.f32.mxu0 0.0
      %4496 = vmatmul.mubr.f32.gmra.mrb[0].mxu0 %v1354
      %v4497 = vpop.f32.mrb[0].mxu0
      %v4498 = vadd.f32 0.0, %v4497
      %v4499 = vpop.f32.mrb[0].mxu0
      %v4500 = vadd.f32 0.0, %v4499
      %4501 = vmatprep.mubr.f32.mxu0 0.0
      %4502 = vmatmul.mubr.f32.gmra.mrb[0].mxu0 %v1357
      %v4503 = vpop.f32.mrb[0].mxu0
      %v4504 = vadd.f32 0.0, %v4503
      %v4505 = vpop.f32.mrb[0].mxu0
      %v4506 = vadd.f32 0.0, %v4505
      %4507 = vmatprep.mubr.f32.mxu0 0.0
      %4508 = vmatmul.mubr.f32.gmra.mrb[0].mxu0 %v1360
      %v4509 = vpop.f32.mrb[0].mxu0
      %v4510 = vadd.f32 0.0, %v4509
      %v4511 = vpop.f32.mrb[0].mxu0
      %v4512 = vadd.f32 0.0, %v4511
      %4513 = vmatprep.mubr.f32.mxu0 0.0
      %4514 = vmatmul.mubr.f32.gmra.mrb[0].mxu0 %v1363
      %v4515 = vpop.f32.mrb[0].mxu0
      %v4516 = vadd.f32 0.0, %v4515
      %v4517 = vpop.f32.mrb[0].mxu0
      %v4518 = vadd.f32 0.0, %v4517
      %4519 = vdwg.mxu0
      %v4520 = vmul.f32 %v4426, %v1313
      %v4521 = vmul.f32 %v4428, %v1314
      %v4522 = vmul.f32 %v4432, %v1315
      %v4523 = vmul.f32 %v4434, %v1316
      %v4524 = vadd.f32 %v4520, %v4522
      %v4525 = vrot.slane %v4524, 4
      %v4526 = vadd.f32 %v4524, %v4525
      %v4527 = vrot.slane %v4526, 2
      %v4528 = vadd.f32 %v4526, %v4527
      %v4529 = vrot.slane %v4528, 1
      %v4530 = vadd.f32 %v4528, %v4529
      %v4531 = vadd.f32 %v4521, %v4523
      %v4532 = vrot.slane %v4531, 4
      %v4533 = vadd.f32 %v4531, %v4532
      %v4534 = vrot.slane %v4533, 2
      %v4535 = vadd.f32 %v4533, %v4534
      %v4536 = vrot.slane %v4535, 1
      %v4537 = vadd.f32 %v4535, %v4536
      %v4538 = vmul.f32 %v4050, %v4530
      %v4539 = vmul.f32 %v4057, %v4537
      %v4540 = vadd.f32 %v4538, 0.0
      %v4541 = vadd.f32 %v4539, 0.0
      %v4542 = vmul.f32 %v4438, %v1313
      %v4543 = vmul.f32 %v4440, %v1314
      %v4544 = vmul.f32 %v4444, %v1315
      %v4545 = vmul.f32 %v4446, %v1316
      %v4546 = vadd.f32 %v4542, %v4544
      %v4547 = vrot.slane %v4546, 4
      %v4548 = vadd.f32 %v4546, %v4547
      %v4549 = vrot.slane %v4548, 2
      %v4550 = vadd.f32 %v4548, %v4549
      %v4551 = vrot.slane %v4550, 1
      %v4552 = vadd.f32 %v4550, %v4551
      %v4553 = vadd.f32 %v4543, %v4545
      %v4554 = vrot.slane %v4553, 4
      %v4555 = vadd.f32 %v4553, %v4554
      %v4556 = vrot.slane %v4555, 2
      %v4557 = vadd.f32 %v4555, %v4556
      %v4558 = vrot.slane %v4557, 1
      %v4559 = vadd.f32 %v4557, %v4558
      %v4560 = vmul.f32 %v4068, %v4552
      %v4561 = vmul.f32 %v4075, %v4559
      %v4562 = vadd.f32 %v4540, %v4560
      %v4563 = vadd.f32 %v4541, %v4561
      %v4564 = vmul.f32 %v4450, %v1313
      %v4565 = vmul.f32 %v4452, %v1314
      %v4566 = vmul.f32 %v4456, %v1315
      %v4567 = vmul.f32 %v4458, %v1316
      %v4568 = vadd.f32 %v4564, %v4566
      %v4569 = vrot.slane %v4568, 4
      %v4570 = vadd.f32 %v4568, %v4569
      %v4571 = vrot.slane %v4570, 2
      %v4572 = vadd.f32 %v4570, %v4571
      %v4573 = vrot.slane %v4572, 1
      %v4574 = vadd.f32 %v4572, %v4573
      %v4575 = vadd.f32 %v4565, %v4567
      %v4576 = vrot.slane %v4575, 4
      %v4577 = vadd.f32 %v4575, %v4576
      %v4578 = vrot.slane %v4577, 2
      %v4579 = vadd.f32 %v4577, %v4578
      %v4580 = vrot.slane %v4579, 1
      %v4581 = vadd.f32 %v4579, %v4580
      %v4582 = vmul.f32 %v4086, %v4574
      %v4583 = vmul.f32 %v4093, %v4581
      %v4584 = vadd.f32 %v4562, %v4582
      %v4585 = vadd.f32 %v4563, %v4583
      %v4586 = vmul.f32 %v4462, %v1313
      %v4587 = vmul.f32 %v4464, %v1314
      %v4588 = vmul.f32 %v4468, %v1315
      %v4589 = vmul.f32 %v4470, %v1316
      %v4590 = vadd.f32 %v4586, %v4588
      %v4591 = vrot.slane %v4590, 4
      %v4592 = vadd.f32 %v4590, %v4591
      %v4593 = vrot.slane %v4592, 2
      %v4594 = vadd.f32 %v4592, %v4593
      %v4595 = vrot.slane %v4594, 1
      %v4596 = vadd.f32 %v4594, %v4595
      %v4597 = vadd.f32 %v4587, %v4589
      %v4598 = vrot.slane %v4597, 4
      %v4599 = vadd.f32 %v4597, %v4598
      %v4600 = vrot.slane %v4599, 2
      %v4601 = vadd.f32 %v4599, %v4600
      %v4602 = vrot.slane %v4601, 1
      %v4603 = vadd.f32 %v4601, %v4602
      %v4604 = vmul.f32 %v4104, %v4596
      %v4605 = vmul.f32 %v4111, %v4603
      %v4606 = vadd.f32 %v4584, %v4604
      %v4607 = vadd.f32 %v4585, %v4605
      %v4608 = vmul.f32 %v4474, %v1313
      %v4609 = vmul.f32 %v4476, %v1314
      %v4610 = vmul.f32 %v4480, %v1315
      %v4611 = vmul.f32 %v4482, %v1316
      %v4612 = vadd.f32 %v4608, %v4610
      %v4613 = vrot.slane %v4612, 4
      %v4614 = vadd.f32 %v4612, %v4613
      %v4615 = vrot.slane %v4614, 2
      %v4616 = vadd.f32 %v4614, %v4615
      %v4617 = vrot.slane %v4616, 1
      %v4618 = vadd.f32 %v4616, %v4617
      %v4619 = vadd.f32 %v4609, %v4611
      %v4620 = vrot.slane %v4619, 4
      %v4621 = vadd.f32 %v4619, %v4620
      %v4622 = vrot.slane %v4621, 2
      %v4623 = vadd.f32 %v4621, %v4622
      %v4624 = vrot.slane %v4623, 1
      %v4625 = vadd.f32 %v4623, %v4624
      %v4626 = vmul.f32 %v4122, %v4618
      %v4627 = vmul.f32 %v4129, %v4625
      %v4628 = vadd.f32 %v4606, %v4626
      %v4629 = vadd.f32 %v4607, %v4627
      %v4630 = vmul.f32 %v4486, %v1313
      %v4631 = vmul.f32 %v4488, %v1314
      %v4632 = vmul.f32 %v4492, %v1315
      %v4633 = vmul.f32 %v4494, %v1316
      %v4634 = vadd.f32 %v4630, %v4632
      %v4635 = vrot.slane %v4634, 4
      %v4636 = vadd.f32 %v4634, %v4635
      %v4637 = vrot.slane %v4636, 2
      %v4638 = vadd.f32 %v4636, %v4637
      %v4639 = vrot.slane %v4638, 1
      %v4640 = vadd.f32 %v4638, %v4639
      %v4641 = vadd.f32 %v4631, %v4633
      %v4642 = vrot.slane %v4641, 4
      %v4643 = vadd.f32 %v4641, %v4642
      %v4644 = vrot.slane %v4643, 2
      %v4645 = vadd.f32 %v4643, %v4644
      %v4646 = vrot.slane %v4645, 1
      %v4647 = vadd.f32 %v4645, %v4646
      %v4648 = vmul.f32 %v4140, %v4640
      %v4649 = vmul.f32 %v4147, %v4647
      %v4650 = vadd.f32 %v4628, %v4648
      %v4651 = vadd.f32 %v4629, %v4649
      %v4652 = vmul.f32 %v4498, %v1313
      %v4653 = vmul.f32 %v4500, %v1314
      %v4654 = vmul.f32 %v4504, %v1315
      %v4655 = vmul.f32 %v4506, %v1316
      %v4656 = vadd.f32 %v4652, %v4654
      %v4657 = vrot.slane %v4656, 4
      %v4658 = vadd.f32 %v4656, %v4657
      %v4659 = vrot.slane %v4658, 2
      %v4660 = vadd.f32 %v4658, %v4659
      %v4661 = vrot.slane %v4660, 1
      %v4662 = vadd.f32 %v4660, %v4661
      %v4663 = vadd.f32 %v4653, %v4655
      %v4664 = vrot.slane %v4663, 4
      %v4665 = vadd.f32 %v4663, %v4664
      %v4666 = vrot.slane %v4665, 2
      %v4667 = vadd.f32 %v4665, %v4666
      %v4668 = vrot.slane %v4667, 1
      %v4669 = vadd.f32 %v4667, %v4668
      %v4670 = vmul.f32 %v4158, %v4662
      %v4671 = vmul.f32 %v4165, %v4669
      %v4672 = vadd.f32 %v4650, %v4670
      %v4673 = vadd.f32 %v4651, %v4671
      %v4674 = vmul.f32 %v4510, %v1313
      %v4675 = vmul.f32 %v4512, %v1314
      %v4676 = vmul.f32 %v4516, %v1315
      %v4677 = vmul.f32 %v4518, %v1316
      %v4678 = vadd.f32 %v4674, %v4676
      %v4679 = vrot.slane %v4678, 4
      %v4680 = vadd.f32 %v4678, %v4679
      %v4681 = vrot.slane %v4680, 2
      %v4682 = vadd.f32 %v4680, %v4681
      %v4683 = vrot.slane %v4682, 1
      %v4684 = vadd.f32 %v4682, %v4683
      %v4685 = vadd.f32 %v4675, %v4677
      %v4686 = vrot.slane %v4685, 4
      %v4687 = vadd.f32 %v4685, %v4686
      %v4688 = vrot.slane %v4687, 2
      %v4689 = vadd.f32 %v4687, %v4688
      %v4690 = vrot.slane %v4689, 1
      %v4691 = vadd.f32 %v4689, %v4690
      %v4692 = vmul.f32 %v4176, %v4684
      %v4693 = vmul.f32 %v4183, %v4691
      %v4694 = vadd.f32 %v4672, %v4692
      %v4695 = vadd.f32 %v4673, %v4693
      %v4696 = vmul.f32 %v3807, %v4287
      %v4697 = vmul.f32 %v3808, %v4288
      %v4698 = vmul.f32 %v4694, %v4696
      %v4699 = vmul.f32 %v4695, %v4697
      %v4700 = vadd.f32 %v367, 2.0
      %v4701 = vmul.f32 %v4700, -1.0
      %v4703 = vlaneseq
      %v4704 = vshrl.u32 %v4703, 7
      %v4705 = vsub.s32 0, %v4704
      %v4706 = vrot.slane %v4701, %v4705
      %v4707 = vlaneseq
      %v4708 = vshrl.u32 %v4707, 7
      %v4709 = vsub.s32 2, %v4708
      %v4710 = vrot.slane %v4701, %v4709
      %v4713 = vadd.f32 %v381, %v4706
      %v4714 = vadd.f32 %v382, %v4710
      %v4715 = vmul.f32 %v4713, 0.13333334
      %v4716 = vmul.f32 %v4714, 0.13333334
      %v4717 = vsub.f32 %v4715, 1.0
      %v4718 = vsub.f32 %v4716, 1.0
      %v4719 = vadd.f32 %v4717, 1.0
      %v4720 = vadd.f32 %v4718, 1.0
      %v4721 = vmul.f32 %v4719, 16.0
      %v4722 = vmul.f32 %v4720, 16.0
      %v4723 = vsub.f32 %v4721, 1.0
      %v4724 = vsub.f32 %v4722, 1.0
      %v4725 = vmul.f32 %v4723, 0.5
      %v4726 = vmul.f32 %v4724, 0.5
      %v4727 = vfloor.f32 %v4725
      %v4728 = vfloor.f32 %v4726
      %v4729 = vsub.f32 %v4725, %v4727
      %v4730 = vsub.f32 %v4726, %v4728
      %v4731 = vsub.f32 1.0, %v4729
      %v4732 = vsub.f32 1.0, %v4730
      %v4733 = vmul.f32 %v4731, %v451
      %v4734 = vmul.f32 %v4732, %v452
      %vm4735 = vcmp.ge.f32.partialorder %v4727, 0.0
      %vm4736 = vcmp.ge.f32.partialorder %v4728, 0.0
      %vm4737 = vcmp.le.f32.partialorder %v4727, 15.0
      %vm4738 = vcmp.le.f32.partialorder %v4728, 15.0
      %vm4739 = vmand %vm4735, %vm4737
      %vm4740 = vmand %vm4736, %vm4738
      %vm4741 = vmand %vm4739, %vm461
      %vm4742 = vmand %vm4740, %vm462
      %vm4743 = vmand %vm4741, %vm465
      %vm4744 = vmand %vm4742, %vm466
      %v4745 = vsel %vm4743, 1, 0
      %v4746 = vsel %vm4744, 1, 0
      %v4747 = vcvt.s32.f32 %v4745
      %v4748 = vcvt.s32.f32 %v4746
      %v4749 = vmul.f32 %v4733, %v4747
      %v4750 = vmul.f32 %v4734, %v4748
      %v4751 = vmul.f32 %v4729, %v451
      %v4752 = vmul.f32 %v4730, %v452
      %v4753 = vadd.f32 %v4727, 1.0
      %v4754 = vadd.f32 %v4728, 1.0
      %vm4755 = vcmp.ge.f32.partialorder %v4753, 0.0
      %vm4756 = vcmp.ge.f32.partialorder %v4754, 0.0
      %vm4757 = vcmp.le.f32.partialorder %v4753, 15.0
      %vm4758 = vcmp.le.f32.partialorder %v4754, 15.0
      %vm4759 = vmand %vm4755, %vm4757
      %vm4760 = vmand %vm4756, %vm4758
      %vm4761 = vmand %vm4759, %vm461
      %vm4762 = vmand %vm4760, %vm462
      %vm4763 = vmand %vm4761, %vm465
      %vm4764 = vmand %vm4762, %vm466
      %v4765 = vsel %vm4763, 1, 0
      %v4766 = vsel %vm4764, 1, 0
      %v4767 = vcvt.s32.f32 %v4765
      %v4768 = vcvt.s32.f32 %v4766
      %v4769 = vmul.f32 %v4751, %v4767
      %v4770 = vmul.f32 %v4752, %v4768
      %v4771 = vadd.f32 %v4749, %v4769
      %v4772 = vadd.f32 %v4750, %v4770
      %v4773 = vmul.f32 %v4731, %v447
      %v4774 = vmul.f32 %v4732, %v448
      %vm4775 = vmand %vm4739, %vm501
      %vm4776 = vmand %vm4740, %vm502
      %vm4777 = vmand %vm4775, %vm505
      %vm4778 = vmand %vm4776, %vm506
      %v4779 = vsel %vm4777, 1, 0
      %v4780 = vsel %vm4778, 1, 0
      %v4781 = vcvt.s32.f32 %v4779
      %v4782 = vcvt.s32.f32 %v4780
      %v4783 = vmul.f32 %v4773, %v4781
      %v4784 = vmul.f32 %v4774, %v4782
      %v4785 = vadd.f32 %v4771, %v4783
      %v4786 = vadd.f32 %v4772, %v4784
      %v4787 = vmul.f32 %v4729, %v447
      %v4788 = vmul.f32 %v4730, %v448
      %vm4789 = vmand %vm4759, %vm501
      %vm4790 = vmand %vm4760, %vm502
      %vm4791 = vmand %vm4789, %vm505
      %vm4792 = vmand %vm4790, %vm506
      %v4793 = vsel %vm4791, 1, 0
      %v4794 = vsel %vm4792, 1, 0
      %v4795 = vcvt.s32.f32 %v4793
      %v4796 = vcvt.s32.f32 %v4794
      %v4797 = vmul.f32 %v4787, %v4795
      %v4798 = vmul.f32 %v4788, %v4796
      %v4799 = vadd.f32 %v4785, %v4797
      %v4800 = vadd.f32 %v4786, %v4798
      %vm4801 = vcmp.ge.f32.partialorder %v4799, 0.999
      %vm4802 = vcmp.ge.f32.partialorder %v4800, 0.999
      %v4803 = vsel %vm4801, 1, 0
      %v4804 = vsel %vm4802, 1, 0
      %v4805 = vcvt.s32.f32 %v4803
      %v4806 = vcvt.s32.f32 %v4804
      %v4807 = vmax.f32 %v4725, 0.0
      %v4808 = vmax.f32 %v4726, 0.0
      %v4809 = vmin.f32 %v4807, 15.0
      %v4810 = vmin.f32 %v4808, 15.0
      %v4811 = vfloor.f32 %v4809
      %v4812 = vfloor.f32 %v4810
      %v4813 = vsub.f32 %v4809, %v4811
      %v4814 = vsub.f32 %v4810, %v4812
      %v4815 = vcvt.f32.s32.to.zero.pseudo %v4811
      %v4816 = vcvt.f32.s32.to.zero.pseudo %v4812
      %v4817 = vadd.s32 %v4815, 1
      %v4818 = vadd.s32 %v4816, 1
      %vm4819 = vcmp.lt.s32.totalorder %v4817, 15
      %v4820 = vsel %vm4819, %v4817, 15
      %vm4821 = vcmp.lt.s32.totalorder %v4818, 15
      %v4822 = vsel %vm4821, %v4818, 15
      %v4823 = vlaneseq
      %v4824 = vshrl.u32 %v4823, 7
      %v4825 = vsub.s32 0, %v4824
      %v4826 = vrot.slane %v4815, %v4825
      %v4827 = vlaneseq
      %v4828 = vshrl.u32 %v4827, 7
      %v4829 = vsub.s32 0, %v4828
      %v4830 = vrot.slane %v4816, %v4829
      %vm4831 = vcmp.eq.s32.totalorder %v384, %v4826
      %vm4832 = vcmp.eq.s32.totalorder %v384, %v4830
      %vm4833 = vcmp.eq.s32.totalorder %v385, %v4826
      %vm4834 = vcmp.eq.s32.totalorder %v385, %v4830
      %v4835 = vsub.f32 1.0, %v4813
      %v4836 = vsub.f32 1.0, %v4814
      %v4837 = vlaneseq
      %v4838 = vshrl.u32 %v4837, 7
      %v4839 = vsub.s32 0, %v4838
      %v4840 = vrot.slane %v4835, %v4839
      %v4841 = vlaneseq
      %v4842 = vshrl.u32 %v4841, 7
      %v4843 = vsub.s32 0, %v4842
      %v4844 = vrot.slane %v4836, %v4843
      %v4845 = vsel %vm4831, %v4840, 0.0
      %v4846 = vsel %vm4832, %v4844, 0.0
      %v4847 = vsel %vm4833, %v4840, 0.0
      %v4848 = vsel %vm4834, %v4844, 0.0
      %v4849 = vlaneseq
      %v4850 = vshrl.u32 %v4849, 7
      %v4851 = vsub.s32 0, %v4850
      %v4852 = vrot.slane %v4820, %v4851
      %v4853 = vlaneseq
      %v4854 = vshrl.u32 %v4853, 7
      %v4855 = vsub.s32 0, %v4854
      %v4856 = vrot.slane %v4822, %v4855
      %vm4857 = vcmp.eq.s32.totalorder %v384, %v4852
      %vm4858 = vcmp.eq.s32.totalorder %v384, %v4856
      %vm4859 = vcmp.eq.s32.totalorder %v385, %v4852
      %vm4860 = vcmp.eq.s32.totalorder %v385, %v4856
      %v4861 = vlaneseq
      %v4862 = vshrl.u32 %v4861, 7
      %v4863 = vsub.s32 0, %v4862
      %v4864 = vrot.slane %v4813, %v4863
      %v4865 = vlaneseq
      %v4866 = vshrl.u32 %v4865, 7
      %v4867 = vsub.s32 0, %v4866
      %v4868 = vrot.slane %v4814, %v4867
      %v4869 = vsel %vm4857, %v4864, 0.0
      %v4870 = vsel %vm4858, %v4868, 0.0
      %v4871 = vsel %vm4859, %v4864, 0.0
      %v4872 = vsel %vm4860, %v4868, 0.0
      %v4873 = vadd.f32 %v4845, %v4869
      %v4874 = vadd.f32 %v4846, %v4870
      %v4875 = vadd.f32 %v4847, %v4871
      %v4876 = vadd.f32 %v4848, %v4872
      %4877 = vmatprep.subr.mxu0 %v4874
      %4878 = vmatpush1.msra.mxu0 %v4873
      %4879 = vmatprep.subr.mxu0 %v4876
      %4880 = vmatpush1.msra.mxu0 %v4875
      %4881 = vmatprep.subr.mxu0 0.0
      %4882 = vmatpush1.msra.mxu0 0.0
      %4883 = vmatprep.subr.mxu0 0.0
      %4884 = vmatpush1.msra.mxu0 0.0
      %4885 = vmatprep.subr.mxu0 0.0
      %4886 = vmatpush1.msra.mxu0 0.0
      %4887 = vmatprep.subr.mxu0 0.0
      %4888 = vmatpush1.msra.mxu0 0.0
      %4889 = vmatprep.subr.mxu0 0.0
      %4890 = vmatpush1.msra.mxu0 0.0
      %4891 = vmatprep.subr.mxu0 0.0
      %4892 = vmatpush1.msra.mxu0 0.0
      %4893 = vmatprep.subr.mxu0 0.0
      %4894 = vmatpush1.msra.mxu0 0.0
      %4895 = vmatprep.subr.mxu0 0.0
      %4896 = vmatpush1.msra.mxu0 0.0
      %4897 = vmatprep.subr.mxu0 0.0
      %4898 = vmatpush1.msra.mxu0 0.0
      %4899 = vmatprep.subr.mxu0 0.0
      %4900 = vmatpush1.msra.mxu0 0.0
      %4901 = vmatprep.subr.mxu0 0.0
      %4902 = vmatpush1.msra.mxu0 0.0
      %4903 = vmatprep.subr.mxu0 0.0
      %4904 = vmatpush1.msra.mxu0 0.0
      %4905 = vmatprep.subr.mxu0 0.0
      %4906 = vmatpush1.msra.mxu0 0.0
      %4907 = vmatprep.subr.mxu0 0.0
      %4908 = vmatpush1.msra.mxu0 0.0
      %4909 = vmatprep.subr.mxu0 0.0
      %4910 = vmatpush1.msra.mxu0 0.0
      %4911 = vmatprep.subr.mxu0 0.0
      %4912 = vmatpush1.msra.mxu0 0.0
      %4913 = vmatprep.subr.mxu0 0.0
      %4914 = vmatpush1.msra.mxu0 0.0
      %4915 = vmatprep.subr.mxu0 0.0
      %4916 = vmatpush1.msra.mxu0 0.0
      %4917 = vmatprep.subr.mxu0 0.0
      %4918 = vmatpush1.msra.mxu0 0.0
      %4919 = vmatprep.subr.mxu0 0.0
      %4920 = vmatpush1.msra.mxu0 0.0
      %4921 = vmatprep.subr.mxu0 0.0
      %4922 = vmatpush1.msra.mxu0 0.0
      %4923 = vmatprep.subr.mxu0 0.0
      %4924 = vmatpush1.msra.mxu0 0.0
      %4925 = vmatprep.subr.mxu0 0.0
      %4926 = vmatpush1.msra.mxu0 0.0
      %4927 = vmatprep.subr.mxu0 0.0
      %4928 = vmatpush1.msra.mxu0 0.0
      %4929 = vmatprep.subr.mxu0 0.0
      %4930 = vmatpush1.msra.mxu0 0.0
      %4931 = vmatprep.subr.mxu0 0.0
      %4932 = vmatpush1.msra.mxu0 0.0
      %4933 = vmatprep.subr.mxu0 0.0
      %4934 = vmatpush1.msra.mxu0 0.0
      %4935 = vmatprep.subr.mxu0 0.0
      %4936 = vmatpush1.msra.mxu0 0.0
      %4937 = vmatprep.subr.mxu0 0.0
      %4938 = vmatpush1.msra.mxu0 0.0
      %4939 = vmatprep.subr.mxu0 0.0
      %4940 = vmatpush1.msra.mxu0 0.0
      %4941 = vmatprep.mubr.f32.mxu0 0.0
      %4942 = vmatmul.mubr.f32.gmra.mrb[0].mxu0 %v679
      %v4943 = vpop.f32.mrb[0].mxu0
      %v4944 = vadd.f32 0.0, %v4943
      %v4945 = vpop.f32.mrb[0].mxu0
      %v4946 = vadd.f32 0.0, %v4945
      %4947 = vmatprep.mubr.f32.mxu0 0.0
      %4948 = vmatmul.mubr.f32.gmra.mrb[0].mxu0 %v682
      %v4949 = vpop.f32.mrb[0].mxu0
      %v4950 = vadd.f32 0.0, %v4949
      %v4951 = vpop.f32.mrb[0].mxu0
      %v4952 = vadd.f32 0.0, %v4951
      %4953 = vmatprep.mubr.f32.mxu0 0.0
      %4954 = vmatmul.mubr.f32.gmra.mrb[0].mxu0 %v685
      %v4955 = vpop.f32.mrb[0].mxu0
      %v4956 = vadd.f32 0.0, %v4955
      %v4957 = vpop.f32.mrb[0].mxu0
      %v4958 = vadd.f32 0.0, %v4957
      %4959 = vmatprep.mubr.f32.mxu0 0.0
      %4960 = vmatmul.mubr.f32.gmra.mrb[0].mxu0 %v688
      %v4961 = vpop.f32.mrb[0].mxu0
      %v4962 = vadd.f32 0.0, %v4961
      %v4963 = vpop.f32.mrb[0].mxu0
      %v4964 = vadd.f32 0.0, %v4963
      %4965 = vmatprep.mubr.f32.mxu0 0.0
      %4966 = vmatmul.mubr.f32.gmra.mrb[0].mxu0 %v691
      %v4967 = vpop.f32.mrb[0].mxu0
      %v4968 = vadd.f32 0.0, %v4967
      %v4969 = vpop.f32.mrb[0].mxu0
      %v4970 = vadd.f32 0.0, %v4969
      %4971 = vmatprep.mubr.f32.mxu0 0.0
      %4972 = vmatmul.mubr.f32.gmra.mrb[0].mxu0 %v694
      %v4973 = vpop.f32.mrb[0].mxu0
      %v4974 = vadd.f32 0.0, %v4973
      %v4975 = vpop.f32.mrb[0].mxu0
      %v4976 = vadd.f32 0.0, %v4975
      %4977 = vmatprep.mubr.f32.mxu0 0.0
      %4978 = vmatmul.mubr.f32.gmra.mrb[0].mxu0 %v697
      %v4979 = vpop.f32.mrb[0].mxu0
      %v4980 = vadd.f32 0.0, %v4979
      %v4981 = vpop.f32.mrb[0].mxu0
      %v4982 = vadd.f32 0.0, %v4981
      %4983 = vmatprep.mubr.f32.mxu0 0.0
      %4984 = vmatmul.mubr.f32.gmra.mrb[0].mxu0 %v700
      %v4985 = vpop.f32.mrb[0].mxu0
      %v4986 = vadd.f32 0.0, %v4985
      %v4987 = vpop.f32.mrb[0].mxu0
      %v4988 = vadd.f32 0.0, %v4987
      %4989 = vmatprep.mubr.f32.mxu0 0.0
      %4990 = vmatmul.mubr.f32.gmra.mrb[0].mxu0 %v703
      %v4991 = vpop.f32.mrb[0].mxu0
      %v4992 = vadd.f32 0.0, %v4991
      %v4993 = vpop.f32.mrb[0].mxu0
      %v4994 = vadd.f32 0.0, %v4993
      %4995 = vmatprep.mubr.f32.mxu0 0.0
      %4996 = vmatmul.mubr.f32.gmra.mrb[0].mxu0 %v706
      %v4997 = vpop.f32.mrb[0].mxu0
      %v4998 = vadd.f32 0.0, %v4997
      %v4999 = vpop.f32.mrb[0].mxu0
      %v5000 = vadd.f32 0.0, %v4999
      %5001 = vmatprep.mubr.f32.mxu0 0.0
      %5002 = vmatmul.mubr.f32.gmra.mrb[0].mxu0 %v709
      %v5003 = vpop.f32.mrb[0].mxu0
      %v5004 = vadd.f32 0.0, %v5003
      %v5005 = vpop.f32.mrb[0].mxu0
      %v5006 = vadd.f32 0.0, %v5005
      %5007 = vmatprep.mubr.f32.mxu0 0.0
      %5008 = vmatmul.mubr.f32.gmra.mrb[0].mxu0 %v712
      %v5009 = vpop.f32.mrb[0].mxu0
      %v5010 = vadd.f32 0.0, %v5009
      %v5011 = vpop.f32.mrb[0].mxu0
      %v5012 = vadd.f32 0.0, %v5011
      %5013 = vmatprep.mubr.f32.mxu0 0.0
      %5014 = vmatmul.mubr.f32.gmra.mrb[0].mxu0 %v715
      %v5015 = vpop.f32.mrb[0].mxu0
      %v5016 = vadd.f32 0.0, %v5015
      %v5017 = vpop.f32.mrb[0].mxu0
      %v5018 = vadd.f32 0.0, %v5017
      %5019 = vmatprep.mubr.f32.mxu0 0.0
      %5020 = vmatmul.mubr.f32.gmra.mrb[0].mxu0 %v718
      %v5021 = vpop.f32.mrb[0].mxu0
      %v5022 = vadd.f32 0.0, %v5021
      %v5023 = vpop.f32.mrb[0].mxu0
      %v5024 = vadd.f32 0.0, %v5023
      %5025 = vmatprep.mubr.f32.mxu0 0.0
      %5026 = vmatmul.mubr.f32.gmra.mrb[0].mxu0 %v721
      %v5027 = vpop.f32.mrb[0].mxu0
      %v5028 = vadd.f32 0.0, %v5027
      %v5029 = vpop.f32.mrb[0].mxu0
      %v5030 = vadd.f32 0.0, %v5029
      %5031 = vmatprep.mubr.f32.mxu0 0.0
      %5032 = vmatmul.mubr.f32.gmra.mrb[0].mxu0 %v724
      %v5033 = vpop.f32.mrb[0].mxu0
      %v5034 = vadd.f32 0.0, %v5033
      %v5035 = vpop.f32.mrb[0].mxu0
      %v5036 = vadd.f32 0.0, %v5035
      %5037 = vdwg.mxu0
      %v5038 = vmul.f32 %v4944, %v673
      %v5039 = vmul.f32 %v4946, %v674
      %v5040 = vmul.f32 %v4950, %v675
      %v5041 = vmul.f32 %v4952, %v676
      %v5042 = vadd.f32 %v5038, %v5040
      %v5043 = vrot.slane %v5042, 4
      %v5044 = vadd.f32 %v5042, %v5043
      %v5045 = vrot.slane %v5044, 2
      %v5046 = vadd.f32 %v5044, %v5045
      %v5047 = vrot.slane %v5046, 1
      %v5048 = vadd.f32 %v5046, %v5047
      %v5049 = vadd.f32 %v5039, %v5041
      %v5050 = vrot.slane %v5049, 4
      %v5051 = vadd.f32 %v5049, %v5050
      %v5052 = vrot.slane %v5051, 2
      %v5053 = vadd.f32 %v5051, %v5052
      %v5054 = vrot.slane %v5053, 1
      %v5055 = vadd.f32 %v5053, %v5054
      %v5056 = vmul.f32 %v4956, %v673
      %v5057 = vmul.f32 %v4958, %v674
      %v5058 = vmul.f32 %v4962, %v675
      %v5059 = vmul.f32 %v4964, %v676
      %v5060 = vadd.f32 %v5056, %v5058
      %v5061 = vrot.slane %v5060, 4
      %v5062 = vadd.f32 %v5060, %v5061
      %v5063 = vrot.slane %v5062, 2
      %v5064 = vadd.f32 %v5062, %v5063
      %v5065 = vrot.slane %v5064, 1
      %v5066 = vadd.f32 %v5064, %v5065
      %v5067 = vadd.f32 %v5057, %v5059
      %v5068 = vrot.slane %v5067, 4
      %v5069 = vadd.f32 %v5067, %v5068
      %v5070 = vrot.slane %v5069, 2
      %v5071 = vadd.f32 %v5069, %v5070
      %v5072 = vrot.slane %v5071, 1
      %v5073 = vadd.f32 %v5071, %v5072
      %v5074 = vmul.f32 %v4968, %v673
      %v5075 = vmul.f32 %v4970, %v674
      %v5076 = vmul.f32 %v4974, %v675
      %v5077 = vmul.f32 %v4976, %v676
      %v5078 = vadd.f32 %v5074, %v5076
      %v5079 = vrot.slane %v5078, 4
      %v5080 = vadd.f32 %v5078, %v5079
      %v5081 = vrot.slane %v5080, 2
      %v5082 = vadd.f32 %v5080, %v5081
      %v5083 = vrot.slane %v5082, 1
      %v5084 = vadd.f32 %v5082, %v5083
      %v5085 = vadd.f32 %v5075, %v5077
      %v5086 = vrot.slane %v5085, 4
      %v5087 = vadd.f32 %v5085, %v5086
      %v5088 = vrot.slane %v5087, 2
      %v5089 = vadd.f32 %v5087, %v5088
      %v5090 = vrot.slane %v5089, 1
      %v5091 = vadd.f32 %v5089, %v5090
      %v5092 = vmul.f32 %v4980, %v673
      %v5093 = vmul.f32 %v4982, %v674
      %v5094 = vmul.f32 %v4986, %v675
      %v5095 = vmul.f32 %v4988, %v676
      %v5096 = vadd.f32 %v5092, %v5094
      %v5097 = vrot.slane %v5096, 4
      %v5098 = vadd.f32 %v5096, %v5097
      %v5099 = vrot.slane %v5098, 2
      %v5100 = vadd.f32 %v5098, %v5099
      %v5101 = vrot.slane %v5100, 1
      %v5102 = vadd.f32 %v5100, %v5101
      %v5103 = vadd.f32 %v5093, %v5095
      %v5104 = vrot.slane %v5103, 4
      %v5105 = vadd.f32 %v5103, %v5104
      %v5106 = vrot.slane %v5105, 2
      %v5107 = vadd.f32 %v5105, %v5106
      %v5108 = vrot.slane %v5107, 1
      %v5109 = vadd.f32 %v5107, %v5108
      %v5110 = vmul.f32 %v4992, %v673
      %v5111 = vmul.f32 %v4994, %v674
      %v5112 = vmul.f32 %v4998, %v675
      %v5113 = vmul.f32 %v5000, %v676
      %v5114 = vadd.f32 %v5110, %v5112
      %v5115 = vrot.slane %v5114, 4
      %v5116 = vadd.f32 %v5114, %v5115
      %v5117 = vrot.slane %v5116, 2
      %v5118 = vadd.f32 %v5116, %v5117
      %v5119 = vrot.slane %v5118, 1
      %v5120 = vadd.f32 %v5118, %v5119
      %v5121 = vadd.f32 %v5111, %v5113
      %v5122 = vrot.slane %v5121, 4
      %v5123 = vadd.f32 %v5121, %v5122
      %v5124 = vrot.slane %v5123, 2
      %v5125 = vadd.f32 %v5123, %v5124
      %v5126 = vrot.slane %v5125, 1
      %v5127 = vadd.f32 %v5125, %v5126
      %v5128 = vmul.f32 %v5004, %v673
      %v5129 = vmul.f32 %v5006, %v674
      %v5130 = vmul.f32 %v5010, %v675
      %v5131 = vmul.f32 %v5012, %v676
      %v5132 = vadd.f32 %v5128, %v5130
      %v5133 = vrot.slane %v5132, 4
      %v5134 = vadd.f32 %v5132, %v5133
      %v5135 = vrot.slane %v5134, 2
      %v5136 = vadd.f32 %v5134, %v5135
      %v5137 = vrot.slane %v5136, 1
      %v5138 = vadd.f32 %v5136, %v5137
      %v5139 = vadd.f32 %v5129, %v5131
      %v5140 = vrot.slane %v5139, 4
      %v5141 = vadd.f32 %v5139, %v5140
      %v5142 = vrot.slane %v5141, 2
      %v5143 = vadd.f32 %v5141, %v5142
      %v5144 = vrot.slane %v5143, 1
      %v5145 = vadd.f32 %v5143, %v5144
      %v5146 = vmul.f32 %v5016, %v673
      %v5147 = vmul.f32 %v5018, %v674
      %v5148 = vmul.f32 %v5022, %v675
      %v5149 = vmul.f32 %v5024, %v676
      %v5150 = vadd.f32 %v5146, %v5148
      %v5151 = vrot.slane %v5150, 4
      %v5152 = vadd.f32 %v5150, %v5151
      %v5153 = vrot.slane %v5152, 2
      %v5154 = vadd.f32 %v5152, %v5153
      %v5155 = vrot.slane %v5154, 1
      %v5156 = vadd.f32 %v5154, %v5155
      %v5157 = vadd.f32 %v5147, %v5149
      %v5158 = vrot.slane %v5157, 4
      %v5159 = vadd.f32 %v5157, %v5158
      %v5160 = vrot.slane %v5159, 2
      %v5161 = vadd.f32 %v5159, %v5160
      %v5162 = vrot.slane %v5161, 1
      %v5163 = vadd.f32 %v5161, %v5162
      %v5164 = vmul.f32 %v5028, %v673
      %v5165 = vmul.f32 %v5030, %v674
      %v5166 = vmul.f32 %v5034, %v675
      %v5167 = vmul.f32 %v5036, %v676
      %v5168 = vadd.f32 %v5164, %v5166
      %v5169 = vrot.slane %v5168, 4
      %v5170 = vadd.f32 %v5168, %v5169
      %v5171 = vrot.slane %v5170, 2
      %v5172 = vadd.f32 %v5170, %v5171
      %v5173 = vrot.slane %v5172, 1
      %v5174 = vadd.f32 %v5172, %v5173
      %v5175 = vadd.f32 %v5165, %v5167
      %v5176 = vrot.slane %v5175, 4
      %v5177 = vadd.f32 %v5175, %v5176
      %v5178 = vrot.slane %v5177, 2
      %v5179 = vadd.f32 %v5177, %v5178
      %v5180 = vrot.slane %v5179, 1
      %v5181 = vadd.f32 %v5179, %v5180
      %v5183 = vlaneseq
      %v5184 = vshrl.u32 %v5183, 7
      %v5185 = vsub.s32 0, %v5184
      %v5186 = vrot.slane %v4700, %v5185
      %v5187 = vlaneseq
      %v5188 = vshrl.u32 %v5187, 7
      %v5189 = vsub.s32 2, %v5188
      %v5190 = vrot.slane %v4700, %v5189
      %v5193 = vadd.f32 %v381, %v5186
      %v5194 = vadd.f32 %v382, %v5190
      %v5195 = vmul.f32 %v5193, 0.13333334
      %v5196 = vmul.f32 %v5194, 0.13333334
      %v5197 = vsub.f32 %v5195, 1.0
      %v5198 = vsub.f32 %v5196, 1.0
      %v5199 = vadd.f32 %v5197, 1.0
      %v5200 = vadd.f32 %v5198, 1.0
      %v5201 = vmul.f32 %v5199, 16.0
      %v5202 = vmul.f32 %v5200, 16.0
      %v5203 = vsub.f32 %v5201, 1.0
      %v5204 = vsub.f32 %v5202, 1.0
      %v5205 = vmul.f32 %v5203, 0.5
      %v5206 = vmul.f32 %v5204, 0.5
      %v5207 = vfloor.f32 %v5205
      %v5208 = vfloor.f32 %v5206
      %v5209 = vsub.f32 %v5205, %v5207
      %v5210 = vsub.f32 %v5206, %v5208
      %v5211 = vsub.f32 1.0, %v5209
      %v5212 = vsub.f32 1.0, %v5210
      %v5213 = vmul.f32 %v5211, %v1091
      %v5214 = vmul.f32 %v5212, %v1092
      %vm5215 = vcmp.ge.f32.partialorder %v5207, 0.0
      %vm5216 = vcmp.ge.f32.partialorder %v5208, 0.0
      %vm5217 = vcmp.le.f32.partialorder %v5207, 15.0
      %vm5218 = vcmp.le.f32.partialorder %v5208, 15.0
      %vm5219 = vmand %vm5215, %vm5217
      %vm5220 = vmand %vm5216, %vm5218
      %vm5221 = vmand %vm5219, %vm1101
      %vm5222 = vmand %vm5220, %vm1102
      %vm5223 = vmand %vm5221, %vm1105
      %vm5224 = vmand %vm5222, %vm1106
      %v5225 = vsel %vm5223, 1, 0
      %v5226 = vsel %vm5224, 1, 0
      %v5227 = vcvt.s32.f32 %v5225
      %v5228 = vcvt.s32.f32 %v5226
      %v5229 = vmul.f32 %v5213, %v5227
      %v5230 = vmul.f32 %v5214, %v5228
      %v5231 = vmul.f32 %v5209, %v1091
      %v5232 = vmul.f32 %v5210, %v1092
      %v5233 = vadd.f32 %v5207, 1.0
      %v5234 = vadd.f32 %v5208, 1.0
      %vm5235 = vcmp.ge.f32.partialorder %v5233, 0.0
      %vm5236 = vcmp.ge.f32.partialorder %v5234, 0.0
      %vm5237 = vcmp.le.f32.partialorder %v5233, 15.0
      %vm5238 = vcmp.le.f32.partialorder %v5234, 15.0
      %vm5239 = vmand %vm5235, %vm5237
      %vm5240 = vmand %vm5236, %vm5238
      %vm5241 = vmand %vm5239, %vm1101
      %vm5242 = vmand %vm5240, %vm1102
      %vm5243 = vmand %vm5241, %vm1105
      %vm5244 = vmand %vm5242, %vm1106
      %v5245 = vsel %vm5243, 1, 0
      %v5246 = vsel %vm5244, 1, 0
      %v5247 = vcvt.s32.f32 %v5245
      %v5248 = vcvt.s32.f32 %v5246
      %v5249 = vmul.f32 %v5231, %v5247
      %v5250 = vmul.f32 %v5232, %v5248
      %v5251 = vadd.f32 %v5229, %v5249
      %v5252 = vadd.f32 %v5230, %v5250
      %v5253 = vmul.f32 %v5211, %v1087
      %v5254 = vmul.f32 %v5212, %v1088
      %vm5255 = vmand %vm5219, %vm1141
      %vm5256 = vmand %vm5220, %vm1142
      %vm5257 = vmand %vm5255, %vm1145
      %vm5258 = vmand %vm5256, %vm1146
      %v5259 = vsel %vm5257, 1, 0
      %v5260 = vsel %vm5258, 1, 0
      %v5261 = vcvt.s32.f32 %v5259
      %v5262 = vcvt.s32.f32 %v5260
      %v5263 = vmul.f32 %v5253, %v5261
      %v5264 = vmul.f32 %v5254, %v5262
      %v5265 = vadd.f32 %v5251, %v5263
      %v5266 = vadd.f32 %v5252, %v5264
      %v5267 = vmul.f32 %v5209, %v1087
      %v5268 = vmul.f32 %v5210, %v1088
      %vm5269 = vmand %vm5239, %vm1141
      %vm5270 = vmand %vm5240, %vm1142
      %vm5271 = vmand %vm5269, %vm1145
      %vm5272 = vmand %vm5270, %vm1146
      %v5273 = vsel %vm5271, 1, 0
      %v5274 = vsel %vm5272, 1, 0
      %v5275 = vcvt.s32.f32 %v5273
      %v5276 = vcvt.s32.f32 %v5274
      %v5277 = vmul.f32 %v5267, %v5275
      %v5278 = vmul.f32 %v5268, %v5276
      %v5279 = vadd.f32 %v5265, %v5277
      %v5280 = vadd.f32 %v5266, %v5278
      %vm5281 = vcmp.ge.f32.partialorder %v5279, 0.999
      %vm5282 = vcmp.ge.f32.partialorder %v5280, 0.999
      %v5283 = vsel %vm5281, 1, 0
      %v5284 = vsel %vm5282, 1, 0
      %v5285 = vcvt.s32.f32 %v5283
      %v5286 = vcvt.s32.f32 %v5284
      %v5287 = vmax.f32 %v5205, 0.0
      %v5288 = vmax.f32 %v5206, 0.0
      %v5289 = vmin.f32 %v5287, 15.0
      %v5290 = vmin.f32 %v5288, 15.0
      %v5291 = vfloor.f32 %v5289
      %v5292 = vfloor.f32 %v5290
      %v5293 = vsub.f32 %v5289, %v5291
      %v5294 = vsub.f32 %v5290, %v5292
      %v5295 = vcvt.f32.s32.to.zero.pseudo %v5291
      %v5296 = vcvt.f32.s32.to.zero.pseudo %v5292
      %v5297 = vadd.s32 %v5295, 1
      %v5298 = vadd.s32 %v5296, 1
      %vm5299 = vcmp.lt.s32.totalorder %v5297, 15
      %v5300 = vsel %vm5299, %v5297, 15
      %vm5301 = vcmp.lt.s32.totalorder %v5298, 15
      %v5302 = vsel %vm5301, %v5298, 15
      %v5303 = vlaneseq
      %v5304 = vshrl.u32 %v5303, 7
      %v5305 = vsub.s32 0, %v5304
      %v5306 = vrot.slane %v5295, %v5305
      %v5307 = vlaneseq
      %v5308 = vshrl.u32 %v5307, 7
      %v5309 = vsub.s32 0, %v5308
      %v5310 = vrot.slane %v5296, %v5309
      %vm5311 = vcmp.eq.s32.totalorder %v384, %v5306
      %vm5312 = vcmp.eq.s32.totalorder %v384, %v5310
      %vm5313 = vcmp.eq.s32.totalorder %v385, %v5306
      %vm5314 = vcmp.eq.s32.totalorder %v385, %v5310
      %v5315 = vsub.f32 1.0, %v5293
      %v5316 = vsub.f32 1.0, %v5294
      %v5317 = vlaneseq
      %v5318 = vshrl.u32 %v5317, 7
      %v5319 = vsub.s32 0, %v5318
      %v5320 = vrot.slane %v5315, %v5319
      %v5321 = vlaneseq
      %v5322 = vshrl.u32 %v5321, 7
      %v5323 = vsub.s32 0, %v5322
      %v5324 = vrot.slane %v5316, %v5323
      %v5325 = vsel %vm5311, %v5320, 0.0
      %v5326 = vsel %vm5312, %v5324, 0.0
      %v5327 = vsel %vm5313, %v5320, 0.0
      %v5328 = vsel %vm5314, %v5324, 0.0
      %v5329 = vlaneseq
      %v5330 = vshrl.u32 %v5329, 7
      %v5331 = vsub.s32 0, %v5330
      %v5332 = vrot.slane %v5300, %v5331
      %v5333 = vlaneseq
      %v5334 = vshrl.u32 %v5333, 7
      %v5335 = vsub.s32 0, %v5334
      %v5336 = vrot.slane %v5302, %v5335
      %vm5337 = vcmp.eq.s32.totalorder %v384, %v5332
      %vm5338 = vcmp.eq.s32.totalorder %v384, %v5336
      %vm5339 = vcmp.eq.s32.totalorder %v385, %v5332
      %vm5340 = vcmp.eq.s32.totalorder %v385, %v5336
      %v5341 = vlaneseq
      %v5342 = vshrl.u32 %v5341, 7
      %v5343 = vsub.s32 0, %v5342
      %v5344 = vrot.slane %v5293, %v5343
      %v5345 = vlaneseq
      %v5346 = vshrl.u32 %v5345, 7
      %v5347 = vsub.s32 0, %v5346
      %v5348 = vrot.slane %v5294, %v5347
      %v5349 = vsel %vm5337, %v5344, 0.0
      %v5350 = vsel %vm5338, %v5348, 0.0
      %v5351 = vsel %vm5339, %v5344, 0.0
      %v5352 = vsel %vm5340, %v5348, 0.0
      %v5353 = vadd.f32 %v5325, %v5349
      %v5354 = vadd.f32 %v5326, %v5350
      %v5355 = vadd.f32 %v5327, %v5351
      %v5356 = vadd.f32 %v5328, %v5352
      %5357 = vmatprep.subr.mxu0 %v5354
      %5358 = vmatpush1.msra.mxu0 %v5353
      %5359 = vmatprep.subr.mxu0 %v5356
      %5360 = vmatpush1.msra.mxu0 %v5355
      %5361 = vmatprep.subr.mxu0 0.0
      %5362 = vmatpush1.msra.mxu0 0.0
      %5363 = vmatprep.subr.mxu0 0.0
      %5364 = vmatpush1.msra.mxu0 0.0
      %5365 = vmatprep.subr.mxu0 0.0
      %5366 = vmatpush1.msra.mxu0 0.0
      %5367 = vmatprep.subr.mxu0 0.0
      %5368 = vmatpush1.msra.mxu0 0.0
      %5369 = vmatprep.subr.mxu0 0.0
      %5370 = vmatpush1.msra.mxu0 0.0
      %5371 = vmatprep.subr.mxu0 0.0
      %5372 = vmatpush1.msra.mxu0 0.0
      %5373 = vmatprep.subr.mxu0 0.0
      %5374 = vmatpush1.msra.mxu0 0.0
      %5375 = vmatprep.subr.mxu0 0.0
      %5376 = vmatpush1.msra.mxu0 0.0
      %5377 = vmatprep.subr.mxu0 0.0
      %5378 = vmatpush1.msra.mxu0 0.0
      %5379 = vmatprep.subr.mxu0 0.0
      %5380 = vmatpush1.msra.mxu0 0.0
      %5381 = vmatprep.subr.mxu0 0.0
      %5382 = vmatpush1.msra.mxu0 0.0
      %5383 = vmatprep.subr.mxu0 0.0
      %5384 = vmatpush1.msra.mxu0 0.0
      %5385 = vmatprep.subr.mxu0 0.0
      %5386 = vmatpush1.msra.mxu0 0.0
      %5387 = vmatprep.subr.mxu0 0.0
      %5388 = vmatpush1.msra.mxu0 0.0
      %5389 = vmatprep.subr.mxu0 0.0
      %5390 = vmatpush1.msra.mxu0 0.0
      %5391 = vmatprep.subr.mxu0 0.0
      %5392 = vmatpush1.msra.mxu0 0.0
      %5393 = vmatprep.subr.mxu0 0.0
      %5394 = vmatpush1.msra.mxu0 0.0
      %5395 = vmatprep.subr.mxu0 0.0
      %5396 = vmatpush1.msra.mxu0 0.0
      %5397 = vmatprep.subr.mxu0 0.0
      %5398 = vmatpush1.msra.mxu0 0.0
      %5399 = vmatprep.subr.mxu0 0.0
      %5400 = vmatpush1.msra.mxu0 0.0
      %5401 = vmatprep.subr.mxu0 0.0
      %5402 = vmatpush1.msra.mxu0 0.0
      %5403 = vmatprep.subr.mxu0 0.0
      %5404 = vmatpush1.msra.mxu0 0.0
      %5405 = vmatprep.subr.mxu0 0.0
      %5406 = vmatpush1.msra.mxu0 0.0
      %5407 = vmatprep.subr.mxu0 0.0
      %5408 = vmatpush1.msra.mxu0 0.0
      %5409 = vmatprep.subr.mxu0 0.0
      %5410 = vmatpush1.msra.mxu0 0.0
      %5411 = vmatprep.subr.mxu0 0.0
      %5412 = vmatpush1.msra.mxu0 0.0
      %5413 = vmatprep.subr.mxu0 0.0
      %5414 = vmatpush1.msra.mxu0 0.0
      %5415 = vmatprep.subr.mxu0 0.0
      %5416 = vmatpush1.msra.mxu0 0.0
      %5417 = vmatprep.subr.mxu0 0.0
      %5418 = vmatpush1.msra.mxu0 0.0
      %5419 = vmatprep.subr.mxu0 0.0
      %5420 = vmatpush1.msra.mxu0 0.0
      %5421 = vmatprep.mubr.f32.mxu0 0.0
      %5422 = vmatmul.mubr.f32.gmra.mrb[0].mxu0 %v1318
      %v5423 = vpop.f32.mrb[0].mxu0
      %v5424 = vadd.f32 0.0, %v5423
      %v5425 = vpop.f32.mrb[0].mxu0
      %v5426 = vadd.f32 0.0, %v5425
      %5427 = vmatprep.mubr.f32.mxu0 0.0
      %5428 = vmatmul.mubr.f32.gmra.mrb[0].mxu0 %v1321
      %v5429 = vpop.f32.mrb[0].mxu0
      %v5430 = vadd.f32 0.0, %v5429
      %v5431 = vpop.f32.mrb[0].mxu0
      %v5432 = vadd.f32 0.0, %v5431
      %5433 = vmatprep.mubr.f32.mxu0 0.0
      %5434 = vmatmul.mubr.f32.gmra.mrb[0].mxu0 %v1324
      %v5435 = vpop.f32.mrb[0].mxu0
      %v5436 = vadd.f32 0.0, %v5435
      %v5437 = vpop.f32.mrb[0].mxu0
      %v5438 = vadd.f32 0.0, %v5437
      %5439 = vmatprep.mubr.f32.mxu0 0.0
      %5440 = vmatmul.mubr.f32.gmra.mrb[0].mxu0 %v1327
      %v5441 = vpop.f32.mrb[0].mxu0
      %v5442 = vadd.f32 0.0, %v5441
      %v5443 = vpop.f32.mrb[0].mxu0
      %v5444 = vadd.f32 0.0, %v5443
      %5445 = vmatprep.mubr.f32.mxu0 0.0
      %5446 = vmatmul.mubr.f32.gmra.mrb[0].mxu0 %v1330
      %v5447 = vpop.f32.mrb[0].mxu0
      %v5448 = vadd.f32 0.0, %v5447
      %v5449 = vpop.f32.mrb[0].mxu0
      %v5450 = vadd.f32 0.0, %v5449
      %5451 = vmatprep.mubr.f32.mxu0 0.0
      %5452 = vmatmul.mubr.f32.gmra.mrb[0].mxu0 %v1333
      %v5453 = vpop.f32.mrb[0].mxu0
      %v5454 = vadd.f32 0.0, %v5453
      %v5455 = vpop.f32.mrb[0].mxu0
      %v5456 = vadd.f32 0.0, %v5455
      %5457 = vmatprep.mubr.f32.mxu0 0.0
      %5458 = vmatmul.mubr.f32.gmra.mrb[0].mxu0 %v1336
      %v5459 = vpop.f32.mrb[0].mxu0
      %v5460 = vadd.f32 0.0, %v5459
      %v5461 = vpop.f32.mrb[0].mxu0
      %v5462 = vadd.f32 0.0, %v5461
      %5463 = vmatprep.mubr.f32.mxu0 0.0
      %5464 = vmatmul.mubr.f32.gmra.mrb[0].mxu0 %v1339
      %v5465 = vpop.f32.mrb[0].mxu0
      %v5466 = vadd.f32 0.0, %v5465
      %v5467 = vpop.f32.mrb[0].mxu0
      %v5468 = vadd.f32 0.0, %v5467
      %5469 = vmatprep.mubr.f32.mxu0 0.0
      %5470 = vmatmul.mubr.f32.gmra.mrb[0].mxu0 %v1342
      %v5471 = vpop.f32.mrb[0].mxu0
      %v5472 = vadd.f32 0.0, %v5471
      %v5473 = vpop.f32.mrb[0].mxu0
      %v5474 = vadd.f32 0.0, %v5473
      %5475 = vmatprep.mubr.f32.mxu0 0.0
      %5476 = vmatmul.mubr.f32.gmra.mrb[0].mxu0 %v1345
      %v5477 = vpop.f32.mrb[0].mxu0
      %v5478 = vadd.f32 0.0, %v5477
      %v5479 = vpop.f32.mrb[0].mxu0
      %v5480 = vadd.f32 0.0, %v5479
      %5481 = vmatprep.mubr.f32.mxu0 0.0
      %5482 = vmatmul.mubr.f32.gmra.mrb[0].mxu0 %v1348
      %v5483 = vpop.f32.mrb[0].mxu0
      %v5484 = vadd.f32 0.0, %v5483
      %v5485 = vpop.f32.mrb[0].mxu0
      %v5486 = vadd.f32 0.0, %v5485
      %5487 = vmatprep.mubr.f32.mxu0 0.0
      %5488 = vmatmul.mubr.f32.gmra.mrb[0].mxu0 %v1351
      %v5489 = vpop.f32.mrb[0].mxu0
      %v5490 = vadd.f32 0.0, %v5489
      %v5491 = vpop.f32.mrb[0].mxu0
      %v5492 = vadd.f32 0.0, %v5491
      %5493 = vmatprep.mubr.f32.mxu0 0.0
      %5494 = vmatmul.mubr.f32.gmra.mrb[0].mxu0 %v1354
      %v5495 = vpop.f32.mrb[0].mxu0
      %v5496 = vadd.f32 0.0, %v5495
      %v5497 = vpop.f32.mrb[0].mxu0
      %v5498 = vadd.f32 0.0, %v5497
      %5499 = vmatprep.mubr.f32.mxu0 0.0
      %5500 = vmatmul.mubr.f32.gmra.mrb[0].mxu0 %v1357
      %v5501 = vpop.f32.mrb[0].mxu0
      %v5502 = vadd.f32 0.0, %v5501
      %v5503 = vpop.f32.mrb[0].mxu0
      %v5504 = vadd.f32 0.0, %v5503
      %5505 = vmatprep.mubr.f32.mxu0 0.0
      %5506 = vmatmul.mubr.f32.gmra.mrb[0].mxu0 %v1360
      %v5507 = vpop.f32.mrb[0].mxu0
      %v5508 = vadd.f32 0.0, %v5507
      %v5509 = vpop.f32.mrb[0].mxu0
      %v5510 = vadd.f32 0.0, %v5509
      %5511 = vmatprep.mubr.f32.mxu0 0.0
      %5512 = vmatmul.mubr.f32.gmra.mrb[0].mxu0 %v1363
      %v5513 = vpop.f32.mrb[0].mxu0
      %v5514 = vadd.f32 0.0, %v5513
      %v5515 = vpop.f32.mrb[0].mxu0
      %v5516 = vadd.f32 0.0, %v5515
      %5517 = vdwg.mxu0
      %v5518 = vmul.f32 %v5424, %v1313
      %v5519 = vmul.f32 %v5426, %v1314
      %v5520 = vmul.f32 %v5430, %v1315
      %v5521 = vmul.f32 %v5432, %v1316
      %v5522 = vadd.f32 %v5518, %v5520
      %v5523 = vrot.slane %v5522, 4
      %v5524 = vadd.f32 %v5522, %v5523
      %v5525 = vrot.slane %v5524, 2
      %v5526 = vadd.f32 %v5524, %v5525
      %v5527 = vrot.slane %v5526, 1
      %v5528 = vadd.f32 %v5526, %v5527
      %v5529 = vadd.f32 %v5519, %v5521
      %v5530 = vrot.slane %v5529, 4
      %v5531 = vadd.f32 %v5529, %v5530
      %v5532 = vrot.slane %v5531, 2
      %v5533 = vadd.f32 %v5531, %v5532
      %v5534 = vrot.slane %v5533, 1
      %v5535 = vadd.f32 %v5533, %v5534
      %v5536 = vmul.f32 %v5048, %v5528
      %v5537 = vmul.f32 %v5055, %v5535
      %v5538 = vadd.f32 %v5536, 0.0
      %v5539 = vadd.f32 %v5537, 0.0
      %v5540 = vmul.f32 %v5436, %v1313
      %v5541 = vmul.f32 %v5438, %v1314
      %v5542 = vmul.f32 %v5442, %v1315
      %v5543 = vmul.f32 %v5444, %v1316
      %v5544 = vadd.f32 %v5540, %v5542
      %v5545 = vrot.slane %v5544, 4
      %v5546 = vadd.f32 %v5544, %v5545
      %v5547 = vrot.slane %v5546, 2
      %v5548 = vadd.f32 %v5546, %v5547
      %v5549 = vrot.slane %v5548, 1
      %v5550 = vadd.f32 %v5548, %v5549
      %v5551 = vadd.f32 %v5541, %v5543
      %v5552 = vrot.slane %v5551, 4
      %v5553 = vadd.f32 %v5551, %v5552
      %v5554 = vrot.slane %v5553, 2
      %v5555 = vadd.f32 %v5553, %v5554
      %v5556 = vrot.slane %v5555, 1
      %v5557 = vadd.f32 %v5555, %v5556
      %v5558 = vmul.f32 %v5066, %v5550
      %v5559 = vmul.f32 %v5073, %v5557
      %v5560 = vadd.f32 %v5538, %v5558
      %v5561 = vadd.f32 %v5539, %v5559
      %v5562 = vmul.f32 %v5448, %v1313
      %v5563 = vmul.f32 %v5450, %v1314
      %v5564 = vmul.f32 %v5454, %v1315
      %v5565 = vmul.f32 %v5456, %v1316
      %v5566 = vadd.f32 %v5562, %v5564
      %v5567 = vrot.slane %v5566, 4
      %v5568 = vadd.f32 %v5566, %v5567
      %v5569 = vrot.slane %v5568, 2
      %v5570 = vadd.f32 %v5568, %v5569
      %v5571 = vrot.slane %v5570, 1
      %v5572 = vadd.f32 %v5570, %v5571
      %v5573 = vadd.f32 %v5563, %v5565
      %v5574 = vrot.slane %v5573, 4
      %v5575 = vadd.f32 %v5573, %v5574
      %v5576 = vrot.slane %v5575, 2
      %v5577 = vadd.f32 %v5575, %v5576
      %v5578 = vrot.slane %v5577, 1
      %v5579 = vadd.f32 %v5577, %v5578
      %v5580 = vmul.f32 %v5084, %v5572
      %v5581 = vmul.f32 %v5091, %v5579
      %v5582 = vadd.f32 %v5560, %v5580
      %v5583 = vadd.f32 %v5561, %v5581
      %v5584 = vmul.f32 %v5460, %v1313
      %v5585 = vmul.f32 %v5462, %v1314
      %v5586 = vmul.f32 %v5466, %v1315
      %v5587 = vmul.f32 %v5468, %v1316
      %v5588 = vadd.f32 %v5584, %v5586
      %v5589 = vrot.slane %v5588, 4
      %v5590 = vadd.f32 %v5588, %v5589
      %v5591 = vrot.slane %v5590, 2
      %v5592 = vadd.f32 %v5590, %v5591
      %v5593 = vrot.slane %v5592, 1
      %v5594 = vadd.f32 %v5592, %v5593
      %v5595 = vadd.f32 %v5585, %v5587
      %v5596 = vrot.slane %v5595, 4
      %v5597 = vadd.f32 %v5595, %v5596
      %v5598 = vrot.slane %v5597, 2
      %v5599 = vadd.f32 %v5597, %v5598
      %v5600 = vrot.slane %v5599, 1
      %v5601 = vadd.f32 %v5599, %v5600
      %v5602 = vmul.f32 %v5102, %v5594
      %v5603 = vmul.f32 %v5109, %v5601
      %v5604 = vadd.f32 %v5582, %v5602
      %v5605 = vadd.f32 %v5583, %v5603
      %v5606 = vmul.f32 %v5472, %v1313
      %v5607 = vmul.f32 %v5474, %v1314
      %v5608 = vmul.f32 %v5478, %v1315
      %v5609 = vmul.f32 %v5480, %v1316
      %v5610 = vadd.f32 %v5606, %v5608
      %v5611 = vrot.slane %v5610, 4
      %v5612 = vadd.f32 %v5610, %v5611
      %v5613 = vrot.slane %v5612, 2
      %v5614 = vadd.f32 %v5612, %v5613
      %v5615 = vrot.slane %v5614, 1
      %v5616 = vadd.f32 %v5614, %v5615
      %v5617 = vadd.f32 %v5607, %v5609
      %v5618 = vrot.slane %v5617, 4
      %v5619 = vadd.f32 %v5617, %v5618
      %v5620 = vrot.slane %v5619, 2
      %v5621 = vadd.f32 %v5619, %v5620
      %v5622 = vrot.slane %v5621, 1
      %v5623 = vadd.f32 %v5621, %v5622
      %v5624 = vmul.f32 %v5120, %v5616
      %v5625 = vmul.f32 %v5127, %v5623
      %v5626 = vadd.f32 %v5604, %v5624
      %v5627 = vadd.f32 %v5605, %v5625
      %v5628 = vmul.f32 %v5484, %v1313
      %v5629 = vmul.f32 %v5486, %v1314
      %v5630 = vmul.f32 %v5490, %v1315
      %v5631 = vmul.f32 %v5492, %v1316
      %v5632 = vadd.f32 %v5628, %v5630
      %v5633 = vrot.slane %v5632, 4
      %v5634 = vadd.f32 %v5632, %v5633
      %v5635 = vrot.slane %v5634, 2
      %v5636 = vadd.f32 %v5634, %v5635
      %v5637 = vrot.slane %v5636, 1
      %v5638 = vadd.f32 %v5636, %v5637
      %v5639 = vadd.f32 %v5629, %v5631
      %v5640 = vrot.slane %v5639, 4
      %v5641 = vadd.f32 %v5639, %v5640
      %v5642 = vrot.slane %v5641, 2
      %v5643 = vadd.f32 %v5641, %v5642
      %v5644 = vrot.slane %v5643, 1
      %v5645 = vadd.f32 %v5643, %v5644
      %v5646 = vmul.f32 %v5138, %v5638
      %v5647 = vmul.f32 %v5145, %v5645
      %v5648 = vadd.f32 %v5626, %v5646
      %v5649 = vadd.f32 %v5627, %v5647
      %v5650 = vmul.f32 %v5496, %v1313
      %v5651 = vmul.f32 %v5498, %v1314
      %v5652 = vmul.f32 %v5502, %v1315
      %v5653 = vmul.f32 %v5504, %v1316
      %v5654 = vadd.f32 %v5650, %v5652
      %v5655 = vrot.slane %v5654, 4
      %v5656 = vadd.f32 %v5654, %v5655
      %v5657 = vrot.slane %v5656, 2
      %v5658 = vadd.f32 %v5656, %v5657
      %v5659 = vrot.slane %v5658, 1
      %v5660 = vadd.f32 %v5658, %v5659
      %v5661 = vadd.f32 %v5651, %v5653
      %v5662 = vrot.slane %v5661, 4
      %v5663 = vadd.f32 %v5661, %v5662
      %v5664 = vrot.slane %v5663, 2
      %v5665 = vadd.f32 %v5663, %v5664
      %v5666 = vrot.slane %v5665, 1
      %v5667 = vadd.f32 %v5665, %v5666
      %v5668 = vmul.f32 %v5156, %v5660
      %v5669 = vmul.f32 %v5163, %v5667
      %v5670 = vadd.f32 %v5648, %v5668
      %v5671 = vadd.f32 %v5649, %v5669
      %v5672 = vmul.f32 %v5508, %v1313
      %v5673 = vmul.f32 %v5510, %v1314
      %v5674 = vmul.f32 %v5514, %v1315
      %v5675 = vmul.f32 %v5516, %v1316
      %v5676 = vadd.f32 %v5672, %v5674
      %v5677 = vrot.slane %v5676, 4
      %v5678 = vadd.f32 %v5676, %v5677
      %v5679 = vrot.slane %v5678, 2
      %v5680 = vadd.f32 %v5678, %v5679
      %v5681 = vrot.slane %v5680, 1
      %v5682 = vadd.f32 %v5680, %v5681
      %v5683 = vadd.f32 %v5673, %v5675
      %v5684 = vrot.slane %v5683, 4
      %v5685 = vadd.f32 %v5683, %v5684
      %v5686 = vrot.slane %v5685, 2
      %v5687 = vadd.f32 %v5685, %v5686
      %v5688 = vrot.slane %v5687, 1
      %v5689 = vadd.f32 %v5687, %v5688
      %v5690 = vmul.f32 %v5174, %v5682
      %v5691 = vmul.f32 %v5181, %v5689
      %v5692 = vadd.f32 %v5670, %v5690
      %v5693 = vadd.f32 %v5671, %v5691
      %v5694 = vmul.f32 %v4805, %v5285
      %v5695 = vmul.f32 %v4806, %v5286
      %v5696 = vmul.f32 %v5692, %v5694
      %v5697 = vmul.f32 %v5693, %v5695
      %v5700 = vrot.slane %v2702, 7
      %v5701 = vrot.slane %v2703, 7
      %v5706 = vrot.slane %v3700, 6
      %v5707 = vrot.slane %v3701, 6
      %v5712 = vrot.slane %v4698, 5
      %v5713 = vrot.slane %v4699, 5
      %v5718 = vrot.slane %v5696, 4
      %v5719 = vrot.slane %v5697, 4
      %vm5722 = vcmask 1040384
      %v5723 = vsel %vm5722, %v1704, %v5700
      %v5724 = vsel %vm5722, %v1705, %v5701
      %vm5725 = vcmask 1041408
      %v5726 = vsel %vm5725, %v5723, %v5706
      %v5727 = vsel %vm5725, %v5724, %v5707
      %vm5728 = vcmask 1042432
      %v5729 = vsel %vm5728, %v5726, %v5712
      %v5730 = vsel %vm5728, %v5727, %v5713
      %vm5731 = vcmask 1043456
      %v5732 = vsel %vm5731, %v5729, %v5718
      %v5733 = vsel %vm5731, %v5730, %v5719
      %5734 = vst [vmem:[%s232] sm:$0x1f] %v5732
      %5735 = vst [vmem:[%s232 + $0x8] sm:$0x1f] %v5733
      %p5736 = scmp.lt.s32.totalorder %s18, 1
      %s5737 = scalar_select %p5736, %s18, 1
      %p5738 = scmp.lt.s32.totalorder %s19, 4
      %s5739 = scalar_select %p5738, %s19, 4
      %s5740 = smul.addr %s5739, 2
      %s5741 = smul.addr %s5737, 10
      %s5742 = sadd.s32 %s5740, %s5741
      %s5743 = smul.addr %s5742, 8
      %s5744 = scalar_lea.vmem %s3, %s5743
      // Predicated region
      $region33: #{tpu_custom_call.1} parent=31 // pred_check
        %p5745 = pneg %p124
      $region34: #{tpu_custom_call.1} parent=31 // pred_check_branch
        %5747 = sbr.rel (%p5745) target = $region36
      $region35: #{tpu_custom_call.1} parent=31 // pred_region
        _
      $region36: #{tpu_custom_call.1} parent=31 // pred_fallthru
        _
    $region32: #{tpu_custom_call.1} parent=5 // pred_fallthru
      _
    %p5748 = scmp.le.s32.totalorder 2, %s9
    // Predicated region
    $region37: #{tpu_custom_call.1} parent=5 // pred_check
      %p5749 = pneg %p5748
    $region38: #{tpu_custom_call.1} parent=5 // pred_check_branch
      %5751 = sbr.rel (%p5749) target = $region40
    $region39: #{tpu_custom_call.1} parent=5 // pred_region
      %s5752 = ssub.s32 %s9, 2
      // Predicated region
      $region41: #{tpu_custom_call.1} parent=39 // pred_check
        %p5753 = pneg %p130
      $region42: #{tpu_custom_call.1} parent=39 // pred_check_branch
        %5755 = sbr.rel (%p5753) target = $region44
      $region43: #{tpu_custom_call.1} parent=39 // pred_region
        %p5756 = scmp.lt.s32.totalorder %s20, 1
        %s5757 = scalar_select %p5756, %s20, 1
        %p5758 = scmp.lt.s32.totalorder %s21, 4
        %s5759 = scalar_select %p5758, %s21, 4
        %s5760 = smul.addr %s5759, 2
        %s5761 = smul.addr %s5757, 10
        %s5762 = sadd.s32 %s5760, %s5761
        %s5763 = smul.addr %s5762, 8
        %s5764 = scalar_lea.vmem %s3, %s5763
      $region44: #{tpu_custom_call.1} parent=39 // pred_fallthru
        _
    $region40: #{tpu_custom_call.1} parent=5 // pred_fallthru
      _
  $region6: #{tpu_custom_call.1} parent=0 // loop_footer
    %s13 = sadd.s32 1, %s9
  $region7: #{tpu_custom_call.1} parent=0 // loop_footer_branch
    %8 = sbr.rel target = $region3
  $region8: #{tpu_custom_call.1} parent=0 // loop_exit
    _

</llo_original>
